<compile_context>
chip_gen: v6e
topology: v6e:2x2x1
jax: 0.10.0
libtpu: 0.0.40
codegen_flags: <defaults>
</compile_context>

<pallas_src>
import functools

import jax
import jax.numpy as jnp
from jax.experimental import pallas as pl
from jax.experimental.pallas import tpu as pltpu


# ----------------------------- configuration -------------------------------
CFG = dict(layers=3, ch=8, res_num=1, C_Q=4, K=2,
           z_min=-1.0, z_max=1.0, z_level=8, softness=1.0)
CFG['z_bin'] = (CFG['z_max'] - CFG['z_min']) / (CFG['z_level'] - 1)


# ------------------------------ Pallas kernels ------------------------------
def _make_conv_kernel(has_res, relu, quantize):
    """Fused conv kernel: single MXU matmul (taps folded into K) + epilogue.

    w_ref: (Cout, 9*Cin) bf16    x_ref: (9*Cin, Ntile) bf16
    b_ref: (Cout, 1)     f32     [r_ref: (Cout, Ntile) f32]
    o_ref: (Cout, Ntile) f32  (lane-dense last dim = spatial positions)
    """
    z_min, z_max, level = float(CFG['z_min']), float(CFG['z_max']), int(CFG['z_level'])
    step = (z_max - z_min) / (level - 1)
    inv_step = 1.0 / step

    def _epilogue(acc, bias, res):
        acc = acc + bias                            # lane-broadcast bias (f32)
        if relu:
            acc = jnp.maximum(acc, 0.0)
        if res is not None:
            acc = acc + res
        if quantize:
            # closed-form nearest-level quantization; ceil(t-0.5) picks the
            # lower level at exact midpoints (matches torch.argmin first-index)
            idx = jnp.clip(jnp.ceil((acc - z_min) * inv_step - 0.5),
                           0.0, float(level - 1))
            acc = idx * step + z_min
        return acc

    if has_res:
        def kernel(w_ref, x_ref, b_ref, r_ref, o_ref):
            acc = jnp.dot(w_ref[...], x_ref[...],
                          preferred_element_type=jnp.float32)
            o_ref[...] = _epilogue(acc, b_ref[...], r_ref[...])
    else:
        def kernel(w_ref, x_ref, b_ref, o_ref):
            acc = jnp.dot(w_ref[...], x_ref[...],
                          preferred_element_type=jnp.float32)
            o_ref[...] = _epilogue(acc, b_ref[...], None)
    return kernel


def lm_nll_kernel(x_ref, mu_ref, ls_ref, wl_ref, o_ref, *, bin_size, x_min, x_max):
    """Per-element NLL under a K-component discretized logistic mixture.
    x_ref: (1, Ntile); mu/ls/wl refs: (K, Ntile); o_ref: (1, Ntile). f32."""
    x = x_ref[...]                                   # (1, nt) broadcasts over K
    mu = mu_ref[...]
    log_s = jnp.maximum(ls_ref[...], -7.0)
    wl = wl_ref[...]
    # mixture softmax in numerator/denominator form; divide -> EUP reciprocal
    wmax = jnp.max(wl, axis=0, keepdims=True)
    we = jnp.exp(wl - wmax)
    inv_s = jnp.exp(-log_s)
    half = bin_size * 0.5
    cdf_plus = jax.nn.sigmoid((x + half - mu) * inv_s)
    cdf_minus = jax.nn.sigmoid((x - half - mu) * inv_s)
    prob = jnp.where(x <= x_min + half, cdf_plus,
                     jnp.where(x >= x_max - half, 1.0 - cdf_minus,
                               cdf_plus - cdf_minus))
    num = jnp.sum(we * prob, axis=0, keepdims=True)
    den = jnp.sum(we, axis=0, keepdims=True)
    pmix = num * pl.reciprocal(den, approx=True)
    # TODO(synk): reference LogisticMixture not provided; a fully log-space
    # (logsumexp) NLL would be more robust for very low-probability bins.
    o_ref[...] = -jnp.log(pmix + 1e-10)


# ----------------------------- kernel wrappers ------------------------------
def _n_tile(n):
    """Largest lane-dense tile (multiple of 128) that gives >=2 grid slices."""
    for c in (2048, 1024, 512, 256, 128):
        if n % c == 0 and n // c >= 2:
            return c
    return n  # full extent (legal even when < 128: block == array dim)


def conv3x3(x_cbhw, wt, b, *, stride=1, relu=False, residual=None, quantize=False):
    """3x3 conv, padding 1, on (C, B, H, W) activations, with fused epilogue.

    im2col is built once as a single (9*Cin, N) matrix (for stride 2 only the
    kept even output positions are materialized); the matmul and the
    bias/relu/residual/quantize epilogue run inside one Pallas kernel.
    """
    C, B, H, W = x_cbhw.shape
    Cout = wt.shape[0]
    Ho, Wo = H // stride, W // stride
    N = B * Ho * Wo

    xb = x_cbhw.astype(jnp.bfloat16)                       # bf16 MXU operands
    xp = jnp.pad(xb, ((0, 0), (0, 0), (1, 1), (1, 1)))
    cols = [xp[:, :, kh:kh + H:stride, kw:kw + W:stride].reshape(C, N)
            for kh in range(3) for kw in range(3)]
    xt = jnp.concatenate(cols, axis=0)                      # (9*Cin, N)
    # TODO(synk): tap formation could move fully in-kernel (pl.ds on a padded
    # VMEM block) to avoid materializing the 9x im2col matrix in HBM.

    nt = _n_tile(N)
    kernel = _make_conv_kernel(residual is not None, relu, quantize)
    in_specs = [pl.BlockSpec((Cout, 9 * C), lambda i: (0, 0)),
                pl.BlockSpec((9 * C, nt), lambda i: (0, i)),
                pl.BlockSpec((Cout, 1), lambda i: (0, 0))]
    args = [wt, xt, b.reshape(Cout, 1)]
    if residual is not None:
        in_specs.append(pl.BlockSpec((Cout, nt), lambda i: (0, i)))
        args.append(residual.reshape(Cout, N))

    out = pl.pallas_call(
        kernel,
        out_shape=jax.ShapeDtypeStruct((Cout, N), jnp.float32),
        grid=(N // nt,),
        in_specs=in_specs,
        out_specs=pl.BlockSpec((Cout, nt), lambda i: (0, i)),
        compiler_params=pltpu.CompilerParams(dimension_semantics=("parallel",)),
    )(*args)
    return out.reshape(Cout, B, Ho, Wo)


def lm_nll(target_cbhw, params_cbhw, *, param_num, K, bin_size, x_min, x_max):
    """Logistic-mixture NLL.  target: (C, B, H, W); params: (K*param_num*C, B, H, W).
    Returns NCHW (B, C, H, W)."""
    C, B, H, W = target_cbhw.shape
    p = params_cbhw.reshape(K, param_num, C, B, H, W)
    mu, log_s, wl = p[:, 0], p[:, 1], p[:, 2]
    # TODO(synk): for param_num==4 (RGB) the reference LogisticMixture also has
    # channel-autoregressive mixing coefficients; submodule not provided, omitted.

    N = C * B * H * W
    nt = _n_tile(N)

    def r(a):  # (K, C, B, H, W) -> (K, N), lane-dense last dim
        return a.astype(jnp.float32).reshape(K, N)

    x2 = target_cbhw.astype(jnp.float32).reshape(1, N)
    nll = pl.pallas_call(
        functools.partial(lm_nll_kernel, bin_size=float(bin_size),
                          x_min=float(x_min), x_max=float(x_max)),
        out_shape=jax.ShapeDtypeStruct((1, N), jnp.float32),
        grid=(N // nt,),
        in_specs=[pl.BlockSpec((1, nt), lambda i: (0, i)),
                  pl.BlockSpec((K, nt), lambda i: (0, i)),
                  pl.BlockSpec((K, nt), lambda i: (0, i)),
                  pl.BlockSpec((K, nt), lambda i: (0, i))],
        out_specs=pl.BlockSpec((1, nt), lambda i: (0, i)),
        compiler_params=pltpu.CompilerParams(dimension_semantics=("parallel",)),
    )(x2, r(mu), r(log_s), r(wl))
    return jnp.transpose(nll.reshape(C, B, H, W), (1, 0, 2, 3))


# ------------------------------ network (glue) ------------------------------
def init_params(key):
    keys = iter(jax.random.split(key, 256))

    def conv(cin, cout):
        k = next(keys)
        w = jax.random.normal(k, (3, 3, cin, cout), jnp.float32) * jnp.sqrt(2.0 / (9 * cin))
        wt = w.reshape(9 * cin, cout).T.astype(jnp.bfloat16)   # (Cout, 9*Cin)
        return (wt, jnp.zeros((cout,), jnp.float32))

    ch, cq, L = CFG['ch'], CFG['C_Q'], CFG['layers']
    p = {'head': conv(3, ch), 'enc': [], 'dec': []}
    for _ in range(L):
        p['enc'].append({'down': conv(ch, ch),
                         'res': [(conv(ch, ch), conv(ch, ch)) for _ in range(CFG['res_num'])],
                         'q': conv(ch, cq)})
    for i in range(L):
        pn = CFG['K'] * cq * 3 if i < L - 1 else 12 * CFG['K']
        p['dec'].append({'in': conv(cq, ch),
                         'res': [(conv(ch, ch), conv(ch, ch)) for _ in range(CFG['res_num'])],
                         'up': conv(ch, ch),
                         'param': conv(ch, pn)})
    return p


def _resblock(f, rb):
    (w1, b1), (w2, b2) = rb
    y = conv3x3(f, w1, b1, relu=True)                 # relu fused
    return conv3x3(y, w2, b2, residual=f)             # residual add fused


def _enc_unit(f, e):
    # stride-2 / pad-1 3x3 down conv: im2col only at kept even output positions
    f = conv3x3(f, *e['down'], stride=2, relu=True)
    for rb in e['res']:
        f = _resblock(f, rb)
    q = conv3x3(f, *e['q'], quantize=True)            # quantizer fused into epilogue
    return f, q


def _dec_unit(z, F_s, d):
    # relu + skip-feature add fused into the input conv epilogue
    f = conv3x3(z, *d['in'], relu=True, residual=F_s)
    for rb in d['res']:
        f = _resblock(f, rb)
    f = jnp.repeat(jnp.repeat(f, 2, axis=2), 2, axis=3)   # nearest-neighbor 2x up
    f = conv3x3(f, *d['up'], relu=True)
    prm = conv3x3(f, *d['param'])
    return f, prm


def forward(params, x_nchw):
    L, K = CFG['layers'], CFG['K']
    # MeanShift(255, rgb_mean) then MeanShift(0, 0, 128): fixed affines, folded (glue)
    rgb_mean = jnp.array([0.4488, 0.4371, 0.404], jnp.float32)
    h = jnp.transpose(x_nchw, (1, 0, 2, 3))               # -> (C, B, H, W)
    h = (h - 255.0 * rgb_mean[:, None, None, None]) / 128.0
    h = conv3x3(h, *params['head'])

    z_hat, feat = [], h
    for i in range(L - 1):
        feat, z = _enc_unit(feat, params['enc'][i])
        z_hat.append(z)
    _, z_s = _enc_unit(feat, params['enc'][L - 1])        # EncUnitLast
    z_hat.append(z_s)

    nll = []
    Cq, B, Hs, Ws = z_hat[-1].shape
    # UniformDistribution NLL: -log(1/level) per element (submodule not provided)
    nll.append(jnp.full((B, Cq, Hs, Ws), jnp.log(float(CFG['z_level'])), jnp.float32))

    F_s = None
    for i in range(L):
        z_in = z_hat[L - 1 - i]
        F_new, prm = _dec_unit(z_in, F_s, params['dec'][i])
        if i == L - 1:
            tgt = jnp.transpose(x_nchw.astype(jnp.float32), (1, 0, 2, 3))
            nll.append(lm_nll(tgt, prm, param_num=4, K=K,
                              bin_size=1.0, x_min=0.0, x_max=255.0))
        else:
            nll.append(lm_nll(z_hat[L - 2 - i], prm, param_num=3, K=K,
                              bin_size=CFG['z_bin'], x_min=CFG['z_min'],
                              x_max=CFG['z_max']))
            F_s = F_new
    return nll


# ---------------------------------- main ------------------------------------
if __name__ == "__main__":
    key = jax.random.PRNGKey(0)
    kp, kx = jax.random.split(key)
    params = init_params(kp)
    x = jax.random.uniform(kx, (2, 3, 16, 16), jnp.float32, 0.0, 255.0)  # NCHW RGB in [0,255]

    out = jax.jit(forward)(params, x)
    jax.block_until_ready(out)

    assert len(out) == CFG['layers'] + 1
    assert all(bool(jnp.all(jnp.isfinite(a))) for a in out)
    print("KERNEL_OK")
</pallas_src>

<mosaic_0001>
module attributes {stable_mosaic.version = 11 : i64} {
  func.func @kernel(%arg0: i32, %arg1: memref<8x27xbf16, #tpu.memory_space<vmem>>, %arg2: memref<27x256xbf16, #tpu.memory_space<vmem>>, %arg3: memref<8x1xf32, #tpu.memory_space<vmem>>, %arg4: memref<8x256xf32, #tpu.memory_space<vmem>>) attributes {dimension_semantics = [#tpu.dimension_semantics<parallel>], iteration_bounds = array<i64: 2>, scalar_prefetch = 0 : i64, scratch_operands = 0 : i64, tpu.core_type = #tpu.core_type<tc>, window_params = [{pipeline_mode = #tpu.pipeline_mode<synchronous>, transform_indices = @transform_0, window_bounds = array<i64: 8, 27>}, {transform_indices = @transform_1, window_bounds = array<i64: 27, 256>}, {pipeline_mode = #tpu.pipeline_mode<synchronous>, transform_indices = @transform_2, window_bounds = array<i64: 8, 1>}, {transform_indices = @transform_3, window_bounds = array<i64: 8, 256>}]} {
    %c0 = arith.constant 0 : index
    %c0_0 = arith.constant 0 : index
    %0 = vector.load %arg1[%c0, %c0_0] : memref<8x27xbf16, #tpu.memory_space<vmem>>, vector<8x27xbf16>
    %c0_1 = arith.constant 0 : index
    %c0_2 = arith.constant 0 : index
    %1 = vector.load %arg2[%c0_1, %c0_2] : memref<27x256xbf16, #tpu.memory_space<vmem>>, vector<27x256xbf16>
    %cst = arith.constant dense<0.000000e+00> : vector<8x256xf32>
    %2 = tpu.matmul %0, %1, %cst {dimension_numbers = #tpu.dot_dimension_numbers<[1], [0], [0], [1], [0, 0, 1, 1], [], []>} : vector<8x27xbf16>, vector<27x256xbf16>, vector<8x256xf32> -> vector<8x256xf32>
    %c0_3 = arith.constant 0 : index
    %c0_4 = arith.constant 0 : index
    %3 = vector.load %arg3[%c0_3, %c0_4] : memref<8x1xf32, #tpu.memory_space<vmem>>, vector<8x1xf32>
    %4 = vector.broadcast %3 : vector<8x1xf32> to vector<8x256xf32>
    %5 = arith.addf %2, %4 : vector<8x256xf32>
    %c0_5 = arith.constant 0 : index
    %c0_6 = arith.constant 0 : index
    %6 = vector.load %arg4[%c0_5, %c0_6] : memref<8x256xf32, #tpu.memory_space<vmem>>, vector<8x256xf32>
    tpu.vector_store %arg4[%c0_5, %c0_6], %5 {strides = array<i32>} : memref<8x256xf32, #tpu.memory_space<vmem>>, vector<8x256xf32>,
    return
  }
  func.func @transform_0(%arg0: i32) -> (i32, i32) {
    %c0_i32 = arith.constant 0 : i32
    %c0_i32_0 = arith.constant 0 : i32
    %c0_i32_1 = arith.constant 0 : i32
    return %c0_i32, %c0_i32_0 : i32, i32
  }
  func.func @transform_1(%arg0: i32) -> (i32, i32) {
    %c0_i32 = arith.constant 0 : i32
    %c0_i32_0 = arith.constant 0 : i32
    return %c0_i32, %arg0 : i32, i32
  }
  func.func @transform_2(%arg0: i32) -> (i32, i32) {
    %c0_i32 = arith.constant 0 : i32
    %c0_i32_0 = arith.constant 0 : i32
    %c0_i32_1 = arith.constant 0 : i32
    return %c0_i32, %c0_i32_0 : i32, i32
  }
  func.func @transform_3(%arg0: i32) -> (i32, i32) {
    %c0_i32 = arith.constant 0 : i32
    %c0_i32_0 = arith.constant 0 : i32
    return %c0_i32, %arg0 : i32, i32
  }
}

module attributes {stable_mosaic.version = 11 : i64} {
  func.func @kernel(%arg0: i32, %arg1: memref<8x72xbf16, #tpu.memory_space<vmem>>, %arg2: memref<72x128xbf16, #tpu.memory_space<vmem>>, %arg3: memref<8x1xf32, #tpu.memory_space<vmem>>, %arg4: memref<8x128xf32, #tpu.memory_space<vmem>>) attributes {dimension_semantics = [#tpu.dimension_semantics<parallel>], iteration_bounds = array<i64: 1>, scalar_prefetch = 0 : i64, scratch_operands = 0 : i64, tpu.core_type = #tpu.core_type<tc>, window_params = [{pipeline_mode = #tpu.pipeline_mode<synchronous>, transform_indices = @transform_0, window_bounds = array<i64: 8, 72>}, {transform_indices = @transform_1, window_bounds = array<i64: 72, 128>}, {pipeline_mode = #tpu.pipeline_mode<synchronous>, transform_indices = @transform_2, window_bounds = array<i64: 8, 1>}, {transform_indices = @transform_3, window_bounds = array<i64: 8, 128>}]} {
    %c0 = arith.constant 0 : index
    %c0_0 = arith.constant 0 : index
    %0 = vector.load %arg1[%c0, %c0_0] : memref<8x72xbf16, #tpu.memory_space<vmem>>, vector<8x72xbf16>
    %c0_1 = arith.constant 0 : index
    %c0_2 = arith.constant 0 : index
    %1 = vector.load %arg2[%c0_1, %c0_2] : memref<72x128xbf16, #tpu.memory_space<vmem>>, vector<72x128xbf16>
    %cst = arith.constant dense<0.000000e+00> : vector<8x128xf32>
    %2 = tpu.matmul %0, %1, %cst {dimension_numbers = #tpu.dot_dimension_numbers<[1], [0], [0], [1], [0, 0, 1, 1], [], []>} : vector<8x72xbf16>, vector<72x128xbf16>, vector<8x128xf32> -> vector<8x128xf32>
    %c0_3 = arith.constant 0 : index
    %c0_4 = arith.constant 0 : index
    %3 = vector.load %arg3[%c0_3, %c0_4] : memref<8x1xf32, #tpu.memory_space<vmem>>, vector<8x1xf32>
    %4 = vector.broadcast %3 : vector<8x1xf32> to vector<8x128xf32>
    %5 = arith.addf %2, %4 : vector<8x128xf32>
    %cst_5 = arith.constant 0.000000e+00 : f32
    %6 = vector.broadcast %cst_5 : f32 to vector<8x128xf32>
    %7 = arith.maximumf %5, %6 : vector<8x128xf32>
    %c0_6 = arith.constant 0 : index
    %c0_7 = arith.constant 0 : index
    %8 = vector.load %arg4[%c0_6, %c0_7] : memref<8x128xf32, #tpu.memory_space<vmem>>, vector<8x128xf32>
    tpu.vector_store %arg4[%c0_6, %c0_7], %7 {strides = array<i32>} : memref<8x128xf32, #tpu.memory_space<vmem>>, vector<8x128xf32>,
    return
  }
  func.func @transform_0(%arg0: i32) -> (i32, i32) {
    %c0_i32 = arith.constant 0 : i32
    %c0_i32_0 = arith.constant 0 : i32
    %c0_i32_1 = arith.constant 0 : i32
    return %c0_i32, %c0_i32_0 : i32, i32
  }
  func.func @transform_1(%arg0: i32) -> (i32, i32) {
    %c0_i32 = arith.constant 0 : i32
    %c0_i32_0 = arith.constant 0 : i32
    return %c0_i32, %arg0 : i32, i32
  }
  func.func @transform_2(%arg0: i32) -> (i32, i32) {
    %c0_i32 = arith.constant 0 : i32
    %c0_i32_0 = arith.constant 0 : i32
    %c0_i32_1 = arith.constant 0 : i32
    return %c0_i32, %c0_i32_0 : i32, i32
  }
  func.func @transform_3(%arg0: i32) -> (i32, i32) {
    %c0_i32 = arith.constant 0 : i32
    %c0_i32_0 = arith.constant 0 : i32
    return %c0_i32, %arg0 : i32, i32
  }
}

module attributes {stable_mosaic.version = 11 : i64} {
  func.func @kernel(%arg0: i32, %arg1: memref<8x72xbf16, #tpu.memory_space<vmem>>, %arg2: memref<72x128xbf16, #tpu.memory_space<vmem>>, %arg3: memref<8x1xf32, #tpu.memory_space<vmem>>, %arg4: memref<8x128xf32, #tpu.memory_space<vmem>>, %arg5: memref<8x128xf32, #tpu.memory_space<vmem>>) attributes {dimension_semantics = [#tpu.dimension_semantics<parallel>], iteration_bounds = array<i64: 1>, scalar_prefetch = 0 : i64, scratch_operands = 0 : i64, tpu.core_type = #tpu.core_type<tc>, window_params = [{pipeline_mode = #tpu.pipeline_mode<synchronous>, transform_indices = @transform_0, window_bounds = array<i64: 8, 72>}, {transform_indices = @transform_1, window_bounds = array<i64: 72, 128>}, {pipeline_mode = #tpu.pipeline_mode<synchronous>, transform_indices = @transform_2, window_bounds = array<i64: 8, 1>}, {transform_indices = @transform_3, window_bounds = array<i64: 8, 128>}, {transform_indices = @transform_4, window_bounds = array<i64: 8, 128>}]} {
    %c0 = arith.constant 0 : index
    %c0_0 = arith.constant 0 : index
    %0 = vector.load %arg1[%c0, %c0_0] : memref<8x72xbf16, #tpu.memory_space<vmem>>, vector<8x72xbf16>
    %c0_1 = arith.constant 0 : index
    %c0_2 = arith.constant 0 : index
    %1 = vector.load %arg2[%c0_1, %c0_2] : memref<72x128xbf16, #tpu.memory_space<vmem>>, vector<72x128xbf16>
    %cst = arith.constant dense<0.000000e+00> : vector<8x128xf32>
    %2 = tpu.matmul %0, %1, %cst {dimension_numbers = #tpu.dot_dimension_numbers<[1], [0], [0], [1], [0, 0, 1, 1], [], []>} : vector<8x72xbf16>, vector<72x128xbf16>, vector<8x128xf32> -> vector<8x128xf32>
    %c0_3 = arith.constant 0 : index
    %c0_4 = arith.constant 0 : index
    %3 = vector.load %arg3[%c0_3, %c0_4] : memref<8x1xf32, #tpu.memory_space<vmem>>, vector<8x1xf32>
    %c0_5 = arith.constant 0 : index
    %c0_6 = arith.constant 0 : index
    %4 = vector.load %arg4[%c0_5, %c0_6] : memref<8x128xf32, #tpu.memory_space<vmem>>, vector<8x128xf32>
    %5 = vector.broadcast %3 : vector<8x1xf32> to vector<8x128xf32>
    %6 = arith.addf %2, %5 : vector<8x128xf32>
    %7 = arith.addf %6, %4 : vector<8x128xf32>
    %c0_7 = arith.constant 0 : index
    %c0_8 = arith.constant 0 : index
    %8 = vector.load %arg5[%c0_7, %c0_8] : memref<8x128xf32, #tpu.memory_space<vmem>>, vector<8x128xf32>
    tpu.vector_store %arg5[%c0_7, %c0_8], %7 {strides = array<i32>} : memref<8x128xf32, #tpu.memory_space<vmem>>, vector<8x128xf32>,
    return
  }
  func.func @transform_0(%arg0: i32) -> (i32, i32) {
    %c0_i32 = arith.constant 0 : i32
    %c0_i32_0 = arith.constant 0 : i32
    %c0_i32_1 = arith.constant 0 : i32
    return %c0_i32, %c0_i32_0 : i32, i32
  }
  func.func @transform_1(%arg0: i32) -> (i32, i32) {
    %c0_i32 = arith.constant 0 : i32
    %c0_i32_0 = arith.constant 0 : i32
    return %c0_i32, %arg0 : i32, i32
  }
  func.func @transform_2(%arg0: i32) -> (i32, i32) {
    %c0_i32 = arith.constant 0 : i32
    %c0_i32_0 = arith.constant 0 : i32
    %c0_i32_1 = arith.constant 0 : i32
    return %c0_i32, %c0_i32_0 : i32, i32
  }
  func.func @transform_3(%arg0: i32) -> (i32, i32) {
    %c0_i32 = arith.constant 0 : i32
    %c0_i32_0 = arith.constant 0 : i32
    return %c0_i32, %arg0 : i32, i32
  }
  func.func @transform_4(%arg0: i32) -> (i32, i32) {
    %c0_i32 = arith.constant 0 : i32
    %c0_i32_0 = arith.constant 0 : i32
    return %c0_i32, %arg0 : i32, i32
  }
}

module attributes {stable_mosaic.version = 11 : i64} {
  func.func @kernel(%arg0: i32, %arg1: memref<4x72xbf16, #tpu.memory_space<vmem>>, %arg2: memref<72x128xbf16, #tpu.memory_space<vmem>>, %arg3: memref<4x1xf32, #tpu.memory_space<vmem>>, %arg4: memref<4x128xf32, #tpu.memory_space<vmem>>) attributes {dimension_semantics = [#tpu.dimension_semantics<parallel>], iteration_bounds = array<i64: 1>, scalar_prefetch = 0 : i64, scratch_operands = 0 : i64, tpu.core_type = #tpu.core_type<tc>, window_params = [{pipeline_mode = #tpu.pipeline_mode<synchronous>, transform_indices = @transform_0, window_bounds = array<i64: 4, 72>}, {transform_indices = @transform_1, window_bounds = array<i64: 72, 128>}, {pipeline_mode = #tpu.pipeline_mode<synchronous>, transform_indices = @transform_2, window_bounds = array<i64: 4, 1>}, {transform_indices = @transform_3, window_bounds = array<i64: 4, 128>}]} {
    %c0 = arith.constant 0 : index
    %c0_0 = arith.constant 0 : index
    %0 = vector.load %arg1[%c0, %c0_0] : memref<4x72xbf16, #tpu.memory_space<vmem>>, vector<4x72xbf16>
    %c0_1 = arith.constant 0 : index
    %c0_2 = arith.constant 0 : index
    %1 = vector.load %arg2[%c0_1, %c0_2] : memref<72x128xbf16, #tpu.memory_space<vmem>>, vector<72x128xbf16>
    %cst = arith.constant dense<0.000000e+00> : vector<4x128xf32>
    %2 = tpu.matmul %0, %1, %cst {dimension_numbers = #tpu.dot_dimension_numbers<[1], [0], [0], [1], [0, 0, 1, 1], [], []>} : vector<4x72xbf16>, vector<72x128xbf16>, vector<4x128xf32> -> vector<4x128xf32>
    %c0_3 = arith.constant 0 : index
    %c0_4 = arith.constant 0 : index
    %3 = vector.load %arg3[%c0_3, %c0_4] : memref<4x1xf32, #tpu.memory_space<vmem>>, vector<4x1xf32>
    %4 = vector.broadcast %3 : vector<4x1xf32> to vector<4x128xf32>
    %5 = arith.addf %2, %4 : vector<4x128xf32>
    %cst_5 = arith.constant -1.000000e+00 : f32
    %6 = vector.broadcast %cst_5 : f32 to vector<4x128xf32>
    %7 = arith.subf %5, %6 : vector<4x128xf32>
    %cst_6 = arith.constant 3.500000e+00 : f32
    %8 = vector.broadcast %cst_6 : f32 to vector<4x128xf32>
    %9 = arith.mulf %7, %8 : vector<4x128xf32>
    %cst_7 = arith.constant 5.000000e-01 : f32
    %10 = vector.broadcast %cst_7 : f32 to vector<4x128xf32>
    %11 = arith.subf %9, %10 : vector<4x128xf32>
    %12 = math.ceil %11 : vector<4x128xf32>
    %cst_8 = arith.constant 0.000000e+00 : f32
    %cst_9 = arith.constant 7.000000e+00 : f32
    %13 = vector.broadcast %cst_8 : f32 to vector<4x128xf32>
    %14 = arith.maximumf %13, %12 : vector<4x128xf32>
    %15 = vector.broadcast %cst_9 : f32 to vector<4x128xf32>
    %16 = arith.minimumf %15, %14 : vector<4x128xf32>
    %cst_10 = arith.constant 0.285714298 : f32
    %17 = vector.broadcast %cst_10 : f32 to vector<4x128xf32>
    %18 = arith.mulf %16, %17 : vector<4x128xf32>
    %cst_11 = arith.constant -1.000000e+00 : f32
    %19 = vector.broadcast %cst_11 : f32 to vector<4x128xf32>
    %20 = arith.addf %18, %19 : vector<4x128xf32>
    %c0_12 = arith.constant 0 : index
    %c0_13 = arith.constant 0 : index
    %21 = vector.load %arg4[%c0_12, %c0_13] : memref<4x128xf32, #tpu.memory_space<vmem>>, vector<4x128xf32>
    tpu.vector_store %arg4[%c0_12, %c0_13], %20 {strides = array<i32>} : memref<4x128xf32, #tpu.memory_space<vmem>>, vector<4x128xf32>,
    return
  }
  func.func @transform_0(%arg0: i32) -> (i32, i32) {
    %c0_i32 = arith.constant 0 : i32
    %c0_i32_0 = arith.constant 0 : i32
    %c0_i32_1 = arith.constant 0 : i32
    return %c0_i32, %c0_i32_0 : i32, i32
  }
  func.func @transform_1(%arg0: i32) -> (i32, i32) {
    %c0_i32 = arith.constant 0 : i32
    %c0_i32_0 = arith.constant 0 : i32
    return %c0_i32, %arg0 : i32, i32
  }
  func.func @transform_2(%arg0: i32) -> (i32, i32) {
    %c0_i32 = arith.constant 0 : i32
    %c0_i32_0 = arith.constant 0 : i32
    %c0_i32_1 = arith.constant 0 : i32
    return %c0_i32, %c0_i32_0 : i32, i32
  }
  func.func @transform_3(%arg0: i32) -> (i32, i32) {
    %c0_i32 = arith.constant 0 : i32
    %c0_i32_0 = arith.constant 0 : i32
    return %c0_i32, %arg0 : i32, i32
  }
}

module attributes {stable_mosaic.version = 11 : i64} {
  func.func @kernel(%arg0: i32, %arg1: memref<8x72xbf16, #tpu.memory_space<vmem>>, %arg2: memref<72x32xbf16, #tpu.memory_space<vmem>>, %arg3: memref<8x1xf32, #tpu.memory_space<vmem>>, %arg4: memref<8x32xf32, #tpu.memory_space<vmem>>) attributes {dimension_semantics = [#tpu.dimension_semantics<parallel>], iteration_bounds = array<i64: 1>, scalar_prefetch = 0 : i64, scratch_operands = 0 : i64, tpu.core_type = #tpu.core_type<tc>, window_params = [{pipeline_mode = #tpu.pipeline_mode<synchronous>, transform_indices = @transform_0, window_bounds = array<i64: 8, 72>}, {transform_indices = @transform_1, window_bounds = array<i64: 72, 32>}, {pipeline_mode = #tpu.pipeline_mode<synchronous>, transform_indices = @transform_2, window_bounds = array<i64: 8, 1>}, {transform_indices = @transform_3, window_bounds = array<i64: 8, 32>}]} {
    %c0 = arith.constant 0 : index
    %c0_0 = arith.constant 0 : index
    %0 = vector.load %arg1[%c0, %c0_0] : memref<8x72xbf16, #tpu.memory_space<vmem>>, vector<8x72xbf16>
    %c0_1 = arith.constant 0 : index
    %c0_2 = arith.constant 0 : index
    %1 = vector.load %arg2[%c0_1, %c0_2] : memref<72x32xbf16, #tpu.memory_space<vmem>>, vector<72x32xbf16>
    %cst = arith.constant dense<0.000000e+00> : vector<8x32xf32>
    %2 = tpu.matmul %0, %1, %cst {dimension_numbers = #tpu.dot_dimension_numbers<[1], [0], [0], [1], [0, 0, 1, 1], [], []>} : vector<8x72xbf16>, vector<72x32xbf16>, vector<8x32xf32> -> vector<8x32xf32>
    %c0_3 = arith.constant 0 : index
    %c0_4 = arith.constant 0 : index
    %3 = vector.load %arg3[%c0_3, %c0_4] : memref<8x1xf32, #tpu.memory_space<vmem>>, vector<8x1xf32>
    %4 = vector.broadcast %3 : vector<8x1xf32> to vector<8x32xf32>
    %5 = arith.addf %2, %4 : vector<8x32xf32>
    %cst_5 = arith.constant 0.000000e+00 : f32
    %6 = vector.broadcast %cst_5 : f32 to vector<8x32xf32>
    %7 = arith.maximumf %5, %6 : vector<8x32xf32>
    %c0_6 = arith.constant 0 : index
    %c0_7 = arith.constant 0 : index
    %8 = vector.load %arg4[%c0_6, %c0_7] : memref<8x32xf32, #tpu.memory_space<vmem>>, vector<8x32xf32>
    tpu.vector_store %arg4[%c0_6, %c0_7], %7 {strides = array<i32>} : memref<8x32xf32, #tpu.memory_space<vmem>>, vector<8x32xf32>,
    return
  }
  func.func @transform_0(%arg0: i32) -> (i32, i32) {
    %c0_i32 = arith.constant 0 : i32
    %c0_i32_0 = arith.constant 0 : i32
    %c0_i32_1 = arith.constant 0 : i32
    return %c0_i32, %c0_i32_0 : i32, i32
  }
  func.func @transform_1(%arg0: i32) -> (i32, i32) {
    %c0_i32 = arith.constant 0 : i32
    %c0_i32_0 = arith.constant 0 : i32
    return %c0_i32, %arg0 : i32, i32
  }
  func.func @transform_2(%arg0: i32) -> (i32, i32) {
    %c0_i32 = arith.constant 0 : i32
    %c0_i32_0 = arith.constant 0 : i32
    %c0_i32_1 = arith.constant 0 : i32
    return %c0_i32, %c0_i32_0 : i32, i32
  }
  func.func @transform_3(%arg0: i32) -> (i32, i32) {
    %c0_i32 = arith.constant 0 : i32
    %c0_i32_0 = arith.constant 0 : i32
    return %c0_i32, %arg0 : i32, i32
  }
}

module attributes {stable_mosaic.version = 11 : i64} {
  func.func @kernel(%arg0: i32, %arg1: memref<8x72xbf16, #tpu.memory_space<vmem>>, %arg2: memref<72x32xbf16, #tpu.memory_space<vmem>>, %arg3: memref<8x1xf32, #tpu.memory_space<vmem>>, %arg4: memref<8x32xf32, #tpu.memory_space<vmem>>, %arg5: memref<8x32xf32, #tpu.memory_space<vmem>>) attributes {dimension_semantics = [#tpu.dimension_semantics<parallel>], iteration_bounds = array<i64: 1>, scalar_prefetch = 0 : i64, scratch_operands = 0 : i64, tpu.core_type = #tpu.core_type<tc>, window_params = [{pipeline_mode = #tpu.pipeline_mode<synchronous>, transform_indices = @transform_0, window_bounds = array<i64: 8, 72>}, {transform_indices = @transform_1, window_bounds = array<i64: 72, 32>}, {pipeline_mode = #tpu.pipeline_mode<synchronous>, transform_indices = @transform_2, window_bounds = array<i64: 8, 1>}, {transform_indices = @transform_3, window_bounds = array<i64: 8, 32>}, {transform_indices = @transform_4, window_bounds = array<i64: 8, 32>}]} {
    %c0 = arith.constant 0 : index
    %c0_0 = arith.constant 0 : index
    %0 = vector.load %arg1[%c0, %c0_0] : memref<8x72xbf16, #tpu.memory_space<vmem>>, vector<8x72xbf16>
    %c0_1 = arith.constant 0 : index
    %c0_2 = arith.constant 0 : index
    %1 = vector.load %arg2[%c0_1, %c0_2] : memref<72x32xbf16, #tpu.memory_space<vmem>>, vector<72x32xbf16>
    %cst = arith.constant dense<0.000000e+00> : vector<8x32xf32>
    %2 = tpu.matmul %0, %1, %cst {dimension_numbers = #tpu.dot_dimension_numbers<[1], [0], [0], [1], [0, 0, 1, 1], [], []>} : vector<8x72xbf16>, vector<72x32xbf16>, vector<8x32xf32> -> vector<8x32xf32>
    %c0_3 = arith.constant 0 : index
    %c0_4 = arith.constant 0 : index
    %3 = vector.load %arg3[%c0_3, %c0_4] : memref<8x1xf32, #tpu.memory_space<vmem>>, vector<8x1xf32>
    %c0_5 = arith.constant 0 : index
    %c0_6 = arith.constant 0 : index
    %4 = vector.load %arg4[%c0_5, %c0_6] : memref<8x32xf32, #tpu.memory_space<vmem>>, vector<8x32xf32>
    %5 = vector.broadcast %3 : vector<8x1xf32> to vector<8x32xf32>
    %6 = arith.addf %2, %5 : vector<8x32xf32>
    %7 = arith.addf %6, %4 : vector<8x32xf32>
    %c0_7 = arith.constant 0 : index
    %c0_8 = arith.constant 0 : index
    %8 = vector.load %arg5[%c0_7, %c0_8] : memref<8x32xf32, #tpu.memory_space<vmem>>, vector<8x32xf32>
    tpu.vector_store %arg5[%c0_7, %c0_8], %7 {strides = array<i32>} : memref<8x32xf32, #tpu.memory_space<vmem>>, vector<8x32xf32>,
    return
  }
  func.func @transform_0(%arg0: i32) -> (i32, i32) {
    %c0_i32 = arith.constant 0 : i32
    %c0_i32_0 = arith.constant 0 : i32
    %c0_i32_1 = arith.constant 0 : i32
    return %c0_i32, %c0_i32_0 : i32, i32
  }
  func.func @transform_1(%arg0: i32) -> (i32, i32) {
    %c0_i32 = arith.constant 0 : i32
    %c0_i32_0 = arith.constant 0 : i32
    return %c0_i32, %arg0 : i32, i32
  }
  func.func @transform_2(%arg0: i32) -> (i32, i32) {
    %c0_i32 = arith.constant 0 : i32
    %c0_i32_0 = arith.constant 0 : i32
    %c0_i32_1 = arith.constant 0 : i32
    return %c0_i32, %c0_i32_0 : i32, i32
  }
  func.func @transform_3(%arg0: i32) -> (i32, i32) {
    %c0_i32 = arith.constant 0 : i32
    %c0_i32_0 = arith.constant 0 : i32
    return %c0_i32, %arg0 : i32, i32
  }
  func.func @transform_4(%arg0: i32) -> (i32, i32) {
    %c0_i32 = arith.constant 0 : i32
    %c0_i32_0 = arith.constant 0 : i32
    return %c0_i32, %arg0 : i32, i32
  }
}

module attributes {stable_mosaic.version = 11 : i64} {
  func.func @kernel(%arg0: i32, %arg1: memref<4x72xbf16, #tpu.memory_space<vmem>>, %arg2: memref<72x32xbf16, #tpu.memory_space<vmem>>, %arg3: memref<4x1xf32, #tpu.memory_space<vmem>>, %arg4: memref<4x32xf32, #tpu.memory_space<vmem>>) attributes {dimension_semantics = [#tpu.dimension_semantics<parallel>], iteration_bounds = array<i64: 1>, scalar_prefetch = 0 : i64, scratch_operands = 0 : i64, tpu.core_type = #tpu.core_type<tc>, window_params = [{pipeline_mode = #tpu.pipeline_mode<synchronous>, transform_indices = @transform_0, window_bounds = array<i64: 4, 72>}, {transform_indices = @transform_1, window_bounds = array<i64: 72, 32>}, {pipeline_mode = #tpu.pipeline_mode<synchronous>, transform_indices = @transform_2, window_bounds = array<i64: 4, 1>}, {transform_indices = @transform_3, window_bounds = array<i64: 4, 32>}]} {
    %c0 = arith.constant 0 : index
    %c0_0 = arith.constant 0 : index
    %0 = vector.load %arg1[%c0, %c0_0] : memref<4x72xbf16, #tpu.memory_space<vmem>>, vector<4x72xbf16>
    %c0_1 = arith.constant 0 : index
    %c0_2 = arith.constant 0 : index
    %1 = vector.load %arg2[%c0_1, %c0_2] : memref<72x32xbf16, #tpu.memory_space<vmem>>, vector<72x32xbf16>
    %cst = arith.constant dense<0.000000e+00> : vector<4x32xf32>
    %2 = tpu.matmul %0, %1, %cst {dimension_numbers = #tpu.dot_dimension_numbers<[1], [0], [0], [1], [0, 0, 1, 1], [], []>} : vector<4x72xbf16>, vector<72x32xbf16>, vector<4x32xf32> -> vector<4x32xf32>
    %c0_3 = arith.constant 0 : index
    %c0_4 = arith.constant 0 : index
    %3 = vector.load %arg3[%c0_3, %c0_4] : memref<4x1xf32, #tpu.memory_space<vmem>>, vector<4x1xf32>
    %4 = vector.broadcast %3 : vector<4x1xf32> to vector<4x32xf32>
    %5 = arith.addf %2, %4 : vector<4x32xf32>
    %cst_5 = arith.constant -1.000000e+00 : f32
    %6 = vector.broadcast %cst_5 : f32 to vector<4x32xf32>
    %7 = arith.subf %5, %6 : vector<4x32xf32>
    %cst_6 = arith.constant 3.500000e+00 : f32
    %8 = vector.broadcast %cst_6 : f32 to vector<4x32xf32>
    %9 = arith.mulf %7, %8 : vector<4x32xf32>
    %cst_7 = arith.constant 5.000000e-01 : f32
    %10 = vector.broadcast %cst_7 : f32 to vector<4x32xf32>
    %11 = arith.subf %9, %10 : vector<4x32xf32>
    %12 = math.ceil %11 : vector<4x32xf32>
    %cst_8 = arith.constant 0.000000e+00 : f32
    %cst_9 = arith.constant 7.000000e+00 : f32
    %13 = vector.broadcast %cst_8 : f32 to vector<4x32xf32>
    %14 = arith.maximumf %13, %12 : vector<4x32xf32>
    %15 = vector.broadcast %cst_9 : f32 to vector<4x32xf32>
    %16 = arith.minimumf %15, %14 : vector<4x32xf32>
    %cst_10 = arith.constant 0.285714298 : f32
    %17 = vector.broadcast %cst_10 : f32 to vector<4x32xf32>
    %18 = arith.mulf %16, %17 : vector<4x32xf32>
    %cst_11 = arith.constant -1.000000e+00 : f32
    %19 = vector.broadcast %cst_11 : f32 to vector<4x32xf32>
    %20 = arith.addf %18, %19 : vector<4x32xf32>
    %c0_12 = arith.constant 0 : index
    %c0_13 = arith.constant 0 : index
    %21 = vector.load %arg4[%c0_12, %c0_13] : memref<4x32xf32, #tpu.memory_space<vmem>>, vector<4x32xf32>
    tpu.vector_store %arg4[%c0_12, %c0_13], %20 {strides = array<i32>} : memref<4x32xf32, #tpu.memory_space<vmem>>, vector<4x32xf32>,
    return
  }
  func.func @transform_0(%arg0: i32) -> (i32, i32) {
    %c0_i32 = arith.constant 0 : i32
    %c0_i32_0 = arith.constant 0 : i32
    %c0_i32_1 = arith.constant 0 : i32
    return %c0_i32, %c0_i32_0 : i32, i32
  }
  func.func @transform_1(%arg0: i32) -> (i32, i32) {
    %c0_i32 = arith.constant 0 : i32
    %c0_i32_0 = arith.constant 0 : i32
    return %c0_i32, %arg0 : i32, i32
  }
  func.func @transform_2(%arg0: i32) -> (i32, i32) {
    %c0_i32 = arith.constant 0 : i32
    %c0_i32_0 = arith.constant 0 : i32
    %c0_i32_1 = arith.constant 0 : i32
    return %c0_i32, %c0_i32_0 : i32, i32
  }
  func.func @transform_3(%arg0: i32) -> (i32, i32) {
    %c0_i32 = arith.constant 0 : i32
    %c0_i32_0 = arith.constant 0 : i32
    return %c0_i32, %arg0 : i32, i32
  }
}

module attributes {stable_mosaic.version = 11 : i64} {
  func.func @kernel(%arg0: i32, %arg1: memref<8x72xbf16, #tpu.memory_space<vmem>>, %arg2: memref<72x8xbf16, #tpu.memory_space<vmem>>, %arg3: memref<8x1xf32, #tpu.memory_space<vmem>>, %arg4: memref<8x8xf32, #tpu.memory_space<vmem>>) attributes {dimension_semantics = [#tpu.dimension_semantics<parallel>], iteration_bounds = array<i64: 1>, scalar_prefetch = 0 : i64, scratch_operands = 0 : i64, tpu.core_type = #tpu.core_type<tc>, window_params = [{pipeline_mode = #tpu.pipeline_mode<synchronous>, transform_indices = @transform_0, window_bounds = array<i64: 8, 72>}, {transform_indices = @transform_1, window_bounds = array<i64: 72, 8>}, {pipeline_mode = #tpu.pipeline_mode<synchronous>, transform_indices = @transform_2, window_bounds = array<i64: 8, 1>}, {transform_indices = @transform_3, window_bounds = array<i64: 8, 8>}]} {
    %c0 = arith.constant 0 : index
    %c0_0 = arith.constant 0 : index
    %0 = vector.load %arg1[%c0, %c0_0] : memref<8x72xbf16, #tpu.memory_space<vmem>>, vector<8x72xbf16>
    %c0_1 = arith.constant 0 : index
    %c0_2 = arith.constant 0 : index
    %1 = vector.load %arg2[%c0_1, %c0_2] : memref<72x8xbf16, #tpu.memory_space<vmem>>, vector<72x8xbf16>
    %cst = arith.constant dense<0.000000e+00> : vector<8x8xf32>
    %2 = tpu.matmul %0, %1, %cst {dimension_numbers = #tpu.dot_dimension_numbers<[1], [0], [0], [1], [0, 0, 1, 1], [], []>} : vector<8x72xbf16>, vector<72x8xbf16>, vector<8x8xf32> -> vector<8x8xf32>
    %c0_3 = arith.constant 0 : index
    %c0_4 = arith.constant 0 : index
    %3 = vector.load %arg3[%c0_3, %c0_4] : memref<8x1xf32, #tpu.memory_space<vmem>>, vector<8x1xf32>
    %4 = vector.broadcast %3 : vector<8x1xf32> to vector<8x8xf32>
    %5 = arith.addf %2, %4 : vector<8x8xf32>
    %cst_5 = arith.constant 0.000000e+00 : f32
    %6 = vector.broadcast %cst_5 : f32 to vector<8x8xf32>
    %7 = arith.maximumf %5, %6 : vector<8x8xf32>
    %c0_6 = arith.constant 0 : index
    %c0_7 = arith.constant 0 : index
    %8 = vector.load %arg4[%c0_6, %c0_7] : memref<8x8xf32, #tpu.memory_space<vmem>>, vector<8x8xf32>
    tpu.vector_store %arg4[%c0_6, %c0_7], %7 {strides = array<i32>} : memref<8x8xf32, #tpu.memory_space<vmem>>, vector<8x8xf32>,
    return
  }
  func.func @transform_0(%arg0: i32) -> (i32, i32) {
    %c0_i32 = arith.constant 0 : i32
    %c0_i32_0 = arith.constant 0 : i32
    %c0_i32_1 = arith.constant 0 : i32
    return %c0_i32, %c0_i32_0 : i32, i32
  }
  func.func @transform_1(%arg0: i32) -> (i32, i32) {
    %c0_i32 = arith.constant 0 : i32
    %c0_i32_0 = arith.constant 0 : i32
    return %c0_i32, %arg0 : i32, i32
  }
  func.func @transform_2(%arg0: i32) -> (i32, i32) {
    %c0_i32 = arith.constant 0 : i32
    %c0_i32_0 = arith.constant 0 : i32
    %c0_i32_1 = arith.constant 0 : i32
    return %c0_i32, %c0_i32_0 : i32, i32
  }
  func.func @transform_3(%arg0: i32) -> (i32, i32) {
    %c0_i32 = arith.constant 0 : i32
    %c0_i32_0 = arith.constant 0 : i32
    return %c0_i32, %arg0 : i32, i32
  }
}

module attributes {stable_mosaic.version = 11 : i64} {
  func.func @kernel(%arg0: i32, %arg1: memref<4x72xbf16, #tpu.memory_space<vmem>>, %arg2: memref<72x8xbf16, #tpu.memory_space<vmem>>, %arg3: memref<4x1xf32, #tpu.memory_space<vmem>>, %arg4: memref<4x8xf32, #tpu.memory_space<vmem>>) attributes {dimension_semantics = [#tpu.dimension_semantics<parallel>], iteration_bounds = array<i64: 1>, scalar_prefetch = 0 : i64, scratch_operands = 0 : i64, tpu.core_type = #tpu.core_type<tc>, window_params = [{pipeline_mode = #tpu.pipeline_mode<synchronous>, transform_indices = @transform_0, window_bounds = array<i64: 4, 72>}, {transform_indices = @transform_1, window_bounds = array<i64: 72, 8>}, {pipeline_mode = #tpu.pipeline_mode<synchronous>, transform_indices = @transform_2, window_bounds = array<i64: 4, 1>}, {transform_indices = @transform_3, window_bounds = array<i64: 4, 8>}]} {
    %c0 = arith.constant 0 : index
    %c0_0 = arith.constant 0 : index
    %0 = vector.load %arg1[%c0, %c0_0] : memref<4x72xbf16, #tpu.memory_space<vmem>>, vector<4x72xbf16>
    %c0_1 = arith.constant 0 : index
    %c0_2 = arith.constant 0 : index
    %1 = vector.load %arg2[%c0_1, %c0_2] : memref<72x8xbf16, #tpu.memory_space<vmem>>, vector<72x8xbf16>
    %cst = arith.constant dense<0.000000e+00> : vector<4x8xf32>
    %2 = tpu.matmul %0, %1, %cst {dimension_numbers = #tpu.dot_dimension_numbers<[1], [0], [0], [1], [0, 0, 1, 1], [], []>} : vector<4x72xbf16>, vector<72x8xbf16>, vector<4x8xf32> -> vector<4x8xf32>
    %c0_3 = arith.constant 0 : index
    %c0_4 = arith.constant 0 : index
    %3 = vector.load %arg3[%c0_3, %c0_4] : memref<4x1xf32, #tpu.memory_space<vmem>>, vector<4x1xf32>
    %4 = vector.broadcast %3 : vector<4x1xf32> to vector<4x8xf32>
    %5 = arith.addf %2, %4 : vector<4x8xf32>
    %cst_5 = arith.constant -1.000000e+00 : f32
    %6 = vector.broadcast %cst_5 : f32 to vector<4x8xf32>
    %7 = arith.subf %5, %6 : vector<4x8xf32>
    %cst_6 = arith.constant 3.500000e+00 : f32
    %8 = vector.broadcast %cst_6 : f32 to vector<4x8xf32>
    %9 = arith.mulf %7, %8 : vector<4x8xf32>
    %cst_7 = arith.constant 5.000000e-01 : f32
    %10 = vector.broadcast %cst_7 : f32 to vector<4x8xf32>
    %11 = arith.subf %9, %10 : vector<4x8xf32>
    %12 = math.ceil %11 : vector<4x8xf32>
    %cst_8 = arith.constant 0.000000e+00 : f32
    %cst_9 = arith.constant 7.000000e+00 : f32
    %13 = vector.broadcast %cst_8 : f32 to vector<4x8xf32>
    %14 = arith.maximumf %13, %12 : vector<4x8xf32>
    %15 = vector.broadcast %cst_9 : f32 to vector<4x8xf32>
    %16 = arith.minimumf %15, %14 : vector<4x8xf32>
    %cst_10 = arith.constant 0.285714298 : f32
    %17 = vector.broadcast %cst_10 : f32 to vector<4x8xf32>
    %18 = arith.mulf %16, %17 : vector<4x8xf32>
    %cst_11 = arith.constant -1.000000e+00 : f32
    %19 = vector.broadcast %cst_11 : f32 to vector<4x8xf32>
    %20 = arith.addf %18, %19 : vector<4x8xf32>
    %c0_12 = arith.constant 0 : index
    %c0_13 = arith.constant 0 : index
    %21 = vector.load %arg4[%c0_12, %c0_13] : memref<4x8xf32, #tpu.memory_space<vmem>>, vector<4x8xf32>
    tpu.vector_store %arg4[%c0_12, %c0_13], %20 {strides = array<i32>} : memref<4x8xf32, #tpu.memory_space<vmem>>, vector<4x8xf32>,
    return
  }
  func.func @transform_0(%arg0: i32) -> (i32, i32) {
    %c0_i32 = arith.constant 0 : i32
    %c0_i32_0 = arith.constant 0 : i32
    %c0_i32_1 = arith.constant 0 : i32
    return %c0_i32, %c0_i32_0 : i32, i32
  }
  func.func @transform_1(%arg0: i32) -> (i32, i32) {
    %c0_i32 = arith.constant 0 : i32
    %c0_i32_0 = arith.constant 0 : i32
    return %c0_i32, %arg0 : i32, i32
  }
  func.func @transform_2(%arg0: i32) -> (i32, i32) {
    %c0_i32 = arith.constant 0 : i32
    %c0_i32_0 = arith.constant 0 : i32
    %c0_i32_1 = arith.constant 0 : i32
    return %c0_i32, %c0_i32_0 : i32, i32
  }
  func.func @transform_3(%arg0: i32) -> (i32, i32) {
    %c0_i32 = arith.constant 0 : i32
    %c0_i32_0 = arith.constant 0 : i32
    return %c0_i32, %arg0 : i32, i32
  }
}

module attributes {stable_mosaic.version = 11 : i64} {
  func.func @kernel(%arg0: i32, %arg1: memref<8x72xbf16, #tpu.memory_space<vmem>>, %arg2: memref<72x8xbf16, #tpu.memory_space<vmem>>, %arg3: memref<8x1xf32, #tpu.memory_space<vmem>>, %arg4: memref<8x8xf32, #tpu.memory_space<vmem>>, %arg5: memref<8x8xf32, #tpu.memory_space<vmem>>) attributes {dimension_semantics = [#tpu.dimension_semantics<parallel>], iteration_bounds = array<i64: 1>, scalar_prefetch = 0 : i64, scratch_operands = 0 : i64, tpu.core_type = #tpu.core_type<tc>, window_params = [{pipeline_mode = #tpu.pipeline_mode<synchronous>, transform_indices = @transform_0, window_bounds = array<i64: 8, 72>}, {transform_indices = @transform_1, window_bounds = array<i64: 72, 8>}, {pipeline_mode = #tpu.pipeline_mode<synchronous>, transform_indices = @transform_2, window_bounds = array<i64: 8, 1>}, {transform_indices = @transform_3, window_bounds = array<i64: 8, 8>}, {transform_indices = @transform_4, window_bounds = array<i64: 8, 8>}]} {
    %c0 = arith.constant 0 : index
    %c0_0 = arith.constant 0 : index
    %0 = vector.load %arg1[%c0, %c0_0] : memref<8x72xbf16, #tpu.memory_space<vmem>>, vector<8x72xbf16>
    %c0_1 = arith.constant 0 : index
    %c0_2 = arith.constant 0 : index
    %1 = vector.load %arg2[%c0_1, %c0_2] : memref<72x8xbf16, #tpu.memory_space<vmem>>, vector<72x8xbf16>
    %cst = arith.constant dense<0.000000e+00> : vector<8x8xf32>
    %2 = tpu.matmul %0, %1, %cst {dimension_numbers = #tpu.dot_dimension_numbers<[1], [0], [0], [1], [0, 0, 1, 1], [], []>} : vector<8x72xbf16>, vector<72x8xbf16>, vector<8x8xf32> -> vector<8x8xf32>
    %c0_3 = arith.constant 0 : index
    %c0_4 = arith.constant 0 : index
    %3 = vector.load %arg3[%c0_3, %c0_4] : memref<8x1xf32, #tpu.memory_space<vmem>>, vector<8x1xf32>
    %c0_5 = arith.constant 0 : index
    %c0_6 = arith.constant 0 : index
    %4 = vector.load %arg4[%c0_5, %c0_6] : memref<8x8xf32, #tpu.memory_space<vmem>>, vector<8x8xf32>
    %5 = vector.broadcast %3 : vector<8x1xf32> to vector<8x8xf32>
    %6 = arith.addf %2, %5 : vector<8x8xf32>
    %7 = arith.addf %6, %4 : vector<8x8xf32>
    %c0_7 = arith.constant 0 : index
    %c0_8 = arith.constant 0 : index
    %8 = vector.load %arg5[%c0_7, %c0_8] : memref<8x8xf32, #tpu.memory_space<vmem>>, vector<8x8xf32>
    tpu.vector_store %arg5[%c0_7, %c0_8], %7 {strides = array<i32>} : memref<8x8xf32, #tpu.memory_space<vmem>>, vector<8x8xf32>,
    return
  }
  func.func @transform_0(%arg0: i32) -> (i32, i32) {
    %c0_i32 = arith.constant 0 : i32
    %c0_i32_0 = arith.constant 0 : i32
    %c0_i32_1 = arith.constant 0 : i32
    return %c0_i32, %c0_i32_0 : i32, i32
  }
  func.func @transform_1(%arg0: i32) -> (i32, i32) {
    %c0_i32 = arith.constant 0 : i32
    %c0_i32_0 = arith.constant 0 : i32
    return %c0_i32, %arg0 : i32, i32
  }
  func.func @transform_2(%arg0: i32) -> (i32, i32) {
    %c0_i32 = arith.constant 0 : i32
    %c0_i32_0 = arith.constant 0 : i32
    %c0_i32_1 = arith.constant 0 : i32
    return %c0_i32, %c0_i32_0 : i32, i32
  }
  func.func @transform_3(%arg0: i32) -> (i32, i32) {
    %c0_i32 = arith.constant 0 : i32
    %c0_i32_0 = arith.constant 0 : i32
    return %c0_i32, %arg0 : i32, i32
  }
  func.func @transform_4(%arg0: i32) -> (i32, i32) {
    %c0_i32 = arith.constant 0 : i32
    %c0_i32_0 = arith.constant 0 : i32
    return %c0_i32, %arg0 : i32, i32
  }
}

module attributes {stable_mosaic.version = 11 : i64} {
  func.func @kernel(%arg0: i32, %arg1: memref<8x36xbf16, #tpu.memory_space<vmem>>, %arg2: memref<36x8xbf16, #tpu.memory_space<vmem>>, %arg3: memref<8x1xf32, #tpu.memory_space<vmem>>, %arg4: memref<8x8xf32, #tpu.memory_space<vmem>>) attributes {dimension_semantics = [#tpu.dimension_semantics<parallel>], iteration_bounds = array<i64: 1>, scalar_prefetch = 0 : i64, scratch_operands = 0 : i64, tpu.core_type = #tpu.core_type<tc>, window_params = [{pipeline_mode = #tpu.pipeline_mode<synchronous>, transform_indices = @transform_0, window_bounds = array<i64: 8, 36>}, {transform_indices = @transform_1, window_bounds = array<i64: 36, 8>}, {pipeline_mode = #tpu.pipeline_mode<synchronous>, transform_indices = @transform_2, window_bounds = array<i64: 8, 1>}, {transform_indices = @transform_3, window_bounds = array<i64: 8, 8>}]} {
    %c0 = arith.constant 0 : index
    %c0_0 = arith.constant 0 : index
    %0 = vector.load %arg1[%c0, %c0_0] : memref<8x36xbf16, #tpu.memory_space<vmem>>, vector<8x36xbf16>
    %c0_1 = arith.constant 0 : index
    %c0_2 = arith.constant 0 : index
    %1 = vector.load %arg2[%c0_1, %c0_2] : memref<36x8xbf16, #tpu.memory_space<vmem>>, vector<36x8xbf16>
    %cst = arith.constant dense<0.000000e+00> : vector<8x8xf32>
    %2 = tpu.matmul %0, %1, %cst {dimension_numbers = #tpu.dot_dimension_numbers<[1], [0], [0], [1], [0, 0, 1, 1], [], []>} : vector<8x36xbf16>, vector<36x8xbf16>, vector<8x8xf32> -> vector<8x8xf32>
    %c0_3 = arith.constant 0 : index
    %c0_4 = arith.constant 0 : index
    %3 = vector.load %arg3[%c0_3, %c0_4] : memref<8x1xf32, #tpu.memory_space<vmem>>, vector<8x1xf32>
    %4 = vector.broadcast %3 : vector<8x1xf32> to vector<8x8xf32>
    %5 = arith.addf %2, %4 : vector<8x8xf32>
    %cst_5 = arith.constant 0.000000e+00 : f32
    %6 = vector.broadcast %cst_5 : f32 to vector<8x8xf32>
    %7 = arith.maximumf %5, %6 : vector<8x8xf32>
    %c0_6 = arith.constant 0 : index
    %c0_7 = arith.constant 0 : index
    %8 = vector.load %arg4[%c0_6, %c0_7] : memref<8x8xf32, #tpu.memory_space<vmem>>, vector<8x8xf32>
    tpu.vector_store %arg4[%c0_6, %c0_7], %7 {strides = array<i32>} : memref<8x8xf32, #tpu.memory_space<vmem>>, vector<8x8xf32>,
    return
  }
  func.func @transform_0(%arg0: i32) -> (i32, i32) {
    %c0_i32 = arith.constant 0 : i32
    %c0_i32_0 = arith.constant 0 : i32
    %c0_i32_1 = arith.constant 0 : i32
    return %c0_i32, %c0_i32_0 : i32, i32
  }
  func.func @transform_1(%arg0: i32) -> (i32, i32) {
    %c0_i32 = arith.constant 0 : i32
    %c0_i32_0 = arith.constant 0 : i32
    return %c0_i32, %arg0 : i32, i32
  }
  func.func @transform_2(%arg0: i32) -> (i32, i32) {
    %c0_i32 = arith.constant 0 : i32
    %c0_i32_0 = arith.constant 0 : i32
    %c0_i32_1 = arith.constant 0 : i32
    return %c0_i32, %c0_i32_0 : i32, i32
  }
  func.func @transform_3(%arg0: i32) -> (i32, i32) {
    %c0_i32 = arith.constant 0 : i32
    %c0_i32_0 = arith.constant 0 : i32
    return %c0_i32, %arg0 : i32, i32
  }
}

module attributes {stable_mosaic.version = 11 : i64} {
  func.func @kernel(%arg0: i32, %arg1: memref<8x36xbf16, #tpu.memory_space<vmem>>, %arg2: memref<36x32xbf16, #tpu.memory_space<vmem>>, %arg3: memref<8x1xf32, #tpu.memory_space<vmem>>, %arg4: memref<8x32xf32, #tpu.memory_space<vmem>>, %arg5: memref<8x32xf32, #tpu.memory_space<vmem>>) attributes {dimension_semantics = [#tpu.dimension_semantics<parallel>], iteration_bounds = array<i64: 1>, scalar_prefetch = 0 : i64, scratch_operands = 0 : i64, tpu.core_type = #tpu.core_type<tc>, window_params = [{pipeline_mode = #tpu.pipeline_mode<synchronous>, transform_indices = @transform_0, window_bounds = array<i64: 8, 36>}, {transform_indices = @transform_1, window_bounds = array<i64: 36, 32>}, {pipeline_mode = #tpu.pipeline_mode<synchronous>, transform_indices = @transform_2, window_bounds = array<i64: 8, 1>}, {transform_indices = @transform_3, window_bounds = array<i64: 8, 32>}, {transform_indices = @transform_4, window_bounds = array<i64: 8, 32>}]} {
    %c0 = arith.constant 0 : index
    %c0_0 = arith.constant 0 : index
    %0 = vector.load %arg1[%c0, %c0_0] : memref<8x36xbf16, #tpu.memory_space<vmem>>, vector<8x36xbf16>
    %c0_1 = arith.constant 0 : index
    %c0_2 = arith.constant 0 : index
    %1 = vector.load %arg2[%c0_1, %c0_2] : memref<36x32xbf16, #tpu.memory_space<vmem>>, vector<36x32xbf16>
    %cst = arith.constant dense<0.000000e+00> : vector<8x32xf32>
    %2 = tpu.matmul %0, %1, %cst {dimension_numbers = #tpu.dot_dimension_numbers<[1], [0], [0], [1], [0, 0, 1, 1], [], []>} : vector<8x36xbf16>, vector<36x32xbf16>, vector<8x32xf32> -> vector<8x32xf32>
    %c0_3 = arith.constant 0 : index
    %c0_4 = arith.constant 0 : index
    %3 = vector.load %arg3[%c0_3, %c0_4] : memref<8x1xf32, #tpu.memory_space<vmem>>, vector<8x1xf32>
    %c0_5 = arith.constant 0 : index
    %c0_6 = arith.constant 0 : index
    %4 = vector.load %arg4[%c0_5, %c0_6] : memref<8x32xf32, #tpu.memory_space<vmem>>, vector<8x32xf32>
    %5 = vector.broadcast %3 : vector<8x1xf32> to vector<8x32xf32>
    %6 = arith.addf %2, %5 : vector<8x32xf32>
    %cst_7 = arith.constant 0.000000e+00 : f32
    %7 = vector.broadcast %cst_7 : f32 to vector<8x32xf32>
    %8 = arith.maximumf %6, %7 : vector<8x32xf32>
    %9 = arith.addf %8, %4 : vector<8x32xf32>
    %c0_8 = arith.constant 0 : index
    %c0_9 = arith.constant 0 : index
    %10 = vector.load %arg5[%c0_8, %c0_9] : memref<8x32xf32, #tpu.memory_space<vmem>>, vector<8x32xf32>
    tpu.vector_store %arg5[%c0_8, %c0_9], %9 {strides = array<i32>} : memref<8x32xf32, #tpu.memory_space<vmem>>, vector<8x32xf32>,
    return
  }
  func.func @transform_0(%arg0: i32) -> (i32, i32) {
    %c0_i32 = arith.constant 0 : i32
    %c0_i32_0 = arith.constant 0 : i32
    %c0_i32_1 = arith.constant 0 : i32
    return %c0_i32, %c0_i32_0 : i32, i32
  }
  func.func @transform_1(%arg0: i32) -> (i32, i32) {
    %c0_i32 = arith.constant 0 : i32
    %c0_i32_0 = arith.constant 0 : i32
    return %c0_i32, %arg0 : i32, i32
  }
  func.func @transform_2(%arg0: i32) -> (i32, i32) {
    %c0_i32 = arith.constant 0 : i32
    %c0_i32_0 = arith.constant 0 : i32
    %c0_i32_1 = arith.constant 0 : i32
    return %c0_i32, %c0_i32_0 : i32, i32
  }
  func.func @transform_3(%arg0: i32) -> (i32, i32) {
    %c0_i32 = arith.constant 0 : i32
    %c0_i32_0 = arith.constant 0 : i32
    return %c0_i32, %arg0 : i32, i32
  }
  func.func @transform_4(%arg0: i32) -> (i32, i32) {
    %c0_i32 = arith.constant 0 : i32
    %c0_i32_0 = arith.constant 0 : i32
    return %c0_i32, %arg0 : i32, i32
  }
}

module attributes {stable_mosaic.version = 11 : i64} {
  func.func @kernel(%arg0: i32, %arg1: memref<8x36xbf16, #tpu.memory_space<vmem>>, %arg2: memref<36x128xbf16, #tpu.memory_space<vmem>>, %arg3: memref<8x1xf32, #tpu.memory_space<vmem>>, %arg4: memref<8x128xf32, #tpu.memory_space<vmem>>, %arg5: memref<8x128xf32, #tpu.memory_space<vmem>>) attributes {dimension_semantics = [#tpu.dimension_semantics<parallel>], iteration_bounds = array<i64: 1>, scalar_prefetch = 0 : i64, scratch_operands = 0 : i64, tpu.core_type = #tpu.core_type<tc>, window_params = [{pipeline_mode = #tpu.pipeline_mode<synchronous>, transform_indices = @transform_0, window_bounds = array<i64: 8, 36>}, {transform_indices = @transform_1, window_bounds = array<i64: 36, 128>}, {pipeline_mode = #tpu.pipeline_mode<synchronous>, transform_indices = @transform_2, window_bounds = array<i64: 8, 1>}, {transform_indices = @transform_3, window_bounds = array<i64: 8, 128>}, {transform_indices = @transform_4, window_bounds = array<i64: 8, 128>}]} {
    %c0 = arith.constant 0 : index
    %c0_0 = arith.constant 0 : index
    %0 = vector.load %arg1[%c0, %c0_0] : memref<8x36xbf16, #tpu.memory_space<vmem>>, vector<8x36xbf16>
    %c0_1 = arith.constant 0 : index
    %c0_2 = arith.constant 0 : index
    %1 = vector.load %arg2[%c0_1, %c0_2] : memref<36x128xbf16, #tpu.memory_space<vmem>>, vector<36x128xbf16>
    %cst = arith.constant dense<0.000000e+00> : vector<8x128xf32>
    %2 = tpu.matmul %0, %1, %cst {dimension_numbers = #tpu.dot_dimension_numbers<[1], [0], [0], [1], [0, 0, 1, 1], [], []>} : vector<8x36xbf16>, vector<36x128xbf16>, vector<8x128xf32> -> vector<8x128xf32>
    %c0_3 = arith.constant 0 : index
    %c0_4 = arith.constant 0 : index
    %3 = vector.load %arg3[%c0_3, %c0_4] : memref<8x1xf32, #tpu.memory_space<vmem>>, vector<8x1xf32>
    %c0_5 = arith.constant 0 : index
    %c0_6 = arith.constant 0 : index
    %4 = vector.load %arg4[%c0_5, %c0_6] : memref<8x128xf32, #tpu.memory_space<vmem>>, vector<8x128xf32>
    %5 = vector.broadcast %3 : vector<8x1xf32> to vector<8x128xf32>
    %6 = arith.addf %2, %5 : vector<8x128xf32>
    %cst_7 = arith.constant 0.000000e+00 : f32
    %7 = vector.broadcast %cst_7 : f32 to vector<8x128xf32>
    %8 = arith.maximumf %6, %7 : vector<8x128xf32>
    %9 = arith.addf %8, %4 : vector<8x128xf32>
    %c0_8 = arith.constant 0 : index
    %c0_9 = arith.constant 0 : index
    %10 = vector.load %arg5[%c0_8, %c0_9] : memref<8x128xf32, #tpu.memory_space<vmem>>, vector<8x128xf32>
    tpu.vector_store %arg5[%c0_8, %c0_9], %9 {strides = array<i32>} : memref<8x128xf32, #tpu.memory_space<vmem>>, vector<8x128xf32>,
    return
  }
  func.func @transform_0(%arg0: i32) -> (i32, i32) {
    %c0_i32 = arith.constant 0 : i32
    %c0_i32_0 = arith.constant 0 : i32
    %c0_i32_1 = arith.constant 0 : i32
    return %c0_i32, %c0_i32_0 : i32, i32
  }
  func.func @transform_1(%arg0: i32) -> (i32, i32) {
    %c0_i32 = arith.constant 0 : i32
    %c0_i32_0 = arith.constant 0 : i32
    return %c0_i32, %arg0 : i32, i32
  }
  func.func @transform_2(%arg0: i32) -> (i32, i32) {
    %c0_i32 = arith.constant 0 : i32
    %c0_i32_0 = arith.constant 0 : i32
    %c0_i32_1 = arith.constant 0 : i32
    return %c0_i32, %c0_i32_0 : i32, i32
  }
  func.func @transform_3(%arg0: i32) -> (i32, i32) {
    %c0_i32 = arith.constant 0 : i32
    %c0_i32_0 = arith.constant 0 : i32
    return %c0_i32, %arg0 : i32, i32
  }
  func.func @transform_4(%arg0: i32) -> (i32, i32) {
    %c0_i32 = arith.constant 0 : i32
    %c0_i32_0 = arith.constant 0 : i32
    return %c0_i32, %arg0 : i32, i32
  }
}

module attributes {stable_mosaic.version = 11 : i64} {
  func.func @kernel(%arg0: i32, %arg1: memref<8x72xbf16, #tpu.memory_space<vmem>>, %arg2: memref<72x256xbf16, #tpu.memory_space<vmem>>, %arg3: memref<8x1xf32, #tpu.memory_space<vmem>>, %arg4: memref<8x256xf32, #tpu.memory_space<vmem>>) attributes {dimension_semantics = [#tpu.dimension_semantics<parallel>], iteration_bounds = array<i64: 2>, scalar_prefetch = 0 : i64, scratch_operands = 0 : i64, tpu.core_type = #tpu.core_type<tc>, window_params = [{pipeline_mode = #tpu.pipeline_mode<synchronous>, transform_indices = @transform_0, window_bounds = array<i64: 8, 72>}, {transform_indices = @transform_1, window_bounds = array<i64: 72, 256>}, {pipeline_mode = #tpu.pipeline_mode<synchronous>, transform_indices = @transform_2, window_bounds = array<i64: 8, 1>}, {transform_indices = @transform_3, window_bounds = array<i64: 8, 256>}]} {
    %c0 = arith.constant 0 : index
    %c0_0 = arith.constant 0 : index
    %0 = vector.load %arg1[%c0, %c0_0] : memref<8x72xbf16, #tpu.memory_space<vmem>>, vector<8x72xbf16>
    %c0_1 = arith.constant 0 : index
    %c0_2 = arith.constant 0 : index
    %1 = vector.load %arg2[%c0_1, %c0_2] : memref<72x256xbf16, #tpu.memory_space<vmem>>, vector<72x256xbf16>
    %cst = arith.constant dense<0.000000e+00> : vector<8x256xf32>
    %2 = tpu.matmul %0, %1, %cst {dimension_numbers = #tpu.dot_dimension_numbers<[1], [0], [0], [1], [0, 0, 1, 1], [], []>} : vector<8x72xbf16>, vector<72x256xbf16>, vector<8x256xf32> -> vector<8x256xf32>
    %c0_3 = arith.constant 0 : index
    %c0_4 = arith.constant 0 : index
    %3 = vector.load %arg3[%c0_3, %c0_4] : memref<8x1xf32, #tpu.memory_space<vmem>>, vector<8x1xf32>
    %4 = vector.broadcast %3 : vector<8x1xf32> to vector<8x256xf32>
    %5 = arith.addf %2, %4 : vector<8x256xf32>
    %cst_5 = arith.constant 0.000000e+00 : f32
    %6 = vector.broadcast %cst_5 : f32 to vector<8x256xf32>
    %7 = arith.maximumf %5, %6 : vector<8x256xf32>
    %c0_6 = arith.constant 0 : index
    %c0_7 = arith.constant 0 : index
    %8 = vector.load %arg4[%c0_6, %c0_7] : memref<8x256xf32, #tpu.memory_space<vmem>>, vector<8x256xf32>
    tpu.vector_store %arg4[%c0_6, %c0_7], %7 {strides = array<i32>} : memref<8x256xf32, #tpu.memory_space<vmem>>, vector<8x256xf32>,
    return
  }
  func.func @transform_0(%arg0: i32) -> (i32, i32) {
    %c0_i32 = arith.constant 0 : i32
    %c0_i32_0 = arith.constant 0 : i32
    %c0_i32_1 = arith.constant 0 : i32
    return %c0_i32, %c0_i32_0 : i32, i32
  }
  func.func @transform_1(%arg0: i32) -> (i32, i32) {
    %c0_i32 = arith.constant 0 : i32
    %c0_i32_0 = arith.constant 0 : i32
    return %c0_i32, %arg0 : i32, i32
  }
  func.func @transform_2(%arg0: i32) -> (i32, i32) {
    %c0_i32 = arith.constant 0 : i32
    %c0_i32_0 = arith.constant 0 : i32
    %c0_i32_1 = arith.constant 0 : i32
    return %c0_i32, %c0_i32_0 : i32, i32
  }
  func.func @transform_3(%arg0: i32) -> (i32, i32) {
    %c0_i32 = arith.constant 0 : i32
    %c0_i32_0 = arith.constant 0 : i32
    return %c0_i32, %arg0 : i32, i32
  }
}

module attributes {stable_mosaic.version = 11 : i64} {
  func.func @kernel(%arg0: i32, %arg1: memref<24x72xbf16, #tpu.memory_space<vmem>>, %arg2: memref<72x256xbf16, #tpu.memory_space<vmem>>, %arg3: memref<24x1xf32, #tpu.memory_space<vmem>>, %arg4: memref<24x256xf32, #tpu.memory_space<vmem>>) attributes {dimension_semantics = [#tpu.dimension_semantics<parallel>], iteration_bounds = array<i64: 2>, scalar_prefetch = 0 : i64, scratch_operands = 0 : i64, tpu.core_type = #tpu.core_type<tc>, window_params = [{pipeline_mode = #tpu.pipeline_mode<synchronous>, transform_indices = @transform_0, window_bounds = array<i64: 24, 72>}, {transform_indices = @transform_1, window_bounds = array<i64: 72, 256>}, {pipeline_mode = #tpu.pipeline_mode<synchronous>, transform_indices = @transform_2, window_bounds = array<i64: 24, 1>}, {transform_indices = @transform_3, window_bounds = array<i64: 24, 256>}]} {
    %c0 = arith.constant 0 : index
    %c0_0 = arith.constant 0 : index
    %0 = vector.load %arg1[%c0, %c0_0] : memref<24x72xbf16, #tpu.memory_space<vmem>>, vector<24x72xbf16>
    %c0_1 = arith.constant 0 : index
    %c0_2 = arith.constant 0 : index
    %1 = vector.load %arg2[%c0_1, %c0_2] : memref<72x256xbf16, #tpu.memory_space<vmem>>, vector<72x256xbf16>
    %cst = arith.constant dense<0.000000e+00> : vector<24x256xf32>
    %2 = tpu.matmul %0, %1, %cst {dimension_numbers = #tpu.dot_dimension_numbers<[1], [0], [0], [1], [0, 0, 1, 1], [], []>} : vector<24x72xbf16>, vector<72x256xbf16>, vector<24x256xf32> -> vector<24x256xf32>
    %c0_3 = arith.constant 0 : index
    %c0_4 = arith.constant 0 : index
    %3 = vector.load %arg3[%c0_3, %c0_4] : memref<24x1xf32, #tpu.memory_space<vmem>>, vector<24x1xf32>
    %4 = vector.broadcast %3 : vector<24x1xf32> to vector<24x256xf32>
    %5 = arith.addf %2, %4 : vector<24x256xf32>
    %c0_5 = arith.constant 0 : index
    %c0_6 = arith.constant 0 : index
    %6 = vector.load %arg4[%c0_5, %c0_6] : memref<24x256xf32, #tpu.memory_space<vmem>>, vector<24x256xf32>
    tpu.vector_store %arg4[%c0_5, %c0_6], %5 {strides = array<i32>} : memref<24x256xf32, #tpu.memory_space<vmem>>, vector<24x256xf32>,
    return
  }
  func.func @transform_0(%arg0: i32) -> (i32, i32) {
    %c0_i32 = arith.constant 0 : i32
    %c0_i32_0 = arith.constant 0 : i32
    %c0_i32_1 = arith.constant 0 : i32
    return %c0_i32, %c0_i32_0 : i32, i32
  }
  func.func @transform_1(%arg0: i32) -> (i32, i32) {
    %c0_i32 = arith.constant 0 : i32
    %c0_i32_0 = arith.constant 0 : i32
    return %c0_i32, %arg0 : i32, i32
  }
  func.func @transform_2(%arg0: i32) -> (i32, i32) {
    %c0_i32 = arith.constant 0 : i32
    %c0_i32_0 = arith.constant 0 : i32
    %c0_i32_1 = arith.constant 0 : i32
    return %c0_i32, %c0_i32_0 : i32, i32
  }
  func.func @transform_3(%arg0: i32) -> (i32, i32) {
    %c0_i32 = arith.constant 0 : i32
    %c0_i32_0 = arith.constant 0 : i32
    return %c0_i32, %arg0 : i32, i32
  }
}

module attributes {stable_mosaic.version = 11 : i64} {
  func.func @lm_nll_kernel(%arg0: i32, %arg1: memref<1x512xf32, #tpu.memory_space<vmem>>, %arg2: memref<2x512xf32, #tpu.memory_space<vmem>>, %arg3: memref<2x512xf32, #tpu.memory_space<vmem>>, %arg4: memref<2x512xf32, #tpu.memory_space<vmem>>, %arg5: memref<1x512xf32, #tpu.memory_space<vmem>>) attributes {dimension_semantics = [#tpu.dimension_semantics<parallel>], iteration_bounds = array<i64: 3>, scalar_prefetch = 0 : i64, scratch_operands = 0 : i64, tpu.core_type = #tpu.core_type<tc>, window_params = [{transform_indices = @transform_0, window_bounds = array<i64: 1, 512>}, {transform_indices = @transform_1, window_bounds = array<i64: 2, 512>}, {transform_indices = @transform_2, window_bounds = array<i64: 2, 512>}, {transform_indices = @transform_3, window_bounds = array<i64: 2, 512>}, {transform_indices = @transform_4, window_bounds = array<i64: 1, 512>}]} {
    %c0 = arith.constant 0 : index
    %c0_0 = arith.constant 0 : index
    %0 = vector.load %arg1[%c0, %c0_0] : memref<1x512xf32, #tpu.memory_space<vmem>>, vector<1x512xf32>
    %c0_1 = arith.constant 0 : index
    %c0_2 = arith.constant 0 : index
    %1 = vector.load %arg2[%c0_1, %c0_2] : memref<2x512xf32, #tpu.memory_space<vmem>>, vector<2x512xf32>
    %c0_3 = arith.constant 0 : index
    %c0_4 = arith.constant 0 : index
    %2 = vector.load %arg3[%c0_3, %c0_4] : memref<2x512xf32, #tpu.memory_space<vmem>>, vector<2x512xf32>
    %cst = arith.constant -7.000000e+00 : f32
    %3 = vector.broadcast %cst : f32 to vector<2x512xf32>
    %4 = arith.maximumf %2, %3 : vector<2x512xf32>
    %c0_5 = arith.constant 0 : index
    %c0_6 = arith.constant 0 : index
    %5 = vector.load %arg4[%c0_5, %c0_6] : memref<2x512xf32, #tpu.memory_space<vmem>>, vector<2x512xf32>
    %cst_7 = arith.constant dense<0xFF800000> : vector<512xf32>
    %6 = vector.multi_reduction <maximumf>, %5, %cst_7 [0] : vector<2x512xf32> to vector<512xf32>
    %7 = vector.shape_cast %6 : vector<512xf32> to vector<1x512xf32>
    %8 = vector.broadcast %7 : vector<1x512xf32> to vector<2x512xf32>
    %9 = arith.subf %5, %8 : vector<2x512xf32>
    %10 = math.exp %9 : vector<2x512xf32>
    %cst_8 = arith.constant 0.000000e+00 : f32
    %11 = vector.broadcast %cst_8 : f32 to vector<2x512xf32>
    %12 = arith.subf %11, %4 : vector<2x512xf32>
    %13 = math.exp %12 : vector<2x512xf32>
    %cst_9 = arith.constant 5.000000e-01 : f32
    %14 = vector.broadcast %cst_9 : f32 to vector<1x512xf32>
    %15 = arith.addf %0, %14 : vector<1x512xf32>
    %16 = vector.broadcast %15 : vector<1x512xf32> to vector<2x512xf32>
    %17 = arith.subf %16, %1 : vector<2x512xf32>
    %18 = arith.mulf %17, %13 : vector<2x512xf32>
    %19 = arith.negf %18 : vector<2x512xf32>
    %20 = math.exp %19 : vector<2x512xf32>
    %cst_10 = arith.constant 1.000000e+00 : f32
    %21 = vector.broadcast %cst_10 : f32 to vector<2x512xf32>
    %22 = arith.addf %21, %20 : vector<2x512xf32>
    %23 = arith.divf %21, %22 : vector<2x512xf32>
    %cst_11 = arith.constant 5.000000e-01 : f32
    %24 = vector.broadcast %cst_11 : f32 to vector<1x512xf32>
    %25 = arith.subf %0, %24 : vector<1x512xf32>
    %26 = vector.broadcast %25 : vector<1x512xf32> to vector<2x512xf32>
    %27 = arith.subf %26, %1 : vector<2x512xf32>
    %28 = arith.mulf %27, %13 : vector<2x512xf32>
    %29 = arith.negf %28 : vector<2x512xf32>
    %30 = math.exp %29 : vector<2x512xf32>
    %cst_12 = arith.constant 1.000000e+00 : f32
    %31 = vector.broadcast %cst_12 : f32 to vector<2x512xf32>
    %32 = arith.addf %31, %30 : vector<2x512xf32>
    %33 = arith.divf %31, %32 : vector<2x512xf32>
    %cst_13 = arith.constant 5.000000e-01 : f32
    %34 = vector.broadcast %cst_13 : f32 to vector<1x512xf32>
    %35 = arith.cmpf ole, %0, %34 : vector<1x512xf32>
    %cst_14 = arith.constant 2.545000e+02 : f32
    %36 = vector.broadcast %cst_14 : f32 to vector<1x512xf32>
    %37 = arith.cmpf oge, %0, %36 : vector<1x512xf32>
    %cst_15 = arith.constant 1.000000e+00 : f32
    %38 = vector.broadcast %cst_15 : f32 to vector<2x512xf32>
    %39 = arith.subf %38, %33 : vector<2x512xf32>
    %40 = arith.subf %23, %33 : vector<2x512xf32>
    %41 = vector.shape_cast %37 : vector<1x512xi1> to vector<1x512xi1>
    %42 = vector.broadcast %41 : vector<1x512xi1> to vector<2x512xi1>
    %43 = arith.select %42, %39, %40 : vector<2x512xi1>, vector<2x512xf32>
    %44 = vector.shape_cast %35 : vector<1x512xi1> to vector<1x512xi1>
    %45 = vector.broadcast %44 : vector<1x512xi1> to vector<2x512xi1>
    %46 = arith.select %45, %23, %43 : vector<2x512xi1>, vector<2x512xf32>
    %47 = arith.mulf %10, %46 : vector<2x512xf32>
    %cst_16 = arith.constant dense<0.000000e+00> : vector<512xf32>
    %48 = vector.multi_reduction <add>, %47, %cst_16 [0] : vector<2x512xf32> to vector<512xf32>
    %49 = vector.shape_cast %48 : vector<512xf32> to vector<1x512xf32>
    %cst_17 = arith.constant dense<0.000000e+00> : vector<512xf32>
    %50 = vector.multi_reduction <add>, %10, %cst_17 [0] : vector<2x512xf32> to vector<512xf32>
    %51 = vector.shape_cast %50 : vector<512xf32> to vector<1x512xf32>
    %52 = tpu.reciprocal %51 {approx = true} : vector<1x512xf32> -> vector<1x512xf32>
    %53 = arith.mulf %49, %52 : vector<1x512xf32>
    %cst_18 = arith.constant 1.000000e-10 : f32
    %54 = vector.broadcast %cst_18 : f32 to vector<1x512xf32>
    %55 = arith.addf %53, %54 : vector<1x512xf32>
    %56 = math.log %55 : vector<1x512xf32>
    %cst_19 = arith.constant 0.000000e+00 : f32
    %57 = vector.broadcast %cst_19 : f32 to vector<1x512xf32>
    %58 = arith.subf %57, %56 : vector<1x512xf32>
    %c0_20 = arith.constant 0 : index
    %c0_21 = arith.constant 0 : index
    %59 = vector.load %arg5[%c0_20, %c0_21] : memref<1x512xf32, #tpu.memory_space<vmem>>, vector<1x512xf32>
    tpu.vector_store %arg5[%c0_20, %c0_21], %58 {strides = array<i32>} : memref<1x512xf32, #tpu.memory_space<vmem>>, vector<1x512xf32>,
    return
  }
  func.func @transform_0(%arg0: i32) -> (i32, i32) {
    %c0_i32 = arith.constant 0 : i32
    %c0_i32_0 = arith.constant 0 : i32
    return %c0_i32, %arg0 : i32, i32
  }
  func.func @transform_1(%arg0: i32) -> (i32, i32) {
    %c0_i32 = arith.constant 0 : i32
    %c0_i32_0 = arith.constant 0 : i32
    return %c0_i32, %arg0 : i32, i32
  }
  func.func @transform_2(%arg0: i32) -> (i32, i32) {
    %c0_i32 = arith.constant 0 : i32
    %c0_i32_0 = arith.constant 0 : i32
    return %c0_i32, %arg0 : i32, i32
  }
  func.func @transform_3(%arg0: i32) -> (i32, i32) {
    %c0_i32 = arith.constant 0 : i32
    %c0_i32_0 = arith.constant 0 : i32
    return %c0_i32, %arg0 : i32, i32
  }
  func.func @transform_4(%arg0: i32) -> (i32, i32) {
    %c0_i32 = arith.constant 0 : i32
    %c0_i32_0 = arith.constant 0 : i32
    return %c0_i32, %arg0 : i32, i32
  }
}

module attributes {stable_mosaic.version = 11 : i64} {
  func.func @kernel(%arg0: i32, %arg1: memref<24x72xbf16, #tpu.memory_space<vmem>>, %arg2: memref<72x128xbf16, #tpu.memory_space<vmem>>, %arg3: memref<24x1xf32, #tpu.memory_space<vmem>>, %arg4: memref<24x128xf32, #tpu.memory_space<vmem>>) attributes {dimension_semantics = [#tpu.dimension_semantics<parallel>], iteration_bounds = array<i64: 1>, scalar_prefetch = 0 : i64, scratch_operands = 0 : i64, tpu.core_type = #tpu.core_type<tc>, window_params = [{pipeline_mode = #tpu.pipeline_mode<synchronous>, transform_indices = @transform_0, window_bounds = array<i64: 24, 72>}, {transform_indices = @transform_1, window_bounds = array<i64: 72, 128>}, {pipeline_mode = #tpu.pipeline_mode<synchronous>, transform_indices = @transform_2, window_bounds = array<i64: 24, 1>}, {transform_indices = @transform_3, window_bounds = array<i64: 24, 128>}]} {
    %c0 = arith.constant 0 : index
    %c0_0 = arith.constant 0 : index
    %0 = vector.load %arg1[%c0, %c0_0] : memref<24x72xbf16, #tpu.memory_space<vmem>>, vector<24x72xbf16>
    %c0_1 = arith.constant 0 : index
    %c0_2 = arith.constant 0 : index
    %1 = vector.load %arg2[%c0_1, %c0_2] : memref<72x128xbf16, #tpu.memory_space<vmem>>, vector<72x128xbf16>
    %cst = arith.constant dense<0.000000e+00> : vector<24x128xf32>
    %2 = tpu.matmul %0, %1, %cst {dimension_numbers = #tpu.dot_dimension_numbers<[1], [0], [0], [1], [0, 0, 1, 1], [], []>} : vector<24x72xbf16>, vector<72x128xbf16>, vector<24x128xf32> -> vector<24x128xf32>
    %c0_3 = arith.constant 0 : index
    %c0_4 = arith.constant 0 : index
    %3 = vector.load %arg3[%c0_3, %c0_4] : memref<24x1xf32, #tpu.memory_space<vmem>>, vector<24x1xf32>
    %4 = vector.broadcast %3 : vector<24x1xf32> to vector<24x128xf32>
    %5 = arith.addf %2, %4 : vector<24x128xf32>
    %c0_5 = arith.constant 0 : index
    %c0_6 = arith.constant 0 : index
    %6 = vector.load %arg4[%c0_5, %c0_6] : memref<24x128xf32, #tpu.memory_space<vmem>>, vector<24x128xf32>
    tpu.vector_store %arg4[%c0_5, %c0_6], %5 {strides = array<i32>} : memref<24x128xf32, #tpu.memory_space<vmem>>, vector<24x128xf32>,
    return
  }
  func.func @transform_0(%arg0: i32) -> (i32, i32) {
    %c0_i32 = arith.constant 0 : i32
    %c0_i32_0 = arith.constant 0 : i32
    %c0_i32_1 = arith.constant 0 : i32
    return %c0_i32, %c0_i32_0 : i32, i32
  }
  func.func @transform_1(%arg0: i32) -> (i32, i32) {
    %c0_i32 = arith.constant 0 : i32
    %c0_i32_0 = arith.constant 0 : i32
    return %c0_i32, %arg0 : i32, i32
  }
  func.func @transform_2(%arg0: i32) -> (i32, i32) {
    %c0_i32 = arith.constant 0 : i32
    %c0_i32_0 = arith.constant 0 : i32
    %c0_i32_1 = arith.constant 0 : i32
    return %c0_i32, %c0_i32_0 : i32, i32
  }
  func.func @transform_3(%arg0: i32) -> (i32, i32) {
    %c0_i32 = arith.constant 0 : i32
    %c0_i32_0 = arith.constant 0 : i32
    return %c0_i32, %arg0 : i32, i32
  }
}

module attributes {stable_mosaic.version = 11 : i64} {
  func.func @lm_nll_kernel(%arg0: i32, %arg1: memref<1x256xf32, #tpu.memory_space<vmem>>, %arg2: memref<2x256xf32, #tpu.memory_space<vmem>>, %arg3: memref<2x256xf32, #tpu.memory_space<vmem>>, %arg4: memref<2x256xf32, #tpu.memory_space<vmem>>, %arg5: memref<1x256xf32, #tpu.memory_space<vmem>>) attributes {dimension_semantics = [#tpu.dimension_semantics<parallel>], iteration_bounds = array<i64: 2>, scalar_prefetch = 0 : i64, scratch_operands = 0 : i64, tpu.core_type = #tpu.core_type<tc>, window_params = [{transform_indices = @transform_0, window_bounds = array<i64: 1, 256>}, {transform_indices = @transform_1, window_bounds = array<i64: 2, 256>}, {transform_indices = @transform_2, window_bounds = array<i64: 2, 256>}, {transform_indices = @transform_3, window_bounds = array<i64: 2, 256>}, {transform_indices = @transform_4, window_bounds = array<i64: 1, 256>}]} {
    %c0 = arith.constant 0 : index
    %c0_0 = arith.constant 0 : index
    %0 = vector.load %arg1[%c0, %c0_0] : memref<1x256xf32, #tpu.memory_space<vmem>>, vector<1x256xf32>
    %c0_1 = arith.constant 0 : index
    %c0_2 = arith.constant 0 : index
    %1 = vector.load %arg2[%c0_1, %c0_2] : memref<2x256xf32, #tpu.memory_space<vmem>>, vector<2x256xf32>
    %c0_3 = arith.constant 0 : index
    %c0_4 = arith.constant 0 : index
    %2 = vector.load %arg3[%c0_3, %c0_4] : memref<2x256xf32, #tpu.memory_space<vmem>>, vector<2x256xf32>
    %cst = arith.constant -7.000000e+00 : f32
    %3 = vector.broadcast %cst : f32 to vector<2x256xf32>
    %4 = arith.maximumf %2, %3 : vector<2x256xf32>
    %c0_5 = arith.constant 0 : index
    %c0_6 = arith.constant 0 : index
    %5 = vector.load %arg4[%c0_5, %c0_6] : memref<2x256xf32, #tpu.memory_space<vmem>>, vector<2x256xf32>
    %cst_7 = arith.constant dense<0xFF800000> : vector<256xf32>
    %6 = vector.multi_reduction <maximumf>, %5, %cst_7 [0] : vector<2x256xf32> to vector<256xf32>
    %7 = vector.shape_cast %6 : vector<256xf32> to vector<1x256xf32>
    %8 = vector.broadcast %7 : vector<1x256xf32> to vector<2x256xf32>
    %9 = arith.subf %5, %8 : vector<2x256xf32>
    %10 = math.exp %9 : vector<2x256xf32>
    %cst_8 = arith.constant 0.000000e+00 : f32
    %11 = vector.broadcast %cst_8 : f32 to vector<2x256xf32>
    %12 = arith.subf %11, %4 : vector<2x256xf32>
    %13 = math.exp %12 : vector<2x256xf32>
    %cst_9 = arith.constant 0.142857149 : f32
    %14 = vector.broadcast %cst_9 : f32 to vector<1x256xf32>
    %15 = arith.addf %0, %14 : vector<1x256xf32>
    %16 = vector.broadcast %15 : vector<1x256xf32> to vector<2x256xf32>
    %17 = arith.subf %16, %1 : vector<2x256xf32>
    %18 = arith.mulf %17, %13 : vector<2x256xf32>
    %19 = arith.negf %18 : vector<2x256xf32>
    %20 = math.exp %19 : vector<2x256xf32>
    %cst_10 = arith.constant 1.000000e+00 : f32
    %21 = vector.broadcast %cst_10 : f32 to vector<2x256xf32>
    %22 = arith.addf %21, %20 : vector<2x256xf32>
    %23 = arith.divf %21, %22 : vector<2x256xf32>
    %cst_11 = arith.constant 0.142857149 : f32
    %24 = vector.broadcast %cst_11 : f32 to vector<1x256xf32>
    %25 = arith.subf %0, %24 : vector<1x256xf32>
    %26 = vector.broadcast %25 : vector<1x256xf32> to vector<2x256xf32>
    %27 = arith.subf %26, %1 : vector<2x256xf32>
    %28 = arith.mulf %27, %13 : vector<2x256xf32>
    %29 = arith.negf %28 : vector<2x256xf32>
    %30 = math.exp %29 : vector<2x256xf32>
    %cst_12 = arith.constant 1.000000e+00 : f32
    %31 = vector.broadcast %cst_12 : f32 to vector<2x256xf32>
    %32 = arith.addf %31, %30 : vector<2x256xf32>
    %33 = arith.divf %31, %32 : vector<2x256xf32>
    %cst_13 = arith.constant -0.857142865 : f32
    %34 = vector.broadcast %cst_13 : f32 to vector<1x256xf32>
    %35 = arith.cmpf ole, %0, %34 : vector<1x256xf32>
    %cst_14 = arith.constant 0.857142865 : f32
    %36 = vector.broadcast %cst_14 : f32 to vector<1x256xf32>
    %37 = arith.cmpf oge, %0, %36 : vector<1x256xf32>
    %cst_15 = arith.constant 1.000000e+00 : f32
    %38 = vector.broadcast %cst_15 : f32 to vector<2x256xf32>
    %39 = arith.subf %38, %33 : vector<2x256xf32>
    %40 = arith.subf %23, %33 : vector<2x256xf32>
    %41 = vector.shape_cast %37 : vector<1x256xi1> to vector<1x256xi1>
    %42 = vector.broadcast %41 : vector<1x256xi1> to vector<2x256xi1>
    %43 = arith.select %42, %39, %40 : vector<2x256xi1>, vector<2x256xf32>
    %44 = vector.shape_cast %35 : vector<1x256xi1> to vector<1x256xi1>
    %45 = vector.broadcast %44 : vector<1x256xi1> to vector<2x256xi1>
    %46 = arith.select %45, %23, %43 : vector<2x256xi1>, vector<2x256xf32>
    %47 = arith.mulf %10, %46 : vector<2x256xf32>
    %cst_16 = arith.constant dense<0.000000e+00> : vector<256xf32>
    %48 = vector.multi_reduction <add>, %47, %cst_16 [0] : vector<2x256xf32> to vector<256xf32>
    %49 = vector.shape_cast %48 : vector<256xf32> to vector<1x256xf32>
    %cst_17 = arith.constant dense<0.000000e+00> : vector<256xf32>
    %50 = vector.multi_reduction <add>, %10, %cst_17 [0] : vector<2x256xf32> to vector<256xf32>
    %51 = vector.shape_cast %50 : vector<256xf32> to vector<1x256xf32>
    %52 = tpu.reciprocal %51 {approx = true} : vector<1x256xf32> -> vector<1x256xf32>
    %53 = arith.mulf %49, %52 : vector<1x256xf32>
    %cst_18 = arith.constant 1.000000e-10 : f32
    %54 = vector.broadcast %cst_18 : f32 to vector<1x256xf32>
    %55 = arith.addf %53, %54 : vector<1x256xf32>
    %56 = math.log %55 : vector<1x256xf32>
    %cst_19 = arith.constant 0.000000e+00 : f32
    %57 = vector.broadcast %cst_19 : f32 to vector<1x256xf32>
    %58 = arith.subf %57, %56 : vector<1x256xf32>
    %c0_20 = arith.constant 0 : index
    %c0_21 = arith.constant 0 : index
    %59 = vector.load %arg5[%c0_20, %c0_21] : memref<1x256xf32, #tpu.memory_space<vmem>>, vector<1x256xf32>
    tpu.vector_store %arg5[%c0_20, %c0_21], %58 {strides = array<i32>} : memref<1x256xf32, #tpu.memory_space<vmem>>, vector<1x256xf32>,
    return
  }
  func.func @transform_0(%arg0: i32) -> (i32, i32) {
    %c0_i32 = arith.constant 0 : i32
    %c0_i32_0 = arith.constant 0 : i32
    return %c0_i32, %arg0 : i32, i32
  }
  func.func @transform_1(%arg0: i32) -> (i32, i32) {
    %c0_i32 = arith.constant 0 : i32
    %c0_i32_0 = arith.constant 0 : i32
    return %c0_i32, %arg0 : i32, i32
  }
  func.func @transform_2(%arg0: i32) -> (i32, i32) {
    %c0_i32 = arith.constant 0 : i32
    %c0_i32_0 = arith.constant 0 : i32
    return %c0_i32, %arg0 : i32, i32
  }
  func.func @transform_3(%arg0: i32) -> (i32, i32) {
    %c0_i32 = arith.constant 0 : i32
    %c0_i32_0 = arith.constant 0 : i32
    return %c0_i32, %arg0 : i32, i32
  }
  func.func @transform_4(%arg0: i32) -> (i32, i32) {
    %c0_i32 = arith.constant 0 : i32
    %c0_i32_0 = arith.constant 0 : i32
    return %c0_i32, %arg0 : i32, i32
  }
}

module attributes {stable_mosaic.version = 11 : i64} {
  func.func @kernel(%arg0: i32, %arg1: memref<24x72xbf16, #tpu.memory_space<vmem>>, %arg2: memref<72x32xbf16, #tpu.memory_space<vmem>>, %arg3: memref<24x1xf32, #tpu.memory_space<vmem>>, %arg4: memref<24x32xf32, #tpu.memory_space<vmem>>) attributes {dimension_semantics = [#tpu.dimension_semantics<parallel>], iteration_bounds = array<i64: 1>, scalar_prefetch = 0 : i64, scratch_operands = 0 : i64, tpu.core_type = #tpu.core_type<tc>, window_params = [{pipeline_mode = #tpu.pipeline_mode<synchronous>, transform_indices = @transform_0, window_bounds = array<i64: 24, 72>}, {transform_indices = @transform_1, window_bounds = array<i64: 72, 32>}, {pipeline_mode = #tpu.pipeline_mode<synchronous>, transform_indices = @transform_2, window_bounds = array<i64: 24, 1>}, {transform_indices = @transform_3, window_bounds = array<i64: 24, 32>}]} {
    %c0 = arith.constant 0 : index
    %c0_0 = arith.constant 0 : index
    %0 = vector.load %arg1[%c0, %c0_0] : memref<24x72xbf16, #tpu.memory_space<vmem>>, vector<24x72xbf16>
    %c0_1 = arith.constant 0 : index
    %c0_2 = arith.constant 0 : index
    %1 = vector.load %arg2[%c0_1, %c0_2] : memref<72x32xbf16, #tpu.memory_space<vmem>>, vector<72x32xbf16>
    %cst = arith.constant dense<0.000000e+00> : vector<24x32xf32>
    %2 = tpu.matmul %0, %1, %cst {dimension_numbers = #tpu.dot_dimension_numbers<[1], [0], [0], [1], [0, 0, 1, 1], [], []>} : vector<24x72xbf16>, vector<72x32xbf16>, vector<24x32xf32> -> vector<24x32xf32>
    %c0_3 = arith.constant 0 : index
    %c0_4 = arith.constant 0 : index
    %3 = vector.load %arg3[%c0_3, %c0_4] : memref<24x1xf32, #tpu.memory_space<vmem>>, vector<24x1xf32>
    %4 = vector.broadcast %3 : vector<24x1xf32> to vector<24x32xf32>
    %5 = arith.addf %2, %4 : vector<24x32xf32>
    %c0_5 = arith.constant 0 : index
    %c0_6 = arith.constant 0 : index
    %6 = vector.load %arg4[%c0_5, %c0_6] : memref<24x32xf32, #tpu.memory_space<vmem>>, vector<24x32xf32>
    tpu.vector_store %arg4[%c0_5, %c0_6], %5 {strides = array<i32>} : memref<24x32xf32, #tpu.memory_space<vmem>>, vector<24x32xf32>,
    return
  }
  func.func @transform_0(%arg0: i32) -> (i32, i32) {
    %c0_i32 = arith.constant 0 : i32
    %c0_i32_0 = arith.constant 0 : i32
    %c0_i32_1 = arith.constant 0 : i32
    return %c0_i32, %c0_i32_0 : i32, i32
  }
  func.func @transform_1(%arg0: i32) -> (i32, i32) {
    %c0_i32 = arith.constant 0 : i32
    %c0_i32_0 = arith.constant 0 : i32
    return %c0_i32, %arg0 : i32, i32
  }
  func.func @transform_2(%arg0: i32) -> (i32, i32) {
    %c0_i32 = arith.constant 0 : i32
    %c0_i32_0 = arith.constant 0 : i32
    %c0_i32_1 = arith.constant 0 : i32
    return %c0_i32, %c0_i32_0 : i32, i32
  }
  func.func @transform_3(%arg0: i32) -> (i32, i32) {
    %c0_i32 = arith.constant 0 : i32
    %c0_i32_0 = arith.constant 0 : i32
    return %c0_i32, %arg0 : i32, i32
  }
}

module attributes {stable_mosaic.version = 11 : i64} {
  func.func @lm_nll_kernel(%arg0: i32, %arg1: memref<1x128xf32, #tpu.memory_space<vmem>>, %arg2: memref<2x128xf32, #tpu.memory_space<vmem>>, %arg3: memref<2x128xf32, #tpu.memory_space<vmem>>, %arg4: memref<2x128xf32, #tpu.memory_space<vmem>>, %arg5: memref<1x128xf32, #tpu.memory_space<vmem>>) attributes {dimension_semantics = [#tpu.dimension_semantics<parallel>], iteration_bounds = array<i64: 1>, scalar_prefetch = 0 : i64, scratch_operands = 0 : i64, tpu.core_type = #tpu.core_type<tc>, window_params = [{transform_indices = @transform_0, window_bounds = array<i64: 1, 128>}, {transform_indices = @transform_1, window_bounds = array<i64: 2, 128>}, {transform_indices = @transform_2, window_bounds = array<i64: 2, 128>}, {transform_indices = @transform_3, window_bounds = array<i64: 2, 128>}, {transform_indices = @transform_4, window_bounds = array<i64: 1, 128>}]} {
    %c0 = arith.constant 0 : index
    %c0_0 = arith.constant 0 : index
    %0 = vector.load %arg1[%c0, %c0_0] : memref<1x128xf32, #tpu.memory_space<vmem>>, vector<1x128xf32>
    %c0_1 = arith.constant 0 : index
    %c0_2 = arith.constant 0 : index
    %1 = vector.load %arg2[%c0_1, %c0_2] : memref<2x128xf32, #tpu.memory_space<vmem>>, vector<2x128xf32>
    %c0_3 = arith.constant 0 : index
    %c0_4 = arith.constant 0 : index
    %2 = vector.load %arg3[%c0_3, %c0_4] : memref<2x128xf32, #tpu.memory_space<vmem>>, vector<2x128xf32>
    %cst = arith.constant -7.000000e+00 : f32
    %3 = vector.broadcast %cst : f32 to vector<2x128xf32>
    %4 = arith.maximumf %2, %3 : vector<2x128xf32>
    %c0_5 = arith.constant 0 : index
    %c0_6 = arith.constant 0 : index
    %5 = vector.load %arg4[%c0_5, %c0_6] : memref<2x128xf32, #tpu.memory_space<vmem>>, vector<2x128xf32>
    %cst_7 = arith.constant dense<0xFF800000> : vector<128xf32>
    %6 = vector.multi_reduction <maximumf>, %5, %cst_7 [0] : vector<2x128xf32> to vector<128xf32>
    %7 = vector.shape_cast %6 : vector<128xf32> to vector<1x128xf32>
    %8 = vector.broadcast %7 : vector<1x128xf32> to vector<2x128xf32>
    %9 = arith.subf %5, %8 : vector<2x128xf32>
    %10 = math.exp %9 : vector<2x128xf32>
    %cst_8 = arith.constant 0.000000e+00 : f32
    %11 = vector.broadcast %cst_8 : f32 to vector<2x128xf32>
    %12 = arith.subf %11, %4 : vector<2x128xf32>
    %13 = math.exp %12 : vector<2x128xf32>
    %cst_9 = arith.constant 0.142857149 : f32
    %14 = vector.broadcast %cst_9 : f32 to vector<1x128xf32>
    %15 = arith.addf %0, %14 : vector<1x128xf32>
    %16 = vector.broadcast %15 : vector<1x128xf32> to vector<2x128xf32>
    %17 = arith.subf %16, %1 : vector<2x128xf32>
    %18 = arith.mulf %17, %13 : vector<2x128xf32>
    %19 = arith.negf %18 : vector<2x128xf32>
    %20 = math.exp %19 : vector<2x128xf32>
    %cst_10 = arith.constant 1.000000e+00 : f32
    %21 = vector.broadcast %cst_10 : f32 to vector<2x128xf32>
    %22 = arith.addf %21, %20 : vector<2x128xf32>
    %23 = arith.divf %21, %22 : vector<2x128xf32>
    %cst_11 = arith.constant 0.142857149 : f32
    %24 = vector.broadcast %cst_11 : f32 to vector<1x128xf32>
    %25 = arith.subf %0, %24 : vector<1x128xf32>
    %26 = vector.broadcast %25 : vector<1x128xf32> to vector<2x128xf32>
    %27 = arith.subf %26, %1 : vector<2x128xf32>
    %28 = arith.mulf %27, %13 : vector<2x128xf32>
    %29 = arith.negf %28 : vector<2x128xf32>
    %30 = math.exp %29 : vector<2x128xf32>
    %cst_12 = arith.constant 1.000000e+00 : f32
    %31 = vector.broadcast %cst_12 : f32 to vector<2x128xf32>
    %32 = arith.addf %31, %30 : vector<2x128xf32>
    %33 = arith.divf %31, %32 : vector<2x128xf32>
    %cst_13 = arith.constant -0.857142865 : f32
    %34 = vector.broadcast %cst_13 : f32 to vector<1x128xf32>
    %35 = arith.cmpf ole, %0, %34 : vector<1x128xf32>
    %cst_14 = arith.constant 0.857142865 : f32
    %36 = vector.broadcast %cst_14 : f32 to vector<1x128xf32>
    %37 = arith.cmpf oge, %0, %36 : vector<1x128xf32>
    %cst_15 = arith.constant 1.000000e+00 : f32
    %38 = vector.broadcast %cst_15 : f32 to vector<2x128xf32>
    %39 = arith.subf %38, %33 : vector<2x128xf32>
    %40 = arith.subf %23, %33 : vector<2x128xf32>
    %41 = vector.shape_cast %37 : vector<1x128xi1> to vector<1x128xi1>
    %42 = vector.broadcast %41 : vector<1x128xi1> to vector<2x128xi1>
    %43 = arith.select %42, %39, %40 : vector<2x128xi1>, vector<2x128xf32>
    %44 = vector.shape_cast %35 : vector<1x128xi1> to vector<1x128xi1>
    %45 = vector.broadcast %44 : vector<1x128xi1> to vector<2x128xi1>
    %46 = arith.select %45, %23, %43 : vector<2x128xi1>, vector<2x128xf32>
    %47 = arith.mulf %10, %46 : vector<2x128xf32>
    %cst_16 = arith.constant dense<0.000000e+00> : vector<128xf32>
    %48 = vector.multi_reduction <add>, %47, %cst_16 [0] : vector<2x128xf32> to vector<128xf32>
    %49 = vector.shape_cast %48 : vector<128xf32> to vector<1x128xf32>
    %cst_17 = arith.constant dense<0.000000e+00> : vector<128xf32>
    %50 = vector.multi_reduction <add>, %10, %cst_17 [0] : vector<2x128xf32> to vector<128xf32>
    %51 = vector.shape_cast %50 : vector<128xf32> to vector<1x128xf32>
    %52 = tpu.reciprocal %51 {approx = true} : vector<1x128xf32> -> vector<1x128xf32>
    %53 = arith.mulf %49, %52 : vector<1x128xf32>
    %cst_18 = arith.constant 1.000000e-10 : f32
    %54 = vector.broadcast %cst_18 : f32 to vector<1x128xf32>
    %55 = arith.addf %53, %54 : vector<1x128xf32>
    %56 = math.log %55 : vector<1x128xf32>
    %cst_19 = arith.constant 0.000000e+00 : f32
    %57 = vector.broadcast %cst_19 : f32 to vector<1x128xf32>
    %58 = arith.subf %57, %56 : vector<1x128xf32>
    %c0_20 = arith.constant 0 : index
    %c0_21 = arith.constant 0 : index
    %59 = vector.load %arg5[%c0_20, %c0_21] : memref<1x128xf32, #tpu.memory_space<vmem>>, vector<1x128xf32>
    tpu.vector_store %arg5[%c0_20, %c0_21], %58 {strides = array<i32>} : memref<1x128xf32, #tpu.memory_space<vmem>>, vector<1x128xf32>,
    return
  }
  func.func @transform_0(%arg0: i32) -> (i32, i32) {
    %c0_i32 = arith.constant 0 : i32
    %c0_i32_0 = arith.constant 0 : i32
    return %c0_i32, %arg0 : i32, i32
  }
  func.func @transform_1(%arg0: i32) -> (i32, i32) {
    %c0_i32 = arith.constant 0 : i32
    %c0_i32_0 = arith.constant 0 : i32
    return %c0_i32, %arg0 : i32, i32
  }
  func.func @transform_2(%arg0: i32) -> (i32, i32) {
    %c0_i32 = arith.constant 0 : i32
    %c0_i32_0 = arith.constant 0 : i32
    return %c0_i32, %arg0 : i32, i32
  }
  func.func @transform_3(%arg0: i32) -> (i32, i32) {
    %c0_i32 = arith.constant 0 : i32
    %c0_i32_0 = arith.constant 0 : i32
    return %c0_i32, %arg0 : i32, i32
  }
  func.func @transform_4(%arg0: i32) -> (i32, i32) {
    %c0_i32 = arith.constant 0 : i32
    %c0_i32_0 = arith.constant 0 : i32
    return %c0_i32, %arg0 : i32, i32
  }
}

</mosaic_0001>

<llo_original>
// kernel: forward.31
$region0: #{forward.31}
  #allocation0 [shape = 'u32[]', space=smem, size = 0x4, offset = 0x4, fixed_abs, tag = 'smem constant byte address 0x4 - core index']
  #allocation1 [shape = 'u32[144,128]{1,0:T(1,128)}', space=vmem, size = 0x12000, scoped, tag = 'internal scratch']
  %s0 = inlined_call_operand.vmem [shape: bf16[8,27], index: 0, kind: input, shape index: {}]
  %s1 = inlined_call_operand.vmem [shape: bf16[27,512], index: 1, kind: input, shape index: {}]
  %s2 = inlined_call_operand.vmem [shape: f32[8,1], index: 2, kind: input, shape index: {}]
  %s3 = inlined_call_operand.vmem [shape: f32[8,512], index: 3, kind: output, shape index: {}]
  %s4 = sld [smem:[#allocation0]]
  $region83: #{forward.31} parent=0
    _
  %s6 = ssub.s32 1, %s4
  %s7 = scalar_select 0, %s6, %s4
  $region1: #{forward.31} parent=0
    #allocation2 [shape = 'u8[32768]{0}', space=vmem, size = 0x8000, scoped, tag = 'input window, operand 1']
    loop: start=0, step=1, limit=4
    $region2: #{forward.31} parent=1 // loop_pre_header
      _
    $region3: #{forward.31} parent=1 // loop_header
      %s9 = sphi 0, %s13
      %p10 = scmp.ge.s32.totalorder %s9, 4
      %s17 = sphi 0, %s17
      %s19 = sphi 0, %s17
      %s20 = sphi 0, %s19
      %s34 = sphi 0, %s20
      %s40 = sphi 0, %s42
      %s43 = sphi 0, %s40
      %s44 = sphi 0, %s43
      %s60 = sphi 0, %s44
      %s64 = sphi 0, %s64
      %s66 = sphi 0, %s64
      %s67 = sphi 0, %s66
      %s81 = sphi 0, %s67
      %s87 = sphi 0, %s89
      %s90 = sphi 0, %s87
      %s91 = sphi 0, %s90
      %s107 = sphi 0, %s91
    $region4: #{forward.31} parent=1 // loop_header_branch
      %12 = sbr.rel (%p10) target = $region8
    $region5: #{forward.31} parent=1 // loop_body
      %s14 = ssub.s32 %s9, 1
      %s15 = ssub.s32 %s9, 2
      %s16 = sadd.s32 %s9, 1
      %s18 = sadd.s32 %s17, 1
      %p21 = scmp.eq.s32.totalorder %s9, 1
      %p22 = scmp.ne.s32.totalorder %s17, %s19
      %p23 = scmp.eq.s32.totalorder %s9, 0
      %p24 = por %p22, %p23
      %p25 = scmp.ne.s32.totalorder %s17, %s19
      %p26 = scmp.eq.s32.totalorder %s14, 1
      %p27 = por %p25, %p26
      %p28 = scmp.ne.s32.totalorder %s19, %s20
      %p29 = scmp.eq.s32.totalorder %s14, 0
      %p30 = por %p28, %p29
      %p31 = scmp.ne.s32.totalorder %s19, %s20
      %p32 = scmp.eq.s32.totalorder %s15, 1
      %p33 = por %p31, %p32
      %p35 = scmp.ne.s32.totalorder %s20, %s34
      %p36 = scmp.eq.s32.totalorder %s15, 0
      %p37 = por %p35, %p36
      %s38 = ssub.s32 %s9, %s16
      %p39 = scmp.eq.s32.totalorder %s38, 0
      %s41 = sadd.s32 %s40, 1
      %s42 = scalar_select %p39, %s40, %s41
      %p45 = pneg %p39
      %p46 = scmp.eq.s32.totalorder %s9, 1
      %p47 = por %p45, %p46
      %p48 = scmp.ne.s32.totalorder %s40, %s43
      %p49 = scmp.eq.s32.totalorder %s9, 0
      %p50 = por %p48, %p49
      %p51 = scmp.ne.s32.totalorder %s40, %s43
      %p52 = scmp.eq.s32.totalorder %s14, 1
      %p53 = por %p51, %p52
      %p54 = scmp.ne.s32.totalorder %s43, %s44
      %p55 = scmp.eq.s32.totalorder %s14, 0
      %p56 = por %p54, %p55
      %p57 = scmp.ne.s32.totalorder %s43, %s44
      %p58 = scmp.eq.s32.totalorder %s15, 1
      %p59 = por %p57, %p58
      %p61 = scmp.ne.s32.totalorder %s44, %s60
      %p62 = scmp.eq.s32.totalorder %s15, 0
      %p63 = por %p61, %p62
      %s65 = sadd.s32 %s64, 1
      %p68 = scmp.eq.s32.totalorder %s9, 1
      %p69 = scmp.ne.s32.totalorder %s64, %s66
      %p70 = scmp.eq.s32.totalorder %s9, 0
      %p71 = por %p69, %p70
      %p72 = scmp.ne.s32.totalorder %s64, %s66
      %p73 = scmp.eq.s32.totalorder %s14, 1
      %p74 = por %p72, %p73
      %p75 = scmp.ne.s32.totalorder %s66, %s67
      %p76 = scmp.eq.s32.totalorder %s14, 0
      %p77 = por %p75, %p76
      %p78 = scmp.ne.s32.totalorder %s66, %s67
      %p79 = scmp.eq.s32.totalorder %s15, 1
      %p80 = por %p78, %p79
      %p82 = scmp.ne.s32.totalorder %s67, %s81
      %p83 = scmp.eq.s32.totalorder %s15, 0
      %p84 = por %p82, %p83
      %s85 = ssub.s32 %s9, %s16
      %p86 = scmp.eq.s32.totalorder %s85, 0
      %s88 = sadd.s32 %s87, 1
      %s89 = scalar_select %p86, %s87, %s88
      %p92 = pneg %p86
      %p93 = scmp.eq.s32.totalorder %s9, 1
      %p94 = por %p92, %p93
      %p95 = scmp.ne.s32.totalorder %s87, %s90
      %p96 = scmp.eq.s32.totalorder %s9, 0
      %p97 = por %p95, %p96
      %p98 = scmp.ne.s32.totalorder %s87, %s90
      %p99 = scmp.eq.s32.totalorder %s14, 1
      %p100 = por %p98, %p99
      %p101 = scmp.ne.s32.totalorder %s90, %s91
      %p102 = scmp.eq.s32.totalorder %s14, 0
      %p103 = por %p101, %p102
      %p104 = scmp.ne.s32.totalorder %s90, %s91
      %p105 = scmp.eq.s32.totalorder %s15, 1
      %p106 = por %p104, %p105
      %p108 = scmp.ne.s32.totalorder %s91, %s107
      %p109 = scmp.eq.s32.totalorder %s15, 0
      %p110 = por %p108, %p109
      %p111 = scmp.le.s32.totalorder 1, %s9
      %p112 = scmp.lt.s32.totalorder %s9, 3
      %p113 = pnand %p111, %p112
      %p114 = pneg %p113
      // Predicated region
      $region9: #{forward.31} parent=5 // pred_check
        _
      $region10: #{forward.31} parent=5 // pred_check_branch
        %116 = sbr.rel (%p113) target = $region12
      $region11: #{forward.31} parent=5 // pred_region
        %s117 = ssub.s32 %s9, 1
        // Predicated region
        $region13: #{forward.31} parent=11 // pred_check
          %p118 = pneg %p30
        $region14: #{forward.31} parent=11 // pred_check_branch
          %120 = sbr.rel (%p118) target = $region16
        $region15: #{forward.31} parent=11 // pred_region
          _
        $region16: #{forward.31} parent=11 // pred_fallthru
          _
        // Predicated region
        $region17: #{forward.31} parent=11 // pred_check
          %p121 = pneg %p77
        $region18: #{forward.31} parent=11 // pred_check_branch
          %123 = sbr.rel (%p121) target = $region20
        $region19: #{forward.31} parent=11 // pred_region
          _
        $region20: #{forward.31} parent=11 // pred_fallthru
          _
      $region12: #{forward.31} parent=5 // pred_fallthru
        _
      %p124 = scmp.lt.s32.totalorder %s9, 2
      // Predicated region
      $region21: #{forward.31} parent=5 // pred_check
        %p125 = pneg %p124
      $region22: #{forward.31} parent=5 // pred_check_branch
        %127 = sbr.rel (%p125) target = $region24
      $region23: #{forward.31} parent=5 // pred_region
        // Predicated region
        $region25: #{forward.31} parent=23 // pred_check
          %p128 = pneg %p50
        $region26: #{forward.31} parent=23 // pred_check_branch
          %130 = sbr.rel (%p128) target = $region28
        $region27: #{forward.31} parent=23 // pred_region
          %s131 = sand.u32 %s40, 1
          %s132 = sand.u32 %s40, 1
          %s133 = smul.addr %s132, 32
          %s134 = scalar_lea.vmem [#allocation2], %s133
          %s135 = smul.u32 2, %s9
          %s136 = smul.addr %s135, 4
          %s137 = scalar_lea.vmem %s1, %s136
          // Predicated region
          $region29: #{forward.31} parent=27 // pred_check
            _
          $region30: #{forward.31} parent=27 // pred_check_branch
            %139 = sbr.rel (0) target = $region32
          $region31: #{forward.31} parent=27 // pred_region
            // Predicated region
            $region33: #{forward.31} parent=31 // pred_check
              _
            $region34: #{forward.31} parent=31 // pred_check_branch
              %141 = sbr.rel (0) target = $region36
            $region35: #{forward.31} parent=31 // pred_region
              // Predicated region
              $region48: #{forward.31} parent=35 // pred_check
                _
              $region49: #{forward.31} parent=35 // pred_check_branch
                %163 = sbr.rel (0) target = $region51
              $region50: #{forward.31} parent=35 // pred_region
                loop: start=0, step=1, limit=1
                $region52: #{forward.31} parent=50 // loop_pre_header
                  _
                $region53: #{forward.31} parent=50 // loop_header
                  %s165 = sphi 0, %s169
                  %p166 = scmp.ge.s32.totalorder %s165, 1
                  %s170 = sphi %s137, %s137
                  %s171 = sphi %s134, %s134
                $region54: #{forward.31} parent=50 // loop_header_branch
                  %168 = sbr.rel (%p166) target = $region58
                $region55: #{forward.31} parent=50 // loop_body
                  %v172 = vld [vmem:[%s170] sm:$0xff]
                  %173 = vst [vmem:[%s171] sm:$0xff] %v172
                  %v174 = vld [vmem:[%s170 + $0x10] sm:$0xff]
                  %175 = vst [vmem:[%s171 + $0x8] sm:$0xff] %v174
                  %v176 = vld [vmem:[%s170 + $0x20] sm:$0xff]
                  %177 = vst [vmem:[%s171 + $0x10] sm:$0xff] %v176
                  %v178 = vld [vmem:[%s170 + $0x30] sm:$0xff]
                  %179 = vst [vmem:[%s171 + $0x18] sm:$0xff] %v178
                $region56: #{forward.31} parent=50 // loop_footer
                  %s169 = sadd.s32 1, %s165
                $region57: #{forward.31} parent=50 // loop_footer_branch
                  %164 = sbr.rel target = $region53
                $region58: #{forward.31} parent=50 // loop_exit
                  _
              $region51: #{forward.31} parent=35 // pred_fallthru
                _
              // Predicated region
              $region59: #{forward.31} parent=35 // pred_check
                _
              $region60: #{forward.31} parent=35 // pred_check_branch
                %181 = sbr.rel target = $region62
              $region61: #{forward.31} parent=35 // pred_region
                _
              $region62: #{forward.31} parent=35 // pred_fallthru
                _
            $region36: #{forward.31} parent=31 // pred_fallthru
              _
            // Predicated region
            $region37: #{forward.31} parent=31 // pred_check
              _
            $region38: #{forward.31} parent=31 // pred_check_branch
              %143 = sbr.rel target = $region40
            $region39: #{forward.31} parent=31 // pred_region
              %s145 = ssub.s32 256, 1
              loop: start=0, step=1, limit=1
              $region41: #{forward.31} parent=39 // loop_pre_header
                _
              $region42: #{forward.31} parent=39 // loop_header
                %s147 = sphi 0, %s151
                %p148 = scmp.ge.s32.totalorder %s147, 1
                %s152 = sphi %s137, %s137
                %s153 = sphi %s134, %s134
              $region43: #{forward.31} parent=39 // loop_header_branch
                %150 = sbr.rel (%p148) target = $region47
              $region44: #{forward.31} parent=39 // loop_body
                %v154 = vld [vmem:[%s152] sm:%s145]
                %155 = vst [vmem:[%s153] sm:%s145] %v154
                %v156 = vld [vmem:[%s152 + $0x10] sm:%s145]
                %157 = vst [vmem:[%s153 + $0x8] sm:%s145] %v156
                %v158 = vld [vmem:[%s152 + $0x20] sm:%s145]
                %159 = vst [vmem:[%s153 + $0x10] sm:%s145] %v158
                %v160 = vld [vmem:[%s152 + $0x30] sm:%s145]
                %161 = vst [vmem:[%s153 + $0x18] sm:%s145] %v160
              $region45: #{forward.31} parent=39 // loop_footer
                %s151 = sadd.s32 1, %s147
              $region46: #{forward.31} parent=39 // loop_footer_branch
                %146 = sbr.rel target = $region42
              $region47: #{forward.31} parent=39 // loop_exit
                _
            $region40: #{forward.31} parent=31 // pred_fallthru
              _
          $region32: #{forward.31} parent=27 // pred_fallthru
            _
          %182 = vnop
        $region28: #{forward.31} parent=23 // pred_fallthru
          _
      $region24: #{forward.31} parent=5 // pred_fallthru
        _
      %p183 = scmp.le.s32.totalorder 1, %s9
      %p184 = scmp.lt.s32.totalorder %s9, 3
      %p185 = pnand %p183, %p184
      %p186 = pneg %p185
      // Predicated region
      $region63: #{forward.31} parent=5 // pred_check
        _
      $region64: #{forward.31} parent=5 // pred_check_branch
        %188 = sbr.rel (%p185) target = $region66
      $region65: #{forward.31} parent=5 // pred_region
        %s189 = ssub.s32 %s9, 1
        %s190 = sand.u32 %s43, 1
        %s191 = sand.u32 %s43, 1
        %s192 = smul.addr %s191, 32
        %s193 = scalar_lea.vmem [#allocation2], %s192
        // Predicated region
        $region67: #{forward.31} parent=65 // pred_check
          %p194 = pneg %p56
        $region68: #{forward.31} parent=65 // pred_check_branch
          %196 = sbr.rel (%p194) target = $region70
        $region69: #{forward.31} parent=65 // pred_region
          _
        $region70: #{forward.31} parent=65 // pred_fallthru
          _
        %p197 = pneg %p30
        %p198 = pneg %p27
        %s199 = sand.u32 %s43, 1
        %s200 = sand.u32 %s43, 1
        %s201 = smul.addr %s200, 32
        %s202 = scalar_lea.vmem [#allocation2], %s201
        %p203 = pneg %p56
        %p204 = pneg %p53
        %p205 = pneg %p77
        %p206 = pneg %p74
        %p207 = pneg %p103
        %p208 = pneg %p100
        %s209 = smul.u32 2, %s14
        %p210 = scmp.lt.s32.totalorder %s209, 3
        %s211 = scalar_select %p210, %s209, 3
        %s212 = smul.addr %s211, 8
        %s213 = scalar_lea.vmem %s3, %s212
        %s214 = smul.u32 2, %s14
        %s215 = smul.u32 2, %s14
        %p216 = scmp.lt.s32.totalorder %s215, 3
        %s217 = scalar_select %p216, %s215, 3
        %s218 = smul.addr %s217, 8
        %s219 = scalar_lea.vmem %s3, %s218
        %s220 = smul.u32 2, %s14
        %v222 = vld [vmem:[%s0] sm:$0xf]
        %v223 = vld [vmem:[%s193] sm:$0xff]
        %v224 = vld [vmem:[%s193 + $0x8] sm:$0xff]
        %v225 = vld [vmem:[%s193 + $0x10] sm:$0xff]
        %v226 = vld [vmem:[%s193 + $0x18] sm:$0x33]
        %v227 = vld [vmem:[%s2] sm:$0xff]
        %229 = vset.pattern.permute.xlu0 0
        %230 = vperm.xlu0 %229, %v227
        %v231 = vpop.permute.xlu0 %230
        %v237 = vunpack.c.l.b16 %v223
        %v238 = vunpack.c.h.b16 %v223
        %v239 = vunpack.c.l.b16 %v224
        %v240 = vunpack.c.h.b16 %v224
        %v241 = vunpack.c.l.b16 %v225
        %v242 = vunpack.c.h.b16 %v225
        %v243 = vunpack.c.l.b16 %v226
        %v244 = vunpack.c.h.b16 %v226
        %v245 = vpack.c.b16 %v239, %v237
        %v246 = vpack.c.b16 %v240, %v238
        %v247 = vpack.c.b16 %v243, %v241
        %v248 = vpack.c.b16 %v244, %v242
        %vm251 = vcmask 220160
        %v253 = vsel %vm251, %v222, 0
        %vm255 = vcmask 1044480
        %vm256 = vcmask 1045504
        %v257 = vsel %vm255, 4294967295, 65535
        %v258 = vsel %vm256, %v257, 0
        %v260 = vand.u32 %v247, %v258
        %v263 = vand.u32 %v248, %v258
        %265 = vmatprep.subr.bf16.mxu0 0
        %266 = vmatpush1.bf16.msra.mxu0 0
        %267 = vmatprep.subr.bf16.mxu0 0
        %268 = vmatpush1.bf16.msra.mxu0 0
        %269 = vmatprep.subr.bf16.mxu0 0
        %270 = vmatpush1.bf16.msra.mxu0 0
        %271 = vmatprep.subr.bf16.mxu0 0
        %272 = vmatpush1.bf16.msra.mxu0 0
        %273 = vmatprep.subr.bf16.mxu0 0
        %274 = vmatpush1.bf16.msra.mxu0 0
        %275 = vmatprep.subr.bf16.mxu0 0
        %276 = vmatpush1.bf16.msra.mxu0 0
        %277 = vmatprep.subr.bf16.mxu0 %v263
        %278 = vmatpush1.bf16.msra.mxu0 %v260
        %279 = vmatprep.subr.bf16.mxu0 %v246
        %280 = vmatpush1.bf16.msra.mxu0 %v245
        %281 = vmatprep.subr.bf16.mxu0 0
        %282 = vmatpush2.bf16.msra.mxu0 0
        %283 = vmatprep.subr.bf16.mxu0 0
        %284 = vmatpush2.bf16.msra.mxu0 0
        %285 = vmatprep.subr.bf16.mxu0 0
        %286 = vmatpush2.bf16.msra.mxu0 0
        %287 = vmatprep.subr.bf16.mxu0 0
        %288 = vmatpush2.bf16.msra.mxu0 0
        %289 = vmatprep.subr.bf16.mxu0 0
        %290 = vmatpush2.bf16.msra.mxu0 0
        %291 = vmatprep.subr.bf16.mxu0 0
        %292 = vmatpush2.bf16.msra.mxu0 0
        %293 = vmatprep.subr.bf16.mxu0 0
        %294 = vmatpush2.bf16.msra.mxu0 0
        %295 = vmatprep.subr.bf16.mxu0 0
        %296 = vmatpush2.bf16.msra.mxu0 0
        %297 = vmatprep.mubr.bf16.mxu0 0
        %298 = vmatmul.mubr.bf16.gmra.mxu0 %v253
        %v299 = vpop.f32.mrf.mxu0
        %v300 = vadd.f32 %v231, %v299
        %v301 = vpop.f32.mrf.mxu0
        %v302 = vadd.f32 %v231, %v301
        %v303 = vpop.f32.mrf.mxu0
        %v304 = vpop.f32.mrf.mxu0
        %305 = vdwg.mxu0
        %306 = vst [vmem:[%s219] sm:$0xff] %v300
        %307 = vst [vmem:[%s219 + $0x8] sm:$0xff] %v302
        %s308 = smul.u32 2, %s14
        %p309 = scmp.lt.s32.totalorder %s308, 3
        %s310 = scalar_select %p309, %s308, 3
        %s311 = smul.addr %s310, 8
        %s312 = scalar_lea.vmem %s3, %s311
        // Predicated region
        $region71: #{forward.31} parent=65 // pred_check
          %p313 = pneg %p100
        $region72: #{forward.31} parent=65 // pred_check_branch
          %315 = sbr.rel (%p313) target = $region74
        $region73: #{forward.31} parent=65 // pred_region
          %s316 = smul.u32 2, %s14
        $region74: #{forward.31} parent=65 // pred_fallthru
          _
      $region66: #{forward.31} parent=5 // pred_fallthru
        _
      %p317 = scmp.le.s32.totalorder 2, %s9
      // Predicated region
      $region75: #{forward.31} parent=5 // pred_check
        %p318 = pneg %p317
      $region76: #{forward.31} parent=5 // pred_check_branch
        %320 = sbr.rel (%p318) target = $region78
      $region77: #{forward.31} parent=5 // pred_region
        %s321 = ssub.s32 %s9, 2
        // Predicated region
        $region79: #{forward.31} parent=77 // pred_check
          %p322 = pneg %p106
        $region80: #{forward.31} parent=77 // pred_check_branch
          %324 = sbr.rel (%p322) target = $region82
        $region81: #{forward.31} parent=77 // pred_region
          %s325 = smul.u32 2, %s15
          %p326 = scmp.lt.s32.totalorder %s325, 3
          %s327 = scalar_select %p326, %s325, 3
          %s328 = smul.addr %s327, 8
          %s329 = scalar_lea.vmem %s3, %s328
        $region82: #{forward.31} parent=77 // pred_fallthru
          _
      $region78: #{forward.31} parent=5 // pred_fallthru
        _
    $region6: #{forward.31} parent=1 // loop_footer
      %s13 = sadd.s32 1, %s9
    $region7: #{forward.31} parent=1 // loop_footer_branch
      %8 = sbr.rel target = $region3
    $region8: #{forward.31} parent=1 // loop_exit
      _

// kernel: forward.32
$region0: #{forward.32}
  #allocation0 [shape = 'u32[]', space=smem, size = 0x4, offset = 0x4, fixed_abs, tag = 'smem constant byte address 0x4 - core index']
  #allocation1 [shape = 'u32[144,128]{1,0:T(1,128)}', space=vmem, size = 0x12000, scoped, tag = 'internal scratch']
  %s0 = inlined_call_operand.vmem [shape: bf16[8,72], index: 0, kind: input, shape index: {}]
  %s1 = inlined_call_operand.vmem [shape: bf16[72,128], index: 1, kind: input, shape index: {}]
  %s2 = inlined_call_operand.vmem [shape: f32[8,1], index: 2, kind: input, shape index: {}]
  %s3 = inlined_call_operand.vmem [shape: f32[8,128], index: 3, kind: output, shape index: {}]
  %s4 = sld [smem:[#allocation0]]
  $region22: #{forward.32} parent=0
    _
  %s6 = ssub.s32 1, %s4
  %s7 = scalar_select 0, %s6, %s4
  // Predicated region
  $region2: #{forward.32} parent=0 // pred_check
    _
  $region3: #{forward.32} parent=0 // pred_check_branch
    %9 = sbr.rel (0) target = $region5
  $region4: #{forward.32} parent=0 // pred_region
    _
  $region5: #{forward.32} parent=0 // pred_fallthru
    _
  // Predicated region
  $region6: #{forward.32} parent=0 // pred_check
    _
  $region7: #{forward.32} parent=0 // pred_check_branch
    %11 = sbr.rel (0) target = $region9
  $region8: #{forward.32} parent=0 // pred_region
    _
  $region9: #{forward.32} parent=0 // pred_fallthru
    _
  // Predicated region
  $region10: #{forward.32} parent=0 // pred_check
    _
  $region11: #{forward.32} parent=0 // pred_check_branch
    %13 = sbr.rel (0) target = $region13
  $region12: #{forward.32} parent=0 // pred_region
    _
  $region13: #{forward.32} parent=0 // pred_fallthru
    _
  %v15 = vld [vmem:[%s0] sm:$0xf]
  %v16 = vld [vmem:[%s1] sm:$0xf]
  %v17 = vld [vmem:[%s1 + $0x4] sm:$0xf]
  %v18 = vld [vmem:[%s1 + $0x8] sm:$0xf]
  %v19 = vld [vmem:[%s1 + $0xc] sm:$0xf]
  %v20 = vld [vmem:[%s1 + $0x10] sm:$0xf]
  %v21 = vld [vmem:[%s1 + $0x14] sm:$0xf]
  %v22 = vld [vmem:[%s1 + $0x18] sm:$0xf]
  %v23 = vld [vmem:[%s1 + $0x1c] sm:$0xf]
  %v24 = vld [vmem:[%s1 + $0x20] sm:$0xf]
  %v25 = vld [vmem:[%s2] sm:$0xff]
  %27 = vset.pattern.permute.xlu0 0
  %28 = vperm.xlu0 %27, %v25
  %v29 = vpop.permute.xlu0 %28
  %v40 = vunpack.c.l.b16 %v16
  %v41 = vunpack.c.l.b16 %v17
  %v42 = vunpack.c.l.b16 %v18
  %v43 = vunpack.c.l.b16 %v19
  %v44 = vunpack.c.l.b16 %v20
  %v45 = vunpack.c.l.b16 %v21
  %v46 = vunpack.c.l.b16 %v22
  %v47 = vunpack.c.l.b16 %v23
  %v48 = vunpack.c.l.b16 %v24
  %v49 = vpack.c.b16 %v41, %v40
  %v50 = vpack.c.b16 %v43, %v42
  %v51 = vpack.c.b16 %v45, %v44
  %v52 = vpack.c.b16 %v47, %v46
  %v53 = vpack.c.b16 %v48, %v48
  %vm58 = vcmask 588800
  %v60 = vsel %vm58, %v15, 0
  %vm62 = vcmask 1043456
  %v64 = vsel %vm62, %v53, 0
  %66 = vmatprep.subr.bf16.mxu0 0
  %67 = vmatpush1.bf16.msra.mxu0 0
  %68 = vmatprep.subr.bf16.mxu0 0
  %69 = vmatpush1.bf16.msra.mxu0 0
  %70 = vmatprep.subr.bf16.mxu0 0
  %71 = vmatpush1.bf16.msra.mxu0 0
  %72 = vmatprep.subr.bf16.mxu0 0
  %73 = vmatpush1.bf16.msra.mxu0 %v64
  %74 = vmatprep.subr.bf16.mxu0 0
  %75 = vmatpush1.bf16.msra.mxu0 %v52
  %76 = vmatprep.subr.bf16.mxu0 0
  %77 = vmatpush1.bf16.msra.mxu0 %v51
  %78 = vmatprep.subr.bf16.mxu0 0
  %79 = vmatpush1.bf16.msra.mxu0 %v50
  %80 = vmatprep.subr.bf16.mxu0 0
  %81 = vmatpush1.bf16.msra.mxu0 %v49
  %82 = vmatprep.subr.bf16.mxu0 0
  %83 = vmatpush2.bf16.msra.mxu0 0
  %84 = vmatprep.subr.bf16.mxu0 0
  %85 = vmatpush2.bf16.msra.mxu0 0
  %86 = vmatprep.subr.bf16.mxu0 0
  %87 = vmatpush2.bf16.msra.mxu0 0
  %88 = vmatprep.subr.bf16.mxu0 0
  %89 = vmatpush2.bf16.msra.mxu0 0
  %90 = vmatprep.subr.bf16.mxu0 0
  %91 = vmatpush2.bf16.msra.mxu0 0
  %92 = vmatprep.subr.bf16.mxu0 0
  %93 = vmatpush2.bf16.msra.mxu0 0
  %94 = vmatprep.subr.bf16.mxu0 0
  %95 = vmatpush2.bf16.msra.mxu0 0
  %96 = vmatprep.subr.bf16.mxu0 0
  %97 = vmatpush2.bf16.msra.mxu0 0
  %98 = vmatprep.mubr.bf16.mxu0 0
  %99 = vmatmul.mubr.bf16.gmra.mxu0 %v60
  %v100 = vpop.f32.mrf.mxu0
  %v101 = vadd.f32 %v29, %v100
  %v102 = vpop.f32.mrf.mxu0
  %v103 = vpop.f32.mrf.mxu0
  %v104 = vpop.f32.mrf.mxu0
  %105 = vdwg.mxu0
  %v106 = vmax.f32 %v101, 0.0
  %107 = vst [vmem:[%s3] sm:$0xff] %v106
  // Predicated region
  $region14: #{forward.32} parent=0 // pred_check
    _
  $region15: #{forward.32} parent=0 // pred_check_branch
    %109 = sbr.rel (0) target = $region17
  $region16: #{forward.32} parent=0 // pred_region
    _
  $region17: #{forward.32} parent=0 // pred_fallthru
    _
  // Predicated region
  $region18: #{forward.32} parent=0 // pred_check
    _
  $region19: #{forward.32} parent=0 // pred_check_branch
    %111 = sbr.rel (0) target = $region21
  $region20: #{forward.32} parent=0 // pred_region
    _
  $region21: #{forward.32} parent=0 // pred_fallthru
    _

// kernel: forward.34
$region0: #{forward.34}
  #allocation0 [shape = 'u32[]', space=smem, size = 0x4, offset = 0x4, fixed_abs, tag = 'smem constant byte address 0x4 - core index']
  #allocation1 [shape = 'u32[144,128]{1,0:T(1,128)}', space=vmem, size = 0x12000, scoped, tag = 'internal scratch']
  %s0 = inlined_call_operand.vmem [shape: bf16[8,72], index: 0, kind: input, shape index: {}]
  %s1 = inlined_call_operand.vmem [shape: bf16[72,128], index: 1, kind: input, shape index: {}]
  %s2 = inlined_call_operand.vmem [shape: f32[8,1], index: 2, kind: input, shape index: {}]
  %s3 = inlined_call_operand.vmem [shape: f32[8,128], index: 3, kind: input, shape index: {}]
  %s4 = inlined_call_operand.vmem [shape: f32[8,128], index: 4, kind: output, shape index: {}]
  %s5 = sld [smem:[#allocation0]]
  $region26: #{forward.34} parent=0
    _
  %s7 = ssub.s32 1, %s5
  %s8 = scalar_select 0, %s7, %s5
  // Predicated region
  $region2: #{forward.34} parent=0 // pred_check
    _
  $region3: #{forward.34} parent=0 // pred_check_branch
    %10 = sbr.rel (0) target = $region5
  $region4: #{forward.34} parent=0 // pred_region
    _
  $region5: #{forward.34} parent=0 // pred_fallthru
    _
  // Predicated region
  $region6: #{forward.34} parent=0 // pred_check
    _
  $region7: #{forward.34} parent=0 // pred_check_branch
    %12 = sbr.rel (0) target = $region9
  $region8: #{forward.34} parent=0 // pred_region
    _
  $region9: #{forward.34} parent=0 // pred_fallthru
    _
  // Predicated region
  $region10: #{forward.34} parent=0 // pred_check
    _
  $region11: #{forward.34} parent=0 // pred_check_branch
    %14 = sbr.rel (0) target = $region13
  $region12: #{forward.34} parent=0 // pred_region
    _
  $region13: #{forward.34} parent=0 // pred_fallthru
    _
  // Predicated region
  $region14: #{forward.34} parent=0 // pred_check
    _
  $region15: #{forward.34} parent=0 // pred_check_branch
    %16 = sbr.rel (0) target = $region17
  $region16: #{forward.34} parent=0 // pred_region
    _
  $region17: #{forward.34} parent=0 // pred_fallthru
    _
  %v18 = vld [vmem:[%s0] sm:$0xf]
  %v19 = vld [vmem:[%s1] sm:$0xf]
  %v20 = vld [vmem:[%s1 + $0x4] sm:$0xf]
  %v21 = vld [vmem:[%s1 + $0x8] sm:$0xf]
  %v22 = vld [vmem:[%s1 + $0xc] sm:$0xf]
  %v23 = vld [vmem:[%s1 + $0x10] sm:$0xf]
  %v24 = vld [vmem:[%s1 + $0x14] sm:$0xf]
  %v25 = vld [vmem:[%s1 + $0x18] sm:$0xf]
  %v26 = vld [vmem:[%s1 + $0x1c] sm:$0xf]
  %v27 = vld [vmem:[%s1 + $0x20] sm:$0xf]
  %v28 = vld [vmem:[%s2] sm:$0xff]
  %v29 = vld [vmem:[%s3] sm:$0xff]
  %31 = vset.pattern.permute.xlu0 0
  %32 = vperm.xlu0 %31, %v28
  %v33 = vpop.permute.xlu0 %32
  %v44 = vunpack.c.l.b16 %v19
  %v45 = vunpack.c.l.b16 %v20
  %v46 = vunpack.c.l.b16 %v21
  %v47 = vunpack.c.l.b16 %v22
  %v48 = vunpack.c.l.b16 %v23
  %v49 = vunpack.c.l.b16 %v24
  %v50 = vunpack.c.l.b16 %v25
  %v51 = vunpack.c.l.b16 %v26
  %v52 = vunpack.c.l.b16 %v27
  %v53 = vpack.c.b16 %v45, %v44
  %v54 = vpack.c.b16 %v47, %v46
  %v55 = vpack.c.b16 %v49, %v48
  %v56 = vpack.c.b16 %v51, %v50
  %v57 = vpack.c.b16 %v52, %v52
  %vm62 = vcmask 588800
  %v64 = vsel %vm62, %v18, 0
  %vm66 = vcmask 1043456
  %v68 = vsel %vm66, %v57, 0
  %70 = vmatprep.subr.bf16.mxu0 0
  %71 = vmatpush1.bf16.msra.mxu0 0
  %72 = vmatprep.subr.bf16.mxu0 0
  %73 = vmatpush1.bf16.msra.mxu0 0
  %74 = vmatprep.subr.bf16.mxu0 0
  %75 = vmatpush1.bf16.msra.mxu0 0
  %76 = vmatprep.subr.bf16.mxu0 0
  %77 = vmatpush1.bf16.msra.mxu0 %v68
  %78 = vmatprep.subr.bf16.mxu0 0
  %79 = vmatpush1.bf16.msra.mxu0 %v56
  %80 = vmatprep.subr.bf16.mxu0 0
  %81 = vmatpush1.bf16.msra.mxu0 %v55
  %82 = vmatprep.subr.bf16.mxu0 0
  %83 = vmatpush1.bf16.msra.mxu0 %v54
  %84 = vmatprep.subr.bf16.mxu0 0
  %85 = vmatpush1.bf16.msra.mxu0 %v53
  %86 = vmatprep.subr.bf16.mxu0 0
  %87 = vmatpush2.bf16.msra.mxu0 0
  %88 = vmatprep.subr.bf16.mxu0 0
  %89 = vmatpush2.bf16.msra.mxu0 0
  %90 = vmatprep.subr.bf16.mxu0 0
  %91 = vmatpush2.bf16.msra.mxu0 0
  %92 = vmatprep.subr.bf16.mxu0 0
  %93 = vmatpush2.bf16.msra.mxu0 0
  %94 = vmatprep.subr.bf16.mxu0 0
  %95 = vmatpush2.bf16.msra.mxu0 0
  %96 = vmatprep.subr.bf16.mxu0 0
  %97 = vmatpush2.bf16.msra.mxu0 0
  %98 = vmatprep.subr.bf16.mxu0 0
  %99 = vmatpush2.bf16.msra.mxu0 0
  %100 = vmatprep.subr.bf16.mxu0 0
  %101 = vmatpush2.bf16.msra.mxu0 0
  %102 = vmatprep.mubr.bf16.mxu0 0
  %103 = vmatmul.mubr.bf16.gmra.mxu0 %v64
  %v104 = vpop.f32.mrf.mxu0
  %v105 = vadd.f32 %v33, %v104
  %v106 = vpop.f32.mrf.mxu0
  %v107 = vpop.f32.mrf.mxu0
  %v108 = vpop.f32.mrf.mxu0
  %109 = vdwg.mxu0
  %v110 = vadd.f32 %v105, %v29
  %111 = vst [vmem:[%s4] sm:$0xff] %v110
  // Predicated region
  $region18: #{forward.34} parent=0 // pred_check
    _
  $region19: #{forward.34} parent=0 // pred_check_branch
    %113 = sbr.rel (0) target = $region21
  $region20: #{forward.34} parent=0 // pred_region
    _
  $region21: #{forward.34} parent=0 // pred_fallthru
    _
  // Predicated region
  $region22: #{forward.34} parent=0 // pred_check
    _
  $region23: #{forward.34} parent=0 // pred_check_branch
    %115 = sbr.rel (0) target = $region25
  $region24: #{forward.34} parent=0 // pred_region
    _
  $region25: #{forward.34} parent=0 // pred_fallthru
    _

// kernel: forward.35
$region0: #{forward.35}
  #allocation0 [shape = 'u32[]', space=smem, size = 0x4, offset = 0x4, fixed_abs, tag = 'smem constant byte address 0x4 - core index']
  #allocation1 [shape = 'u32[144,128]{1,0:T(1,128)}', space=vmem, size = 0x12000, scoped, tag = 'internal scratch']
  %s0 = inlined_call_operand.vmem [shape: bf16[4,72], index: 0, kind: input, shape index: {}]
  %s1 = inlined_call_operand.vmem [shape: bf16[72,128], index: 1, kind: input, shape index: {}]
  %s2 = inlined_call_operand.vmem [shape: f32[4,1], index: 2, kind: input, shape index: {}]
  %s3 = inlined_call_operand.vmem [shape: f32[4,128], index: 3, kind: output, shape index: {}]
  %s4 = sld [smem:[#allocation0]]
  $region22: #{forward.35} parent=0
    _
  %s6 = ssub.s32 1, %s4
  %s7 = scalar_select 0, %s6, %s4
  // Predicated region
  $region2: #{forward.35} parent=0 // pred_check
    _
  $region3: #{forward.35} parent=0 // pred_check_branch
    %9 = sbr.rel (0) target = $region5
  $region4: #{forward.35} parent=0 // pred_region
    _
  $region5: #{forward.35} parent=0 // pred_fallthru
    _
  // Predicated region
  $region6: #{forward.35} parent=0 // pred_check
    _
  $region7: #{forward.35} parent=0 // pred_check_branch
    %11 = sbr.rel (0) target = $region9
  $region8: #{forward.35} parent=0 // pred_region
    _
  $region9: #{forward.35} parent=0 // pred_fallthru
    _
  // Predicated region
  $region10: #{forward.35} parent=0 // pred_check
    _
  $region11: #{forward.35} parent=0 // pred_check_branch
    %13 = sbr.rel (0) target = $region13
  $region12: #{forward.35} parent=0 // pred_region
    _
  $region13: #{forward.35} parent=0 // pred_fallthru
    _
  %v15 = vld [vmem:[%s0] sm:$0x3]
  %v16 = vld [vmem:[%s1] sm:$0xf]
  %v17 = vld [vmem:[%s1 + $0x4] sm:$0xf]
  %v18 = vld [vmem:[%s1 + $0x8] sm:$0xf]
  %v19 = vld [vmem:[%s1 + $0xc] sm:$0xf]
  %v20 = vld [vmem:[%s1 + $0x10] sm:$0xf]
  %v21 = vld [vmem:[%s1 + $0x14] sm:$0xf]
  %v22 = vld [vmem:[%s1 + $0x18] sm:$0xf]
  %v23 = vld [vmem:[%s1 + $0x1c] sm:$0xf]
  %v24 = vld [vmem:[%s1 + $0x20] sm:$0xf]
  %v25 = vld [vmem:[%s2] sm:$0xf]
  %27 = vset.pattern.permute.xlu0 0
  %28 = vperm.xlu0 %27, %v25
  %v29 = vpop.permute.xlu0 %28
  %v40 = vunpack.c.l.b16 %v16
  %v41 = vunpack.c.l.b16 %v17
  %v42 = vunpack.c.l.b16 %v18
  %v43 = vunpack.c.l.b16 %v19
  %v44 = vunpack.c.l.b16 %v20
  %v45 = vunpack.c.l.b16 %v21
  %v46 = vunpack.c.l.b16 %v22
  %v47 = vunpack.c.l.b16 %v23
  %v48 = vunpack.c.l.b16 %v24
  %v49 = vpack.c.b16 %v41, %v40
  %v50 = vpack.c.b16 %v43, %v42
  %v51 = vpack.c.b16 %v45, %v44
  %v52 = vpack.c.b16 %v47, %v46
  %v53 = vpack.c.b16 %v48, %v48
  %vm58 = vcmask 588800
  %v60 = vsel %vm58, %v15, 0
  %vm62 = vcmask 1043456
  %v64 = vsel %vm62, %v53, 0
  %66 = vmatprep.subr.bf16.mxu0 0
  %67 = vmatpush1.bf16.msra.mxu0 0
  %68 = vmatprep.subr.bf16.mxu0 0
  %69 = vmatpush1.bf16.msra.mxu0 0
  %70 = vmatprep.subr.bf16.mxu0 0
  %71 = vmatpush1.bf16.msra.mxu0 0
  %72 = vmatprep.subr.bf16.mxu0 0
  %73 = vmatpush1.bf16.msra.mxu0 %v64
  %74 = vmatprep.subr.bf16.mxu0 0
  %75 = vmatpush1.bf16.msra.mxu0 %v52
  %76 = vmatprep.subr.bf16.mxu0 0
  %77 = vmatpush1.bf16.msra.mxu0 %v51
  %78 = vmatprep.subr.bf16.mxu0 0
  %79 = vmatpush1.bf16.msra.mxu0 %v50
  %80 = vmatprep.subr.bf16.mxu0 0
  %81 = vmatpush1.bf16.msra.mxu0 %v49
  %82 = vmatprep.subr.bf16.mxu0 0
  %83 = vmatpush2.bf16.msra.mxu0 0
  %84 = vmatprep.subr.bf16.mxu0 0
  %85 = vmatpush2.bf16.msra.mxu0 0
  %86 = vmatprep.subr.bf16.mxu0 0
  %87 = vmatpush2.bf16.msra.mxu0 0
  %88 = vmatprep.subr.bf16.mxu0 0
  %89 = vmatpush2.bf16.msra.mxu0 0
  %90 = vmatprep.subr.bf16.mxu0 0
  %91 = vmatpush2.bf16.msra.mxu0 0
  %92 = vmatprep.subr.bf16.mxu0 0
  %93 = vmatpush2.bf16.msra.mxu0 0
  %94 = vmatprep.subr.bf16.mxu0 0
  %95 = vmatpush2.bf16.msra.mxu0 0
  %96 = vmatprep.subr.bf16.mxu0 0
  %97 = vmatpush2.bf16.msra.mxu0 0
  %98 = vmatprep.mubr.bf16.mxu0 0
  %99 = vmatmul.mubr.bf16.gmra.mxu0 %v60
  %v100 = vpop.f32.mrf.mxu0
  %v101 = vadd.f32 %v29, %v100
  %v102 = vpop.f32.mrf.mxu0
  %v103 = vpop.f32.mrf.mxu0
  %v104 = vpop.f32.mrf.mxu0
  %105 = vdwg.mxu0
  %v106 = vsub.f32 %v101, -1.0
  %v107 = vmul.f32 %v106, 3.5
  %v108 = vsub.f32 %v107, 0.5
  %v109 = vceil.f32 %v108
  %v110 = vmax.f32 %v109, 0.0
  %v111 = vmin.f32 %v110, 7.0
  %v112 = vmul.f32 %v111, 0.2857143
  %v113 = vadd.f32 %v112, -1.0
  %114 = vst [vmem:[%s3] sm:$0xf] %v113
  // Predicated region
  $region14: #{forward.35} parent=0 // pred_check
    _
  $region15: #{forward.35} parent=0 // pred_check_branch
    %116 = sbr.rel (0) target = $region17
  $region16: #{forward.35} parent=0 // pred_region
    _
  $region17: #{forward.35} parent=0 // pred_fallthru
    _
  // Predicated region
  $region18: #{forward.35} parent=0 // pred_check
    _
  $region19: #{forward.35} parent=0 // pred_check_branch
    %118 = sbr.rel (0) target = $region21
  $region20: #{forward.35} parent=0 // pred_region
    _
  $region21: #{forward.35} parent=0 // pred_fallthru
    _

// kernel: forward.36
$region0: #{forward.36}
  #allocation0 [shape = 'u32[]', space=smem, size = 0x4, offset = 0x4, fixed_abs, tag = 'smem constant byte address 0x4 - core index']
  #allocation1 [shape = 'u32[144,128]{1,0:T(1,128)}', space=vmem, size = 0x12000, scoped, tag = 'internal scratch']
  %s0 = inlined_call_operand.vmem [shape: bf16[8,72], index: 0, kind: input, shape index: {}]
  %s1 = inlined_call_operand.vmem [shape: bf16[72,32], index: 1, kind: input, shape index: {}]
  %s2 = inlined_call_operand.vmem [shape: f32[8,1], index: 2, kind: input, shape index: {}]
  %s3 = inlined_call_operand.vmem [shape: f32[8,32], index: 3, kind: output, shape index: {}]
  %s4 = sld [smem:[#allocation0]]
  $region22: #{forward.36} parent=0
    _
  %s6 = ssub.s32 1, %s4
  %s7 = scalar_select 0, %s6, %s4
  // Predicated region
  $region2: #{forward.36} parent=0 // pred_check
    _
  $region3: #{forward.36} parent=0 // pred_check_branch
    %9 = sbr.rel (0) target = $region5
  $region4: #{forward.36} parent=0 // pred_region
    _
  $region5: #{forward.36} parent=0 // pred_fallthru
    _
  // Predicated region
  $region6: #{forward.36} parent=0 // pred_check
    _
  $region7: #{forward.36} parent=0 // pred_check_branch
    %11 = sbr.rel (0) target = $region9
  $region8: #{forward.36} parent=0 // pred_region
    _
  $region9: #{forward.36} parent=0 // pred_fallthru
    _
  // Predicated region
  $region10: #{forward.36} parent=0 // pred_check
    _
  $region11: #{forward.36} parent=0 // pred_check_branch
    %13 = sbr.rel (0) target = $region13
  $region12: #{forward.36} parent=0 // pred_region
    _
  $region13: #{forward.36} parent=0 // pred_fallthru
    _
  %v15 = vld [vmem:[%s0] sm:$0xf]
  %v16 = vld [vmem:[%s1] sm:$0xf]
  %v17 = vld [vmem:[%s1 + $0x4] sm:$0xf]
  %v18 = vld [vmem:[%s1 + $0x8] sm:$0xf]
  %v19 = vld [vmem:[%s1 + $0xc] sm:$0xf]
  %v20 = vld [vmem:[%s1 + $0x10] sm:$0xf]
  %v21 = vld [vmem:[%s1 + $0x14] sm:$0xf]
  %v22 = vld [vmem:[%s1 + $0x18] sm:$0xf]
  %v23 = vld [vmem:[%s1 + $0x1c] sm:$0xf]
  %v24 = vld [vmem:[%s1 + $0x20] sm:$0xf]
  %v25 = vld [vmem:[%s2] sm:$0xff]
  %27 = vset.pattern.permute.xlu0 0
  %28 = vperm.xlu0 %27, %v25
  %v29 = vpop.permute.xlu0 %28
  %v40 = vunpack.c.l.b16 %v16
  %v41 = vunpack.c.l.b16 %v17
  %v42 = vunpack.c.l.b16 %v18
  %v43 = vunpack.c.l.b16 %v19
  %v44 = vunpack.c.l.b16 %v20
  %v45 = vunpack.c.l.b16 %v21
  %v46 = vunpack.c.l.b16 %v22
  %v47 = vunpack.c.l.b16 %v23
  %v48 = vunpack.c.l.b16 %v24
  %v49 = vpack.c.b16 %v41, %v40
  %v50 = vpack.c.b16 %v43, %v42
  %v51 = vpack.c.b16 %v45, %v44
  %v52 = vpack.c.b16 %v47, %v46
  %v53 = vpack.c.b16 %v48, %v48
  %vm58 = vcmask 588800
  %v60 = vsel %vm58, %v15, 0
  %vm62 = vcmask 1043456
  %v64 = vsel %vm62, %v53, 0
  %66 = vmatprep.subr.bf16.mxu0 0
  %67 = vmatpush1.bf16.msra.mxu0 0
  %68 = vmatprep.subr.bf16.mxu0 0
  %69 = vmatpush1.bf16.msra.mxu0 0
  %70 = vmatprep.subr.bf16.mxu0 0
  %71 = vmatpush1.bf16.msra.mxu0 0
  %72 = vmatprep.subr.bf16.mxu0 0
  %73 = vmatpush1.bf16.msra.mxu0 %v64
  %74 = vmatprep.subr.bf16.mxu0 0
  %75 = vmatpush1.bf16.msra.mxu0 %v52
  %76 = vmatprep.subr.bf16.mxu0 0
  %77 = vmatpush1.bf16.msra.mxu0 %v51
  %78 = vmatprep.subr.bf16.mxu0 0
  %79 = vmatpush1.bf16.msra.mxu0 %v50
  %80 = vmatprep.subr.bf16.mxu0 0
  %81 = vmatpush1.bf16.msra.mxu0 %v49
  %82 = vmatprep.subr.bf16.mxu0 0
  %83 = vmatpush2.bf16.msra.mxu0 0
  %84 = vmatprep.subr.bf16.mxu0 0
  %85 = vmatpush2.bf16.msra.mxu0 0
  %86 = vmatprep.subr.bf16.mxu0 0
  %87 = vmatpush2.bf16.msra.mxu0 0
  %88 = vmatprep.subr.bf16.mxu0 0
  %89 = vmatpush2.bf16.msra.mxu0 0
  %90 = vmatprep.subr.bf16.mxu0 0
  %91 = vmatpush2.bf16.msra.mxu0 0
  %92 = vmatprep.subr.bf16.mxu0 0
  %93 = vmatpush2.bf16.msra.mxu0 0
  %94 = vmatprep.subr.bf16.mxu0 0
  %95 = vmatpush2.bf16.msra.mxu0 0
  %96 = vmatprep.subr.bf16.mxu0 0
  %97 = vmatpush2.bf16.msra.mxu0 0
  %98 = vmatprep.mubr.bf16.mxu0 0
  %99 = vmatmul.mubr.bf16.gmra.mxu0 %v60
  %v100 = vpop.f32.mrf.mxu0
  %v101 = vadd.f32 %v29, %v100
  %v102 = vpop.f32.mrf.mxu0
  %v103 = vpop.f32.mrf.mxu0
  %v104 = vpop.f32.mrf.mxu0
  %105 = vdwg.mxu0
  %v106 = vmax.f32 %v101, 0.0
  %vm107 = vcmask 261120
  %108 = vst.msk [vmem:[%s3] sm:$0xff] %vm107, %v106
  // Predicated region
  $region14: #{forward.36} parent=0 // pred_check
    _
  $region15: #{forward.36} parent=0 // pred_check_branch
    %110 = sbr.rel (0) target = $region17
  $region16: #{forward.36} parent=0 // pred_region
    _
  $region17: #{forward.36} parent=0 // pred_fallthru
    _
  // Predicated region
  $region18: #{forward.36} parent=0 // pred_check
    _
  $region19: #{forward.36} parent=0 // pred_check_branch
    %112 = sbr.rel (0) target = $region21
  $region20: #{forward.36} parent=0 // pred_region
    _
  $region21: #{forward.36} parent=0 // pred_fallthru
    _

// kernel: forward.38
$region0: #{forward.38}
  #allocation0 [shape = 'u32[]', space=smem, size = 0x4, offset = 0x4, fixed_abs, tag = 'smem constant byte address 0x4 - core index']
  #allocation1 [shape = 'u32[144,128]{1,0:T(1,128)}', space=vmem, size = 0x12000, scoped, tag = 'internal scratch']
  %s0 = inlined_call_operand.vmem [shape: bf16[8,72], index: 0, kind: input, shape index: {}]
  %s1 = inlined_call_operand.vmem [shape: bf16[72,32], index: 1, kind: input, shape index: {}]
  %s2 = inlined_call_operand.vmem [shape: f32[8,1], index: 2, kind: input, shape index: {}]
  %s3 = inlined_call_operand.vmem [shape: f32[8,32], index: 3, kind: input, shape index: {}]
  %s4 = inlined_call_operand.vmem [shape: f32[8,32], index: 4, kind: output, shape index: {}]
  %s5 = sld [smem:[#allocation0]]
  $region26: #{forward.38} parent=0
    _
  %s7 = ssub.s32 1, %s5
  %s8 = scalar_select 0, %s7, %s5
  // Predicated region
  $region2: #{forward.38} parent=0 // pred_check
    _
  $region3: #{forward.38} parent=0 // pred_check_branch
    %10 = sbr.rel (0) target = $region5
  $region4: #{forward.38} parent=0 // pred_region
    _
  $region5: #{forward.38} parent=0 // pred_fallthru
    _
  // Predicated region
  $region6: #{forward.38} parent=0 // pred_check
    _
  $region7: #{forward.38} parent=0 // pred_check_branch
    %12 = sbr.rel (0) target = $region9
  $region8: #{forward.38} parent=0 // pred_region
    _
  $region9: #{forward.38} parent=0 // pred_fallthru
    _
  // Predicated region
  $region10: #{forward.38} parent=0 // pred_check
    _
  $region11: #{forward.38} parent=0 // pred_check_branch
    %14 = sbr.rel (0) target = $region13
  $region12: #{forward.38} parent=0 // pred_region
    _
  $region13: #{forward.38} parent=0 // pred_fallthru
    _
  // Predicated region
  $region14: #{forward.38} parent=0 // pred_check
    _
  $region15: #{forward.38} parent=0 // pred_check_branch
    %16 = sbr.rel (0) target = $region17
  $region16: #{forward.38} parent=0 // pred_region
    _
  $region17: #{forward.38} parent=0 // pred_fallthru
    _
  %v18 = vld [vmem:[%s0] sm:$0xf]
  %v19 = vld [vmem:[%s1] sm:$0xf]
  %v20 = vld [vmem:[%s1 + $0x4] sm:$0xf]
  %v21 = vld [vmem:[%s1 + $0x8] sm:$0xf]
  %v22 = vld [vmem:[%s1 + $0xc] sm:$0xf]
  %v23 = vld [vmem:[%s1 + $0x10] sm:$0xf]
  %v24 = vld [vmem:[%s1 + $0x14] sm:$0xf]
  %v25 = vld [vmem:[%s1 + $0x18] sm:$0xf]
  %v26 = vld [vmem:[%s1 + $0x1c] sm:$0xf]
  %v27 = vld [vmem:[%s1 + $0x20] sm:$0xf]
  %v28 = vld [vmem:[%s2] sm:$0xff]
  %v29 = vld [vmem:[%s3] sm:$0xff]
  %31 = vset.pattern.permute.xlu0 0
  %32 = vperm.xlu0 %31, %v28
  %v33 = vpop.permute.xlu0 %32
  %v44 = vunpack.c.l.b16 %v19
  %v45 = vunpack.c.l.b16 %v20
  %v46 = vunpack.c.l.b16 %v21
  %v47 = vunpack.c.l.b16 %v22
  %v48 = vunpack.c.l.b16 %v23
  %v49 = vunpack.c.l.b16 %v24
  %v50 = vunpack.c.l.b16 %v25
  %v51 = vunpack.c.l.b16 %v26
  %v52 = vunpack.c.l.b16 %v27
  %v53 = vpack.c.b16 %v45, %v44
  %v54 = vpack.c.b16 %v47, %v46
  %v55 = vpack.c.b16 %v49, %v48
  %v56 = vpack.c.b16 %v51, %v50
  %v57 = vpack.c.b16 %v52, %v52
  %vm62 = vcmask 588800
  %v64 = vsel %vm62, %v18, 0
  %vm66 = vcmask 1043456
  %v68 = vsel %vm66, %v57, 0
  %70 = vmatprep.subr.bf16.mxu0 0
  %71 = vmatpush1.bf16.msra.mxu0 0
  %72 = vmatprep.subr.bf16.mxu0 0
  %73 = vmatpush1.bf16.msra.mxu0 0
  %74 = vmatprep.subr.bf16.mxu0 0
  %75 = vmatpush1.bf16.msra.mxu0 0
  %76 = vmatprep.subr.bf16.mxu0 0
  %77 = vmatpush1.bf16.msra.mxu0 %v68
  %78 = vmatprep.subr.bf16.mxu0 0
  %79 = vmatpush1.bf16.msra.mxu0 %v56
  %80 = vmatprep.subr.bf16.mxu0 0
  %81 = vmatpush1.bf16.msra.mxu0 %v55
  %82 = vmatprep.subr.bf16.mxu0 0
  %83 = vmatpush1.bf16.msra.mxu0 %v54
  %84 = vmatprep.subr.bf16.mxu0 0
  %85 = vmatpush1.bf16.msra.mxu0 %v53
  %86 = vmatprep.subr.bf16.mxu0 0
  %87 = vmatpush2.bf16.msra.mxu0 0
  %88 = vmatprep.subr.bf16.mxu0 0
  %89 = vmatpush2.bf16.msra.mxu0 0
  %90 = vmatprep.subr.bf16.mxu0 0
  %91 = vmatpush2.bf16.msra.mxu0 0
  %92 = vmatprep.subr.bf16.mxu0 0
  %93 = vmatpush2.bf16.msra.mxu0 0
  %94 = vmatprep.subr.bf16.mxu0 0
  %95 = vmatpush2.bf16.msra.mxu0 0
  %96 = vmatprep.subr.bf16.mxu0 0
  %97 = vmatpush2.bf16.msra.mxu0 0
  %98 = vmatprep.subr.bf16.mxu0 0
  %99 = vmatpush2.bf16.msra.mxu0 0
  %100 = vmatprep.subr.bf16.mxu0 0
  %101 = vmatpush2.bf16.msra.mxu0 0
  %102 = vmatprep.mubr.bf16.mxu0 0
  %103 = vmatmul.mubr.bf16.gmra.mxu0 %v64
  %v104 = vpop.f32.mrf.mxu0
  %v105 = vadd.f32 %v33, %v104
  %v106 = vpop.f32.mrf.mxu0
  %v107 = vpop.f32.mrf.mxu0
  %v108 = vpop.f32.mrf.mxu0
  %109 = vdwg.mxu0
  %v110 = vadd.f32 %v105, %v29
  %vm111 = vcmask 261120
  %112 = vst.msk [vmem:[%s4] sm:$0xff] %vm111, %v110
  // Predicated region
  $region18: #{forward.38} parent=0 // pred_check
    _
  $region19: #{forward.38} parent=0 // pred_check_branch
    %114 = sbr.rel (0) target = $region21
  $region20: #{forward.38} parent=0 // pred_region
    _
  $region21: #{forward.38} parent=0 // pred_fallthru
    _
  // Predicated region
  $region22: #{forward.38} parent=0 // pred_check
    _
  $region23: #{forward.38} parent=0 // pred_check_branch
    %116 = sbr.rel (0) target = $region25
  $region24: #{forward.38} parent=0 // pred_region
    _
  $region25: #{forward.38} parent=0 // pred_fallthru
    _

// kernel: forward.39
$region0: #{forward.39}
  #allocation0 [shape = 'u32[]', space=smem, size = 0x4, offset = 0x4, fixed_abs, tag = 'smem constant byte address 0x4 - core index']
  #allocation1 [shape = 'u32[144,128]{1,0:T(1,128)}', space=vmem, size = 0x12000, scoped, tag = 'internal scratch']
  %s0 = inlined_call_operand.vmem [shape: bf16[4,72], index: 0, kind: input, shape index: {}]
  %s1 = inlined_call_operand.vmem [shape: bf16[72,32], index: 1, kind: input, shape index: {}]
  %s2 = inlined_call_operand.vmem [shape: f32[4,1], index: 2, kind: input, shape index: {}]
  %s3 = inlined_call_operand.vmem [shape: f32[4,32], index: 3, kind: output, shape index: {}]
  %s4 = sld [smem:[#allocation0]]
  $region22: #{forward.39} parent=0
    _
  %s6 = ssub.s32 1, %s4
  %s7 = scalar_select 0, %s6, %s4
  // Predicated region
  $region2: #{forward.39} parent=0 // pred_check
    _
  $region3: #{forward.39} parent=0 // pred_check_branch
    %9 = sbr.rel (0) target = $region5
  $region4: #{forward.39} parent=0 // pred_region
    _
  $region5: #{forward.39} parent=0 // pred_fallthru
    _
  // Predicated region
  $region6: #{forward.39} parent=0 // pred_check
    _
  $region7: #{forward.39} parent=0 // pred_check_branch
    %11 = sbr.rel (0) target = $region9
  $region8: #{forward.39} parent=0 // pred_region
    _
  $region9: #{forward.39} parent=0 // pred_fallthru
    _
  // Predicated region
  $region10: #{forward.39} parent=0 // pred_check
    _
  $region11: #{forward.39} parent=0 // pred_check_branch
    %13 = sbr.rel (0) target = $region13
  $region12: #{forward.39} parent=0 // pred_region
    _
  $region13: #{forward.39} parent=0 // pred_fallthru
    _
  %v15 = vld [vmem:[%s0] sm:$0x3]
  %v16 = vld [vmem:[%s1] sm:$0xf]
  %v17 = vld [vmem:[%s1 + $0x4] sm:$0xf]
  %v18 = vld [vmem:[%s1 + $0x8] sm:$0xf]
  %v19 = vld [vmem:[%s1 + $0xc] sm:$0xf]
  %v20 = vld [vmem:[%s1 + $0x10] sm:$0xf]
  %v21 = vld [vmem:[%s1 + $0x14] sm:$0xf]
  %v22 = vld [vmem:[%s1 + $0x18] sm:$0xf]
  %v23 = vld [vmem:[%s1 + $0x1c] sm:$0xf]
  %v24 = vld [vmem:[%s1 + $0x20] sm:$0xf]
  %v25 = vld [vmem:[%s2] sm:$0xf]
  %27 = vset.pattern.permute.xlu0 0
  %28 = vperm.xlu0 %27, %v25
  %v29 = vpop.permute.xlu0 %28
  %v40 = vunpack.c.l.b16 %v16
  %v41 = vunpack.c.l.b16 %v17
  %v42 = vunpack.c.l.b16 %v18
  %v43 = vunpack.c.l.b16 %v19
  %v44 = vunpack.c.l.b16 %v20
  %v45 = vunpack.c.l.b16 %v21
  %v46 = vunpack.c.l.b16 %v22
  %v47 = vunpack.c.l.b16 %v23
  %v48 = vunpack.c.l.b16 %v24
  %v49 = vpack.c.b16 %v41, %v40
  %v50 = vpack.c.b16 %v43, %v42
  %v51 = vpack.c.b16 %v45, %v44
  %v52 = vpack.c.b16 %v47, %v46
  %v53 = vpack.c.b16 %v48, %v48
  %vm58 = vcmask 588800
  %v60 = vsel %vm58, %v15, 0
  %vm62 = vcmask 1043456
  %v64 = vsel %vm62, %v53, 0
  %66 = vmatprep.subr.bf16.mxu0 0
  %67 = vmatpush1.bf16.msra.mxu0 0
  %68 = vmatprep.subr.bf16.mxu0 0
  %69 = vmatpush1.bf16.msra.mxu0 0
  %70 = vmatprep.subr.bf16.mxu0 0
  %71 = vmatpush1.bf16.msra.mxu0 0
  %72 = vmatprep.subr.bf16.mxu0 0
  %73 = vmatpush1.bf16.msra.mxu0 %v64
  %74 = vmatprep.subr.bf16.mxu0 0
  %75 = vmatpush1.bf16.msra.mxu0 %v52
  %76 = vmatprep.subr.bf16.mxu0 0
  %77 = vmatpush1.bf16.msra.mxu0 %v51
  %78 = vmatprep.subr.bf16.mxu0 0
  %79 = vmatpush1.bf16.msra.mxu0 %v50
  %80 = vmatprep.subr.bf16.mxu0 0
  %81 = vmatpush1.bf16.msra.mxu0 %v49
  %82 = vmatprep.subr.bf16.mxu0 0
  %83 = vmatpush2.bf16.msra.mxu0 0
  %84 = vmatprep.subr.bf16.mxu0 0
  %85 = vmatpush2.bf16.msra.mxu0 0
  %86 = vmatprep.subr.bf16.mxu0 0
  %87 = vmatpush2.bf16.msra.mxu0 0
  %88 = vmatprep.subr.bf16.mxu0 0
  %89 = vmatpush2.bf16.msra.mxu0 0
  %90 = vmatprep.subr.bf16.mxu0 0
  %91 = vmatpush2.bf16.msra.mxu0 0
  %92 = vmatprep.subr.bf16.mxu0 0
  %93 = vmatpush2.bf16.msra.mxu0 0
  %94 = vmatprep.subr.bf16.mxu0 0
  %95 = vmatpush2.bf16.msra.mxu0 0
  %96 = vmatprep.subr.bf16.mxu0 0
  %97 = vmatpush2.bf16.msra.mxu0 0
  %98 = vmatprep.mubr.bf16.mxu0 0
  %99 = vmatmul.mubr.bf16.gmra.mxu0 %v60
  %v100 = vpop.f32.mrf.mxu0
  %v101 = vadd.f32 %v29, %v100
  %v102 = vpop.f32.mrf.mxu0
  %v103 = vpop.f32.mrf.mxu0
  %v104 = vpop.f32.mrf.mxu0
  %105 = vdwg.mxu0
  %v106 = vsub.f32 %v101, -1.0
  %v107 = vmul.f32 %v106, 3.5
  %v108 = vsub.f32 %v107, 0.5
  %v109 = vceil.f32 %v108
  %v110 = vmax.f32 %v109, 0.0
  %v111 = vmin.f32 %v110, 7.0
  %v112 = vmul.f32 %v111, 0.2857143
  %v113 = vadd.f32 %v112, -1.0
  %vm114 = vcmask 257024
  %115 = vst.msk [vmem:[%s3] sm:$0xf] %vm114, %v113
  // Predicated region
  $region14: #{forward.39} parent=0 // pred_check
    _
  $region15: #{forward.39} parent=0 // pred_check_branch
    %117 = sbr.rel (0) target = $region17
  $region16: #{forward.39} parent=0 // pred_region
    _
  $region17: #{forward.39} parent=0 // pred_fallthru
    _
  // Predicated region
  $region18: #{forward.39} parent=0 // pred_check
    _
  $region19: #{forward.39} parent=0 // pred_check_branch
    %119 = sbr.rel (0) target = $region21
  $region20: #{forward.39} parent=0 // pred_region
    _
  $region21: #{forward.39} parent=0 // pred_fallthru
    _

// kernel: forward.40
$region0: #{forward.40}
  #allocation0 [shape = 'u32[]', space=smem, size = 0x4, offset = 0x4, fixed_abs, tag = 'smem constant byte address 0x4 - core index']
  #allocation1 [shape = 'u32[144,128]{1,0:T(1,128)}', space=vmem, size = 0x12000, scoped, tag = 'internal scratch']
  %s0 = inlined_call_operand.vmem [shape: bf16[8,72], index: 0, kind: input, shape index: {}]
  %s1 = inlined_call_operand.vmem [shape: bf16[72,8], index: 1, kind: input, shape index: {}]
  %s2 = inlined_call_operand.vmem [shape: f32[8,1], index: 2, kind: input, shape index: {}]
  %s3 = inlined_call_operand.vmem [shape: f32[8,8], index: 3, kind: output, shape index: {}]
  %s4 = sld [smem:[#allocation0]]
  $region22: #{forward.40} parent=0
    _
  %s6 = ssub.s32 1, %s4
  %s7 = scalar_select 0, %s6, %s4
  // Predicated region
  $region2: #{forward.40} parent=0 // pred_check
    _
  $region3: #{forward.40} parent=0 // pred_check_branch
    %9 = sbr.rel (0) target = $region5
  $region4: #{forward.40} parent=0 // pred_region
    _
  $region5: #{forward.40} parent=0 // pred_fallthru
    _
  // Predicated region
  $region6: #{forward.40} parent=0 // pred_check
    _
  $region7: #{forward.40} parent=0 // pred_check_branch
    %11 = sbr.rel (0) target = $region9
  $region8: #{forward.40} parent=0 // pred_region
    _
  $region9: #{forward.40} parent=0 // pred_fallthru
    _
  // Predicated region
  $region10: #{forward.40} parent=0 // pred_check
    _
  $region11: #{forward.40} parent=0 // pred_check_branch
    %13 = sbr.rel (0) target = $region13
  $region12: #{forward.40} parent=0 // pred_region
    _
  $region13: #{forward.40} parent=0 // pred_fallthru
    _
  %v15 = vld [vmem:[%s0] sm:$0xf]
  %v16 = vld [vmem:[%s1] sm:$0xf]
  %v17 = vld [vmem:[%s1 + $0x4] sm:$0xf]
  %v18 = vld [vmem:[%s1 + $0x8] sm:$0xf]
  %v19 = vld [vmem:[%s1 + $0xc] sm:$0xf]
  %v20 = vld [vmem:[%s1 + $0x10] sm:$0xf]
  %v21 = vld [vmem:[%s1 + $0x14] sm:$0xf]
  %v22 = vld [vmem:[%s1 + $0x18] sm:$0xf]
  %v23 = vld [vmem:[%s1 + $0x1c] sm:$0xf]
  %v24 = vld [vmem:[%s1 + $0x20] sm:$0xf]
  %v25 = vld [vmem:[%s2] sm:$0xff]
  %27 = vset.pattern.permute.xlu0 0
  %28 = vperm.xlu0 %27, %v25
  %v29 = vpop.permute.xlu0 %28
  %v40 = vunpack.c.l.b16 %v16
  %v41 = vunpack.c.l.b16 %v17
  %v42 = vunpack.c.l.b16 %v18
  %v43 = vunpack.c.l.b16 %v19
  %v44 = vunpack.c.l.b16 %v20
  %v45 = vunpack.c.l.b16 %v21
  %v46 = vunpack.c.l.b16 %v22
  %v47 = vunpack.c.l.b16 %v23
  %v48 = vunpack.c.l.b16 %v24
  %v49 = vpack.c.b16 %v41, %v40
  %v50 = vpack.c.b16 %v43, %v42
  %v51 = vpack.c.b16 %v45, %v44
  %v52 = vpack.c.b16 %v47, %v46
  %v53 = vpack.c.b16 %v48, %v48
  %vm58 = vcmask 588800
  %v60 = vsel %vm58, %v15, 0
  %vm62 = vcmask 1043456
  %v64 = vsel %vm62, %v53, 0
  %66 = vmatprep.subr.bf16.mxu0 0
  %67 = vmatpush1.bf16.msra.mxu0 0
  %68 = vmatprep.subr.bf16.mxu0 0
  %69 = vmatpush1.bf16.msra.mxu0 0
  %70 = vmatprep.subr.bf16.mxu0 0
  %71 = vmatpush1.bf16.msra.mxu0 0
  %72 = vmatprep.subr.bf16.mxu0 0
  %73 = vmatpush1.bf16.msra.mxu0 %v64
  %74 = vmatprep.subr.bf16.mxu0 0
  %75 = vmatpush1.bf16.msra.mxu0 %v52
  %76 = vmatprep.subr.bf16.mxu0 0
  %77 = vmatpush1.bf16.msra.mxu0 %v51
  %78 = vmatprep.subr.bf16.mxu0 0
  %79 = vmatpush1.bf16.msra.mxu0 %v50
  %80 = vmatprep.subr.bf16.mxu0 0
  %81 = vmatpush1.bf16.msra.mxu0 %v49
  %82 = vmatprep.subr.bf16.mxu0 0
  %83 = vmatpush2.bf16.msra.mxu0 0
  %84 = vmatprep.subr.bf16.mxu0 0
  %85 = vmatpush2.bf16.msra.mxu0 0
  %86 = vmatprep.subr.bf16.mxu0 0
  %87 = vmatpush2.bf16.msra.mxu0 0
  %88 = vmatprep.subr.bf16.mxu0 0
  %89 = vmatpush2.bf16.msra.mxu0 0
  %90 = vmatprep.subr.bf16.mxu0 0
  %91 = vmatpush2.bf16.msra.mxu0 0
  %92 = vmatprep.subr.bf16.mxu0 0
  %93 = vmatpush2.bf16.msra.mxu0 0
  %94 = vmatprep.subr.bf16.mxu0 0
  %95 = vmatpush2.bf16.msra.mxu0 0
  %96 = vmatprep.subr.bf16.mxu0 0
  %97 = vmatpush2.bf16.msra.mxu0 0
  %98 = vmatprep.mubr.bf16.mxu0 0
  %99 = vmatmul.mubr.bf16.gmra.mxu0 %v60
  %v100 = vpop.f32.mrf.mxu0
  %v101 = vadd.f32 %v29, %v100
  %v102 = vpop.f32.mrf.mxu0
  %v103 = vpop.f32.mrf.mxu0
  %v104 = vpop.f32.mrf.mxu0
  %105 = vdwg.mxu0
  %v106 = vmax.f32 %v101, 0.0
  %vm107 = vcmask 64512
  %108 = vst.msk [vmem:[%s3] sm:$0xff] %vm107, %v106
  // Predicated region
  $region14: #{forward.40} parent=0 // pred_check
    _
  $region15: #{forward.40} parent=0 // pred_check_branch
    %110 = sbr.rel (0) target = $region17
  $region16: #{forward.40} parent=0 // pred_region
    _
  $region17: #{forward.40} parent=0 // pred_fallthru
    _
  // Predicated region
  $region18: #{forward.40} parent=0 // pred_check
    _
  $region19: #{forward.40} parent=0 // pred_check_branch
    %112 = sbr.rel (0) target = $region21
  $region20: #{forward.40} parent=0 // pred_region
    _
  $region21: #{forward.40} parent=0 // pred_fallthru
    _

// kernel: forward.43
$region0: #{forward.43}
  #allocation0 [shape = 'u32[]', space=smem, size = 0x4, offset = 0x4, fixed_abs, tag = 'smem constant byte address 0x4 - core index']
  #allocation1 [shape = 'u32[144,128]{1,0:T(1,128)}', space=vmem, size = 0x12000, scoped, tag = 'internal scratch']
  %s0 = inlined_call_operand.vmem [shape: bf16[4,72], index: 0, kind: input, shape index: {}]
  %s1 = inlined_call_operand.vmem [shape: bf16[72,8], index: 1, kind: input, shape index: {}]
  %s2 = inlined_call_operand.vmem [shape: f32[4,1], index: 2, kind: input, shape index: {}]
  %s3 = inlined_call_operand.vmem [shape: f32[4,8], index: 3, kind: output, shape index: {}]
  %s4 = sld [smem:[#allocation0]]
  $region22: #{forward.43} parent=0
    _
  %s6 = ssub.s32 1, %s4
  %s7 = scalar_select 0, %s6, %s4
  // Predicated region
  $region2: #{forward.43} parent=0 // pred_check
    _
  $region3: #{forward.43} parent=0 // pred_check_branch
    %9 = sbr.rel (0) target = $region5
  $region4: #{forward.43} parent=0 // pred_region
    _
  $region5: #{forward.43} parent=0 // pred_fallthru
    _
  // Predicated region
  $region6: #{forward.43} parent=0 // pred_check
    _
  $region7: #{forward.43} parent=0 // pred_check_branch
    %11 = sbr.rel (0) target = $region9
  $region8: #{forward.43} parent=0 // pred_region
    _
  $region9: #{forward.43} parent=0 // pred_fallthru
    _
  // Predicated region
  $region10: #{forward.43} parent=0 // pred_check
    _
  $region11: #{forward.43} parent=0 // pred_check_branch
    %13 = sbr.rel (0) target = $region13
  $region12: #{forward.43} parent=0 // pred_region
    _
  $region13: #{forward.43} parent=0 // pred_fallthru
    _
  %v15 = vld [vmem:[%s0] sm:$0x3]
  %v16 = vld [vmem:[%s1] sm:$0xf]
  %v17 = vld [vmem:[%s1 + $0x4] sm:$0xf]
  %v18 = vld [vmem:[%s1 + $0x8] sm:$0xf]
  %v19 = vld [vmem:[%s1 + $0xc] sm:$0xf]
  %v20 = vld [vmem:[%s1 + $0x10] sm:$0xf]
  %v21 = vld [vmem:[%s1 + $0x14] sm:$0xf]
  %v22 = vld [vmem:[%s1 + $0x18] sm:$0xf]
  %v23 = vld [vmem:[%s1 + $0x1c] sm:$0xf]
  %v24 = vld [vmem:[%s1 + $0x20] sm:$0xf]
  %v25 = vld [vmem:[%s2] sm:$0xf]
  %27 = vset.pattern.permute.xlu0 0
  %28 = vperm.xlu0 %27, %v25
  %v29 = vpop.permute.xlu0 %28
  %v40 = vunpack.c.l.b16 %v16
  %v41 = vunpack.c.l.b16 %v17
  %v42 = vunpack.c.l.b16 %v18
  %v43 = vunpack.c.l.b16 %v19
  %v44 = vunpack.c.l.b16 %v20
  %v45 = vunpack.c.l.b16 %v21
  %v46 = vunpack.c.l.b16 %v22
  %v47 = vunpack.c.l.b16 %v23
  %v48 = vunpack.c.l.b16 %v24
  %v49 = vpack.c.b16 %v41, %v40
  %v50 = vpack.c.b16 %v43, %v42
  %v51 = vpack.c.b16 %v45, %v44
  %v52 = vpack.c.b16 %v47, %v46
  %v53 = vpack.c.b16 %v48, %v48
  %vm58 = vcmask 588800
  %v60 = vsel %vm58, %v15, 0
  %vm62 = vcmask 1043456
  %v64 = vsel %vm62, %v53, 0
  %66 = vmatprep.subr.bf16.mxu0 0
  %67 = vmatpush1.bf16.msra.mxu0 0
  %68 = vmatprep.subr.bf16.mxu0 0
  %69 = vmatpush1.bf16.msra.mxu0 0
  %70 = vmatprep.subr.bf16.mxu0 0
  %71 = vmatpush1.bf16.msra.mxu0 0
  %72 = vmatprep.subr.bf16.mxu0 0
  %73 = vmatpush1.bf16.msra.mxu0 %v64
  %74 = vmatprep.subr.bf16.mxu0 0
  %75 = vmatpush1.bf16.msra.mxu0 %v52
  %76 = vmatprep.subr.bf16.mxu0 0
  %77 = vmatpush1.bf16.msra.mxu0 %v51
  %78 = vmatprep.subr.bf16.mxu0 0
  %79 = vmatpush1.bf16.msra.mxu0 %v50
  %80 = vmatprep.subr.bf16.mxu0 0
  %81 = vmatpush1.bf16.msra.mxu0 %v49
  %82 = vmatprep.subr.bf16.mxu0 0
  %83 = vmatpush2.bf16.msra.mxu0 0
  %84 = vmatprep.subr.bf16.mxu0 0
  %85 = vmatpush2.bf16.msra.mxu0 0
  %86 = vmatprep.subr.bf16.mxu0 0
  %87 = vmatpush2.bf16.msra.mxu0 0
  %88 = vmatprep.subr.bf16.mxu0 0
  %89 = vmatpush2.bf16.msra.mxu0 0
  %90 = vmatprep.subr.bf16.mxu0 0
  %91 = vmatpush2.bf16.msra.mxu0 0
  %92 = vmatprep.subr.bf16.mxu0 0
  %93 = vmatpush2.bf16.msra.mxu0 0
  %94 = vmatprep.subr.bf16.mxu0 0
  %95 = vmatpush2.bf16.msra.mxu0 0
  %96 = vmatprep.subr.bf16.mxu0 0
  %97 = vmatpush2.bf16.msra.mxu0 0
  %98 = vmatprep.mubr.bf16.mxu0 0
  %99 = vmatmul.mubr.bf16.gmra.mxu0 %v60
  %v100 = vpop.f32.mrf.mxu0
  %v101 = vadd.f32 %v29, %v100
  %v102 = vpop.f32.mrf.mxu0
  %v103 = vpop.f32.mrf.mxu0
  %v104 = vpop.f32.mrf.mxu0
  %105 = vdwg.mxu0
  %v106 = vsub.f32 %v101, -1.0
  %v107 = vmul.f32 %v106, 3.5
  %v108 = vsub.f32 %v107, 0.5
  %v109 = vceil.f32 %v108
  %v110 = vmax.f32 %v109, 0.0
  %v111 = vmin.f32 %v110, 7.0
  %v112 = vmul.f32 %v111, 0.2857143
  %v113 = vadd.f32 %v112, -1.0
  %vm114 = vcmask 60416
  %115 = vst.msk [vmem:[%s3] sm:$0xf] %vm114, %v113
  // Predicated region
  $region14: #{forward.43} parent=0 // pred_check
    _
  $region15: #{forward.43} parent=0 // pred_check_branch
    %117 = sbr.rel (0) target = $region17
  $region16: #{forward.43} parent=0 // pred_region
    _
  $region17: #{forward.43} parent=0 // pred_fallthru
    _
  // Predicated region
  $region18: #{forward.43} parent=0 // pred_check
    _
  $region19: #{forward.43} parent=0 // pred_check_branch
    %119 = sbr.rel (0) target = $region21
  $region20: #{forward.43} parent=0 // pred_region
    _
  $region21: #{forward.43} parent=0 // pred_fallthru
    _

// kernel: forward.42
$region0: #{forward.42}
  #allocation0 [shape = 'u32[]', space=smem, size = 0x4, offset = 0x4, fixed_abs, tag = 'smem constant byte address 0x4 - core index']
  #allocation1 [shape = 'u32[144,128]{1,0:T(1,128)}', space=vmem, size = 0x12000, scoped, tag = 'internal scratch']
  %s0 = inlined_call_operand.vmem [shape: bf16[8,72], index: 0, kind: input, shape index: {}]
  %s1 = inlined_call_operand.vmem [shape: bf16[72,8], index: 1, kind: input, shape index: {}]
  %s2 = inlined_call_operand.vmem [shape: f32[8,1], index: 2, kind: input, shape index: {}]
  %s3 = inlined_call_operand.vmem [shape: f32[8,8], index: 3, kind: input, shape index: {}]
  %s4 = inlined_call_operand.vmem [shape: f32[8,8], index: 4, kind: output, shape index: {}]
  %s5 = sld [smem:[#allocation0]]
  $region26: #{forward.42} parent=0
    _
  %s7 = ssub.s32 1, %s5
  %s8 = scalar_select 0, %s7, %s5
  // Predicated region
  $region2: #{forward.42} parent=0 // pred_check
    _
  $region3: #{forward.42} parent=0 // pred_check_branch
    %10 = sbr.rel (0) target = $region5
  $region4: #{forward.42} parent=0 // pred_region
    _
  $region5: #{forward.42} parent=0 // pred_fallthru
    _
  // Predicated region
  $region6: #{forward.42} parent=0 // pred_check
    _
  $region7: #{forward.42} parent=0 // pred_check_branch
    %12 = sbr.rel (0) target = $region9
  $region8: #{forward.42} parent=0 // pred_region
    _
  $region9: #{forward.42} parent=0 // pred_fallthru
    _
  // Predicated region
  $region10: #{forward.42} parent=0 // pred_check
    _
  $region11: #{forward.42} parent=0 // pred_check_branch
    %14 = sbr.rel (0) target = $region13
  $region12: #{forward.42} parent=0 // pred_region
    _
  $region13: #{forward.42} parent=0 // pred_fallthru
    _
  // Predicated region
  $region14: #{forward.42} parent=0 // pred_check
    _
  $region15: #{forward.42} parent=0 // pred_check_branch
    %16 = sbr.rel (0) target = $region17
  $region16: #{forward.42} parent=0 // pred_region
    _
  $region17: #{forward.42} parent=0 // pred_fallthru
    _
  %v18 = vld [vmem:[%s0] sm:$0xf]
  %v19 = vld [vmem:[%s1] sm:$0xf]
  %v20 = vld [vmem:[%s1 + $0x4] sm:$0xf]
  %v21 = vld [vmem:[%s1 + $0x8] sm:$0xf]
  %v22 = vld [vmem:[%s1 + $0xc] sm:$0xf]
  %v23 = vld [vmem:[%s1 + $0x10] sm:$0xf]
  %v24 = vld [vmem:[%s1 + $0x14] sm:$0xf]
  %v25 = vld [vmem:[%s1 + $0x18] sm:$0xf]
  %v26 = vld [vmem:[%s1 + $0x1c] sm:$0xf]
  %v27 = vld [vmem:[%s1 + $0x20] sm:$0xf]
  %v28 = vld [vmem:[%s2] sm:$0xff]
  %v29 = vld [vmem:[%s3] sm:$0xff]
  %31 = vset.pattern.permute.xlu0 0
  %32 = vperm.xlu0 %31, %v28
  %v33 = vpop.permute.xlu0 %32
  %v44 = vunpack.c.l.b16 %v19
  %v45 = vunpack.c.l.b16 %v20
  %v46 = vunpack.c.l.b16 %v21
  %v47 = vunpack.c.l.b16 %v22
  %v48 = vunpack.c.l.b16 %v23
  %v49 = vunpack.c.l.b16 %v24
  %v50 = vunpack.c.l.b16 %v25
  %v51 = vunpack.c.l.b16 %v26
  %v52 = vunpack.c.l.b16 %v27
  %v53 = vpack.c.b16 %v45, %v44
  %v54 = vpack.c.b16 %v47, %v46
  %v55 = vpack.c.b16 %v49, %v48
  %v56 = vpack.c.b16 %v51, %v50
  %v57 = vpack.c.b16 %v52, %v52
  %vm62 = vcmask 588800
  %v64 = vsel %vm62, %v18, 0
  %vm66 = vcmask 1043456
  %v68 = vsel %vm66, %v57, 0
  %70 = vmatprep.subr.bf16.mxu0 0
  %71 = vmatpush1.bf16.msra.mxu0 0
  %72 = vmatprep.subr.bf16.mxu0 0
  %73 = vmatpush1.bf16.msra.mxu0 0
  %74 = vmatprep.subr.bf16.mxu0 0
  %75 = vmatpush1.bf16.msra.mxu0 0
  %76 = vmatprep.subr.bf16.mxu0 0
  %77 = vmatpush1.bf16.msra.mxu0 %v68
  %78 = vmatprep.subr.bf16.mxu0 0
  %79 = vmatpush1.bf16.msra.mxu0 %v56
  %80 = vmatprep.subr.bf16.mxu0 0
  %81 = vmatpush1.bf16.msra.mxu0 %v55
  %82 = vmatprep.subr.bf16.mxu0 0
  %83 = vmatpush1.bf16.msra.mxu0 %v54
  %84 = vmatprep.subr.bf16.mxu0 0
  %85 = vmatpush1.bf16.msra.mxu0 %v53
  %86 = vmatprep.subr.bf16.mxu0 0
  %87 = vmatpush2.bf16.msra.mxu0 0
  %88 = vmatprep.subr.bf16.mxu0 0
  %89 = vmatpush2.bf16.msra.mxu0 0
  %90 = vmatprep.subr.bf16.mxu0 0
  %91 = vmatpush2.bf16.msra.mxu0 0
  %92 = vmatprep.subr.bf16.mxu0 0
  %93 = vmatpush2.bf16.msra.mxu0 0
  %94 = vmatprep.subr.bf16.mxu0 0
  %95 = vmatpush2.bf16.msra.mxu0 0
  %96 = vmatprep.subr.bf16.mxu0 0
  %97 = vmatpush2.bf16.msra.mxu0 0
  %98 = vmatprep.subr.bf16.mxu0 0
  %99 = vmatpush2.bf16.msra.mxu0 0
  %100 = vmatprep.subr.bf16.mxu0 0
  %101 = vmatpush2.bf16.msra.mxu0 0
  %102 = vmatprep.mubr.bf16.mxu0 0
  %103 = vmatmul.mubr.bf16.gmra.mxu0 %v64
  %v104 = vpop.f32.mrf.mxu0
  %v105 = vadd.f32 %v33, %v104
  %v106 = vpop.f32.mrf.mxu0
  %v107 = vpop.f32.mrf.mxu0
  %v108 = vpop.f32.mrf.mxu0
  %109 = vdwg.mxu0
  %v110 = vadd.f32 %v105, %v29
  %vm111 = vcmask 64512
  %112 = vst.msk [vmem:[%s4] sm:$0xff] %vm111, %v110
  // Predicated region
  $region18: #{forward.42} parent=0 // pred_check
    _
  $region19: #{forward.42} parent=0 // pred_check_branch
    %114 = sbr.rel (0) target = $region21
  $region20: #{forward.42} parent=0 // pred_region
    _
  $region21: #{forward.42} parent=0 // pred_fallthru
    _
  // Predicated region
  $region22: #{forward.42} parent=0 // pred_check
    _
  $region23: #{forward.42} parent=0 // pred_check_branch
    %116 = sbr.rel (0) target = $region25
  $region24: #{forward.42} parent=0 // pred_region
    _
  $region25: #{forward.42} parent=0 // pred_fallthru
    _

// kernel: forward.44
$region0: #{forward.44}
  #allocation0 [shape = 'u32[]', space=smem, size = 0x4, offset = 0x4, fixed_abs, tag = 'smem constant byte address 0x4 - core index']
  #allocation1 [shape = 'u32[144,128]{1,0:T(1,128)}', space=vmem, size = 0x12000, scoped, tag = 'internal scratch']
  %s0 = inlined_call_operand.vmem [shape: bf16[8,36], index: 0, kind: input, shape index: {}]
  %s1 = inlined_call_operand.vmem [shape: bf16[36,8], index: 1, kind: input, shape index: {}]
  %s2 = inlined_call_operand.vmem [shape: f32[8,1], index: 2, kind: input, shape index: {}]
  %s3 = inlined_call_operand.vmem [shape: f32[8,8], index: 3, kind: output, shape index: {}]
  %s4 = sld [smem:[#allocation0]]
  $region22: #{forward.44} parent=0
    _
  %s6 = ssub.s32 1, %s4
  %s7 = scalar_select 0, %s6, %s4
  // Predicated region
  $region2: #{forward.44} parent=0 // pred_check
    _
  $region3: #{forward.44} parent=0 // pred_check_branch
    %9 = sbr.rel (0) target = $region5
  $region4: #{forward.44} parent=0 // pred_region
    _
  $region5: #{forward.44} parent=0 // pred_fallthru
    _
  // Predicated region
  $region6: #{forward.44} parent=0 // pred_check
    _
  $region7: #{forward.44} parent=0 // pred_check_branch
    %11 = sbr.rel (0) target = $region9
  $region8: #{forward.44} parent=0 // pred_region
    _
  $region9: #{forward.44} parent=0 // pred_fallthru
    _
  // Predicated region
  $region10: #{forward.44} parent=0 // pred_check
    _
  $region11: #{forward.44} parent=0 // pred_check_branch
    %13 = sbr.rel (0) target = $region13
  $region12: #{forward.44} parent=0 // pred_region
    _
  $region13: #{forward.44} parent=0 // pred_fallthru
    _
  %v15 = vld [vmem:[%s0] sm:$0xf]
  %v16 = vld [vmem:[%s1] sm:$0xf]
  %v17 = vld [vmem:[%s1 + $0x4] sm:$0xf]
  %v18 = vld [vmem:[%s1 + $0x8] sm:$0xf]
  %v19 = vld [vmem:[%s1 + $0xc] sm:$0xf]
  %v20 = vld [vmem:[%s1 + $0x10] sm:$0x3]
  %v21 = vld [vmem:[%s2] sm:$0xff]
  %23 = vset.pattern.permute.xlu0 0
  %24 = vperm.xlu0 %23, %v21
  %v25 = vpop.permute.xlu0 %24
  %v32 = vunpack.c.l.b16 %v16
  %v33 = vunpack.c.l.b16 %v17
  %v34 = vunpack.c.l.b16 %v18
  %v35 = vunpack.c.l.b16 %v19
  %v36 = vunpack.c.l.b16 %v20
  %v37 = vpack.c.b16 %v33, %v32
  %v38 = vpack.c.b16 %v35, %v34
  %v39 = vpack.c.b16 %v36, %v36
  %vm42 = vcmask 293888
  %v44 = vsel %vm42, %v15, 0
  %vm46 = vcmask 1041408
  %v48 = vsel %vm46, %v39, 0
  %50 = vmatprep.subr.bf16.mxu0 0
  %51 = vmatpush1.bf16.msra.mxu0 0
  %52 = vmatprep.subr.bf16.mxu0 0
  %53 = vmatpush1.bf16.msra.mxu0 0
  %54 = vmatprep.subr.bf16.mxu0 0
  %55 = vmatpush1.bf16.msra.mxu0 0
  %56 = vmatprep.subr.bf16.mxu0 0
  %57 = vmatpush1.bf16.msra.mxu0 0
  %58 = vmatprep.subr.bf16.mxu0 0
  %59 = vmatpush1.bf16.msra.mxu0 0
  %60 = vmatprep.subr.bf16.mxu0 0
  %61 = vmatpush1.bf16.msra.mxu0 %v48
  %62 = vmatprep.subr.bf16.mxu0 0
  %63 = vmatpush1.bf16.msra.mxu0 %v38
  %64 = vmatprep.subr.bf16.mxu0 0
  %65 = vmatpush1.bf16.msra.mxu0 %v37
  %66 = vmatprep.subr.bf16.mxu0 0
  %67 = vmatpush2.bf16.msra.mxu0 0
  %68 = vmatprep.subr.bf16.mxu0 0
  %69 = vmatpush2.bf16.msra.mxu0 0
  %70 = vmatprep.subr.bf16.mxu0 0
  %71 = vmatpush2.bf16.msra.mxu0 0
  %72 = vmatprep.subr.bf16.mxu0 0
  %73 = vmatpush2.bf16.msra.mxu0 0
  %74 = vmatprep.subr.bf16.mxu0 0
  %75 = vmatpush2.bf16.msra.mxu0 0
  %76 = vmatprep.subr.bf16.mxu0 0
  %77 = vmatpush2.bf16.msra.mxu0 0
  %78 = vmatprep.subr.bf16.mxu0 0
  %79 = vmatpush2.bf16.msra.mxu0 0
  %80 = vmatprep.subr.bf16.mxu0 0
  %81 = vmatpush2.bf16.msra.mxu0 0
  %82 = vmatprep.mubr.bf16.mxu0 0
  %83 = vmatmul.mubr.bf16.gmra.mxu0 %v44
  %v84 = vpop.f32.mrf.mxu0
  %v85 = vadd.f32 %v25, %v84
  %v86 = vpop.f32.mrf.mxu0
  %v87 = vpop.f32.mrf.mxu0
  %v88 = vpop.f32.mrf.mxu0
  %89 = vdwg.mxu0
  %v90 = vmax.f32 %v85, 0.0
  %vm91 = vcmask 64512
  %92 = vst.msk [vmem:[%s3] sm:$0xff] %vm91, %v90
  // Predicated region
  $region14: #{forward.44} parent=0 // pred_check
    _
  $region15: #{forward.44} parent=0 // pred_check_branch
    %94 = sbr.rel (0) target = $region17
  $region16: #{forward.44} parent=0 // pred_region
    _
  $region17: #{forward.44} parent=0 // pred_fallthru
    _
  // Predicated region
  $region18: #{forward.44} parent=0 // pred_check
    _
  $region19: #{forward.44} parent=0 // pred_check_branch
    %96 = sbr.rel (0) target = $region21
  $region20: #{forward.44} parent=0 // pred_region
    _
  $region21: #{forward.44} parent=0 // pred_fallthru
    _

// kernel: forward.50
$region0: #{forward.50}
  #allocation0 [shape = 'u32[]', space=smem, size = 0x4, offset = 0x4, fixed_abs, tag = 'smem constant byte address 0x4 - core index']
  #allocation1 [shape = 'u32[144,128]{1,0:T(1,128)}', space=vmem, size = 0x12000, scoped, tag = 'internal scratch']
  %s0 = inlined_call_operand.vmem [shape: bf16[8,36], index: 0, kind: input, shape index: {}]
  %s1 = inlined_call_operand.vmem [shape: bf16[36,32], index: 1, kind: input, shape index: {}]
  %s2 = inlined_call_operand.vmem [shape: f32[8,1], index: 2, kind: input, shape index: {}]
  %s3 = inlined_call_operand.vmem [shape: f32[8,32], index: 3, kind: input, shape index: {}]
  %s4 = inlined_call_operand.vmem [shape: f32[8,32], index: 4, kind: output, shape index: {}]
  %s5 = sld [smem:[#allocation0]]
  $region26: #{forward.50} parent=0
    _
  %s7 = ssub.s32 1, %s5
  %s8 = scalar_select 0, %s7, %s5
  // Predicated region
  $region2: #{forward.50} parent=0 // pred_check
    _
  $region3: #{forward.50} parent=0 // pred_check_branch
    %10 = sbr.rel (0) target = $region5
  $region4: #{forward.50} parent=0 // pred_region
    _
  $region5: #{forward.50} parent=0 // pred_fallthru
    _
  // Predicated region
  $region6: #{forward.50} parent=0 // pred_check
    _
  $region7: #{forward.50} parent=0 // pred_check_branch
    %12 = sbr.rel (0) target = $region9
  $region8: #{forward.50} parent=0 // pred_region
    _
  $region9: #{forward.50} parent=0 // pred_fallthru
    _
  // Predicated region
  $region10: #{forward.50} parent=0 // pred_check
    _
  $region11: #{forward.50} parent=0 // pred_check_branch
    %14 = sbr.rel (0) target = $region13
  $region12: #{forward.50} parent=0 // pred_region
    _
  $region13: #{forward.50} parent=0 // pred_fallthru
    _
  // Predicated region
  $region14: #{forward.50} parent=0 // pred_check
    _
  $region15: #{forward.50} parent=0 // pred_check_branch
    %16 = sbr.rel (0) target = $region17
  $region16: #{forward.50} parent=0 // pred_region
    _
  $region17: #{forward.50} parent=0 // pred_fallthru
    _
  %v18 = vld [vmem:[%s0] sm:$0xf]
  %v19 = vld [vmem:[%s1] sm:$0xf]
  %v20 = vld [vmem:[%s1 + $0x4] sm:$0xf]
  %v21 = vld [vmem:[%s1 + $0x8] sm:$0xf]
  %v22 = vld [vmem:[%s1 + $0xc] sm:$0xf]
  %v23 = vld [vmem:[%s1 + $0x10] sm:$0x3]
  %v24 = vld [vmem:[%s2] sm:$0xff]
  %v25 = vld [vmem:[%s3] sm:$0xff]
  %27 = vset.pattern.permute.xlu0 0
  %28 = vperm.xlu0 %27, %v24
  %v29 = vpop.permute.xlu0 %28
  %v36 = vunpack.c.l.b16 %v19
  %v37 = vunpack.c.l.b16 %v20
  %v38 = vunpack.c.l.b16 %v21
  %v39 = vunpack.c.l.b16 %v22
  %v40 = vunpack.c.l.b16 %v23
  %v41 = vpack.c.b16 %v37, %v36
  %v42 = vpack.c.b16 %v39, %v38
  %v43 = vpack.c.b16 %v40, %v40
  %vm46 = vcmask 293888
  %v48 = vsel %vm46, %v18, 0
  %vm50 = vcmask 1041408
  %v52 = vsel %vm50, %v43, 0
  %54 = vmatprep.subr.bf16.mxu0 0
  %55 = vmatpush1.bf16.msra.mxu0 0
  %56 = vmatprep.subr.bf16.mxu0 0
  %57 = vmatpush1.bf16.msra.mxu0 0
  %58 = vmatprep.subr.bf16.mxu0 0
  %59 = vmatpush1.bf16.msra.mxu0 0
  %60 = vmatprep.subr.bf16.mxu0 0
  %61 = vmatpush1.bf16.msra.mxu0 0
  %62 = vmatprep.subr.bf16.mxu0 0
  %63 = vmatpush1.bf16.msra.mxu0 0
  %64 = vmatprep.subr.bf16.mxu0 0
  %65 = vmatpush1.bf16.msra.mxu0 %v52
  %66 = vmatprep.subr.bf16.mxu0 0
  %67 = vmatpush1.bf16.msra.mxu0 %v42
  %68 = vmatprep.subr.bf16.mxu0 0
  %69 = vmatpush1.bf16.msra.mxu0 %v41
  %70 = vmatprep.subr.bf16.mxu0 0
  %71 = vmatpush2.bf16.msra.mxu0 0
  %72 = vmatprep.subr.bf16.mxu0 0
  %73 = vmatpush2.bf16.msra.mxu0 0
  %74 = vmatprep.subr.bf16.mxu0 0
  %75 = vmatpush2.bf16.msra.mxu0 0
  %76 = vmatprep.subr.bf16.mxu0 0
  %77 = vmatpush2.bf16.msra.mxu0 0
  %78 = vmatprep.subr.bf16.mxu0 0
  %79 = vmatpush2.bf16.msra.mxu0 0
  %80 = vmatprep.subr.bf16.mxu0 0
  %81 = vmatpush2.bf16.msra.mxu0 0
  %82 = vmatprep.subr.bf16.mxu0 0
  %83 = vmatpush2.bf16.msra.mxu0 0
  %84 = vmatprep.subr.bf16.mxu0 0
  %85 = vmatpush2.bf16.msra.mxu0 0
  %86 = vmatprep.mubr.bf16.mxu0 0
  %87 = vmatmul.mubr.bf16.gmra.mxu0 %v48
  %v88 = vpop.f32.mrf.mxu0
  %v89 = vadd.f32 %v29, %v88
  %v90 = vpop.f32.mrf.mxu0
  %v91 = vpop.f32.mrf.mxu0
  %v92 = vpop.f32.mrf.mxu0
  %93 = vdwg.mxu0
  %v94 = vmax.f32 %v89, 0.0
  %v95 = vadd.f32 %v94, %v25
  %vm96 = vcmask 261120
  %97 = vst.msk [vmem:[%s4] sm:$0xff] %vm96, %v95
  // Predicated region
  $region18: #{forward.50} parent=0 // pred_check
    _
  $region19: #{forward.50} parent=0 // pred_check_branch
    %99 = sbr.rel (0) target = $region21
  $region20: #{forward.50} parent=0 // pred_region
    _
  $region21: #{forward.50} parent=0 // pred_fallthru
    _
  // Predicated region
  $region22: #{forward.50} parent=0 // pred_check
    _
  $region23: #{forward.50} parent=0 // pred_check_branch
    %101 = sbr.rel (0) target = $region25
  $region24: #{forward.50} parent=0 // pred_region
    _
  $region25: #{forward.50} parent=0 // pred_fallthru
    _

// kernel: forward.56
$region0: #{forward.56}
  #allocation0 [shape = 'u32[]', space=smem, size = 0x4, offset = 0x4, fixed_abs, tag = 'smem constant byte address 0x4 - core index']
  #allocation1 [shape = 'u32[144,128]{1,0:T(1,128)}', space=vmem, size = 0x12000, scoped, tag = 'internal scratch']
  %s0 = inlined_call_operand.vmem [shape: bf16[8,36], index: 0, kind: input, shape index: {}]
  %s1 = inlined_call_operand.vmem [shape: bf16[36,128], index: 1, kind: input, shape index: {}]
  %s2 = inlined_call_operand.vmem [shape: f32[8,1], index: 2, kind: input, shape index: {}]
  %s3 = inlined_call_operand.vmem [shape: f32[8,128], index: 3, kind: input, shape index: {}]
  %s4 = inlined_call_operand.vmem [shape: f32[8,128], index: 4, kind: output, shape index: {}]
  %s5 = sld [smem:[#allocation0]]
  $region26: #{forward.56} parent=0
    _
  %s7 = ssub.s32 1, %s5
  %s8 = scalar_select 0, %s7, %s5
  // Predicated region
  $region2: #{forward.56} parent=0 // pred_check
    _
  $region3: #{forward.56} parent=0 // pred_check_branch
    %10 = sbr.rel (0) target = $region5
  $region4: #{forward.56} parent=0 // pred_region
    _
  $region5: #{forward.56} parent=0 // pred_fallthru
    _
  // Predicated region
  $region6: #{forward.56} parent=0 // pred_check
    _
  $region7: #{forward.56} parent=0 // pred_check_branch
    %12 = sbr.rel (0) target = $region9
  $region8: #{forward.56} parent=0 // pred_region
    _
  $region9: #{forward.56} parent=0 // pred_fallthru
    _
  // Predicated region
  $region10: #{forward.56} parent=0 // pred_check
    _
  $region11: #{forward.56} parent=0 // pred_check_branch
    %14 = sbr.rel (0) target = $region13
  $region12: #{forward.56} parent=0 // pred_region
    _
  $region13: #{forward.56} parent=0 // pred_fallthru
    _
  // Predicated region
  $region14: #{forward.56} parent=0 // pred_check
    _
  $region15: #{forward.56} parent=0 // pred_check_branch
    %16 = sbr.rel (0) target = $region17
  $region16: #{forward.56} parent=0 // pred_region
    _
  $region17: #{forward.56} parent=0 // pred_fallthru
    _
  %v18 = vld [vmem:[%s0] sm:$0xf]
  %v19 = vld [vmem:[%s1] sm:$0xf]
  %v20 = vld [vmem:[%s1 + $0x4] sm:$0xf]
  %v21 = vld [vmem:[%s1 + $0x8] sm:$0xf]
  %v22 = vld [vmem:[%s1 + $0xc] sm:$0xf]
  %v23 = vld [vmem:[%s1 + $0x10] sm:$0x3]
  %v24 = vld [vmem:[%s2] sm:$0xff]
  %v25 = vld [vmem:[%s3] sm:$0xff]
  %27 = vset.pattern.permute.xlu0 0
  %28 = vperm.xlu0 %27, %v24
  %v29 = vpop.permute.xlu0 %28
  %v36 = vunpack.c.l.b16 %v19
  %v37 = vunpack.c.l.b16 %v20
  %v38 = vunpack.c.l.b16 %v21
  %v39 = vunpack.c.l.b16 %v22
  %v40 = vunpack.c.l.b16 %v23
  %v41 = vpack.c.b16 %v37, %v36
  %v42 = vpack.c.b16 %v39, %v38
  %v43 = vpack.c.b16 %v40, %v40
  %vm46 = vcmask 293888
  %v48 = vsel %vm46, %v18, 0
  %vm50 = vcmask 1041408
  %v52 = vsel %vm50, %v43, 0
  %54 = vmatprep.subr.bf16.mxu0 0
  %55 = vmatpush1.bf16.msra.mxu0 0
  %56 = vmatprep.subr.bf16.mxu0 0
  %57 = vmatpush1.bf16.msra.mxu0 0
  %58 = vmatprep.subr.bf16.mxu0 0
  %59 = vmatpush1.bf16.msra.mxu0 0
  %60 = vmatprep.subr.bf16.mxu0 0
  %61 = vmatpush1.bf16.msra.mxu0 0
  %62 = vmatprep.subr.bf16.mxu0 0
  %63 = vmatpush1.bf16.msra.mxu0 0
  %64 = vmatprep.subr.bf16.mxu0 0
  %65 = vmatpush1.bf16.msra.mxu0 %v52
  %66 = vmatprep.subr.bf16.mxu0 0
  %67 = vmatpush1.bf16.msra.mxu0 %v42
  %68 = vmatprep.subr.bf16.mxu0 0
  %69 = vmatpush1.bf16.msra.mxu0 %v41
  %70 = vmatprep.subr.bf16.mxu0 0
  %71 = vmatpush2.bf16.msra.mxu0 0
  %72 = vmatprep.subr.bf16.mxu0 0
  %73 = vmatpush2.bf16.msra.mxu0 0
  %74 = vmatprep.subr.bf16.mxu0 0
  %75 = vmatpush2.bf16.msra.mxu0 0
  %76 = vmatprep.subr.bf16.mxu0 0
  %77 = vmatpush2.bf16.msra.mxu0 0
  %78 = vmatprep.subr.bf16.mxu0 0
  %79 = vmatpush2.bf16.msra.mxu0 0
  %80 = vmatprep.subr.bf16.mxu0 0
  %81 = vmatpush2.bf16.msra.mxu0 0
  %82 = vmatprep.subr.bf16.mxu0 0
  %83 = vmatpush2.bf16.msra.mxu0 0
  %84 = vmatprep.subr.bf16.mxu0 0
  %85 = vmatpush2.bf16.msra.mxu0 0
  %86 = vmatprep.mubr.bf16.mxu0 0
  %87 = vmatmul.mubr.bf16.gmra.mxu0 %v48
  %v88 = vpop.f32.mrf.mxu0
  %v89 = vadd.f32 %v29, %v88
  %v90 = vpop.f32.mrf.mxu0
  %v91 = vpop.f32.mrf.mxu0
  %v92 = vpop.f32.mrf.mxu0
  %93 = vdwg.mxu0
  %v94 = vmax.f32 %v89, 0.0
  %v95 = vadd.f32 %v94, %v25
  %96 = vst [vmem:[%s4] sm:$0xff] %v95
  // Predicated region
  $region18: #{forward.56} parent=0 // pred_check
    _
  $region19: #{forward.56} parent=0 // pred_check_branch
    %98 = sbr.rel (0) target = $region21
  $region20: #{forward.56} parent=0 // pred_region
    _
  $region21: #{forward.56} parent=0 // pred_fallthru
    _
  // Predicated region
  $region22: #{forward.56} parent=0 // pred_check
    _
  $region23: #{forward.56} parent=0 // pred_check_branch
    %100 = sbr.rel (0) target = $region25
  $region24: #{forward.56} parent=0 // pred_region
    _
  $region25: #{forward.56} parent=0 // pred_fallthru
    _

// kernel: forward.59
$region0: #{forward.59}
  #allocation0 [shape = 'u32[]', space=smem, size = 0x4, offset = 0x4, fixed_abs, tag = 'smem constant byte address 0x4 - core index']
  #allocation1 [shape = 'u32[144,128]{1,0:T(1,128)}', space=vmem, size = 0x12000, scoped, tag = 'internal scratch']
  %s0 = inlined_call_operand.vmem [shape: bf16[8,72], index: 0, kind: input, shape index: {}]
  %s1 = inlined_call_operand.vmem [shape: bf16[72,512], index: 1, kind: input, shape index: {}]
  %s2 = inlined_call_operand.vmem [shape: f32[8,1], index: 2, kind: input, shape index: {}]
  %s3 = inlined_call_operand.vmem [shape: f32[8,512], index: 3, kind: output, shape index: {}]
  %s4 = sld [smem:[#allocation0]]
  $region83: #{forward.59} parent=0
    _
  %s6 = ssub.s32 1, %s4
  %s7 = scalar_select 0, %s6, %s4
  $region1: #{forward.59} parent=0
    #allocation2 [shape = 'u8[73728]{0}', space=vmem, size = 0x12000, scoped, tag = 'input window, operand 1']
    loop: start=0, step=1, limit=4
    $region2: #{forward.59} parent=1 // loop_pre_header
      _
    $region3: #{forward.59} parent=1 // loop_header
      %s9 = sphi 0, %s13
      %p10 = scmp.ge.s32.totalorder %s9, 4
      %s17 = sphi 0, %s17
      %s19 = sphi 0, %s17
      %s20 = sphi 0, %s19
      %s34 = sphi 0, %s20
      %s40 = sphi 0, %s42
      %s43 = sphi 0, %s40
      %s44 = sphi 0, %s43
      %s60 = sphi 0, %s44
      %s64 = sphi 0, %s64
      %s66 = sphi 0, %s64
      %s67 = sphi 0, %s66
      %s81 = sphi 0, %s67
      %s87 = sphi 0, %s89
      %s90 = sphi 0, %s87
      %s91 = sphi 0, %s90
      %s107 = sphi 0, %s91
    $region4: #{forward.59} parent=1 // loop_header_branch
      %12 = sbr.rel (%p10) target = $region8
    $region5: #{forward.59} parent=1 // loop_body
      %s14 = ssub.s32 %s9, 1
      %s15 = ssub.s32 %s9, 2
      %s16 = sadd.s32 %s9, 1
      %s18 = sadd.s32 %s17, 1
      %p21 = scmp.eq.s32.totalorder %s9, 1
      %p22 = scmp.ne.s32.totalorder %s17, %s19
      %p23 = scmp.eq.s32.totalorder %s9, 0
      %p24 = por %p22, %p23
      %p25 = scmp.ne.s32.totalorder %s17, %s19
      %p26 = scmp.eq.s32.totalorder %s14, 1
      %p27 = por %p25, %p26
      %p28 = scmp.ne.s32.totalorder %s19, %s20
      %p29 = scmp.eq.s32.totalorder %s14, 0
      %p30 = por %p28, %p29
      %p31 = scmp.ne.s32.totalorder %s19, %s20
      %p32 = scmp.eq.s32.totalorder %s15, 1
      %p33 = por %p31, %p32
      %p35 = scmp.ne.s32.totalorder %s20, %s34
      %p36 = scmp.eq.s32.totalorder %s15, 0
      %p37 = por %p35, %p36
      %s38 = ssub.s32 %s9, %s16
      %p39 = scmp.eq.s32.totalorder %s38, 0
      %s41 = sadd.s32 %s40, 1
      %s42 = scalar_select %p39, %s40, %s41
      %p45 = pneg %p39
      %p46 = scmp.eq.s32.totalorder %s9, 1
      %p47 = por %p45, %p46
      %p48 = scmp.ne.s32.totalorder %s40, %s43
      %p49 = scmp.eq.s32.totalorder %s9, 0
      %p50 = por %p48, %p49
      %p51 = scmp.ne.s32.totalorder %s40, %s43
      %p52 = scmp.eq.s32.totalorder %s14, 1
      %p53 = por %p51, %p52
      %p54 = scmp.ne.s32.totalorder %s43, %s44
      %p55 = scmp.eq.s32.totalorder %s14, 0
      %p56 = por %p54, %p55
      %p57 = scmp.ne.s32.totalorder %s43, %s44
      %p58 = scmp.eq.s32.totalorder %s15, 1
      %p59 = por %p57, %p58
      %p61 = scmp.ne.s32.totalorder %s44, %s60
      %p62 = scmp.eq.s32.totalorder %s15, 0
      %p63 = por %p61, %p62
      %s65 = sadd.s32 %s64, 1
      %p68 = scmp.eq.s32.totalorder %s9, 1
      %p69 = scmp.ne.s32.totalorder %s64, %s66
      %p70 = scmp.eq.s32.totalorder %s9, 0
      %p71 = por %p69, %p70
      %p72 = scmp.ne.s32.totalorder %s64, %s66
      %p73 = scmp.eq.s32.totalorder %s14, 1
      %p74 = por %p72, %p73
      %p75 = scmp.ne.s32.totalorder %s66, %s67
      %p76 = scmp.eq.s32.totalorder %s14, 0
      %p77 = por %p75, %p76
      %p78 = scmp.ne.s32.totalorder %s66, %s67
      %p79 = scmp.eq.s32.totalorder %s15, 1
      %p80 = por %p78, %p79
      %p82 = scmp.ne.s32.totalorder %s67, %s81
      %p83 = scmp.eq.s32.totalorder %s15, 0
      %p84 = por %p82, %p83
      %s85 = ssub.s32 %s9, %s16
      %p86 = scmp.eq.s32.totalorder %s85, 0
      %s88 = sadd.s32 %s87, 1
      %s89 = scalar_select %p86, %s87, %s88
      %p92 = pneg %p86
      %p93 = scmp.eq.s32.totalorder %s9, 1
      %p94 = por %p92, %p93
      %p95 = scmp.ne.s32.totalorder %s87, %s90
      %p96 = scmp.eq.s32.totalorder %s9, 0
      %p97 = por %p95, %p96
      %p98 = scmp.ne.s32.totalorder %s87, %s90
      %p99 = scmp.eq.s32.totalorder %s14, 1
      %p100 = por %p98, %p99
      %p101 = scmp.ne.s32.totalorder %s90, %s91
      %p102 = scmp.eq.s32.totalorder %s14, 0
      %p103 = por %p101, %p102
      %p104 = scmp.ne.s32.totalorder %s90, %s91
      %p105 = scmp.eq.s32.totalorder %s15, 1
      %p106 = por %p104, %p105
      %p108 = scmp.ne.s32.totalorder %s91, %s107
      %p109 = scmp.eq.s32.totalorder %s15, 0
      %p110 = por %p108, %p109
      %p111 = scmp.le.s32.totalorder 1, %s9
      %p112 = scmp.lt.s32.totalorder %s9, 3
      %p113 = pnand %p111, %p112
      %p114 = pneg %p113
      // Predicated region
      $region9: #{forward.59} parent=5 // pred_check
        _
      $region10: #{forward.59} parent=5 // pred_check_branch
        %116 = sbr.rel (%p113) target = $region12
      $region11: #{forward.59} parent=5 // pred_region
        %s117 = ssub.s32 %s9, 1
        // Predicated region
        $region13: #{forward.59} parent=11 // pred_check
          %p118 = pneg %p30
        $region14: #{forward.59} parent=11 // pred_check_branch
          %120 = sbr.rel (%p118) target = $region16
        $region15: #{forward.59} parent=11 // pred_region
          _
        $region16: #{forward.59} parent=11 // pred_fallthru
          _
        // Predicated region
        $region17: #{forward.59} parent=11 // pred_check
          %p121 = pneg %p77
        $region18: #{forward.59} parent=11 // pred_check_branch
          %123 = sbr.rel (%p121) target = $region20
        $region19: #{forward.59} parent=11 // pred_region
          _
        $region20: #{forward.59} parent=11 // pred_fallthru
          _
      $region12: #{forward.59} parent=5 // pred_fallthru
        _
      %p124 = scmp.lt.s32.totalorder %s9, 2
      // Predicated region
      $region21: #{forward.59} parent=5 // pred_check
        %p125 = pneg %p124
      $region22: #{forward.59} parent=5 // pred_check_branch
        %127 = sbr.rel (%p125) target = $region24
      $region23: #{forward.59} parent=5 // pred_region
        // Predicated region
        $region25: #{forward.59} parent=23 // pred_check
          %p128 = pneg %p50
        $region26: #{forward.59} parent=23 // pred_check_branch
          %130 = sbr.rel (%p128) target = $region28
        $region27: #{forward.59} parent=23 // pred_region
          %s131 = sand.u32 %s40, 1
          %s132 = sand.u32 %s40, 1
          %s133 = smul.addr %s132, 72
          %s134 = scalar_lea.vmem [#allocation2], %s133
          %s135 = smul.u32 2, %s9
          %s136 = smul.addr %s135, 4
          %s137 = scalar_lea.vmem %s1, %s136
          // Predicated region
          $region29: #{forward.59} parent=27 // pred_check
            _
          $region30: #{forward.59} parent=27 // pred_check_branch
            %139 = sbr.rel (0) target = $region32
          $region31: #{forward.59} parent=27 // pred_region
            // Predicated region
            $region33: #{forward.59} parent=31 // pred_check
              _
            $region34: #{forward.59} parent=31 // pred_check_branch
              %141 = sbr.rel (0) target = $region36
            $region35: #{forward.59} parent=31 // pred_region
              // Predicated region
              $region48: #{forward.59} parent=35 // pred_check
                _
              $region49: #{forward.59} parent=35 // pred_check_branch
                %173 = sbr.rel (0) target = $region51
              $region50: #{forward.59} parent=35 // pred_region
                loop: start=0, step=1, limit=1
                $region52: #{forward.59} parent=50 // loop_pre_header
                  _
                $region53: #{forward.59} parent=50 // loop_header
                  %s175 = sphi 0, %s179
                  %p176 = scmp.ge.s32.totalorder %s175, 1
                  %s180 = sphi %s137, %s137
                  %s181 = sphi %s134, %s134
                $region54: #{forward.59} parent=50 // loop_header_branch
                  %178 = sbr.rel (%p176) target = $region58
                $region55: #{forward.59} parent=50 // loop_body
                  %v182 = vld [vmem:[%s180] sm:$0xff]
                  %183 = vst [vmem:[%s181] sm:$0xff] %v182
                  %v184 = vld [vmem:[%s180 + $0x10] sm:$0xff]
                  %185 = vst [vmem:[%s181 + $0x8] sm:$0xff] %v184
                  %v186 = vld [vmem:[%s180 + $0x20] sm:$0xff]
                  %187 = vst [vmem:[%s181 + $0x10] sm:$0xff] %v186
                  %v188 = vld [vmem:[%s180 + $0x30] sm:$0xff]
                  %189 = vst [vmem:[%s181 + $0x18] sm:$0xff] %v188
                  %v190 = vld [vmem:[%s180 + $0x40] sm:$0xff]
                  %191 = vst [vmem:[%s181 + $0x20] sm:$0xff] %v190
                  %v192 = vld [vmem:[%s180 + $0x50] sm:$0xff]
                  %193 = vst [vmem:[%s181 + $0x28] sm:$0xff] %v192
                  %v194 = vld [vmem:[%s180 + $0x60] sm:$0xff]
                  %195 = vst [vmem:[%s181 + $0x30] sm:$0xff] %v194
                  %v196 = vld [vmem:[%s180 + $0x70] sm:$0xff]
                  %197 = vst [vmem:[%s181 + $0x38] sm:$0xff] %v196
                  %v198 = vld [vmem:[%s180 + $0x80] sm:$0xff]
                  %199 = vst [vmem:[%s181 + $0x40] sm:$0xff] %v198
                $region56: #{forward.59} parent=50 // loop_footer
                  %s179 = sadd.s32 1, %s175
                $region57: #{forward.59} parent=50 // loop_footer_branch
                  %174 = sbr.rel target = $region53
                $region58: #{forward.59} parent=50 // loop_exit
                  _
              $region51: #{forward.59} parent=35 // pred_fallthru
                _
              // Predicated region
              $region59: #{forward.59} parent=35 // pred_check
                _
              $region60: #{forward.59} parent=35 // pred_check_branch
                %201 = sbr.rel target = $region62
              $region61: #{forward.59} parent=35 // pred_region
                _
              $region62: #{forward.59} parent=35 // pred_fallthru
                _
            $region36: #{forward.59} parent=31 // pred_fallthru
              _
            // Predicated region
            $region37: #{forward.59} parent=31 // pred_check
              _
            $region38: #{forward.59} parent=31 // pred_check_branch
              %143 = sbr.rel target = $region40
            $region39: #{forward.59} parent=31 // pred_region
              %s145 = ssub.s32 256, 1
              loop: start=0, step=1, limit=1
              $region41: #{forward.59} parent=39 // loop_pre_header
                _
              $region42: #{forward.59} parent=39 // loop_header
                %s147 = sphi 0, %s151
                %p148 = scmp.ge.s32.totalorder %s147, 1
                %s152 = sphi %s137, %s137
                %s153 = sphi %s134, %s134
              $region43: #{forward.59} parent=39 // loop_header_branch
                %150 = sbr.rel (%p148) target = $region47
              $region44: #{forward.59} parent=39 // loop_body
                %v154 = vld [vmem:[%s152] sm:%s145]
                %155 = vst [vmem:[%s153] sm:%s145] %v154
                %v156 = vld [vmem:[%s152 + $0x10] sm:%s145]
                %157 = vst [vmem:[%s153 + $0x8] sm:%s145] %v156
                %v158 = vld [vmem:[%s152 + $0x20] sm:%s145]
                %159 = vst [vmem:[%s153 + $0x10] sm:%s145] %v158
                %v160 = vld [vmem:[%s152 + $0x30] sm:%s145]
                %161 = vst [vmem:[%s153 + $0x18] sm:%s145] %v160
                %v162 = vld [vmem:[%s152 + $0x40] sm:%s145]
                %163 = vst [vmem:[%s153 + $0x20] sm:%s145] %v162
                %v164 = vld [vmem:[%s152 + $0x50] sm:%s145]
                %165 = vst [vmem:[%s153 + $0x28] sm:%s145] %v164
                %v166 = vld [vmem:[%s152 + $0x60] sm:%s145]
                %167 = vst [vmem:[%s153 + $0x30] sm:%s145] %v166
                %v168 = vld [vmem:[%s152 + $0x70] sm:%s145]
                %169 = vst [vmem:[%s153 + $0x38] sm:%s145] %v168
                %v170 = vld [vmem:[%s152 + $0x80] sm:%s145]
                %171 = vst [vmem:[%s153 + $0x40] sm:%s145] %v170
              $region45: #{forward.59} parent=39 // loop_footer
                %s151 = sadd.s32 1, %s147
              $region46: #{forward.59} parent=39 // loop_footer_branch
                %146 = sbr.rel target = $region42
              $region47: #{forward.59} parent=39 // loop_exit
                _
            $region40: #{forward.59} parent=31 // pred_fallthru
              _
          $region32: #{forward.59} parent=27 // pred_fallthru
            _
          %202 = vnop
        $region28: #{forward.59} parent=23 // pred_fallthru
          _
      $region24: #{forward.59} parent=5 // pred_fallthru
        _
      %p203 = scmp.le.s32.totalorder 1, %s9
      %p204 = scmp.lt.s32.totalorder %s9, 3
      %p205 = pnand %p203, %p204
      %p206 = pneg %p205
      // Predicated region
      $region63: #{forward.59} parent=5 // pred_check
        _
      $region64: #{forward.59} parent=5 // pred_check_branch
        %208 = sbr.rel (%p205) target = $region66
      $region65: #{forward.59} parent=5 // pred_region
        %s209 = ssub.s32 %s9, 1
        %s210 = sand.u32 %s43, 1
        %s211 = sand.u32 %s43, 1
        %s212 = smul.addr %s211, 72
        %s213 = scalar_lea.vmem [#allocation2], %s212
        // Predicated region
        $region67: #{forward.59} parent=65 // pred_check
          %p214 = pneg %p56
        $region68: #{forward.59} parent=65 // pred_check_branch
          %216 = sbr.rel (%p214) target = $region70
        $region69: #{forward.59} parent=65 // pred_region
          _
        $region70: #{forward.59} parent=65 // pred_fallthru
          _
        %p217 = pneg %p30
        %p218 = pneg %p27
        %s219 = sand.u32 %s43, 1
        %s220 = sand.u32 %s43, 1
        %s221 = smul.addr %s220, 72
        %s222 = scalar_lea.vmem [#allocation2], %s221
        %p223 = pneg %p56
        %p224 = pneg %p53
        %p225 = pneg %p77
        %p226 = pneg %p74
        %p227 = pneg %p103
        %p228 = pneg %p100
        %s229 = smul.u32 2, %s14
        %p230 = scmp.lt.s32.totalorder %s229, 3
        %s231 = scalar_select %p230, %s229, 3
        %s232 = smul.addr %s231, 8
        %s233 = scalar_lea.vmem %s3, %s232
        %s234 = smul.u32 2, %s14
        %s235 = smul.u32 2, %s14
        %p236 = scmp.lt.s32.totalorder %s235, 3
        %s237 = scalar_select %p236, %s235, 3
        %s238 = smul.addr %s237, 8
        %s239 = scalar_lea.vmem %s3, %s238
        %s240 = smul.u32 2, %s14
        %v242 = vld [vmem:[%s0] sm:$0xf]
        %v243 = vld [vmem:[%s213] sm:$0xff]
        %v244 = vld [vmem:[%s213 + $0x8] sm:$0xff]
        %v245 = vld [vmem:[%s213 + $0x10] sm:$0xff]
        %v246 = vld [vmem:[%s213 + $0x18] sm:$0xff]
        %v247 = vld [vmem:[%s213 + $0x20] sm:$0xff]
        %v248 = vld [vmem:[%s213 + $0x28] sm:$0xff]
        %v249 = vld [vmem:[%s213 + $0x30] sm:$0xff]
        %v250 = vld [vmem:[%s213 + $0x38] sm:$0xff]
        %v251 = vld [vmem:[%s213 + $0x40] sm:$0xff]
        %v252 = vld [vmem:[%s2] sm:$0xff]
        %254 = vset.pattern.permute.xlu0 0
        %255 = vperm.xlu0 %254, %v252
        %v256 = vpop.permute.xlu0 %255
        %v267 = vunpack.c.l.b16 %v243
        %v268 = vunpack.c.h.b16 %v243
        %v269 = vunpack.c.l.b16 %v244
        %v270 = vunpack.c.h.b16 %v244
        %v271 = vunpack.c.l.b16 %v245
        %v272 = vunpack.c.h.b16 %v245
        %v273 = vunpack.c.l.b16 %v246
        %v274 = vunpack.c.h.b16 %v246
        %v275 = vunpack.c.l.b16 %v247
        %v276 = vunpack.c.h.b16 %v247
        %v277 = vunpack.c.l.b16 %v248
        %v278 = vunpack.c.h.b16 %v248
        %v279 = vunpack.c.l.b16 %v249
        %v280 = vunpack.c.h.b16 %v249
        %v281 = vunpack.c.l.b16 %v250
        %v282 = vunpack.c.h.b16 %v250
        %v283 = vunpack.c.l.b16 %v251
        %v284 = vunpack.c.h.b16 %v251
        %v285 = vpack.c.b16 %v269, %v267
        %v286 = vpack.c.b16 %v270, %v268
        %v287 = vpack.c.b16 %v273, %v271
        %v288 = vpack.c.b16 %v274, %v272
        %v289 = vpack.c.b16 %v277, %v275
        %v290 = vpack.c.b16 %v278, %v276
        %v291 = vpack.c.b16 %v281, %v279
        %v292 = vpack.c.b16 %v282, %v280
        %v293 = vpack.c.b16 %v283, %v283
        %v294 = vpack.c.b16 %v284, %v284
        %vm303 = vcmask 588800
        %v305 = vsel %vm303, %v242, 0
        %vm307 = vcmask 1043456
        %v309 = vsel %vm307, %v293, 0
        %v312 = vsel %vm307, %v294, 0
        %314 = vmatprep.subr.bf16.mxu0 0
        %315 = vmatpush1.bf16.msra.mxu0 0
        %316 = vmatprep.subr.bf16.mxu0 0
        %317 = vmatpush1.bf16.msra.mxu0 0
        %318 = vmatprep.subr.bf16.mxu0 0
        %319 = vmatpush1.bf16.msra.mxu0 0
        %320 = vmatprep.subr.bf16.mxu0 %v312
        %321 = vmatpush1.bf16.msra.mxu0 %v309
        %322 = vmatprep.subr.bf16.mxu0 %v292
        %323 = vmatpush1.bf16.msra.mxu0 %v291
        %324 = vmatprep.subr.bf16.mxu0 %v290
        %325 = vmatpush1.bf16.msra.mxu0 %v289
        %326 = vmatprep.subr.bf16.mxu0 %v288
        %327 = vmatpush1.bf16.msra.mxu0 %v287
        %328 = vmatprep.subr.bf16.mxu0 %v286
        %329 = vmatpush1.bf16.msra.mxu0 %v285
        %330 = vmatprep.subr.bf16.mxu0 0
        %331 = vmatpush2.bf16.msra.mxu0 0
        %332 = vmatprep.subr.bf16.mxu0 0
        %333 = vmatpush2.bf16.msra.mxu0 0
        %334 = vmatprep.subr.bf16.mxu0 0
        %335 = vmatpush2.bf16.msra.mxu0 0
        %336 = vmatprep.subr.bf16.mxu0 0
        %337 = vmatpush2.bf16.msra.mxu0 0
        %338 = vmatprep.subr.bf16.mxu0 0
        %339 = vmatpush2.bf16.msra.mxu0 0
        %340 = vmatprep.subr.bf16.mxu0 0
        %341 = vmatpush2.bf16.msra.mxu0 0
        %342 = vmatprep.subr.bf16.mxu0 0
        %343 = vmatpush2.bf16.msra.mxu0 0
        %344 = vmatprep.subr.bf16.mxu0 0
        %345 = vmatpush2.bf16.msra.mxu0 0
        %346 = vmatprep.mubr.bf16.mxu0 0
        %347 = vmatmul.mubr.bf16.gmra.mxu0 %v305
        %v348 = vpop.f32.mrf.mxu0
        %v349 = vadd.f32 %v256, %v348
        %v350 = vpop.f32.mrf.mxu0
        %v351 = vadd.f32 %v256, %v350
        %v352 = vpop.f32.mrf.mxu0
        %v353 = vpop.f32.mrf.mxu0
        %354 = vdwg.mxu0
        %v355 = vmax.f32 %v349, 0.0
        %v356 = vmax.f32 %v351, 0.0
        %357 = vst [vmem:[%s239] sm:$0xff] %v355
        %358 = vst [vmem:[%s239 + $0x8] sm:$0xff] %v356
        %s359 = smul.u32 2, %s14
        %p360 = scmp.lt.s32.totalorder %s359, 3
        %s361 = scalar_select %p360, %s359, 3
        %s362 = smul.addr %s361, 8
        %s363 = scalar_lea.vmem %s3, %s362
        // Predicated region
        $region71: #{forward.59} parent=65 // pred_check
          %p364 = pneg %p100
        $region72: #{forward.59} parent=65 // pred_check_branch
          %366 = sbr.rel (%p364) target = $region74
        $region73: #{forward.59} parent=65 // pred_region
          %s367 = smul.u32 2, %s14
        $region74: #{forward.59} parent=65 // pred_fallthru
          _
      $region66: #{forward.59} parent=5 // pred_fallthru
        _
      %p368 = scmp.le.s32.totalorder 2, %s9
      // Predicated region
      $region75: #{forward.59} parent=5 // pred_check
        %p369 = pneg %p368
      $region76: #{forward.59} parent=5 // pred_check_branch
        %371 = sbr.rel (%p369) target = $region78
      $region77: #{forward.59} parent=5 // pred_region
        %s372 = ssub.s32 %s9, 2
        // Predicated region
        $region79: #{forward.59} parent=77 // pred_check
          %p373 = pneg %p106
        $region80: #{forward.59} parent=77 // pred_check_branch
          %375 = sbr.rel (%p373) target = $region82
        $region81: #{forward.59} parent=77 // pred_region
          %s376 = smul.u32 2, %s15
          %p377 = scmp.lt.s32.totalorder %s376, 3
          %s378 = scalar_select %p377, %s376, 3
          %s379 = smul.addr %s378, 8
          %s380 = scalar_lea.vmem %s3, %s379
        $region82: #{forward.59} parent=77 // pred_fallthru
          _
      $region78: #{forward.59} parent=5 // pred_fallthru
        _
    $region6: #{forward.59} parent=1 // loop_footer
      %s13 = sadd.s32 1, %s9
    $region7: #{forward.59} parent=1 // loop_footer_branch
      %8 = sbr.rel target = $region3
    $region8: #{forward.59} parent=1 // loop_exit
      _

// kernel: squeeze.15
$region0: #{squeeze.15}
  %s0 = inlined_call_operand.vmem [shape: f32[2,1,3,2,16,16], index: 0, kind: input, shape index: {}]
  %s1 = inlined_call_operand.vmem [shape: f32[2,1536], index: 1, kind: output, shape index: {}]
  $region1: #{squeeze.15} parent=0
    #allocation0 [shape = 'u8[49152]{0}', space=vmem, size = 0xc000, scoped, tag = 'scoped mem for output reshape']
    %v2 = vld [vmem:[%s0] ss:$8 sm:$0xf]
    %v3 = vld [vmem:[%s0] ss:$8 sm:$0xf0]
    %vm4 = vcmask 1047556
    %v5 = vsel %vm4, %v3, %v2
    %vm6 = vcmask 130048
    %7 = vst.msk [vmem:[#allocation0] ss:$8 sm:$0xf] %vm6, %v5
    %8 = vst.msk [vmem:[#allocation0] ss:$8 sm:$0xf0] %vm6, %v5
    %s9 = scalar_lea.vmem %s0, 64
    %v10 = vld [vmem:[%s9] ss:$8 sm:$0xf]
    %s11 = scalar_lea.vmem %s0, 64
    %v12 = vld [vmem:[%s11] ss:$8 sm:$0xf0]
    %vm13 = vcmask 1047556
    %v14 = vsel %vm13, %v12, %v10
    %vm15 = vcmask 130048
    %s16 = scalar_lea.vmem [#allocation0], 64
    %17 = vst.msk [vmem:[%s16] ss:$8 sm:$0xf] %vm15, %v14
    %s18 = scalar_lea.vmem [#allocation0], 4294967265
    %19 = vst.msk [vmem:[%s18] ss:$8 sm:$0xf0] %vm15, %v14
    %s20 = scalar_lea.vmem %s0, 128
    %v21 = vld [vmem:[%s20] ss:$8 sm:$0xf]
    %s22 = scalar_lea.vmem %s0, 128
    %v23 = vld [vmem:[%s22] ss:$8 sm:$0xf0]
    %vm24 = vcmask 1047556
    %v25 = vsel %vm24, %v23, %v21
    %vm26 = vcmask 130048
    %s27 = scalar_lea.vmem [#allocation0], 33
    %28 = vst.msk [vmem:[%s27] ss:$8 sm:$0xf] %vm26, %v25
    %s29 = scalar_lea.vmem [#allocation0], 33
    %30 = vst.msk [vmem:[%s29] ss:$8 sm:$0xf0] %vm26, %v25
    %s31 = scalar_lea.vmem %s0, 7
    %v32 = vld [vmem:[%s31] sm:$0x1]
    %s33 = scalar_lea.vmem %s0, 191
    %s34 = smov 6
    %v35 = vld [vmem:[%s33] ss:$-88 sm:%s34]
    %vm36 = vcmask 1042433
    %v37 = vsel %vm36, %v35, %v32
    %s38 = scalar_lea.vmem %s0, 375
    %s39 = smov 24
    %v40 = vld [vmem:[%s38] ss:$-88 sm:%s39]
    %vm41 = vcmask 1044483
    %v42 = vsel %vm41, %v40, %v37
    %s43 = scalar_lea.vmem %s0, 559
    %s44 = smov 96
    %v45 = vld [vmem:[%s43] ss:$-88 sm:%s44]
    %vm46 = vcmask 1046533
    %v47 = vsel %vm46, %v45, %v42
    %s48 = scalar_lea.vmem %s0, 120
    %v49 = vld [vmem:[%s48] sm:$0x80]
    %vm50 = vcmask 1047559
    %v51 = vsel %vm50, %v49, %v47
    %52 = vrot.lane.b32.xlu0 %v51, 112
    %v53 = vpop.permute.xlu0 %52
    %vm54 = vcmask 1048448
    %55 = vst.msk [vmem:[#allocation0] sm:$0x3] %vm54, %v53
    %s56 = scalar_lea.vmem [#allocation0], 6
    %57 = vst.msk [vmem:[%s56] sm:$0xc] %vm54, %v53
    %s58 = scalar_lea.vmem [#allocation0], 12
    %59 = vst.msk [vmem:[%s58] sm:$0x30] %vm54, %v53
    %s60 = scalar_lea.vmem [#allocation0], 18
    %61 = vst.msk [vmem:[%s60] sm:$0xc0] %vm54, %v53
    %s62 = scalar_lea.vmem %s0, 39
    %v63 = vld [vmem:[%s62] sm:$0x1]
    %s64 = scalar_lea.vmem %s0, 223
    %s65 = smov 6
    %v66 = vld [vmem:[%s64] ss:$-88 sm:%s65]
    %vm67 = vcmask 1042433
    %v68 = vsel %vm67, %v66, %v63
    %s69 = scalar_lea.vmem %s0, 407
    %s70 = smov 24
    %v71 = vld [vmem:[%s69] ss:$-88 sm:%s70]
    %vm72 = vcmask 1044483
    %v73 = vsel %vm72, %v71, %v68
    %s74 = scalar_lea.vmem %s0, 591
    %s75 = smov 96
    %v76 = vld [vmem:[%s74] ss:$-88 sm:%s75]
    %vm77 = vcmask 1046533
    %v78 = vsel %vm77, %v76, %v73
    %s79 = scalar_lea.vmem %s0, 152
    %v80 = vld [vmem:[%s79] sm:$0x80]
    %vm81 = vcmask 1047559
    %v82 = vsel %vm81, %v80, %v78
    %83 = vrot.lane.b32.xlu0 %v82, 112
    %v84 = vpop.permute.xlu0 %83
    %vm85 = vcmask 1048448
    %s86 = scalar_lea.vmem [#allocation0], 32
    %87 = vst.msk [vmem:[%s86] sm:$0x3] %vm85, %v84
    %s88 = scalar_lea.vmem [#allocation0], 38
    %89 = vst.msk [vmem:[%s88] sm:$0xc] %vm85, %v84
    %s90 = scalar_lea.vmem [#allocation0], 44
    %91 = vst.msk [vmem:[%s90] sm:$0x30] %vm85, %v84
    %s92 = scalar_lea.vmem [#allocation0], 50
    %93 = vst.msk [vmem:[%s92] sm:$0xc0] %vm85, %v84
    %s94 = scalar_lea.vmem %s0, 71
    %v95 = vld [vmem:[%s94] sm:$0x1]
    %s96 = scalar_lea.vmem %s0, 255
    %s97 = smov 6
    %v98 = vld [vmem:[%s96] ss:$-88 sm:%s97]
    %vm99 = vcmask 1042433
    %v100 = vsel %vm99, %v98, %v95
    %s101 = scalar_lea.vmem %s0, 439
    %s102 = smov 24
    %v103 = vld [vmem:[%s101] ss:$-88 sm:%s102]
    %vm104 = vcmask 1044483
    %v105 = vsel %vm104, %v103, %v100
    %s106 = scalar_lea.vmem %s0, 623
    %s107 = smov 96
    %v108 = vld [vmem:[%s106] ss:$-88 sm:%s107]
    %vm109 = vcmask 1046533
    %v110 = vsel %vm109, %v108, %v105
    %s111 = scalar_lea.vmem %s0, 184
    %v112 = vld [vmem:[%s111] sm:$0x80]
    %vm113 = vcmask 1047559
    %v114 = vsel %vm113, %v112, %v110
    %115 = vrot.lane.b32.xlu0 %v114, 112
    %v116 = vpop.permute.xlu0 %115
    %vm117 = vcmask 1048448
    %s118 = scalar_lea.vmem [#allocation0], 64
    %119 = vst.msk [vmem:[%s118] sm:$0x3] %vm117, %v116
    %s120 = scalar_lea.vmem [#allocation0], 70
    %121 = vst.msk [vmem:[%s120] sm:$0xc] %vm117, %v116
    %s122 = scalar_lea.vmem [#allocation0], 76
    %123 = vst.msk [vmem:[%s122] sm:$0x30] %vm117, %v116
    %s124 = scalar_lea.vmem [#allocation0], 82
    %125 = vst.msk [vmem:[%s124] sm:$0xc0] %vm117, %v116
    %s126 = scalar_lea.vmem %s0, 6
    %v127 = vld [vmem:[%s126] sm:$0x1]
    %s128 = scalar_lea.vmem %s0, 190
    %s129 = smov 6
    %v130 = vld [vmem:[%s128] ss:$-88 sm:%s129]
    %vm131 = vcmask 1042433
    %v132 = vsel %vm131, %v130, %v127
    %s133 = scalar_lea.vmem %s0, 374
    %s134 = smov 24
    %v135 = vld [vmem:[%s133] ss:$-88 sm:%s134]
    %vm136 = vcmask 1044483
    %v137 = vsel %vm136, %v135, %v132
    %s138 = scalar_lea.vmem %s0, 558
    %s139 = smov 96
    %v140 = vld [vmem:[%s138] ss:$-88 sm:%s139]
    %vm141 = vcmask 1046533
    %v142 = vsel %vm141, %v140, %v137
    %s143 = scalar_lea.vmem %s0, 119
    %v144 = vld [vmem:[%s143] sm:$0x80]
    %vm145 = vcmask 1047559
    %v146 = vsel %vm145, %v144, %v142
    %147 = vrot.lane.b32.xlu0 %v146, 96
    %v148 = vpop.permute.xlu0 %147
    %vm149 = vcmask 917248
    %150 = vst.msk [vmem:[#allocation0] sm:$0x3] %vm149, %v148
    %s151 = scalar_lea.vmem [#allocation0], 6
    %152 = vst.msk [vmem:[%s151] sm:$0xc] %vm149, %v148
    %s153 = scalar_lea.vmem [#allocation0], 12
    %154 = vst.msk [vmem:[%s153] sm:$0x30] %vm149, %v148
    %s155 = scalar_lea.vmem [#allocation0], 18
    %156 = vst.msk [vmem:[%s155] sm:$0xc0] %vm149, %v148
    %s157 = scalar_lea.vmem %s0, 38
    %v158 = vld [vmem:[%s157] sm:$0x1]
    %s159 = scalar_lea.vmem %s0, 222
    %s160 = smov 6
    %v161 = vld [vmem:[%s159] ss:$-88 sm:%s160]
    %vm162 = vcmask 1042433
    %v163 = vsel %vm162, %v161, %v158
    %s164 = scalar_lea.vmem %s0, 406
    %s165 = smov 24
    %v166 = vld [vmem:[%s164] ss:$-88 sm:%s165]
    %vm167 = vcmask 1044483
    %v168 = vsel %vm167, %v166, %v163
    %s169 = scalar_lea.vmem %s0, 590
    %s170 = smov 96
    %v171 = vld [vmem:[%s169] ss:$-88 sm:%s170]
    %vm172 = vcmask 1046533
    %v173 = vsel %vm172, %v171, %v168
    %s174 = scalar_lea.vmem %s0, 151
    %v175 = vld [vmem:[%s174] sm:$0x80]
    %vm176 = vcmask 1047559
    %v177 = vsel %vm176, %v175, %v173
    %178 = vrot.lane.b32.xlu0 %v177, 96
    %v179 = vpop.permute.xlu0 %178
    %vm180 = vcmask 917248
    %s181 = scalar_lea.vmem [#allocation0], 32
    %182 = vst.msk [vmem:[%s181] sm:$0x3] %vm180, %v179
    %s183 = scalar_lea.vmem [#allocation0], 38
    %184 = vst.msk [vmem:[%s183] sm:$0xc] %vm180, %v179
    %s185 = scalar_lea.vmem [#allocation0], 44
    %186 = vst.msk [vmem:[%s185] sm:$0x30] %vm180, %v179
    %s187 = scalar_lea.vmem [#allocation0], 50
    %188 = vst.msk [vmem:[%s187] sm:$0xc0] %vm180, %v179
    %s189 = scalar_lea.vmem %s0, 70
    %v190 = vld [vmem:[%s189] sm:$0x1]
    %s191 = scalar_lea.vmem %s0, 254
    %s192 = smov 6
    %v193 = vld [vmem:[%s191] ss:$-88 sm:%s192]
    %vm194 = vcmask 1042433
    %v195 = vsel %vm194, %v193, %v190
    %s196 = scalar_lea.vmem %s0, 438
    %s197 = smov 24
    %v198 = vld [vmem:[%s196] ss:$-88 sm:%s197]
    %vm199 = vcmask 1044483
    %v200 = vsel %vm199, %v198, %v195
    %s201 = scalar_lea.vmem %s0, 622
    %s202 = smov 96
    %v203 = vld [vmem:[%s201] ss:$-88 sm:%s202]
    %vm204 = vcmask 1046533
    %v205 = vsel %vm204, %v203, %v200
    %s206 = scalar_lea.vmem %s0, 183
    %v207 = vld [vmem:[%s206] sm:$0x80]
    %vm208 = vcmask 1047559
    %v209 = vsel %vm208, %v207, %v205
    %210 = vrot.lane.b32.xlu0 %v209, 96
    %v211 = vpop.permute.xlu0 %210
    %vm212 = vcmask 917248
    %s213 = scalar_lea.vmem [#allocation0], 64
    %214 = vst.msk [vmem:[%s213] sm:$0x3] %vm212, %v211
    %s215 = scalar_lea.vmem [#allocation0], 70
    %216 = vst.msk [vmem:[%s215] sm:$0xc] %vm212, %v211
    %s217 = scalar_lea.vmem [#allocation0], 76
    %218 = vst.msk [vmem:[%s217] sm:$0x30] %vm212, %v211
    %s219 = scalar_lea.vmem [#allocation0], 82
    %220 = vst.msk [vmem:[%s219] sm:$0xc0] %vm212, %v211
    %s221 = scalar_lea.vmem %s0, 5
    %v222 = vld [vmem:[%s221] sm:$0x1]
    %s223 = scalar_lea.vmem %s0, 189
    %s224 = smov 6
    %v225 = vld [vmem:[%s223] ss:$-88 sm:%s224]
    %vm226 = vcmask 1042433
    %v227 = vsel %vm226, %v225, %v222
    %s228 = scalar_lea.vmem %s0, 373
    %s229 = smov 24
    %v230 = vld [vmem:[%s228] ss:$-88 sm:%s229]
    %vm231 = vcmask 1044483
    %v232 = vsel %vm231, %v230, %v227
    %s233 = scalar_lea.vmem %s0, 557
    %s234 = smov 96
    %v235 = vld [vmem:[%s233] ss:$-88 sm:%s234]
    %vm236 = vcmask 1046533
    %v237 = vsel %vm236, %v235, %v232
    %s238 = scalar_lea.vmem %s0, 118
    %v239 = vld [vmem:[%s238] sm:$0x80]
    %vm240 = vcmask 1047559
    %v241 = vsel %vm240, %v239, %v237
    %242 = vrot.lane.b32.xlu0 %v241, 80
    %v243 = vpop.permute.xlu0 %242
    %vm244 = vcmask 786048
    %245 = vst.msk [vmem:[#allocation0] sm:$0x3] %vm244, %v243
    %s246 = scalar_lea.vmem [#allocation0], 6
    %247 = vst.msk [vmem:[%s246] sm:$0xc] %vm244, %v243
    %s248 = scalar_lea.vmem [#allocation0], 12
    %249 = vst.msk [vmem:[%s248] sm:$0x30] %vm244, %v243
    %s250 = scalar_lea.vmem [#allocation0], 18
    %251 = vst.msk [vmem:[%s250] sm:$0xc0] %vm244, %v243
    %s252 = scalar_lea.vmem %s0, 37
    %v253 = vld [vmem:[%s252] sm:$0x1]
    %s254 = scalar_lea.vmem %s0, 221
    %s255 = smov 6
    %v256 = vld [vmem:[%s254] ss:$-88 sm:%s255]
    %vm257 = vcmask 1042433
    %v258 = vsel %vm257, %v256, %v253
    %s259 = scalar_lea.vmem %s0, 405
    %s260 = smov 24
    %v261 = vld [vmem:[%s259] ss:$-88 sm:%s260]
    %vm262 = vcmask 1044483
    %v263 = vsel %vm262, %v261, %v258
    %s264 = scalar_lea.vmem %s0, 589
    %s265 = smov 96
    %v266 = vld [vmem:[%s264] ss:$-88 sm:%s265]
    %vm267 = vcmask 1046533
    %v268 = vsel %vm267, %v266, %v263
    %s269 = scalar_lea.vmem %s0, 150
    %v270 = vld [vmem:[%s269] sm:$0x80]
    %vm271 = vcmask 1047559
    %v272 = vsel %vm271, %v270, %v268
    %273 = vrot.lane.b32.xlu0 %v272, 80
    %v274 = vpop.permute.xlu0 %273
    %vm275 = vcmask 786048
    %s276 = scalar_lea.vmem [#allocation0], 32
    %277 = vst.msk [vmem:[%s276] sm:$0x3] %vm275, %v274
    %s278 = scalar_lea.vmem [#allocation0], 38
    %279 = vst.msk [vmem:[%s278] sm:$0xc] %vm275, %v274
    %s280 = scalar_lea.vmem [#allocation0], 44
    %281 = vst.msk [vmem:[%s280] sm:$0x30] %vm275, %v274
    %s282 = scalar_lea.vmem [#allocation0], 50
    %283 = vst.msk [vmem:[%s282] sm:$0xc0] %vm275, %v274
    %s284 = scalar_lea.vmem %s0, 69
    %v285 = vld [vmem:[%s284] sm:$0x1]
    %s286 = scalar_lea.vmem %s0, 253
    %s287 = smov 6
    %v288 = vld [vmem:[%s286] ss:$-88 sm:%s287]
    %vm289 = vcmask 1042433
    %v290 = vsel %vm289, %v288, %v285
    %s291 = scalar_lea.vmem %s0, 437
    %s292 = smov 24
    %v293 = vld [vmem:[%s291] ss:$-88 sm:%s292]
    %vm294 = vcmask 1044483
    %v295 = vsel %vm294, %v293, %v290
    %s296 = scalar_lea.vmem %s0, 621
    %s297 = smov 96
    %v298 = vld [vmem:[%s296] ss:$-88 sm:%s297]
    %vm299 = vcmask 1046533
    %v300 = vsel %vm299, %v298, %v295
    %s301 = scalar_lea.vmem %s0, 182
    %v302 = vld [vmem:[%s301] sm:$0x80]
    %vm303 = vcmask 1047559
    %v304 = vsel %vm303, %v302, %v300
    %305 = vrot.lane.b32.xlu0 %v304, 80
    %v306 = vpop.permute.xlu0 %305
    %vm307 = vcmask 786048
    %s308 = scalar_lea.vmem [#allocation0], 64
    %309 = vst.msk [vmem:[%s308] sm:$0x3] %vm307, %v306
    %s310 = scalar_lea.vmem [#allocation0], 70
    %311 = vst.msk [vmem:[%s310] sm:$0xc] %vm307, %v306
    %s312 = scalar_lea.vmem [#allocation0], 76
    %313 = vst.msk [vmem:[%s312] sm:$0x30] %vm307, %v306
    %s314 = scalar_lea.vmem [#allocation0], 82
    %315 = vst.msk [vmem:[%s314] sm:$0xc0] %vm307, %v306
    %s316 = scalar_lea.vmem %s0, 4
    %v317 = vld [vmem:[%s316] sm:$0x1]
    %s318 = scalar_lea.vmem %s0, 188
    %s319 = smov 6
    %v320 = vld [vmem:[%s318] ss:$-88 sm:%s319]
    %vm321 = vcmask 1042433
    %v322 = vsel %vm321, %v320, %v317
    %s323 = scalar_lea.vmem %s0, 372
    %s324 = smov 24
    %v325 = vld [vmem:[%s323] ss:$-88 sm:%s324]
    %vm326 = vcmask 1044483
    %v327 = vsel %vm326, %v325, %v322
    %s328 = scalar_lea.vmem %s0, 556
    %s329 = smov 96
    %v330 = vld [vmem:[%s328] ss:$-88 sm:%s329]
    %vm331 = vcmask 1046533
    %v332 = vsel %vm331, %v330, %v327
    %s333 = scalar_lea.vmem %s0, 117
    %v334 = vld [vmem:[%s333] sm:$0x80]
    %vm335 = vcmask 1047559
    %v336 = vsel %vm335, %v334, %v332
    %337 = vrot.lane.b32.xlu0 %v336, 64
    %v338 = vpop.permute.xlu0 %337
    %vm339 = vcmask 654848
    %340 = vst.msk [vmem:[#allocation0] sm:$0x3] %vm339, %v338
    %s341 = scalar_lea.vmem [#allocation0], 6
    %342 = vst.msk [vmem:[%s341] sm:$0xc] %vm339, %v338
    %s343 = scalar_lea.vmem [#allocation0], 12
    %344 = vst.msk [vmem:[%s343] sm:$0x30] %vm339, %v338
    %s345 = scalar_lea.vmem [#allocation0], 18
    %346 = vst.msk [vmem:[%s345] sm:$0xc0] %vm339, %v338
    %s347 = scalar_lea.vmem %s0, 36
    %v348 = vld [vmem:[%s347] sm:$0x1]
    %s349 = scalar_lea.vmem %s0, 220
    %s350 = smov 6
    %v351 = vld [vmem:[%s349] ss:$-88 sm:%s350]
    %vm352 = vcmask 1042433
    %v353 = vsel %vm352, %v351, %v348
    %s354 = scalar_lea.vmem %s0, 404
    %s355 = smov 24
    %v356 = vld [vmem:[%s354] ss:$-88 sm:%s355]
    %vm357 = vcmask 1044483
    %v358 = vsel %vm357, %v356, %v353
    %s359 = scalar_lea.vmem %s0, 588
    %s360 = smov 96
    %v361 = vld [vmem:[%s359] ss:$-88 sm:%s360]
    %vm362 = vcmask 1046533
    %v363 = vsel %vm362, %v361, %v358
    %s364 = scalar_lea.vmem %s0, 149
    %v365 = vld [vmem:[%s364] sm:$0x80]
    %vm366 = vcmask 1047559
    %v367 = vsel %vm366, %v365, %v363
    %368 = vrot.lane.b32.xlu0 %v367, 64
    %v369 = vpop.permute.xlu0 %368
    %vm370 = vcmask 654848
    %s371 = scalar_lea.vmem [#allocation0], 32
    %372 = vst.msk [vmem:[%s371] sm:$0x3] %vm370, %v369
    %s373 = scalar_lea.vmem [#allocation0], 38
    %374 = vst.msk [vmem:[%s373] sm:$0xc] %vm370, %v369
    %s375 = scalar_lea.vmem [#allocation0], 44
    %376 = vst.msk [vmem:[%s375] sm:$0x30] %vm370, %v369
    %s377 = scalar_lea.vmem [#allocation0], 50
    %378 = vst.msk [vmem:[%s377] sm:$0xc0] %vm370, %v369
    %s379 = scalar_lea.vmem %s0, 68
    %v380 = vld [vmem:[%s379] sm:$0x1]
    %s381 = scalar_lea.vmem %s0, 252
    %s382 = smov 6
    %v383 = vld [vmem:[%s381] ss:$-88 sm:%s382]
    %vm384 = vcmask 1042433
    %v385 = vsel %vm384, %v383, %v380
    %s386 = scalar_lea.vmem %s0, 436
    %s387 = smov 24
    %v388 = vld [vmem:[%s386] ss:$-88 sm:%s387]
    %vm389 = vcmask 1044483
    %v390 = vsel %vm389, %v388, %v385
    %s391 = scalar_lea.vmem %s0, 620
    %s392 = smov 96
    %v393 = vld [vmem:[%s391] ss:$-88 sm:%s392]
    %vm394 = vcmask 1046533
    %v395 = vsel %vm394, %v393, %v390
    %s396 = scalar_lea.vmem %s0, 181
    %v397 = vld [vmem:[%s396] sm:$0x80]
    %vm398 = vcmask 1047559
    %v399 = vsel %vm398, %v397, %v395
    %400 = vrot.lane.b32.xlu0 %v399, 64
    %v401 = vpop.permute.xlu0 %400
    %vm402 = vcmask 654848
    %s403 = scalar_lea.vmem [#allocation0], 64
    %404 = vst.msk [vmem:[%s403] sm:$0x3] %vm402, %v401
    %s405 = scalar_lea.vmem [#allocation0], 70
    %406 = vst.msk [vmem:[%s405] sm:$0xc] %vm402, %v401
    %s407 = scalar_lea.vmem [#allocation0], 76
    %408 = vst.msk [vmem:[%s407] sm:$0x30] %vm402, %v401
    %s409 = scalar_lea.vmem [#allocation0], 82
    %410 = vst.msk [vmem:[%s409] sm:$0xc0] %vm402, %v401
    %s411 = scalar_lea.vmem %s0, 3
    %v412 = vld [vmem:[%s411] sm:$0x1]
    %s413 = scalar_lea.vmem %s0, 187
    %s414 = smov 6
    %v415 = vld [vmem:[%s413] ss:$-88 sm:%s414]
    %vm416 = vcmask 1042433
    %v417 = vsel %vm416, %v415, %v412
    %s418 = scalar_lea.vmem %s0, 371
    %s419 = smov 24
    %v420 = vld [vmem:[%s418] ss:$-88 sm:%s419]
    %vm421 = vcmask 1044483
    %v422 = vsel %vm421, %v420, %v417
    %s423 = scalar_lea.vmem %s0, 555
    %s424 = smov 96
    %v425 = vld [vmem:[%s423] ss:$-88 sm:%s424]
    %vm426 = vcmask 1046533
    %v427 = vsel %vm426, %v425, %v422
    %s428 = scalar_lea.vmem %s0, 116
    %v429 = vld [vmem:[%s428] sm:$0x80]
    %vm430 = vcmask 1047559
    %v431 = vsel %vm430, %v429, %v427
    %432 = vrot.lane.b32.xlu0 %v431, 48
    %v433 = vpop.permute.xlu0 %432
    %vm434 = vcmask 523648
    %435 = vst.msk [vmem:[#allocation0] sm:$0x3] %vm434, %v433
    %s436 = scalar_lea.vmem [#allocation0], 6
    %437 = vst.msk [vmem:[%s436] sm:$0xc] %vm434, %v433
    %s438 = scalar_lea.vmem [#allocation0], 12
    %439 = vst.msk [vmem:[%s438] sm:$0x30] %vm434, %v433
    %s440 = scalar_lea.vmem [#allocation0], 18
    %441 = vst.msk [vmem:[%s440] sm:$0xc0] %vm434, %v433
    %s442 = scalar_lea.vmem %s0, 35
    %v443 = vld [vmem:[%s442] sm:$0x1]
    %s444 = scalar_lea.vmem %s0, 219
    %s445 = smov 6
    %v446 = vld [vmem:[%s444] ss:$-88 sm:%s445]
    %vm447 = vcmask 1042433
    %v448 = vsel %vm447, %v446, %v443
    %s449 = scalar_lea.vmem %s0, 403
    %s450 = smov 24
    %v451 = vld [vmem:[%s449] ss:$-88 sm:%s450]
    %vm452 = vcmask 1044483
    %v453 = vsel %vm452, %v451, %v448
    %s454 = scalar_lea.vmem %s0, 587
    %s455 = smov 96
    %v456 = vld [vmem:[%s454] ss:$-88 sm:%s455]
    %vm457 = vcmask 1046533
    %v458 = vsel %vm457, %v456, %v453
    %s459 = scalar_lea.vmem %s0, 148
    %v460 = vld [vmem:[%s459] sm:$0x80]
    %vm461 = vcmask 1047559
    %v462 = vsel %vm461, %v460, %v458
    %463 = vrot.lane.b32.xlu0 %v462, 48
    %v464 = vpop.permute.xlu0 %463
    %vm465 = vcmask 523648
    %s466 = scalar_lea.vmem [#allocation0], 32
    %467 = vst.msk [vmem:[%s466] sm:$0x3] %vm465, %v464
    %s468 = scalar_lea.vmem [#allocation0], 38
    %469 = vst.msk [vmem:[%s468] sm:$0xc] %vm465, %v464
    %s470 = scalar_lea.vmem [#allocation0], 44
    %471 = vst.msk [vmem:[%s470] sm:$0x30] %vm465, %v464
    %s472 = scalar_lea.vmem [#allocation0], 50
    %473 = vst.msk [vmem:[%s472] sm:$0xc0] %vm465, %v464
    %s474 = scalar_lea.vmem %s0, 67
    %v475 = vld [vmem:[%s474] sm:$0x1]
    %s476 = scalar_lea.vmem %s0, 251
    %s477 = smov 6
    %v478 = vld [vmem:[%s476] ss:$-88 sm:%s477]
    %vm479 = vcmask 1042433
    %v480 = vsel %vm479, %v478, %v475
    %s481 = scalar_lea.vmem %s0, 435
    %s482 = smov 24
    %v483 = vld [vmem:[%s481] ss:$-88 sm:%s482]
    %vm484 = vcmask 1044483
    %v485 = vsel %vm484, %v483, %v480
    %s486 = scalar_lea.vmem %s0, 619
    %s487 = smov 96
    %v488 = vld [vmem:[%s486] ss:$-88 sm:%s487]
    %vm489 = vcmask 1046533
    %v490 = vsel %vm489, %v488, %v485
    %s491 = scalar_lea.vmem %s0, 180
    %v492 = vld [vmem:[%s491] sm:$0x80]
    %vm493 = vcmask 1047559
    %v494 = vsel %vm493, %v492, %v490
    %495 = vrot.lane.b32.xlu0 %v494, 48
    %v496 = vpop.permute.xlu0 %495
    %vm497 = vcmask 523648
    %s498 = scalar_lea.vmem [#allocation0], 64
    %499 = vst.msk [vmem:[%s498] sm:$0x3] %vm497, %v496
    %s500 = scalar_lea.vmem [#allocation0], 70
    %501 = vst.msk [vmem:[%s500] sm:$0xc] %vm497, %v496
    %s502 = scalar_lea.vmem [#allocation0], 76
    %503 = vst.msk [vmem:[%s502] sm:$0x30] %vm497, %v496
    %s504 = scalar_lea.vmem [#allocation0], 82
    %505 = vst.msk [vmem:[%s504] sm:$0xc0] %vm497, %v496
    %s506 = scalar_lea.vmem %s0, 2
    %v507 = vld [vmem:[%s506] sm:$0x1]
    %s508 = scalar_lea.vmem %s0, 186
    %s509 = smov 6
    %v510 = vld [vmem:[%s508] ss:$-88 sm:%s509]
    %vm511 = vcmask 1042433
    %v512 = vsel %vm511, %v510, %v507
    %s513 = scalar_lea.vmem %s0, 370
    %s514 = smov 24
    %v515 = vld [vmem:[%s513] ss:$-88 sm:%s514]
    %vm516 = vcmask 1044483
    %v517 = vsel %vm516, %v515, %v512
    %s518 = scalar_lea.vmem %s0, 554
    %s519 = smov 96
    %v520 = vld [vmem:[%s518] ss:$-88 sm:%s519]
    %vm521 = vcmask 1046533
    %v522 = vsel %vm521, %v520, %v517
    %s523 = scalar_lea.vmem %s0, 115
    %v524 = vld [vmem:[%s523] sm:$0x80]
    %vm525 = vcmask 1047559
    %v526 = vsel %vm525, %v524, %v522
    %527 = vrot.lane.b32.xlu0 %v526, 32
    %v528 = vpop.permute.xlu0 %527
    %vm529 = vcmask 392448
    %530 = vst.msk [vmem:[#allocation0] sm:$0x3] %vm529, %v528
    %s531 = scalar_lea.vmem [#allocation0], 6
    %532 = vst.msk [vmem:[%s531] sm:$0xc] %vm529, %v528
    %s533 = scalar_lea.vmem [#allocation0], 12
    %534 = vst.msk [vmem:[%s533] sm:$0x30] %vm529, %v528
    %s535 = scalar_lea.vmem [#allocation0], 18
    %536 = vst.msk [vmem:[%s535] sm:$0xc0] %vm529, %v528
    %s537 = scalar_lea.vmem %s0, 34
    %v538 = vld [vmem:[%s537] sm:$0x1]
    %s539 = scalar_lea.vmem %s0, 218
    %s540 = smov 6
    %v541 = vld [vmem:[%s539] ss:$-88 sm:%s540]
    %vm542 = vcmask 1042433
    %v543 = vsel %vm542, %v541, %v538
    %s544 = scalar_lea.vmem %s0, 402
    %s545 = smov 24
    %v546 = vld [vmem:[%s544] ss:$-88 sm:%s545]
    %vm547 = vcmask 1044483
    %v548 = vsel %vm547, %v546, %v543
    %s549 = scalar_lea.vmem %s0, 586
    %s550 = smov 96
    %v551 = vld [vmem:[%s549] ss:$-88 sm:%s550]
    %vm552 = vcmask 1046533
    %v553 = vsel %vm552, %v551, %v548
    %s554 = scalar_lea.vmem %s0, 147
    %v555 = vld [vmem:[%s554] sm:$0x80]
    %vm556 = vcmask 1047559
    %v557 = vsel %vm556, %v555, %v553
    %558 = vrot.lane.b32.xlu0 %v557, 32
    %v559 = vpop.permute.xlu0 %558
    %vm560 = vcmask 392448
    %s561 = scalar_lea.vmem [#allocation0], 32
    %562 = vst.msk [vmem:[%s561] sm:$0x3] %vm560, %v559
    %s563 = scalar_lea.vmem [#allocation0], 38
    %564 = vst.msk [vmem:[%s563] sm:$0xc] %vm560, %v559
    %s565 = scalar_lea.vmem [#allocation0], 44
    %566 = vst.msk [vmem:[%s565] sm:$0x30] %vm560, %v559
    %s567 = scalar_lea.vmem [#allocation0], 50
    %568 = vst.msk [vmem:[%s567] sm:$0xc0] %vm560, %v559
    %s569 = scalar_lea.vmem %s0, 66
    %v570 = vld [vmem:[%s569] sm:$0x1]
    %s571 = scalar_lea.vmem %s0, 250
    %s572 = smov 6
    %v573 = vld [vmem:[%s571] ss:$-88 sm:%s572]
    %vm574 = vcmask 1042433
    %v575 = vsel %vm574, %v573, %v570
    %s576 = scalar_lea.vmem %s0, 434
    %s577 = smov 24
    %v578 = vld [vmem:[%s576] ss:$-88 sm:%s577]
    %vm579 = vcmask 1044483
    %v580 = vsel %vm579, %v578, %v575
    %s581 = scalar_lea.vmem %s0, 618
    %s582 = smov 96
    %v583 = vld [vmem:[%s581] ss:$-88 sm:%s582]
    %vm584 = vcmask 1046533
    %v585 = vsel %vm584, %v583, %v580
    %s586 = scalar_lea.vmem %s0, 179
    %v587 = vld [vmem:[%s586] sm:$0x80]
    %vm588 = vcmask 1047559
    %v589 = vsel %vm588, %v587, %v585
    %590 = vrot.lane.b32.xlu0 %v589, 32
    %v591 = vpop.permute.xlu0 %590
    %vm592 = vcmask 392448
    %s593 = scalar_lea.vmem [#allocation0], 64
    %594 = vst.msk [vmem:[%s593] sm:$0x3] %vm592, %v591
    %s595 = scalar_lea.vmem [#allocation0], 70
    %596 = vst.msk [vmem:[%s595] sm:$0xc] %vm592, %v591
    %s597 = scalar_lea.vmem [#allocation0], 76
    %598 = vst.msk [vmem:[%s597] sm:$0x30] %vm592, %v591
    %s599 = scalar_lea.vmem [#allocation0], 82
    %600 = vst.msk [vmem:[%s599] sm:$0xc0] %vm592, %v591
    %s601 = scalar_lea.vmem %s0, 1
    %v602 = vld [vmem:[%s601] sm:$0x1]
    %s603 = scalar_lea.vmem %s0, 185
    %s604 = smov 6
    %v605 = vld [vmem:[%s603] ss:$-88 sm:%s604]
    %vm606 = vcmask 1042433
    %v607 = vsel %vm606, %v605, %v602
    %s608 = scalar_lea.vmem %s0, 369
    %s609 = smov 24
    %v610 = vld [vmem:[%s608] ss:$-88 sm:%s609]
    %vm611 = vcmask 1044483
    %v612 = vsel %vm611, %v610, %v607
    %s613 = scalar_lea.vmem %s0, 553
    %s614 = smov 96
    %v615 = vld [vmem:[%s613] ss:$-88 sm:%s614]
    %vm616 = vcmask 1046533
    %v617 = vsel %vm616, %v615, %v612
    %s618 = scalar_lea.vmem %s0, 114
    %v619 = vld [vmem:[%s618] sm:$0x80]
    %vm620 = vcmask 1047559
    %v621 = vsel %vm620, %v619, %v617
    %622 = vrot.lane.b32.xlu0 %v621, 16
    %v623 = vpop.permute.xlu0 %622
    %vm624 = vcmask 261248
    %625 = vst.msk [vmem:[#allocation0] sm:$0x3] %vm624, %v623
    %s626 = scalar_lea.vmem [#allocation0], 6
    %627 = vst.msk [vmem:[%s626] sm:$0xc] %vm624, %v623
    %s628 = scalar_lea.vmem [#allocation0], 12
    %629 = vst.msk [vmem:[%s628] sm:$0x30] %vm624, %v623
    %s630 = scalar_lea.vmem [#allocation0], 18
    %631 = vst.msk [vmem:[%s630] sm:$0xc0] %vm624, %v623
    %s632 = scalar_lea.vmem %s0, 33
    %v633 = vld [vmem:[%s632] sm:$0x1]
    %s634 = scalar_lea.vmem %s0, 217
    %s635 = smov 6
    %v636 = vld [vmem:[%s634] ss:$-88 sm:%s635]
    %vm637 = vcmask 1042433
    %v638 = vsel %vm637, %v636, %v633
    %s639 = scalar_lea.vmem %s0, 401
    %s640 = smov 24
    %v641 = vld [vmem:[%s639] ss:$-88 sm:%s640]
    %vm642 = vcmask 1044483
    %v643 = vsel %vm642, %v641, %v638
    %s644 = scalar_lea.vmem %s0, 585
    %s645 = smov 96
    %v646 = vld [vmem:[%s644] ss:$-88 sm:%s645]
    %vm647 = vcmask 1046533
    %v648 = vsel %vm647, %v646, %v643
    %s649 = scalar_lea.vmem %s0, 146
    %v650 = vld [vmem:[%s649] sm:$0x80]
    %vm651 = vcmask 1047559
    %v652 = vsel %vm651, %v650, %v648
    %653 = vrot.lane.b32.xlu0 %v652, 16
    %v654 = vpop.permute.xlu0 %653
    %vm655 = vcmask 261248
    %s656 = scalar_lea.vmem [#allocation0], 32
    %657 = vst.msk [vmem:[%s656] sm:$0x3] %vm655, %v654
    %s658 = scalar_lea.vmem [#allocation0], 38
    %659 = vst.msk [vmem:[%s658] sm:$0xc] %vm655, %v654
    %s660 = scalar_lea.vmem [#allocation0], 44
    %661 = vst.msk [vmem:[%s660] sm:$0x30] %vm655, %v654
    %s662 = scalar_lea.vmem [#allocation0], 50
    %663 = vst.msk [vmem:[%s662] sm:$0xc0] %vm655, %v654
    %s664 = scalar_lea.vmem %s0, 65
    %v665 = vld [vmem:[%s664] sm:$0x1]
    %s666 = scalar_lea.vmem %s0, 249
    %s667 = smov 6
    %v668 = vld [vmem:[%s666] ss:$-88 sm:%s667]
    %vm669 = vcmask 1042433
    %v670 = vsel %vm669, %v668, %v665
    %s671 = scalar_lea.vmem %s0, 433
    %s672 = smov 24
    %v673 = vld [vmem:[%s671] ss:$-88 sm:%s672]
    %vm674 = vcmask 1044483
    %v675 = vsel %vm674, %v673, %v670
    %s676 = scalar_lea.vmem %s0, 617
    %s677 = smov 96
    %v678 = vld [vmem:[%s676] ss:$-88 sm:%s677]
    %vm679 = vcmask 1046533
    %v680 = vsel %vm679, %v678, %v675
    %s681 = scalar_lea.vmem %s0, 178
    %v682 = vld [vmem:[%s681] sm:$0x80]
    %vm683 = vcmask 1047559
    %v684 = vsel %vm683, %v682, %v680
    %685 = vrot.lane.b32.xlu0 %v684, 16
    %v686 = vpop.permute.xlu0 %685
    %vm687 = vcmask 261248
    %s688 = scalar_lea.vmem [#allocation0], 64
    %689 = vst.msk [vmem:[%s688] sm:$0x3] %vm687, %v686
    %s690 = scalar_lea.vmem [#allocation0], 70
    %691 = vst.msk [vmem:[%s690] sm:$0xc] %vm687, %v686
    %s692 = scalar_lea.vmem [#allocation0], 76
    %693 = vst.msk [vmem:[%s692] sm:$0x30] %vm687, %v686
    %s694 = scalar_lea.vmem [#allocation0], 82
    %695 = vst.msk [vmem:[%s694] sm:$0xc0] %vm687, %v686
    %s697 = sshll.u32 1, 2
    %s698 = ssub.s32 %s697, 1
    %v700 = vld [vmem:[#allocation0] sm:%s698]
    %s701 = sshll.u32 1, 2
    %s702 = ssub.s32 %s701, 1
    %703 = vst [vmem:[%s1] sm:%s702] %v700
    %s704 = scalar_lea.vmem [#allocation0], 8
    %v705 = vld [vmem:[%s704] sm:%s698]
    %s706 = sshll.u32 1, 2
    %s707 = ssub.s32 %s706, 1
    %s708 = scalar_lea.vmem %s1, 2
    %709 = vst [vmem:[%s708] sm:%s707] %v705
    %s710 = scalar_lea.vmem [#allocation0], 16
    %v711 = vld [vmem:[%s710] sm:%s698]
    %s712 = sshll.u32 1, 2
    %s713 = ssub.s32 %s712, 1
    %s714 = smul.addr 2, 2
    %s715 = scalar_lea.vmem %s1, %s714
    %716 = vst [vmem:[%s715] sm:%s713] %v711
    %s717 = scalar_lea.vmem [#allocation0], 24
    %v718 = vld [vmem:[%s717] sm:%s698]
    %s719 = sshll.u32 1, 2
    %s720 = ssub.s32 %s719, 1
    %s721 = smul.addr 2, 3
    %s722 = scalar_lea.vmem %s1, %s721
    %723 = vst [vmem:[%s722] sm:%s720] %v718
    %s724 = scalar_lea.vmem [#allocation0], 32
    %v725 = vld [vmem:[%s724] sm:%s698]
    %s726 = sshll.u32 1, 2
    %s727 = ssub.s32 %s726, 1
    %s728 = smul.addr 2, 4
    %s729 = scalar_lea.vmem %s1, %s728
    %730 = vst [vmem:[%s729] sm:%s727] %v725
    %s731 = scalar_lea.vmem [#allocation0], 40
    %v732 = vld [vmem:[%s731] sm:%s698]
    %s733 = sshll.u32 1, 2
    %s734 = ssub.s32 %s733, 1
    %s735 = smul.addr 2, 5
    %s736 = scalar_lea.vmem %s1, %s735
    %737 = vst [vmem:[%s736] sm:%s734] %v732
    %s738 = scalar_lea.vmem [#allocation0], 48
    %v739 = vld [vmem:[%s738] sm:%s698]
    %s740 = sshll.u32 1, 2
    %s741 = ssub.s32 %s740, 1
    %s742 = smul.addr 2, 6
    %s743 = scalar_lea.vmem %s1, %s742
    %744 = vst [vmem:[%s743] sm:%s741] %v739
    %s745 = scalar_lea.vmem [#allocation0], 56
    %v746 = vld [vmem:[%s745] sm:%s698]
    %s747 = sshll.u32 1, 2
    %s748 = ssub.s32 %s747, 1
    %s749 = smul.addr 2, 7
    %s750 = scalar_lea.vmem %s1, %s749
    %751 = vst [vmem:[%s750] sm:%s748] %v746
    %s752 = scalar_lea.vmem [#allocation0], 64
    %v753 = vld [vmem:[%s752] sm:%s698]
    %s754 = sshll.u32 1, 2
    %s755 = ssub.s32 %s754, 1
    %s756 = smul.addr 2, 8
    %s757 = scalar_lea.vmem %s1, %s756
    %758 = vst [vmem:[%s757] sm:%s755] %v753
    %s759 = scalar_lea.vmem [#allocation0], 72
    %v760 = vld [vmem:[%s759] sm:%s698]
    %s761 = sshll.u32 1, 2
    %s762 = ssub.s32 %s761, 1
    %s763 = smul.addr 2, 9
    %s764 = scalar_lea.vmem %s1, %s763
    %765 = vst [vmem:[%s764] sm:%s762] %v760
    %s766 = scalar_lea.vmem [#allocation0], 80
    %v767 = vld [vmem:[%s766] sm:%s698]
    %s768 = sshll.u32 1, 2
    %s769 = ssub.s32 %s768, 1
    %s770 = smul.addr 2, 10
    %s771 = scalar_lea.vmem %s1, %s770
    %772 = vst [vmem:[%s771] sm:%s769] %v767
    %s773 = scalar_lea.vmem [#allocation0], 88
    %v774 = vld [vmem:[%s773] sm:%s698]
    %s775 = sshll.u32 1, 2
    %s776 = ssub.s32 %s775, 1
    %s777 = smul.addr 2, 11
    %s778 = scalar_lea.vmem %s1, %s777
    %779 = vst [vmem:[%s778] sm:%s776] %v774

// kernel: forward.60
$region0: #{forward.60}
  #allocation0 [shape = 'u32[]', space=smem, size = 0x4, offset = 0x4, fixed_abs, tag = 'smem constant byte address 0x4 - core index']
  #allocation1 [shape = 'u32[144,128]{1,0:T(1,128)}', space=vmem, size = 0x12000, scoped, tag = 'internal scratch']
  %s0 = inlined_call_operand.vmem [shape: bf16[24,72], index: 0, kind: input, shape index: {}]
  %s1 = inlined_call_operand.vmem [shape: bf16[72,512], index: 1, kind: input, shape index: {}]
  %s2 = inlined_call_operand.vmem [shape: f32[24,1], index: 2, kind: input, shape index: {}]
  %s3 = inlined_call_operand.vmem [shape: f32[24,512], index: 3, kind: output, shape index: {}]
  %s4 = sld [smem:[#allocation0]]
  $region102: #{forward.60} parent=0
    _
  %s6 = ssub.s32 1, %s4
  %s7 = scalar_select 0, %s6, %s4
  $region1: #{forward.60} parent=0
    #allocation2 [shape = 'u8[73728]{0}', space=vmem, size = 0x12000, scoped, tag = 'input window, operand 1']
    #allocation3 [shape = 'u8[49152]{0}', space=vmem, size = 0xc000, scoped, tag = 'output window, operand 0']
    loop: start=0, step=1, limit=4
    $region2: #{forward.60} parent=1 // loop_pre_header
      _
    $region3: #{forward.60} parent=1 // loop_header
      %s9 = sphi 0, %s13
      %p10 = scmp.ge.s32.totalorder %s9, 4
      %s17 = sphi 0, %s17
      %s19 = sphi 0, %s17
      %s20 = sphi 0, %s19
      %s34 = sphi 0, %s20
      %s40 = sphi 0, %s42
      %s43 = sphi 0, %s40
      %s44 = sphi 0, %s43
      %s60 = sphi 0, %s44
      %s64 = sphi 0, %s64
      %s66 = sphi 0, %s64
      %s67 = sphi 0, %s66
      %s81 = sphi 0, %s67
      %s87 = sphi 0, %s89
      %s90 = sphi 0, %s87
      %s91 = sphi 0, %s90
      %s107 = sphi 0, %s91
    $region4: #{forward.60} parent=1 // loop_header_branch
      %12 = sbr.rel (%p10) target = $region8
    $region5: #{forward.60} parent=1 // loop_body
      %s14 = ssub.s32 %s9, 1
      %s15 = ssub.s32 %s9, 2
      %s16 = sadd.s32 %s9, 1
      %s18 = sadd.s32 %s17, 1
      %p21 = scmp.eq.s32.totalorder %s9, 1
      %p22 = scmp.ne.s32.totalorder %s17, %s19
      %p23 = scmp.eq.s32.totalorder %s9, 0
      %p24 = por %p22, %p23
      %p25 = scmp.ne.s32.totalorder %s17, %s19
      %p26 = scmp.eq.s32.totalorder %s14, 1
      %p27 = por %p25, %p26
      %p28 = scmp.ne.s32.totalorder %s19, %s20
      %p29 = scmp.eq.s32.totalorder %s14, 0
      %p30 = por %p28, %p29
      %p31 = scmp.ne.s32.totalorder %s19, %s20
      %p32 = scmp.eq.s32.totalorder %s15, 1
      %p33 = por %p31, %p32
      %p35 = scmp.ne.s32.totalorder %s20, %s34
      %p36 = scmp.eq.s32.totalorder %s15, 0
      %p37 = por %p35, %p36
      %s38 = ssub.s32 %s9, %s16
      %p39 = scmp.eq.s32.totalorder %s38, 0
      %s41 = sadd.s32 %s40, 1
      %s42 = scalar_select %p39, %s40, %s41
      %p45 = pneg %p39
      %p46 = scmp.eq.s32.totalorder %s9, 1
      %p47 = por %p45, %p46
      %p48 = scmp.ne.s32.totalorder %s40, %s43
      %p49 = scmp.eq.s32.totalorder %s9, 0
      %p50 = por %p48, %p49
      %p51 = scmp.ne.s32.totalorder %s40, %s43
      %p52 = scmp.eq.s32.totalorder %s14, 1
      %p53 = por %p51, %p52
      %p54 = scmp.ne.s32.totalorder %s43, %s44
      %p55 = scmp.eq.s32.totalorder %s14, 0
      %p56 = por %p54, %p55
      %p57 = scmp.ne.s32.totalorder %s43, %s44
      %p58 = scmp.eq.s32.totalorder %s15, 1
      %p59 = por %p57, %p58
      %p61 = scmp.ne.s32.totalorder %s44, %s60
      %p62 = scmp.eq.s32.totalorder %s15, 0
      %p63 = por %p61, %p62
      %s65 = sadd.s32 %s64, 1
      %p68 = scmp.eq.s32.totalorder %s9, 1
      %p69 = scmp.ne.s32.totalorder %s64, %s66
      %p70 = scmp.eq.s32.totalorder %s9, 0
      %p71 = por %p69, %p70
      %p72 = scmp.ne.s32.totalorder %s64, %s66
      %p73 = scmp.eq.s32.totalorder %s14, 1
      %p74 = por %p72, %p73
      %p75 = scmp.ne.s32.totalorder %s66, %s67
      %p76 = scmp.eq.s32.totalorder %s14, 0
      %p77 = por %p75, %p76
      %p78 = scmp.ne.s32.totalorder %s66, %s67
      %p79 = scmp.eq.s32.totalorder %s15, 1
      %p80 = por %p78, %p79
      %p82 = scmp.ne.s32.totalorder %s67, %s81
      %p83 = scmp.eq.s32.totalorder %s15, 0
      %p84 = por %p82, %p83
      %s85 = ssub.s32 %s9, %s16
      %p86 = scmp.eq.s32.totalorder %s85, 0
      %s88 = sadd.s32 %s87, 1
      %s89 = scalar_select %p86, %s87, %s88
      %p92 = pneg %p86
      %p93 = scmp.eq.s32.totalorder %s9, 1
      %p94 = por %p92, %p93
      %p95 = scmp.ne.s32.totalorder %s87, %s90
      %p96 = scmp.eq.s32.totalorder %s9, 0
      %p97 = por %p95, %p96
      %p98 = scmp.ne.s32.totalorder %s87, %s90
      %p99 = scmp.eq.s32.totalorder %s14, 1
      %p100 = por %p98, %p99
      %p101 = scmp.ne.s32.totalorder %s90, %s91
      %p102 = scmp.eq.s32.totalorder %s14, 0
      %p103 = por %p101, %p102
      %p104 = scmp.ne.s32.totalorder %s90, %s91
      %p105 = scmp.eq.s32.totalorder %s15, 1
      %p106 = por %p104, %p105
      %p108 = scmp.ne.s32.totalorder %s91, %s107
      %p109 = scmp.eq.s32.totalorder %s15, 0
      %p110 = por %p108, %p109
      %p111 = scmp.le.s32.totalorder 1, %s9
      %p112 = scmp.lt.s32.totalorder %s9, 3
      %p113 = pnand %p111, %p112
      %p114 = pneg %p113
      // Predicated region
      $region9: #{forward.60} parent=5 // pred_check
        _
      $region10: #{forward.60} parent=5 // pred_check_branch
        %116 = sbr.rel (%p113) target = $region12
      $region11: #{forward.60} parent=5 // pred_region
        %s117 = ssub.s32 %s9, 1
        // Predicated region
        $region13: #{forward.60} parent=11 // pred_check
          %p118 = pneg %p30
        $region14: #{forward.60} parent=11 // pred_check_branch
          %120 = sbr.rel (%p118) target = $region16
        $region15: #{forward.60} parent=11 // pred_region
          _
        $region16: #{forward.60} parent=11 // pred_fallthru
          _
        // Predicated region
        $region17: #{forward.60} parent=11 // pred_check
          %p121 = pneg %p77
        $region18: #{forward.60} parent=11 // pred_check_branch
          %123 = sbr.rel (%p121) target = $region20
        $region19: #{forward.60} parent=11 // pred_region
          _
        $region20: #{forward.60} parent=11 // pred_fallthru
          _
      $region12: #{forward.60} parent=5 // pred_fallthru
        _
      %p124 = scmp.lt.s32.totalorder %s9, 2
      // Predicated region
      $region21: #{forward.60} parent=5 // pred_check
        %p125 = pneg %p124
      $region22: #{forward.60} parent=5 // pred_check_branch
        %127 = sbr.rel (%p125) target = $region24
      $region23: #{forward.60} parent=5 // pred_region
        // Predicated region
        $region25: #{forward.60} parent=23 // pred_check
          %p128 = pneg %p50
        $region26: #{forward.60} parent=23 // pred_check_branch
          %130 = sbr.rel (%p128) target = $region28
        $region27: #{forward.60} parent=23 // pred_region
          %s131 = sand.u32 %s40, 1
          %s132 = sand.u32 %s40, 1
          %s133 = smul.addr %s132, 72
          %s134 = scalar_lea.vmem [#allocation2], %s133
          %s135 = smul.u32 2, %s9
          %s136 = smul.addr %s135, 4
          %s137 = scalar_lea.vmem %s1, %s136
          // Predicated region
          $region29: #{forward.60} parent=27 // pred_check
            _
          $region30: #{forward.60} parent=27 // pred_check_branch
            %139 = sbr.rel (0) target = $region32
          $region31: #{forward.60} parent=27 // pred_region
            // Predicated region
            $region33: #{forward.60} parent=31 // pred_check
              _
            $region34: #{forward.60} parent=31 // pred_check_branch
              %141 = sbr.rel (0) target = $region36
            $region35: #{forward.60} parent=31 // pred_region
              // Predicated region
              $region48: #{forward.60} parent=35 // pred_check
                _
              $region49: #{forward.60} parent=35 // pred_check_branch
                %173 = sbr.rel (0) target = $region51
              $region50: #{forward.60} parent=35 // pred_region
                loop: start=0, step=1, limit=1
                $region52: #{forward.60} parent=50 // loop_pre_header
                  _
                $region53: #{forward.60} parent=50 // loop_header
                  %s175 = sphi 0, %s179
                  %p176 = scmp.ge.s32.totalorder %s175, 1
                  %s180 = sphi %s137, %s137
                  %s181 = sphi %s134, %s134
                $region54: #{forward.60} parent=50 // loop_header_branch
                  %178 = sbr.rel (%p176) target = $region58
                $region55: #{forward.60} parent=50 // loop_body
                  %v182 = vld [vmem:[%s180] sm:$0xff]
                  %183 = vst [vmem:[%s181] sm:$0xff] %v182
                  %v184 = vld [vmem:[%s180 + $0x10] sm:$0xff]
                  %185 = vst [vmem:[%s181 + $0x8] sm:$0xff] %v184
                  %v186 = vld [vmem:[%s180 + $0x20] sm:$0xff]
                  %187 = vst [vmem:[%s181 + $0x10] sm:$0xff] %v186
                  %v188 = vld [vmem:[%s180 + $0x30] sm:$0xff]
                  %189 = vst [vmem:[%s181 + $0x18] sm:$0xff] %v188
                  %v190 = vld [vmem:[%s180 + $0x40] sm:$0xff]
                  %191 = vst [vmem:[%s181 + $0x20] sm:$0xff] %v190
                  %v192 = vld [vmem:[%s180 + $0x50] sm:$0xff]
                  %193 = vst [vmem:[%s181 + $0x28] sm:$0xff] %v192
                  %v194 = vld [vmem:[%s180 + $0x60] sm:$0xff]
                  %195 = vst [vmem:[%s181 + $0x30] sm:$0xff] %v194
                  %v196 = vld [vmem:[%s180 + $0x70] sm:$0xff]
                  %197 = vst [vmem:[%s181 + $0x38] sm:$0xff] %v196
                  %v198 = vld [vmem:[%s180 + $0x80] sm:$0xff]
                  %199 = vst [vmem:[%s181 + $0x40] sm:$0xff] %v198
                $region56: #{forward.60} parent=50 // loop_footer
                  %s179 = sadd.s32 1, %s175
                $region57: #{forward.60} parent=50 // loop_footer_branch
                  %174 = sbr.rel target = $region53
                $region58: #{forward.60} parent=50 // loop_exit
                  _
              $region51: #{forward.60} parent=35 // pred_fallthru
                _
              // Predicated region
              $region59: #{forward.60} parent=35 // pred_check
                _
              $region60: #{forward.60} parent=35 // pred_check_branch
                %201 = sbr.rel target = $region62
              $region61: #{forward.60} parent=35 // pred_region
                _
              $region62: #{forward.60} parent=35 // pred_fallthru
                _
            $region36: #{forward.60} parent=31 // pred_fallthru
              _
            // Predicated region
            $region37: #{forward.60} parent=31 // pred_check
              _
            $region38: #{forward.60} parent=31 // pred_check_branch
              %143 = sbr.rel target = $region40
            $region39: #{forward.60} parent=31 // pred_region
              %s145 = ssub.s32 256, 1
              loop: start=0, step=1, limit=1
              $region41: #{forward.60} parent=39 // loop_pre_header
                _
              $region42: #{forward.60} parent=39 // loop_header
                %s147 = sphi 0, %s151
                %p148 = scmp.ge.s32.totalorder %s147, 1
                %s152 = sphi %s137, %s137
                %s153 = sphi %s134, %s134
              $region43: #{forward.60} parent=39 // loop_header_branch
                %150 = sbr.rel (%p148) target = $region47
              $region44: #{forward.60} parent=39 // loop_body
                %v154 = vld [vmem:[%s152] sm:%s145]
                %155 = vst [vmem:[%s153] sm:%s145] %v154
                %v156 = vld [vmem:[%s152 + $0x10] sm:%s145]
                %157 = vst [vmem:[%s153 + $0x8] sm:%s145] %v156
                %v158 = vld [vmem:[%s152 + $0x20] sm:%s145]
                %159 = vst [vmem:[%s153 + $0x10] sm:%s145] %v158
                %v160 = vld [vmem:[%s152 + $0x30] sm:%s145]
                %161 = vst [vmem:[%s153 + $0x18] sm:%s145] %v160
                %v162 = vld [vmem:[%s152 + $0x40] sm:%s145]
                %163 = vst [vmem:[%s153 + $0x20] sm:%s145] %v162
                %v164 = vld [vmem:[%s152 + $0x50] sm:%s145]
                %165 = vst [vmem:[%s153 + $0x28] sm:%s145] %v164
                %v166 = vld [vmem:[%s152 + $0x60] sm:%s145]
                %167 = vst [vmem:[%s153 + $0x30] sm:%s145] %v166
                %v168 = vld [vmem:[%s152 + $0x70] sm:%s145]
                %169 = vst [vmem:[%s153 + $0x38] sm:%s145] %v168
                %v170 = vld [vmem:[%s152 + $0x80] sm:%s145]
                %171 = vst [vmem:[%s153 + $0x40] sm:%s145] %v170
              $region45: #{forward.60} parent=39 // loop_footer
                %s151 = sadd.s32 1, %s147
              $region46: #{forward.60} parent=39 // loop_footer_branch
                %146 = sbr.rel target = $region42
              $region47: #{forward.60} parent=39 // loop_exit
                _
            $region40: #{forward.60} parent=31 // pred_fallthru
              _
          $region32: #{forward.60} parent=27 // pred_fallthru
            _
          %202 = vnop
        $region28: #{forward.60} parent=23 // pred_fallthru
          _
      $region24: #{forward.60} parent=5 // pred_fallthru
        _
      %p203 = scmp.le.s32.totalorder 1, %s9
      %p204 = scmp.lt.s32.totalorder %s9, 3
      %p205 = pnand %p203, %p204
      %p206 = pneg %p205
      // Predicated region
      $region63: #{forward.60} parent=5 // pred_check
        _
      $region64: #{forward.60} parent=5 // pred_check_branch
        %208 = sbr.rel (%p205) target = $region66
      $region65: #{forward.60} parent=5 // pred_region
        %s209 = ssub.s32 %s9, 1
        %s210 = sand.u32 %s43, 1
        %s211 = sand.u32 %s43, 1
        %s212 = smul.addr %s211, 72
        %s213 = scalar_lea.vmem [#allocation2], %s212
        // Predicated region
        $region67: #{forward.60} parent=65 // pred_check
          %p214 = pneg %p56
        $region68: #{forward.60} parent=65 // pred_check_branch
          %216 = sbr.rel (%p214) target = $region70
        $region69: #{forward.60} parent=65 // pred_region
          _
        $region70: #{forward.60} parent=65 // pred_fallthru
          _
        %p217 = pneg %p30
        %p218 = pneg %p27
        %s219 = sand.u32 %s43, 1
        %s220 = sand.u32 %s43, 1
        %s221 = smul.addr %s220, 72
        %s222 = scalar_lea.vmem [#allocation2], %s221
        %p223 = pneg %p56
        %p224 = pneg %p53
        %p225 = pneg %p77
        %p226 = pneg %p74
        %p227 = pneg %p103
        %p228 = pneg %p100
        %s229 = sand.u32 %s90, 1
        %s230 = sand.u32 %s90, 1
        %s231 = smul.addr %s230, 48
        %s232 = scalar_lea.vmem [#allocation3], %s231
        %s233 = smul.u32 2, %s14
        %s234 = smul.u32 2, %s14
        %v236 = vld [vmem:[%s0] sm:$0xf]
        %v237 = vld [vmem:[%s0 + $0x4] sm:$0xf]
        %v238 = vld [vmem:[%s0 + $0x8] sm:$0xf]
        %v239 = vld [vmem:[%s213] sm:$0xff]
        %v240 = vld [vmem:[%s213 + $0x8] sm:$0xff]
        %v241 = vld [vmem:[%s213 + $0x10] sm:$0xff]
        %v242 = vld [vmem:[%s213 + $0x18] sm:$0xff]
        %v243 = vld [vmem:[%s213 + $0x20] sm:$0xff]
        %v244 = vld [vmem:[%s213 + $0x28] sm:$0xff]
        %v245 = vld [vmem:[%s213 + $0x30] sm:$0xff]
        %v246 = vld [vmem:[%s213 + $0x38] sm:$0xff]
        %v247 = vld [vmem:[%s213 + $0x40] sm:$0xff]
        %v248 = vld [vmem:[%s2] sm:$0xff]
        %v249 = vld [vmem:[%s2 + $0x8] sm:$0xff]
        %v250 = vld [vmem:[%s2 + $0x10] sm:$0xff]
        %252 = vset.pattern.permute.xlu0 0
        %253 = vperm.xlu0 %252, %v248
        %v254 = vpop.permute.xlu0 %253
        %257 = vset.pattern.permute.xlu0 0
        %258 = vperm.xlu0 %257, %v249
        %v259 = vpop.permute.xlu0 %258
        %262 = vset.pattern.permute.xlu0 0
        %263 = vperm.xlu0 %262, %v250
        %v264 = vpop.permute.xlu0 %263
        %v269 = vunpack.c.l.b16 %v236
        %v270 = vunpack.c.l.b16 %v237
        %v271 = vunpack.c.l.b16 %v238
        %v272 = vpack.c.b16 %v270, %v269
        %v273 = vpack.c.b16 %v271, %v271
        %v283 = vunpack.c.l.b16 %v239
        %v284 = vunpack.c.h.b16 %v239
        %v285 = vunpack.c.l.b16 %v240
        %v286 = vunpack.c.h.b16 %v240
        %v287 = vunpack.c.l.b16 %v241
        %v288 = vunpack.c.h.b16 %v241
        %v289 = vunpack.c.l.b16 %v242
        %v290 = vunpack.c.h.b16 %v242
        %v291 = vunpack.c.l.b16 %v243
        %v292 = vunpack.c.h.b16 %v243
        %v293 = vunpack.c.l.b16 %v244
        %v294 = vunpack.c.h.b16 %v244
        %v295 = vunpack.c.l.b16 %v245
        %v296 = vunpack.c.h.b16 %v245
        %v297 = vunpack.c.l.b16 %v246
        %v298 = vunpack.c.h.b16 %v246
        %v299 = vunpack.c.l.b16 %v247
        %v300 = vunpack.c.h.b16 %v247
        %v301 = vpack.c.b16 %v285, %v283
        %v302 = vpack.c.b16 %v286, %v284
        %v303 = vpack.c.b16 %v289, %v287
        %v304 = vpack.c.b16 %v290, %v288
        %v305 = vpack.c.b16 %v293, %v291
        %v306 = vpack.c.b16 %v294, %v292
        %v307 = vpack.c.b16 %v297, %v295
        %v308 = vpack.c.b16 %v298, %v296
        %v309 = vpack.c.b16 %v299, %v299
        %v310 = vpack.c.b16 %v300, %v300
        %vm319 = vcmask 588800
        %v321 = vsel %vm319, %v272, 0
        %v324 = vsel %vm319, %v273, 0
        %vm326 = vcmask 1043456
        %v328 = vsel %vm326, %v309, 0
        %v331 = vsel %vm326, %v310, 0
        %333 = vmatprep.subr.bf16.mxu0 0
        %334 = vmatpush1.bf16.msra.mxu0 0
        %335 = vmatprep.subr.bf16.mxu0 0
        %336 = vmatpush1.bf16.msra.mxu0 0
        %337 = vmatprep.subr.bf16.mxu0 0
        %338 = vmatpush1.bf16.msra.mxu0 0
        %339 = vmatprep.subr.bf16.mxu0 %v331
        %340 = vmatpush1.bf16.msra.mxu0 %v328
        %341 = vmatprep.subr.bf16.mxu0 %v308
        %342 = vmatpush1.bf16.msra.mxu0 %v307
        %343 = vmatprep.subr.bf16.mxu0 %v306
        %344 = vmatpush1.bf16.msra.mxu0 %v305
        %345 = vmatprep.subr.bf16.mxu0 %v304
        %346 = vmatpush1.bf16.msra.mxu0 %v303
        %347 = vmatprep.subr.bf16.mxu0 %v302
        %348 = vmatpush1.bf16.msra.mxu0 %v301
        %349 = vmatprep.subr.bf16.mxu0 0
        %350 = vmatpush2.bf16.msra.mxu0 0
        %351 = vmatprep.subr.bf16.mxu0 0
        %352 = vmatpush2.bf16.msra.mxu0 0
        %353 = vmatprep.subr.bf16.mxu0 0
        %354 = vmatpush2.bf16.msra.mxu0 0
        %355 = vmatprep.subr.bf16.mxu0 0
        %356 = vmatpush2.bf16.msra.mxu0 0
        %357 = vmatprep.subr.bf16.mxu0 0
        %358 = vmatpush2.bf16.msra.mxu0 0
        %359 = vmatprep.subr.bf16.mxu0 0
        %360 = vmatpush2.bf16.msra.mxu0 0
        %361 = vmatprep.subr.bf16.mxu0 0
        %362 = vmatpush2.bf16.msra.mxu0 0
        %363 = vmatprep.subr.bf16.mxu0 0
        %364 = vmatpush2.bf16.msra.mxu0 0
        %365 = vmatprep.mubr.bf16.mxu0 0
        %366 = vmatmul.mubr.bf16.gmra.mxu0 %v321
        %v367 = vpop.f32.mrf.mxu0
        %v368 = vadd.f32 %v254, %v367
        %v369 = vpop.f32.mrf.mxu0
        %v370 = vadd.f32 %v254, %v369
        %v371 = vpop.f32.mrf.mxu0
        %v372 = vadd.f32 %v259, %v371
        %v373 = vpop.f32.mrf.mxu0
        %v374 = vadd.f32 %v259, %v373
        %375 = vmatprep.mubr.bf16.mxu0 0
        %376 = vmatmul.mubr.bf16.gmra.mxu0 %v324
        %v377 = vpop.f32.mrf.mxu0
        %v378 = vadd.f32 %v264, %v377
        %v379 = vpop.f32.mrf.mxu0
        %v380 = vadd.f32 %v264, %v379
        %v381 = vpop.f32.mrf.mxu0
        %v382 = vpop.f32.mrf.mxu0
        %383 = vdwg.mxu0
        %384 = vst [vmem:[%s232] sm:$0xff] %v368
        %385 = vst [vmem:[%s232 + $0x8] sm:$0xff] %v370
        %386 = vst [vmem:[%s232 + $0x10] sm:$0xff] %v372
        %387 = vst [vmem:[%s232 + $0x18] sm:$0xff] %v374
        %388 = vst [vmem:[%s232 + $0x20] sm:$0xff] %v378
        %389 = vst [vmem:[%s232 + $0x28] sm:$0xff] %v380
        %s390 = sand.u32 %s90, 1
        %s391 = sand.u32 %s90, 1
        %s392 = smul.addr %s391, 48
        %s393 = scalar_lea.vmem [#allocation3], %s392
        // Predicated region
        $region71: #{forward.60} parent=65 // pred_check
          %p394 = pneg %p100
        $region72: #{forward.60} parent=65 // pred_check_branch
          %396 = sbr.rel (%p394) target = $region74
        $region73: #{forward.60} parent=65 // pred_region
          %s397 = smul.u32 2, %s14
          %s398 = smul.addr %s397, 8
          %s399 = scalar_lea.vmem %s3, %s398
          // Predicated region
          $region75: #{forward.60} parent=73 // pred_check
            _
          $region76: #{forward.60} parent=73 // pred_check_branch
            %401 = sbr.rel (0) target = $region78
          $region77: #{forward.60} parent=73 // pred_region
            // Predicated region
            $region79: #{forward.60} parent=77 // pred_check
              _
            $region80: #{forward.60} parent=77 // pred_check_branch
              %403 = sbr.rel (0) target = $region82
            $region81: #{forward.60} parent=77 // pred_region
              loop: start=0, step=1, limit=1
              $region83: #{forward.60} parent=81 // loop_pre_header
                _
              $region84: #{forward.60} parent=81 // loop_header
                %s405 = sphi 0, %s409
                %p406 = scmp.ge.s32.totalorder %s405, 1
                %s410 = sphi %s393, %s393
                %s411 = sphi %s399, %s399
              $region85: #{forward.60} parent=81 // loop_header_branch
                %408 = sbr.rel (%p406) target = $region89
              $region86: #{forward.60} parent=81 // loop_body
                %v412 = vld [vmem:[%s410] sm:$0xff]
                %413 = vst [vmem:[%s411] sm:$0xff] %v412
                %v414 = vld [vmem:[%s410 + $0x8] sm:$0xff]
                %415 = vst [vmem:[%s411 + $0x8] sm:$0xff] %v414
                %v416 = vld [vmem:[%s410 + $0x10] sm:$0xff]
                %417 = vst [vmem:[%s411 + $0x20] sm:$0xff] %v416
                %v418 = vld [vmem:[%s410 + $0x18] sm:$0xff]
                %419 = vst [vmem:[%s411 + $0x28] sm:$0xff] %v418
                %v420 = vld [vmem:[%s410 + $0x20] sm:$0xff]
                %421 = vst [vmem:[%s411 + $0x40] sm:$0xff] %v420
                %v422 = vld [vmem:[%s410 + $0x28] sm:$0xff]
                %423 = vst [vmem:[%s411 + $0x48] sm:$0xff] %v422
              $region87: #{forward.60} parent=81 // loop_footer
                %s409 = sadd.s32 1, %s405
              $region88: #{forward.60} parent=81 // loop_footer_branch
                %404 = sbr.rel target = $region84
              $region89: #{forward.60} parent=81 // loop_exit
                _
            $region82: #{forward.60} parent=77 // pred_fallthru
              _
            // Predicated region
            $region90: #{forward.60} parent=77 // pred_check
              _
            $region91: #{forward.60} parent=77 // pred_check_branch
              %425 = sbr.rel target = $region93
            $region92: #{forward.60} parent=77 // pred_region
              _
            $region93: #{forward.60} parent=77 // pred_fallthru
              _
          $region78: #{forward.60} parent=73 // pred_fallthru
            _
          %426 = vnop
        $region74: #{forward.60} parent=65 // pred_fallthru
          _
      $region66: #{forward.60} parent=5 // pred_fallthru
        _
      %p427 = scmp.le.s32.totalorder 2, %s9
      // Predicated region
      $region94: #{forward.60} parent=5 // pred_check
        %p428 = pneg %p427
      $region95: #{forward.60} parent=5 // pred_check_branch
        %430 = sbr.rel (%p428) target = $region97
      $region96: #{forward.60} parent=5 // pred_region
        %s431 = ssub.s32 %s9, 2
        // Predicated region
        $region98: #{forward.60} parent=96 // pred_check
          %p432 = pneg %p106
        $region99: #{forward.60} parent=96 // pred_check_branch
          %434 = sbr.rel (%p432) target = $region101
        $region100: #{forward.60} parent=96 // pred_region
          %s435 = sand.u32 %s91, 1
          %s436 = sand.u32 %s91, 1
          %s437 = smul.addr %s436, 48
          %s438 = scalar_lea.vmem [#allocation3], %s437
        $region101: #{forward.60} parent=96 // pred_fallthru
          _
      $region97: #{forward.60} parent=5 // pred_fallthru
        _
    $region6: #{forward.60} parent=1 // loop_footer
      %s13 = sadd.s32 1, %s9
    $region7: #{forward.60} parent=1 // loop_footer_branch
      %8 = sbr.rel target = $region3
    $region8: #{forward.60} parent=1 // loop_exit
      _

// kernel: squeeze.12
$region0: #{squeeze.12}
  %s0 = inlined_call_operand.vmem [shape: f32[2,1,4,2,8,8], index: 0, kind: input, shape index: {}]
  %s1 = inlined_call_operand.vmem [shape: f32[2,512], index: 1, kind: output, shape index: {}]
  $region1: #{squeeze.12} parent=0
    #allocation0 [shape = 'u8[16384]{0}', space=vmem, size = 0x4000, scoped, tag = 'scoped mem for output reshape']
    %s2 = smov 3
    %v3 = vld [vmem:[%s0] ss:$16 sm:%s2]
    %s4 = smov 12
    %v5 = vld [vmem:[%s0] ss:$16 sm:%s4]
    %vm6 = vcmask 1043458
    %v7 = vsel %vm6, %v5, %v3
    %s8 = smov 48
    %v9 = vld [vmem:[%s0] ss:$16 sm:%s8]
    %vm10 = vcmask 1045508
    %v11 = vsel %vm10, %v9, %v7
    %s12 = smov 192
    %v13 = vld [vmem:[%s0] ss:$16 sm:%s12]
    %vm14 = vcmask 1047558
    %v15 = vsel %vm14, %v13, %v11
    %vm16 = vcmask 64512
    %17 = vst.msk [vmem:[#allocation0] ss:$8 sm:$0xf] %vm16, %v15
    %s18 = scalar_lea.vmem [#allocation0], 4294967265
    %19 = vst.msk [vmem:[%s18] ss:$8 sm:$0xf0] %vm16, %v15
    %s20 = scalar_lea.vmem %s0, 15
    %v21 = vld [vmem:[%s20] sm:$0x1]
    %s22 = scalar_lea.vmem %s0, 127
    %s23 = smov 6
    %v24 = vld [vmem:[%s22] ss:$-48 sm:%s23]
    %vm25 = vcmask 1042433
    %v26 = vsel %vm25, %v24, %v21
    %s27 = scalar_lea.vmem %s0, 239
    %s28 = smov 24
    %v29 = vld [vmem:[%s27] ss:$-48 sm:%s28]
    %vm30 = vcmask 1044483
    %v31 = vsel %vm30, %v29, %v26
    %s32 = scalar_lea.vmem %s0, 351
    %s33 = smov 96
    %v34 = vld [vmem:[%s32] ss:$-48 sm:%s33]
    %vm35 = vcmask 1046533
    %v36 = vsel %vm35, %v34, %v31
    %s37 = scalar_lea.vmem %s0, 120
    %v38 = vld [vmem:[%s37] sm:$0x80]
    %vm39 = vcmask 1047559
    %v40 = vsel %vm39, %v38, %v36
    %41 = vrot.lane.b32.xlu0 %v40, 120
    %v42 = vpop.permute.xlu0 %41
    %vm43 = vcmask 1048512
    %44 = vst.msk [vmem:[#allocation0] sm:$0x3] %vm43, %v42
    %s45 = scalar_lea.vmem [#allocation0], 6
    %46 = vst.msk [vmem:[%s45] sm:$0xc] %vm43, %v42
    %s47 = scalar_lea.vmem [#allocation0], 12
    %48 = vst.msk [vmem:[%s47] sm:$0x30] %vm43, %v42
    %s49 = scalar_lea.vmem [#allocation0], 18
    %50 = vst.msk [vmem:[%s49] sm:$0xc0] %vm43, %v42
    %s51 = scalar_lea.vmem %s0, 14
    %v52 = vld [vmem:[%s51] sm:$0x1]
    %s53 = scalar_lea.vmem %s0, 126
    %s54 = smov 6
    %v55 = vld [vmem:[%s53] ss:$-48 sm:%s54]
    %vm56 = vcmask 1042433
    %v57 = vsel %vm56, %v55, %v52
    %s58 = scalar_lea.vmem %s0, 238
    %s59 = smov 24
    %v60 = vld [vmem:[%s58] ss:$-48 sm:%s59]
    %vm61 = vcmask 1044483
    %v62 = vsel %vm61, %v60, %v57
    %s63 = scalar_lea.vmem %s0, 350
    %s64 = smov 96
    %v65 = vld [vmem:[%s63] ss:$-48 sm:%s64]
    %vm66 = vcmask 1046533
    %v67 = vsel %vm66, %v65, %v62
    %s68 = scalar_lea.vmem %s0, 119
    %v69 = vld [vmem:[%s68] sm:$0x80]
    %vm70 = vcmask 1047559
    %v71 = vsel %vm70, %v69, %v67
    %72 = vrot.lane.b32.xlu0 %v71, 112
    %v73 = vpop.permute.xlu0 %72
    %vm74 = vcmask 982912
    %75 = vst.msk [vmem:[#allocation0] sm:$0x3] %vm74, %v73
    %s76 = scalar_lea.vmem [#allocation0], 6
    %77 = vst.msk [vmem:[%s76] sm:$0xc] %vm74, %v73
    %s78 = scalar_lea.vmem [#allocation0], 12
    %79 = vst.msk [vmem:[%s78] sm:$0x30] %vm74, %v73
    %s80 = scalar_lea.vmem [#allocation0], 18
    %81 = vst.msk [vmem:[%s80] sm:$0xc0] %vm74, %v73
    %s82 = scalar_lea.vmem %s0, 13
    %v83 = vld [vmem:[%s82] sm:$0x1]
    %s84 = scalar_lea.vmem %s0, 125
    %s85 = smov 6
    %v86 = vld [vmem:[%s84] ss:$-48 sm:%s85]
    %vm87 = vcmask 1042433
    %v88 = vsel %vm87, %v86, %v83
    %s89 = scalar_lea.vmem %s0, 237
    %s90 = smov 24
    %v91 = vld [vmem:[%s89] ss:$-48 sm:%s90]
    %vm92 = vcmask 1044483
    %v93 = vsel %vm92, %v91, %v88
    %s94 = scalar_lea.vmem %s0, 349
    %s95 = smov 96
    %v96 = vld [vmem:[%s94] ss:$-48 sm:%s95]
    %vm97 = vcmask 1046533
    %v98 = vsel %vm97, %v96, %v93
    %s99 = scalar_lea.vmem %s0, 118
    %v100 = vld [vmem:[%s99] sm:$0x80]
    %vm101 = vcmask 1047559
    %v102 = vsel %vm101, %v100, %v98
    %103 = vrot.lane.b32.xlu0 %v102, 104
    %v104 = vpop.permute.xlu0 %103
    %vm105 = vcmask 917312
    %106 = vst.msk [vmem:[#allocation0] sm:$0x3] %vm105, %v104
    %s107 = scalar_lea.vmem [#allocation0], 6
    %108 = vst.msk [vmem:[%s107] sm:$0xc] %vm105, %v104
    %s109 = scalar_lea.vmem [#allocation0], 12
    %110 = vst.msk [vmem:[%s109] sm:$0x30] %vm105, %v104
    %s111 = scalar_lea.vmem [#allocation0], 18
    %112 = vst.msk [vmem:[%s111] sm:$0xc0] %vm105, %v104
    %s113 = scalar_lea.vmem %s0, 12
    %v114 = vld [vmem:[%s113] sm:$0x1]
    %s115 = scalar_lea.vmem %s0, 124
    %s116 = smov 6
    %v117 = vld [vmem:[%s115] ss:$-48 sm:%s116]
    %vm118 = vcmask 1042433
    %v119 = vsel %vm118, %v117, %v114
    %s120 = scalar_lea.vmem %s0, 236
    %s121 = smov 24
    %v122 = vld [vmem:[%s120] ss:$-48 sm:%s121]
    %vm123 = vcmask 1044483
    %v124 = vsel %vm123, %v122, %v119
    %s125 = scalar_lea.vmem %s0, 348
    %s126 = smov 96
    %v127 = vld [vmem:[%s125] ss:$-48 sm:%s126]
    %vm128 = vcmask 1046533
    %v129 = vsel %vm128, %v127, %v124
    %s130 = scalar_lea.vmem %s0, 117
    %v131 = vld [vmem:[%s130] sm:$0x80]
    %vm132 = vcmask 1047559
    %v133 = vsel %vm132, %v131, %v129
    %134 = vrot.lane.b32.xlu0 %v133, 96
    %v135 = vpop.permute.xlu0 %134
    %vm136 = vcmask 851712
    %137 = vst.msk [vmem:[#allocation0] sm:$0x3] %vm136, %v135
    %s138 = scalar_lea.vmem [#allocation0], 6
    %139 = vst.msk [vmem:[%s138] sm:$0xc] %vm136, %v135
    %s140 = scalar_lea.vmem [#allocation0], 12
    %141 = vst.msk [vmem:[%s140] sm:$0x30] %vm136, %v135
    %s142 = scalar_lea.vmem [#allocation0], 18
    %143 = vst.msk [vmem:[%s142] sm:$0xc0] %vm136, %v135
    %s144 = scalar_lea.vmem %s0, 11
    %v145 = vld [vmem:[%s144] sm:$0x1]
    %s146 = scalar_lea.vmem %s0, 123
    %s147 = smov 6
    %v148 = vld [vmem:[%s146] ss:$-48 sm:%s147]
    %vm149 = vcmask 1042433
    %v150 = vsel %vm149, %v148, %v145
    %s151 = scalar_lea.vmem %s0, 235
    %s152 = smov 24
    %v153 = vld [vmem:[%s151] ss:$-48 sm:%s152]
    %vm154 = vcmask 1044483
    %v155 = vsel %vm154, %v153, %v150
    %s156 = scalar_lea.vmem %s0, 347
    %s157 = smov 96
    %v158 = vld [vmem:[%s156] ss:$-48 sm:%s157]
    %vm159 = vcmask 1046533
    %v160 = vsel %vm159, %v158, %v155
    %s161 = scalar_lea.vmem %s0, 116
    %v162 = vld [vmem:[%s161] sm:$0x80]
    %vm163 = vcmask 1047559
    %v164 = vsel %vm163, %v162, %v160
    %165 = vrot.lane.b32.xlu0 %v164, 88
    %v166 = vpop.permute.xlu0 %165
    %vm167 = vcmask 786112
    %168 = vst.msk [vmem:[#allocation0] sm:$0x3] %vm167, %v166
    %s169 = scalar_lea.vmem [#allocation0], 6
    %170 = vst.msk [vmem:[%s169] sm:$0xc] %vm167, %v166
    %s171 = scalar_lea.vmem [#allocation0], 12
    %172 = vst.msk [vmem:[%s171] sm:$0x30] %vm167, %v166
    %s173 = scalar_lea.vmem [#allocation0], 18
    %174 = vst.msk [vmem:[%s173] sm:$0xc0] %vm167, %v166
    %s175 = scalar_lea.vmem %s0, 10
    %v176 = vld [vmem:[%s175] sm:$0x1]
    %s177 = scalar_lea.vmem %s0, 122
    %s178 = smov 6
    %v179 = vld [vmem:[%s177] ss:$-48 sm:%s178]
    %vm180 = vcmask 1042433
    %v181 = vsel %vm180, %v179, %v176
    %s182 = scalar_lea.vmem %s0, 234
    %s183 = smov 24
    %v184 = vld [vmem:[%s182] ss:$-48 sm:%s183]
    %vm185 = vcmask 1044483
    %v186 = vsel %vm185, %v184, %v181
    %s187 = scalar_lea.vmem %s0, 346
    %s188 = smov 96
    %v189 = vld [vmem:[%s187] ss:$-48 sm:%s188]
    %vm190 = vcmask 1046533
    %v191 = vsel %vm190, %v189, %v186
    %s192 = scalar_lea.vmem %s0, 115
    %v193 = vld [vmem:[%s192] sm:$0x80]
    %vm194 = vcmask 1047559
    %v195 = vsel %vm194, %v193, %v191
    %196 = vrot.lane.b32.xlu0 %v195, 80
    %v197 = vpop.permute.xlu0 %196
    %vm198 = vcmask 720512
    %199 = vst.msk [vmem:[#allocation0] sm:$0x3] %vm198, %v197
    %s200 = scalar_lea.vmem [#allocation0], 6
    %201 = vst.msk [vmem:[%s200] sm:$0xc] %vm198, %v197
    %s202 = scalar_lea.vmem [#allocation0], 12
    %203 = vst.msk [vmem:[%s202] sm:$0x30] %vm198, %v197
    %s204 = scalar_lea.vmem [#allocation0], 18
    %205 = vst.msk [vmem:[%s204] sm:$0xc0] %vm198, %v197
    %s206 = scalar_lea.vmem %s0, 9
    %v207 = vld [vmem:[%s206] sm:$0x1]
    %s208 = scalar_lea.vmem %s0, 121
    %s209 = smov 6
    %v210 = vld [vmem:[%s208] ss:$-48 sm:%s209]
    %vm211 = vcmask 1042433
    %v212 = vsel %vm211, %v210, %v207
    %s213 = scalar_lea.vmem %s0, 233
    %s214 = smov 24
    %v215 = vld [vmem:[%s213] ss:$-48 sm:%s214]
    %vm216 = vcmask 1044483
    %v217 = vsel %vm216, %v215, %v212
    %s218 = scalar_lea.vmem %s0, 345
    %s219 = smov 96
    %v220 = vld [vmem:[%s218] ss:$-48 sm:%s219]
    %vm221 = vcmask 1046533
    %v222 = vsel %vm221, %v220, %v217
    %s223 = scalar_lea.vmem %s0, 114
    %v224 = vld [vmem:[%s223] sm:$0x80]
    %vm225 = vcmask 1047559
    %v226 = vsel %vm225, %v224, %v222
    %227 = vrot.lane.b32.xlu0 %v226, 72
    %v228 = vpop.permute.xlu0 %227
    %vm229 = vcmask 654912
    %230 = vst.msk [vmem:[#allocation0] sm:$0x3] %vm229, %v228
    %s231 = scalar_lea.vmem [#allocation0], 6
    %232 = vst.msk [vmem:[%s231] sm:$0xc] %vm229, %v228
    %s233 = scalar_lea.vmem [#allocation0], 12
    %234 = vst.msk [vmem:[%s233] sm:$0x30] %vm229, %v228
    %s235 = scalar_lea.vmem [#allocation0], 18
    %236 = vst.msk [vmem:[%s235] sm:$0xc0] %vm229, %v228
    %s237 = scalar_lea.vmem %s0, 8
    %v238 = vld [vmem:[%s237] sm:$0x1]
    %s239 = scalar_lea.vmem %s0, 120
    %s240 = smov 6
    %v241 = vld [vmem:[%s239] ss:$-48 sm:%s240]
    %vm242 = vcmask 1042433
    %v243 = vsel %vm242, %v241, %v238
    %s244 = scalar_lea.vmem %s0, 232
    %s245 = smov 24
    %v246 = vld [vmem:[%s244] ss:$-48 sm:%s245]
    %vm247 = vcmask 1044483
    %v248 = vsel %vm247, %v246, %v243
    %s249 = scalar_lea.vmem %s0, 344
    %s250 = smov 96
    %v251 = vld [vmem:[%s249] ss:$-48 sm:%s250]
    %vm252 = vcmask 1046533
    %v253 = vsel %vm252, %v251, %v248
    %s254 = scalar_lea.vmem %s0, 113
    %v255 = vld [vmem:[%s254] sm:$0x80]
    %vm256 = vcmask 1047559
    %v257 = vsel %vm256, %v255, %v253
    %258 = vrot.lane.b32.xlu0 %v257, 64
    %v259 = vpop.permute.xlu0 %258
    %vm260 = vcmask 589312
    %261 = vst.msk [vmem:[#allocation0] sm:$0x3] %vm260, %v259
    %s262 = scalar_lea.vmem [#allocation0], 6
    %263 = vst.msk [vmem:[%s262] sm:$0xc] %vm260, %v259
    %s264 = scalar_lea.vmem [#allocation0], 12
    %265 = vst.msk [vmem:[%s264] sm:$0x30] %vm260, %v259
    %s266 = scalar_lea.vmem [#allocation0], 18
    %267 = vst.msk [vmem:[%s266] sm:$0xc0] %vm260, %v259
    %s268 = scalar_lea.vmem %s0, 7
    %v269 = vld [vmem:[%s268] sm:$0x1]
    %s270 = scalar_lea.vmem %s0, 119
    %s271 = smov 6
    %v272 = vld [vmem:[%s270] ss:$-48 sm:%s271]
    %vm273 = vcmask 1042433
    %v274 = vsel %vm273, %v272, %v269
    %s275 = scalar_lea.vmem %s0, 231
    %s276 = smov 24
    %v277 = vld [vmem:[%s275] ss:$-48 sm:%s276]
    %vm278 = vcmask 1044483
    %v279 = vsel %vm278, %v277, %v274
    %s280 = scalar_lea.vmem %s0, 343
    %s281 = smov 96
    %v282 = vld [vmem:[%s280] ss:$-48 sm:%s281]
    %vm283 = vcmask 1046533
    %v284 = vsel %vm283, %v282, %v279
    %s285 = scalar_lea.vmem %s0, 112
    %v286 = vld [vmem:[%s285] sm:$0x80]
    %vm287 = vcmask 1047559
    %v288 = vsel %vm287, %v286, %v284
    %289 = vrot.lane.b32.xlu0 %v288, 56
    %v290 = vpop.permute.xlu0 %289
    %vm291 = vcmask 523712
    %292 = vst.msk [vmem:[#allocation0] sm:$0x3] %vm291, %v290
    %s293 = scalar_lea.vmem [#allocation0], 6
    %294 = vst.msk [vmem:[%s293] sm:$0xc] %vm291, %v290
    %s295 = scalar_lea.vmem [#allocation0], 12
    %296 = vst.msk [vmem:[%s295] sm:$0x30] %vm291, %v290
    %s297 = scalar_lea.vmem [#allocation0], 18
    %298 = vst.msk [vmem:[%s297] sm:$0xc0] %vm291, %v290
    %s299 = scalar_lea.vmem %s0, 6
    %v300 = vld [vmem:[%s299] sm:$0x1]
    %s301 = scalar_lea.vmem %s0, 118
    %s302 = smov 6
    %v303 = vld [vmem:[%s301] ss:$-48 sm:%s302]
    %vm304 = vcmask 1042433
    %v305 = vsel %vm304, %v303, %v300
    %s306 = scalar_lea.vmem %s0, 230
    %s307 = smov 24
    %v308 = vld [vmem:[%s306] ss:$-48 sm:%s307]
    %vm309 = vcmask 1044483
    %v310 = vsel %vm309, %v308, %v305
    %s311 = scalar_lea.vmem %s0, 342
    %s312 = smov 96
    %v313 = vld [vmem:[%s311] ss:$-48 sm:%s312]
    %vm314 = vcmask 1046533
    %v315 = vsel %vm314, %v313, %v310
    %s316 = scalar_lea.vmem %s0, 111
    %v317 = vld [vmem:[%s316] sm:$0x80]
    %vm318 = vcmask 1047559
    %v319 = vsel %vm318, %v317, %v315
    %320 = vrot.lane.b32.xlu0 %v319, 48
    %v321 = vpop.permute.xlu0 %320
    %vm322 = vcmask 458112
    %323 = vst.msk [vmem:[#allocation0] sm:$0x3] %vm322, %v321
    %s324 = scalar_lea.vmem [#allocation0], 6
    %325 = vst.msk [vmem:[%s324] sm:$0xc] %vm322, %v321
    %s326 = scalar_lea.vmem [#allocation0], 12
    %327 = vst.msk [vmem:[%s326] sm:$0x30] %vm322, %v321
    %s328 = scalar_lea.vmem [#allocation0], 18
    %329 = vst.msk [vmem:[%s328] sm:$0xc0] %vm322, %v321
    %s330 = scalar_lea.vmem %s0, 5
    %v331 = vld [vmem:[%s330] sm:$0x1]
    %s332 = scalar_lea.vmem %s0, 117
    %s333 = smov 6
    %v334 = vld [vmem:[%s332] ss:$-48 sm:%s333]
    %vm335 = vcmask 1042433
    %v336 = vsel %vm335, %v334, %v331
    %s337 = scalar_lea.vmem %s0, 229
    %s338 = smov 24
    %v339 = vld [vmem:[%s337] ss:$-48 sm:%s338]
    %vm340 = vcmask 1044483
    %v341 = vsel %vm340, %v339, %v336
    %s342 = scalar_lea.vmem %s0, 341
    %s343 = smov 96
    %v344 = vld [vmem:[%s342] ss:$-48 sm:%s343]
    %vm345 = vcmask 1046533
    %v346 = vsel %vm345, %v344, %v341
    %s347 = scalar_lea.vmem %s0, 110
    %v348 = vld [vmem:[%s347] sm:$0x80]
    %vm349 = vcmask 1047559
    %v350 = vsel %vm349, %v348, %v346
    %351 = vrot.lane.b32.xlu0 %v350, 40
    %v352 = vpop.permute.xlu0 %351
    %vm353 = vcmask 392512
    %354 = vst.msk [vmem:[#allocation0] sm:$0x3] %vm353, %v352
    %s355 = scalar_lea.vmem [#allocation0], 6
    %356 = vst.msk [vmem:[%s355] sm:$0xc] %vm353, %v352
    %s357 = scalar_lea.vmem [#allocation0], 12
    %358 = vst.msk [vmem:[%s357] sm:$0x30] %vm353, %v352
    %s359 = scalar_lea.vmem [#allocation0], 18
    %360 = vst.msk [vmem:[%s359] sm:$0xc0] %vm353, %v352
    %s361 = scalar_lea.vmem %s0, 4
    %v362 = vld [vmem:[%s361] sm:$0x1]
    %s363 = scalar_lea.vmem %s0, 116
    %s364 = smov 6
    %v365 = vld [vmem:[%s363] ss:$-48 sm:%s364]
    %vm366 = vcmask 1042433
    %v367 = vsel %vm366, %v365, %v362
    %s368 = scalar_lea.vmem %s0, 228
    %s369 = smov 24
    %v370 = vld [vmem:[%s368] ss:$-48 sm:%s369]
    %vm371 = vcmask 1044483
    %v372 = vsel %vm371, %v370, %v367
    %s373 = scalar_lea.vmem %s0, 340
    %s374 = smov 96
    %v375 = vld [vmem:[%s373] ss:$-48 sm:%s374]
    %vm376 = vcmask 1046533
    %v377 = vsel %vm376, %v375, %v372
    %s378 = scalar_lea.vmem %s0, 109
    %v379 = vld [vmem:[%s378] sm:$0x80]
    %vm380 = vcmask 1047559
    %v381 = vsel %vm380, %v379, %v377
    %382 = vrot.lane.b32.xlu0 %v381, 32
    %v383 = vpop.permute.xlu0 %382
    %vm384 = vcmask 326912
    %385 = vst.msk [vmem:[#allocation0] sm:$0x3] %vm384, %v383
    %s386 = scalar_lea.vmem [#allocation0], 6
    %387 = vst.msk [vmem:[%s386] sm:$0xc] %vm384, %v383
    %s388 = scalar_lea.vmem [#allocation0], 12
    %389 = vst.msk [vmem:[%s388] sm:$0x30] %vm384, %v383
    %s390 = scalar_lea.vmem [#allocation0], 18
    %391 = vst.msk [vmem:[%s390] sm:$0xc0] %vm384, %v383
    %s392 = scalar_lea.vmem %s0, 3
    %v393 = vld [vmem:[%s392] sm:$0x1]
    %s394 = scalar_lea.vmem %s0, 115
    %s395 = smov 6
    %v396 = vld [vmem:[%s394] ss:$-48 sm:%s395]
    %vm397 = vcmask 1042433
    %v398 = vsel %vm397, %v396, %v393
    %s399 = scalar_lea.vmem %s0, 227
    %s400 = smov 24
    %v401 = vld [vmem:[%s399] ss:$-48 sm:%s400]
    %vm402 = vcmask 1044483
    %v403 = vsel %vm402, %v401, %v398
    %s404 = scalar_lea.vmem %s0, 339
    %s405 = smov 96
    %v406 = vld [vmem:[%s404] ss:$-48 sm:%s405]
    %vm407 = vcmask 1046533
    %v408 = vsel %vm407, %v406, %v403
    %s409 = scalar_lea.vmem %s0, 108
    %v410 = vld [vmem:[%s409] sm:$0x80]
    %vm411 = vcmask 1047559
    %v412 = vsel %vm411, %v410, %v408
    %413 = vrot.lane.b32.xlu0 %v412, 24
    %v414 = vpop.permute.xlu0 %413
    %vm415 = vcmask 261312
    %416 = vst.msk [vmem:[#allocation0] sm:$0x3] %vm415, %v414
    %s417 = scalar_lea.vmem [#allocation0], 6
    %418 = vst.msk [vmem:[%s417] sm:$0xc] %vm415, %v414
    %s419 = scalar_lea.vmem [#allocation0], 12
    %420 = vst.msk [vmem:[%s419] sm:$0x30] %vm415, %v414
    %s421 = scalar_lea.vmem [#allocation0], 18
    %422 = vst.msk [vmem:[%s421] sm:$0xc0] %vm415, %v414
    %s423 = scalar_lea.vmem %s0, 2
    %v424 = vld [vmem:[%s423] sm:$0x1]
    %s425 = scalar_lea.vmem %s0, 114
    %s426 = smov 6
    %v427 = vld [vmem:[%s425] ss:$-48 sm:%s426]
    %vm428 = vcmask 1042433
    %v429 = vsel %vm428, %v427, %v424
    %s430 = scalar_lea.vmem %s0, 226
    %s431 = smov 24
    %v432 = vld [vmem:[%s430] ss:$-48 sm:%s431]
    %vm433 = vcmask 1044483
    %v434 = vsel %vm433, %v432, %v429
    %s435 = scalar_lea.vmem %s0, 338
    %s436 = smov 96
    %v437 = vld [vmem:[%s435] ss:$-48 sm:%s436]
    %vm438 = vcmask 1046533
    %v439 = vsel %vm438, %v437, %v434
    %s440 = scalar_lea.vmem %s0, 107
    %v441 = vld [vmem:[%s440] sm:$0x80]
    %vm442 = vcmask 1047559
    %v443 = vsel %vm442, %v441, %v439
    %444 = vrot.lane.b32.xlu0 %v443, 16
    %v445 = vpop.permute.xlu0 %444
    %vm446 = vcmask 195712
    %447 = vst.msk [vmem:[#allocation0] sm:$0x3] %vm446, %v445
    %s448 = scalar_lea.vmem [#allocation0], 6
    %449 = vst.msk [vmem:[%s448] sm:$0xc] %vm446, %v445
    %s450 = scalar_lea.vmem [#allocation0], 12
    %451 = vst.msk [vmem:[%s450] sm:$0x30] %vm446, %v445
    %s452 = scalar_lea.vmem [#allocation0], 18
    %453 = vst.msk [vmem:[%s452] sm:$0xc0] %vm446, %v445
    %s454 = scalar_lea.vmem %s0, 1
    %v455 = vld [vmem:[%s454] sm:$0x1]
    %s456 = scalar_lea.vmem %s0, 113
    %s457 = smov 6
    %v458 = vld [vmem:[%s456] ss:$-48 sm:%s457]
    %vm459 = vcmask 1042433
    %v460 = vsel %vm459, %v458, %v455
    %s461 = scalar_lea.vmem %s0, 225
    %s462 = smov 24
    %v463 = vld [vmem:[%s461] ss:$-48 sm:%s462]
    %vm464 = vcmask 1044483
    %v465 = vsel %vm464, %v463, %v460
    %s466 = scalar_lea.vmem %s0, 337
    %s467 = smov 96
    %v468 = vld [vmem:[%s466] ss:$-48 sm:%s467]
    %vm469 = vcmask 1046533
    %v470 = vsel %vm469, %v468, %v465
    %s471 = scalar_lea.vmem %s0, 106
    %v472 = vld [vmem:[%s471] sm:$0x80]
    %vm473 = vcmask 1047559
    %v474 = vsel %vm473, %v472, %v470
    %475 = vrot.lane.b32.xlu0 %v474, 8
    %v476 = vpop.permute.xlu0 %475
    %vm477 = vcmask 130112
    %478 = vst.msk [vmem:[#allocation0] sm:$0x3] %vm477, %v476
    %s479 = scalar_lea.vmem [#allocation0], 6
    %480 = vst.msk [vmem:[%s479] sm:$0xc] %vm477, %v476
    %s481 = scalar_lea.vmem [#allocation0], 12
    %482 = vst.msk [vmem:[%s481] sm:$0x30] %vm477, %v476
    %s483 = scalar_lea.vmem [#allocation0], 18
    %484 = vst.msk [vmem:[%s483] sm:$0xc0] %vm477, %v476
    %s486 = sshll.u32 1, 2
    %s487 = ssub.s32 %s486, 1
    %v489 = vld [vmem:[#allocation0] sm:%s487]
    %s490 = sshll.u32 1, 2
    %s491 = ssub.s32 %s490, 1
    %492 = vst [vmem:[%s1] sm:%s491] %v489
    %s493 = scalar_lea.vmem [#allocation0], 8
    %v494 = vld [vmem:[%s493] sm:%s487]
    %s495 = sshll.u32 1, 2
    %s496 = ssub.s32 %s495, 1
    %s497 = scalar_lea.vmem %s1, 2
    %498 = vst [vmem:[%s497] sm:%s496] %v494
    %s499 = scalar_lea.vmem [#allocation0], 16
    %v500 = vld [vmem:[%s499] sm:%s487]
    %s501 = sshll.u32 1, 2
    %s502 = ssub.s32 %s501, 1
    %s503 = smul.addr 2, 2
    %s504 = scalar_lea.vmem %s1, %s503
    %505 = vst [vmem:[%s504] sm:%s502] %v500
    %s506 = scalar_lea.vmem [#allocation0], 24
    %v507 = vld [vmem:[%s506] sm:%s487]
    %s508 = sshll.u32 1, 2
    %s509 = ssub.s32 %s508, 1
    %s510 = smul.addr 2, 3
    %s511 = scalar_lea.vmem %s1, %s510
    %512 = vst [vmem:[%s511] sm:%s509] %v507

// kernel: forward.54
$region0: #{forward.54}
  #allocation0 [shape = 'u32[]', space=smem, size = 0x4, offset = 0x4, fixed_abs, tag = 'smem constant byte address 0x4 - core index']
  #allocation1 [shape = 'u32[144,128]{1,0:T(1,128)}', space=vmem, size = 0x12000, scoped, tag = 'internal scratch']
  %s0 = inlined_call_operand.vmem [shape: bf16[24,72], index: 0, kind: input, shape index: {}]
  %s1 = inlined_call_operand.vmem [shape: bf16[72,128], index: 1, kind: input, shape index: {}]
  %s2 = inlined_call_operand.vmem [shape: f32[24,1], index: 2, kind: input, shape index: {}]
  %s3 = inlined_call_operand.vmem [shape: f32[24,128], index: 3, kind: output, shape index: {}]
  %s4 = sld [smem:[#allocation0]]
  $region22: #{forward.54} parent=0
    _
  %s6 = ssub.s32 1, %s4
  %s7 = scalar_select 0, %s6, %s4
  // Predicated region
  $region2: #{forward.54} parent=0 // pred_check
    _
  $region3: #{forward.54} parent=0 // pred_check_branch
    %9 = sbr.rel (0) target = $region5
  $region4: #{forward.54} parent=0 // pred_region
    _
  $region5: #{forward.54} parent=0 // pred_fallthru
    _
  // Predicated region
  $region6: #{forward.54} parent=0 // pred_check
    _
  $region7: #{forward.54} parent=0 // pred_check_branch
    %11 = sbr.rel (0) target = $region9
  $region8: #{forward.54} parent=0 // pred_region
    _
  $region9: #{forward.54} parent=0 // pred_fallthru
    _
  // Predicated region
  $region10: #{forward.54} parent=0 // pred_check
    _
  $region11: #{forward.54} parent=0 // pred_check_branch
    %13 = sbr.rel (0) target = $region13
  $region12: #{forward.54} parent=0 // pred_region
    _
  $region13: #{forward.54} parent=0 // pred_fallthru
    _
  %v15 = vld [vmem:[%s0] sm:$0xf]
  %v16 = vld [vmem:[%s0 + $0x4] sm:$0xf]
  %v17 = vld [vmem:[%s0 + $0x8] sm:$0xf]
  %v18 = vld [vmem:[%s1] sm:$0xf]
  %v19 = vld [vmem:[%s1 + $0x4] sm:$0xf]
  %v20 = vld [vmem:[%s1 + $0x8] sm:$0xf]
  %v21 = vld [vmem:[%s1 + $0xc] sm:$0xf]
  %v22 = vld [vmem:[%s1 + $0x10] sm:$0xf]
  %v23 = vld [vmem:[%s1 + $0x14] sm:$0xf]
  %v24 = vld [vmem:[%s1 + $0x18] sm:$0xf]
  %v25 = vld [vmem:[%s1 + $0x1c] sm:$0xf]
  %v26 = vld [vmem:[%s1 + $0x20] sm:$0xf]
  %v27 = vld [vmem:[%s2] sm:$0xff]
  %v28 = vld [vmem:[%s2 + $0x8] sm:$0xff]
  %v29 = vld [vmem:[%s2 + $0x10] sm:$0xff]
  %31 = vset.pattern.permute.xlu0 0
  %32 = vperm.xlu0 %31, %v27
  %v33 = vpop.permute.xlu0 %32
  %36 = vset.pattern.permute.xlu0 0
  %37 = vperm.xlu0 %36, %v28
  %v38 = vpop.permute.xlu0 %37
  %41 = vset.pattern.permute.xlu0 0
  %42 = vperm.xlu0 %41, %v29
  %v43 = vpop.permute.xlu0 %42
  %v48 = vunpack.c.l.b16 %v15
  %v49 = vunpack.c.l.b16 %v16
  %v50 = vunpack.c.l.b16 %v17
  %v51 = vpack.c.b16 %v49, %v48
  %v52 = vpack.c.b16 %v50, %v50
  %v62 = vunpack.c.l.b16 %v18
  %v63 = vunpack.c.l.b16 %v19
  %v64 = vunpack.c.l.b16 %v20
  %v65 = vunpack.c.l.b16 %v21
  %v66 = vunpack.c.l.b16 %v22
  %v67 = vunpack.c.l.b16 %v23
  %v68 = vunpack.c.l.b16 %v24
  %v69 = vunpack.c.l.b16 %v25
  %v70 = vunpack.c.l.b16 %v26
  %v71 = vpack.c.b16 %v63, %v62
  %v72 = vpack.c.b16 %v65, %v64
  %v73 = vpack.c.b16 %v67, %v66
  %v74 = vpack.c.b16 %v69, %v68
  %v75 = vpack.c.b16 %v70, %v70
  %vm80 = vcmask 588800
  %v82 = vsel %vm80, %v51, 0
  %v85 = vsel %vm80, %v52, 0
  %vm87 = vcmask 1043456
  %v89 = vsel %vm87, %v75, 0
  %91 = vmatprep.subr.bf16.mxu0 0
  %92 = vmatpush1.bf16.msra.mxu0 0
  %93 = vmatprep.subr.bf16.mxu0 0
  %94 = vmatpush1.bf16.msra.mxu0 0
  %95 = vmatprep.subr.bf16.mxu0 0
  %96 = vmatpush1.bf16.msra.mxu0 0
  %97 = vmatprep.subr.bf16.mxu0 0
  %98 = vmatpush1.bf16.msra.mxu0 %v89
  %99 = vmatprep.subr.bf16.mxu0 0
  %100 = vmatpush1.bf16.msra.mxu0 %v74
  %101 = vmatprep.subr.bf16.mxu0 0
  %102 = vmatpush1.bf16.msra.mxu0 %v73
  %103 = vmatprep.subr.bf16.mxu0 0
  %104 = vmatpush1.bf16.msra.mxu0 %v72
  %105 = vmatprep.subr.bf16.mxu0 0
  %106 = vmatpush1.bf16.msra.mxu0 %v71
  %107 = vmatprep.subr.bf16.mxu0 0
  %108 = vmatpush2.bf16.msra.mxu0 0
  %109 = vmatprep.subr.bf16.mxu0 0
  %110 = vmatpush2.bf16.msra.mxu0 0
  %111 = vmatprep.subr.bf16.mxu0 0
  %112 = vmatpush2.bf16.msra.mxu0 0
  %113 = vmatprep.subr.bf16.mxu0 0
  %114 = vmatpush2.bf16.msra.mxu0 0
  %115 = vmatprep.subr.bf16.mxu0 0
  %116 = vmatpush2.bf16.msra.mxu0 0
  %117 = vmatprep.subr.bf16.mxu0 0
  %118 = vmatpush2.bf16.msra.mxu0 0
  %119 = vmatprep.subr.bf16.mxu0 0
  %120 = vmatpush2.bf16.msra.mxu0 0
  %121 = vmatprep.subr.bf16.mxu0 0
  %122 = vmatpush2.bf16.msra.mxu0 0
  %123 = vmatprep.mubr.bf16.mxu0 0
  %124 = vmatmul.mubr.bf16.gmra.mxu0 %v82
  %v125 = vpop.f32.mrf.mxu0
  %v126 = vadd.f32 %v33, %v125
  %v127 = vpop.f32.mrf.mxu0
  %v128 = vpop.f32.mrf.mxu0
  %v129 = vadd.f32 %v38, %v128
  %v130 = vpop.f32.mrf.mxu0
  %131 = vmatprep.mubr.bf16.mxu0 0
  %132 = vmatmul.mubr.bf16.gmra.mxu0 %v85
  %v133 = vpop.f32.mrf.mxu0
  %v134 = vadd.f32 %v43, %v133
  %v135 = vpop.f32.mrf.mxu0
  %v136 = vpop.f32.mrf.mxu0
  %v137 = vpop.f32.mrf.mxu0
  %138 = vdwg.mxu0
  %139 = vst [vmem:[%s3] sm:$0xff] %v126
  %140 = vst [vmem:[%s3 + $0x8] sm:$0xff] %v129
  %141 = vst [vmem:[%s3 + $0x10] sm:$0xff] %v134
  // Predicated region
  $region14: #{forward.54} parent=0 // pred_check
    _
  $region15: #{forward.54} parent=0 // pred_check_branch
    %143 = sbr.rel (0) target = $region17
  $region16: #{forward.54} parent=0 // pred_region
    _
  $region17: #{forward.54} parent=0 // pred_fallthru
    _
  // Predicated region
  $region18: #{forward.54} parent=0 // pred_check
    _
  $region19: #{forward.54} parent=0 // pred_check_branch
    %145 = sbr.rel (0) target = $region21
  $region20: #{forward.54} parent=0 // pred_region
    _
  $region21: #{forward.54} parent=0 // pred_fallthru
    _

// kernel: forward.61
$region0: #{forward.61}
  #allocation0 [shape = 'u32[]', space=smem, size = 0x4, offset = 0x4, fixed_abs, tag = 'smem constant byte address 0x4 - core index']
  #allocation1 [shape = 'u32[144,128]{1,0:T(1,128)}', space=vmem, size = 0x12000, scoped, tag = 'internal scratch']
  %s0 = inlined_call_operand.vmem [shape: f32[1,1536], index: 0, kind: input, shape index: {}]
  %s1 = inlined_call_operand.vmem [shape: f32[2,1536], index: 1, kind: input, shape index: {}]
  %s2 = inlined_call_operand.vmem [shape: f32[2,1536], index: 2, kind: input, shape index: {}]
  %s3 = inlined_call_operand.vmem [shape: f32[2,1536], index: 3, kind: input, shape index: {}]
  %s4 = inlined_call_operand.vmem [shape: f32[1,1536], index: 4, kind: output, shape index: {}]
  %s5 = sld [smem:[#allocation0]]
  $region49: #{forward.61} parent=0
    _
  %s7 = ssub.s32 1, %s5
  %s8 = scalar_select 0, %s7, %s5
  loop: start=0, step=1, limit=5
  $region2: #{forward.61} parent=0 // loop_pre_header
    _
  $region3: #{forward.61} parent=0 // loop_header
    %s10 = sphi 0, %s14
    %p11 = scmp.ge.s32.totalorder %s10, 5
    %s20 = sphi 0, %s22
    %s23 = sphi 0, %s20
    %s24 = sphi 0, %s23
    %s40 = sphi 0, %s24
    %s46 = sphi 0, %s48
    %s49 = sphi 0, %s46
    %s50 = sphi 0, %s49
    %s66 = sphi 0, %s50
    %s72 = sphi 0, %s74
    %s75 = sphi 0, %s72
    %s76 = sphi 0, %s75
    %s92 = sphi 0, %s76
    %s98 = sphi 0, %s100
    %s101 = sphi 0, %s98
    %s102 = sphi 0, %s101
    %s118 = sphi 0, %s102
    %s124 = sphi 0, %s126
    %s127 = sphi 0, %s124
    %s128 = sphi 0, %s127
    %s144 = sphi 0, %s128
  $region4: #{forward.61} parent=0 // loop_header_branch
    %13 = sbr.rel (%p11) target = $region8
  $region5: #{forward.61} parent=0 // loop_body
    %s15 = ssub.s32 %s10, 1
    %s16 = ssub.s32 %s10, 2
    %s17 = sadd.s32 %s10, 1
    %s18 = ssub.s32 %s10, %s17
    %p19 = scmp.eq.s32.totalorder %s18, 0
    %s21 = sadd.s32 %s20, 1
    %s22 = scalar_select %p19, %s20, %s21
    %p25 = pneg %p19
    %p26 = scmp.eq.s32.totalorder %s10, 2
    %p27 = por %p25, %p26
    %p28 = scmp.ne.s32.totalorder %s20, %s23
    %p29 = scmp.eq.s32.totalorder %s10, 0
    %p30 = por %p28, %p29
    %p31 = scmp.ne.s32.totalorder %s20, %s23
    %p32 = scmp.eq.s32.totalorder %s15, 2
    %p33 = por %p31, %p32
    %p34 = scmp.ne.s32.totalorder %s23, %s24
    %p35 = scmp.eq.s32.totalorder %s15, 0
    %p36 = por %p34, %p35
    %p37 = scmp.ne.s32.totalorder %s23, %s24
    %p38 = scmp.eq.s32.totalorder %s16, 2
    %p39 = por %p37, %p38
    %p41 = scmp.ne.s32.totalorder %s24, %s40
    %p42 = scmp.eq.s32.totalorder %s16, 0
    %p43 = por %p41, %p42
    %s44 = ssub.s32 %s10, %s17
    %p45 = scmp.eq.s32.totalorder %s44, 0
    %s47 = sadd.s32 %s46, 1
    %s48 = scalar_select %p45, %s46, %s47
    %p51 = pneg %p45
    %p52 = scmp.eq.s32.totalorder %s10, 2
    %p53 = por %p51, %p52
    %p54 = scmp.ne.s32.totalorder %s46, %s49
    %p55 = scmp.eq.s32.totalorder %s10, 0
    %p56 = por %p54, %p55
    %p57 = scmp.ne.s32.totalorder %s46, %s49
    %p58 = scmp.eq.s32.totalorder %s15, 2
    %p59 = por %p57, %p58
    %p60 = scmp.ne.s32.totalorder %s49, %s50
    %p61 = scmp.eq.s32.totalorder %s15, 0
    %p62 = por %p60, %p61
    %p63 = scmp.ne.s32.totalorder %s49, %s50
    %p64 = scmp.eq.s32.totalorder %s16, 2
    %p65 = por %p63, %p64
    %p67 = scmp.ne.s32.totalorder %s50, %s66
    %p68 = scmp.eq.s32.totalorder %s16, 0
    %p69 = por %p67, %p68
    %s70 = ssub.s32 %s10, %s17
    %p71 = scmp.eq.s32.totalorder %s70, 0
    %s73 = sadd.s32 %s72, 1
    %s74 = scalar_select %p71, %s72, %s73
    %p77 = pneg %p71
    %p78 = scmp.eq.s32.totalorder %s10, 2
    %p79 = por %p77, %p78
    %p80 = scmp.ne.s32.totalorder %s72, %s75
    %p81 = scmp.eq.s32.totalorder %s10, 0
    %p82 = por %p80, %p81
    %p83 = scmp.ne.s32.totalorder %s72, %s75
    %p84 = scmp.eq.s32.totalorder %s15, 2
    %p85 = por %p83, %p84
    %p86 = scmp.ne.s32.totalorder %s75, %s76
    %p87 = scmp.eq.s32.totalorder %s15, 0
    %p88 = por %p86, %p87
    %p89 = scmp.ne.s32.totalorder %s75, %s76
    %p90 = scmp.eq.s32.totalorder %s16, 2
    %p91 = por %p89, %p90
    %p93 = scmp.ne.s32.totalorder %s76, %s92
    %p94 = scmp.eq.s32.totalorder %s16, 0
    %p95 = por %p93, %p94
    %s96 = ssub.s32 %s10, %s17
    %p97 = scmp.eq.s32.totalorder %s96, 0
    %s99 = sadd.s32 %s98, 1
    %s100 = scalar_select %p97, %s98, %s99
    %p103 = pneg %p97
    %p104 = scmp.eq.s32.totalorder %s10, 2
    %p105 = por %p103, %p104
    %p106 = scmp.ne.s32.totalorder %s98, %s101
    %p107 = scmp.eq.s32.totalorder %s10, 0
    %p108 = por %p106, %p107
    %p109 = scmp.ne.s32.totalorder %s98, %s101
    %p110 = scmp.eq.s32.totalorder %s15, 2
    %p111 = por %p109, %p110
    %p112 = scmp.ne.s32.totalorder %s101, %s102
    %p113 = scmp.eq.s32.totalorder %s15, 0
    %p114 = por %p112, %p113
    %p115 = scmp.ne.s32.totalorder %s101, %s102
    %p116 = scmp.eq.s32.totalorder %s16, 2
    %p117 = por %p115, %p116
    %p119 = scmp.ne.s32.totalorder %s102, %s118
    %p120 = scmp.eq.s32.totalorder %s16, 0
    %p121 = por %p119, %p120
    %s122 = ssub.s32 %s10, %s17
    %p123 = scmp.eq.s32.totalorder %s122, 0
    %s125 = sadd.s32 %s124, 1
    %s126 = scalar_select %p123, %s124, %s125
    %p129 = pneg %p123
    %p130 = scmp.eq.s32.totalorder %s10, 2
    %p131 = por %p129, %p130
    %p132 = scmp.ne.s32.totalorder %s124, %s127
    %p133 = scmp.eq.s32.totalorder %s10, 0
    %p134 = por %p132, %p133
    %p135 = scmp.ne.s32.totalorder %s124, %s127
    %p136 = scmp.eq.s32.totalorder %s15, 2
    %p137 = por %p135, %p136
    %p138 = scmp.ne.s32.totalorder %s127, %s128
    %p139 = scmp.eq.s32.totalorder %s15, 0
    %p140 = por %p138, %p139
    %p141 = scmp.ne.s32.totalorder %s127, %s128
    %p142 = scmp.eq.s32.totalorder %s16, 2
    %p143 = por %p141, %p142
    %p145 = scmp.ne.s32.totalorder %s128, %s144
    %p146 = scmp.eq.s32.totalorder %s16, 0
    %p147 = por %p145, %p146
    %p148 = scmp.le.s32.totalorder 1, %s10
    %p149 = scmp.lt.s32.totalorder %s10, 4
    %p150 = pnand %p148, %p149
    %p151 = pneg %p150
    // Predicated region
    $region9: #{forward.61} parent=5 // pred_check
      _
    $region10: #{forward.61} parent=5 // pred_check_branch
      %153 = sbr.rel (%p150) target = $region12
    $region11: #{forward.61} parent=5 // pred_region
      %s154 = ssub.s32 %s10, 1
    $region12: #{forward.61} parent=5 // pred_fallthru
      _
    %p155 = scmp.lt.s32.totalorder %s10, 3
    // Predicated region
    $region13: #{forward.61} parent=5 // pred_check
      %p156 = pneg %p155
    $region14: #{forward.61} parent=5 // pred_check_branch
      %158 = sbr.rel (%p156) target = $region16
    $region15: #{forward.61} parent=5 // pred_region
      // Predicated region
      $region17: #{forward.61} parent=15 // pred_check
        %p159 = pneg %p30
      $region18: #{forward.61} parent=15 // pred_check_branch
        %161 = sbr.rel (%p159) target = $region20
      $region19: #{forward.61} parent=15 // pred_region
        %s162 = smul.u32 4, %s10
        %p163 = scmp.lt.s32.totalorder %s162, 11
        %s164 = scalar_select %p163, %s162, 11
        %s165 = scalar_lea.vmem %s0, %s164
        %s166 = smul.u32 4, %s10
      $region20: #{forward.61} parent=15 // pred_fallthru
        _
      // Predicated region
      $region21: #{forward.61} parent=15 // pred_check
        %p167 = pneg %p56
      $region22: #{forward.61} parent=15 // pred_check_branch
        %169 = sbr.rel (%p167) target = $region24
      $region23: #{forward.61} parent=15 // pred_region
        %s170 = smul.u32 4, %s10
        %p171 = scmp.lt.s32.totalorder %s170, 11
        %s172 = scalar_select %p171, %s170, 11
        %s173 = smul.addr %s172, 2
        %s174 = scalar_lea.vmem %s1, %s173
        %s175 = smul.u32 4, %s10
      $region24: #{forward.61} parent=15 // pred_fallthru
        _
      // Predicated region
      $region25: #{forward.61} parent=15 // pred_check
        %p176 = pneg %p82
      $region26: #{forward.61} parent=15 // pred_check_branch
        %178 = sbr.rel (%p176) target = $region28
      $region27: #{forward.61} parent=15 // pred_region
        %s179 = smul.u32 4, %s10
        %p180 = scmp.lt.s32.totalorder %s179, 11
        %s181 = scalar_select %p180, %s179, 11
        %s182 = smul.addr %s181, 2
        %s183 = scalar_lea.vmem %s2, %s182
        %s184 = smul.u32 4, %s10
      $region28: #{forward.61} parent=15 // pred_fallthru
        _
      // Predicated region
      $region29: #{forward.61} parent=15 // pred_check
        %p185 = pneg %p108
      $region30: #{forward.61} parent=15 // pred_check_branch
        %187 = sbr.rel (%p185) target = $region32
      $region31: #{forward.61} parent=15 // pred_region
        %s188 = smul.u32 4, %s10
        %p189 = scmp.lt.s32.totalorder %s188, 11
        %s190 = scalar_select %p189, %s188, 11
        %s191 = smul.addr %s190, 2
        %s192 = scalar_lea.vmem %s3, %s191
        %s193 = smul.u32 4, %s10
      $region32: #{forward.61} parent=15 // pred_fallthru
        _
    $region16: #{forward.61} parent=5 // pred_fallthru
      _
    %p194 = scmp.le.s32.totalorder 1, %s10
    %p195 = scmp.lt.s32.totalorder %s10, 4
    %p196 = pnand %p194, %p195
    %p197 = pneg %p196
    // Predicated region
    $region33: #{forward.61} parent=5 // pred_check
      _
    $region34: #{forward.61} parent=5 // pred_check_branch
      %199 = sbr.rel (%p196) target = $region36
    $region35: #{forward.61} parent=5 // pred_region
      %s200 = ssub.s32 %s10, 1
      %s201 = smul.u32 4, %s15
      %p202 = scmp.lt.s32.totalorder %s201, 11
      %s203 = scalar_select %p202, %s201, 11
      %s204 = scalar_lea.vmem %s0, %s203
      %p205 = pneg %p36
      %p206 = pneg %p33
      %s207 = smul.u32 4, %s15
      %p208 = scmp.lt.s32.totalorder %s207, 11
      %s209 = scalar_select %p208, %s207, 11
      %s210 = smul.addr %s209, 2
      %s211 = scalar_lea.vmem %s1, %s210
      %p212 = pneg %p62
      %p213 = pneg %p59
      %s214 = smul.u32 4, %s15
      %p215 = scmp.lt.s32.totalorder %s214, 11
      %s216 = scalar_select %p215, %s214, 11
      %s217 = smul.addr %s216, 2
      %s218 = scalar_lea.vmem %s2, %s217
      %p219 = pneg %p88
      %p220 = pneg %p85
      %s221 = smul.u32 4, %s15
      %p222 = scmp.lt.s32.totalorder %s221, 11
      %s223 = scalar_select %p222, %s221, 11
      %s224 = smul.addr %s223, 2
      %s225 = scalar_lea.vmem %s3, %s224
      %p226 = pneg %p114
      %p227 = pneg %p111
      %p228 = pneg %p140
      %p229 = pneg %p137
      %s230 = smul.u32 4, %s15
      %p231 = scmp.lt.s32.totalorder %s230, 11
      %s232 = scalar_select %p231, %s230, 11
      %s233 = scalar_lea.vmem %s4, %s232
      %s234 = smul.u32 4, %s15
      %p235 = scmp.lt.s32.totalorder %s234, 11
      %s236 = scalar_select %p235, %s234, 11
      %s237 = scalar_lea.vmem %s0, %s236
      %s238 = smul.u32 4, %s15
      %s239 = smul.u32 4, %s15
      %p240 = scmp.lt.s32.totalorder %s239, 11
      %s241 = scalar_select %p240, %s239, 11
      %s242 = smul.addr %s241, 2
      %s243 = scalar_lea.vmem %s1, %s242
      %s244 = smul.u32 4, %s15
      %s245 = smul.u32 4, %s15
      %p246 = scmp.lt.s32.totalorder %s245, 11
      %s247 = scalar_select %p246, %s245, 11
      %s248 = smul.addr %s247, 2
      %s249 = scalar_lea.vmem %s2, %s248
      %s250 = smul.u32 4, %s15
      %s251 = smul.u32 4, %s15
      %p252 = scmp.lt.s32.totalorder %s251, 11
      %s253 = scalar_select %p252, %s251, 11
      %s254 = smul.addr %s253, 2
      %s255 = scalar_lea.vmem %s3, %s254
      %s256 = smul.u32 4, %s15
      %s257 = smul.u32 4, %s15
      %p258 = scmp.lt.s32.totalorder %s257, 11
      %s259 = scalar_select %p258, %s257, 11
      %s260 = scalar_lea.vmem %s4, %s259
      %s261 = smul.u32 4, %s15
      %v262 = vld [vmem:[%s237] sm:$0xf]
      %v263 = vld [vmem:[%s243] sm:$0xff]
      %v264 = vld [vmem:[%s249] sm:$0xff]
      %v265 = vmax.f32 %v264, -7.0
      %v266 = vld [vmem:[%s255] sm:$0xff]
      %v268 = vcombine.high %v266, %v266
      %v270 = vunpack.c.l.s4 1983009808
      %v271 = vunpack.c.0.s8 %v270
      %v272 = vlaneseq
      %v273 = vshrl.u32 %v272, 7
      %v274 = vsub.s32 %v271, %v273
      %v275 = vrot.slane %v266, %v274
      %v277 = vunpack.c.l.s4 1983009808
      %v278 = vunpack.c.0.s8 %v277
      %v279 = vlaneseq
      %v280 = vshrl.u32 %v279, 7
      %v281 = vsub.s32 %v278, %v280
      %v282 = vrot.slane %v268, %v281
      %v283 = vcombine.high %v275, %v275
      %v284 = vcombine.high %v282, %v282
      %vm289 = vcmask 1041408
      %v290 = vsel %vm289, %v275, -inf
      %v291 = vrot.slane %v290, 4
      %v292 = vmax.f32 %v290, %v291
      %v293 = vrot.slane %v292, 2
      %v294 = vmax.f32 %v292, %v293
      %v295 = vrot.slane %v294, 1
      %v296 = vmax.f32 %v294, %v295
      %v297 = vsel %vm289, %v283, -inf
      %v298 = vrot.slane %v297, 4
      %v299 = vmax.f32 %v297, %v298
      %v300 = vrot.slane %v299, 2
      %v301 = vmax.f32 %v299, %v300
      %v302 = vrot.slane %v301, 1
      %v303 = vmax.f32 %v301, %v302
      %v304 = vsel %vm289, %v282, -inf
      %v305 = vrot.slane %v304, 4
      %v306 = vmax.f32 %v304, %v305
      %v307 = vrot.slane %v306, 2
      %v308 = vmax.f32 %v306, %v307
      %v309 = vrot.slane %v308, 1
      %v310 = vmax.f32 %v308, %v309
      %v311 = vsel %vm289, %v284, -inf
      %v312 = vrot.slane %v311, 4
      %v313 = vmax.f32 %v311, %v312
      %v314 = vrot.slane %v313, 2
      %v315 = vmax.f32 %v313, %v314
      %v316 = vrot.slane %v315, 1
      %v317 = vmax.f32 %v315, %v316
      %v322 = vcombine.low %v296, %v303
      %v323 = vcombine.low %v310, %v317
      %v325 = vunpack.c.l.s4 1983009808
      %v326 = vunpack.c.0.s8 %v325
      %v327 = vlaneseq
      %v328 = vshrl.u32 %v327, 7
      %v329 = vsub.s32 %v326, %v328
      %v330 = vrot.slane %v322, %v329
      %v332 = vunpack.c.l.s4 1983009808
      %v333 = vunpack.c.0.s8 %v332
      %v334 = vlaneseq
      %v335 = vshrl.u32 %v334, 7
      %v336 = vsub.s32 %v333, %v335
      %v337 = vrot.slane %v323, %v336
      %v338 = vcombine.low %v330, %v337
      %v340 = vsub.f32 %v266, %v338
      %v341 = vmul.f32 %v340, 1.442695
      %v342 = vpow.pop %v341
      %v343 = vsub.f32 0.0, %v265
      %v344 = vmul.f32 %v343, 1.442695
      %v345 = vpow.pop %v344
      %v346 = vadd.f32 %v262, 0.5
      %v348 = vlaneseq
      %v349 = vshrl.u32 %v348, 7
      %v350 = vsub.s32 0, %v349
      %v351 = vrot.slane %v346, %v350
      %v352 = vlaneseq
      %v353 = vshrl.u32 %v352, 7
      %v354 = vsub.s32 1, %v353
      %v355 = vrot.slane %v346, %v354
      %v356 = vlaneseq
      %v357 = vshrl.u32 %v356, 7
      %v358 = vsub.s32 2, %v357
      %v359 = vrot.slane %v346, %v358
      %v360 = vlaneseq
      %v361 = vshrl.u32 %v360, 7
      %v362 = vsub.s32 3, %v361
      %v363 = vrot.slane %v346, %v362
      %v369 = vcombine.high %v263, %v263
      %v371 = vunpack.c.l.s4 1983009808
      %v372 = vunpack.c.0.s8 %v371
      %v373 = vlaneseq
      %v374 = vshrl.u32 %v373, 7
      %v375 = vsub.s32 %v372, %v374
      %v376 = vrot.slane %v263, %v375
      %v378 = vunpack.c.l.s4 1983009808
      %v379 = vunpack.c.0.s8 %v378
      %v380 = vlaneseq
      %v381 = vshrl.u32 %v380, 7
      %v382 = vsub.s32 %v379, %v381
      %v383 = vrot.slane %v369, %v382
      %v384 = vcombine.high %v376, %v376
      %v385 = vcombine.high %v383, %v383
      %v390 = vsub.f32 %v351, %v376
      %v391 = vsub.f32 %v355, %v384
      %v392 = vsub.f32 %v359, %v383
      %v393 = vsub.f32 %v363, %v385
      %v395 = vcombine.high %v345, %v345
      %v397 = vunpack.c.l.s4 1983009808
      %v398 = vunpack.c.0.s8 %v397
      %v399 = vlaneseq
      %v400 = vshrl.u32 %v399, 7
      %v401 = vsub.s32 %v398, %v400
      %v402 = vrot.slane %v345, %v401
      %v404 = vunpack.c.l.s4 1983009808
      %v405 = vunpack.c.0.s8 %v404
      %v406 = vlaneseq
      %v407 = vshrl.u32 %v406, 7
      %v408 = vsub.s32 %v405, %v407
      %v409 = vrot.slane %v395, %v408
      %v410 = vcombine.high %v402, %v402
      %v411 = vcombine.high %v409, %v409
      %v416 = vmul.f32 %v390, %v402
      %v417 = vmul.f32 %v391, %v410
      %v418 = vmul.f32 %v392, %v409
      %v419 = vmul.f32 %v393, %v411
      %v420 = vxor.u32 %v416, 2147483648
      %v421 = vxor.u32 %v417, 2147483648
      %v422 = vxor.u32 %v418, 2147483648
      %v423 = vxor.u32 %v419, 2147483648
      %v424 = vmul.f32 %v420, 1.442695
      %v425 = vpow.pop %v424
      %v426 = vmul.f32 %v421, 1.442695
      %v427 = vpow.pop %v426
      %v428 = vmul.f32 %v422, 1.442695
      %v429 = vpow.pop %v428
      %v430 = vmul.f32 %v423, 1.442695
      %v431 = vpow.pop %v430
      %v432 = vadd.f32 %v425, 1.0
      %v433 = vadd.f32 %v427, 1.0
      %v434 = vadd.f32 %v429, 1.0
      %v435 = vadd.f32 %v431, 1.0
      %v436 = vrcp.pop %v432
      %v437 = vmul.f32 1.0, %v436
      %v438 = vrcp.pop %v433
      %v439 = vmul.f32 1.0, %v438
      %v440 = vrcp.pop %v434
      %v441 = vmul.f32 1.0, %v440
      %v442 = vrcp.pop %v435
      %v443 = vmul.f32 1.0, %v442
      %v444 = vsub.f32 %v262, 0.5
      %v446 = vlaneseq
      %v447 = vshrl.u32 %v446, 7
      %v448 = vsub.s32 0, %v447
      %v449 = vrot.slane %v444, %v448
      %v450 = vlaneseq
      %v451 = vshrl.u32 %v450, 7
      %v452 = vsub.s32 1, %v451
      %v453 = vrot.slane %v444, %v452
      %v454 = vlaneseq
      %v455 = vshrl.u32 %v454, 7
      %v456 = vsub.s32 2, %v455
      %v457 = vrot.slane %v444, %v456
      %v458 = vlaneseq
      %v459 = vshrl.u32 %v458, 7
      %v460 = vsub.s32 3, %v459
      %v461 = vrot.slane %v444, %v460
      %v466 = vsub.f32 %v449, %v376
      %v467 = vsub.f32 %v453, %v384
      %v468 = vsub.f32 %v457, %v383
      %v469 = vsub.f32 %v461, %v385
      %v470 = vmul.f32 %v466, %v402
      %v471 = vmul.f32 %v467, %v410
      %v472 = vmul.f32 %v468, %v409
      %v473 = vmul.f32 %v469, %v411
      %v474 = vxor.u32 %v470, 2147483648
      %v475 = vxor.u32 %v471, 2147483648
      %v476 = vxor.u32 %v472, 2147483648
      %v477 = vxor.u32 %v473, 2147483648
      %v478 = vmul.f32 %v474, 1.442695
      %v479 = vpow.pop %v478
      %v480 = vmul.f32 %v475, 1.442695
      %v481 = vpow.pop %v480
      %v482 = vmul.f32 %v476, 1.442695
      %v483 = vpow.pop %v482
      %v484 = vmul.f32 %v477, 1.442695
      %v485 = vpow.pop %v484
      %v486 = vadd.f32 %v479, 1.0
      %v487 = vadd.f32 %v481, 1.0
      %v488 = vadd.f32 %v483, 1.0
      %v489 = vadd.f32 %v485, 1.0
      %v490 = vrcp.pop %v486
      %v491 = vmul.f32 1.0, %v490
      %v492 = vrcp.pop %v487
      %v493 = vmul.f32 1.0, %v492
      %v494 = vrcp.pop %v488
      %v495 = vmul.f32 1.0, %v494
      %v496 = vrcp.pop %v489
      %v497 = vmul.f32 1.0, %v496
      %vm498 = vcmp.le.f32.partialorder %v262, 0.5
      %vm499 = vcmp.ge.f32.partialorder %v262, 254.5
      %v500 = vsub.f32 1.0, %v491
      %v501 = vsub.f32 1.0, %v493
      %v502 = vsub.f32 1.0, %v495
      %v503 = vsub.f32 1.0, %v497
      %v504 = vsub.f32 %v437, %v491
      %v505 = vsub.f32 %v439, %v493
      %v506 = vsub.f32 %v441, %v495
      %v507 = vsub.f32 %v443, %v497
      %v508 = vsel %vm499, 1, 0
      %v509 = vlaneseq
      %v510 = vshrl.u32 %v509, 7
      %v511 = vsub.s32 0, %v510
      %v512 = vrot.slane %v508, %v511
      %v513 = vlaneseq
      %v514 = vshrl.u32 %v513, 7
      %v515 = vsub.s32 1, %v514
      %v516 = vrot.slane %v508, %v515
      %v517 = vlaneseq
      %v518 = vshrl.u32 %v517, 7
      %v519 = vsub.s32 2, %v518
      %v520 = vrot.slane %v508, %v519
      %v521 = vlaneseq
      %v522 = vshrl.u32 %v521, 7
      %v523 = vsub.s32 3, %v522
      %v524 = vrot.slane %v508, %v523
      %vm525 = vcmp.eq.s32.totalorder %v512, 1
      %vm526 = vcmp.eq.s32.totalorder %v516, 1
      %vm527 = vcmp.eq.s32.totalorder %v520, 1
      %vm528 = vcmp.eq.s32.totalorder %v524, 1
      %v529 = vsel %vm525, %v500, %v504
      %v530 = vsel %vm526, %v501, %v505
      %v531 = vsel %vm527, %v502, %v506
      %v532 = vsel %vm528, %v503, %v507
      %v533 = vsel %vm498, 1, 0
      %v534 = vlaneseq
      %v535 = vshrl.u32 %v534, 7
      %v536 = vsub.s32 0, %v535
      %v537 = vrot.slane %v533, %v536
      %v538 = vlaneseq
      %v539 = vshrl.u32 %v538, 7
      %v540 = vsub.s32 1, %v539
      %v541 = vrot.slane %v533, %v540
      %v542 = vlaneseq
      %v543 = vshrl.u32 %v542, 7
      %v544 = vsub.s32 2, %v543
      %v545 = vrot.slane %v533, %v544
      %v546 = vlaneseq
      %v547 = vshrl.u32 %v546, 7
      %v548 = vsub.s32 3, %v547
      %v549 = vrot.slane %v533, %v548
      %vm550 = vcmp.eq.s32.totalorder %v537, 1
      %vm551 = vcmp.eq.s32.totalorder %v541, 1
      %vm552 = vcmp.eq.s32.totalorder %v545, 1
      %vm553 = vcmp.eq.s32.totalorder %v549, 1
      %v554 = vsel %vm550, %v437, %v529
      %v555 = vsel %vm551, %v439, %v530
      %v556 = vsel %vm552, %v441, %v531
      %v557 = vsel %vm553, %v443, %v532
      %v562 = vcombine.low %v554, %v555
      %v563 = vcombine.low %v556, %v557
      %v565 = vunpack.c.l.s4 1983009808
      %v566 = vunpack.c.0.s8 %v565
      %v567 = vlaneseq
      %v568 = vshrl.u32 %v567, 7
      %v569 = vsub.s32 %v566, %v568
      %v570 = vrot.slane %v562, %v569
      %v572 = vunpack.c.l.s4 1983009808
      %v573 = vunpack.c.0.s8 %v572
      %v574 = vlaneseq
      %v575 = vshrl.u32 %v574, 7
      %v576 = vsub.s32 %v573, %v575
      %v577 = vrot.slane %v563, %v576
      %v578 = vcombine.low %v570, %v577
      %v580 = vmul.f32 %v342, %v578
      %v582 = vcombine.high %v580, %v580
      %v584 = vunpack.c.l.s4 1983009808
      %v585 = vunpack.c.0.s8 %v584
      %v586 = vlaneseq
      %v587 = vshrl.u32 %v586, 7
      %v588 = vsub.s32 %v585, %v587
      %v589 = vrot.slane %v580, %v588
      %v591 = vunpack.c.l.s4 1983009808
      %v592 = vunpack.c.0.s8 %v591
      %v593 = vlaneseq
      %v594 = vshrl.u32 %v593, 7
      %v595 = vsub.s32 %v592, %v594
      %v596 = vrot.slane %v582, %v595
      %v597 = vcombine.high %v589, %v589
      %v598 = vcombine.high %v596, %v596
      %v603 = vsel %vm289, %v589, 0.0
      %v604 = vrot.slane %v603, 4
      %v605 = vadd.f32 %v603, %v604
      %v606 = vrot.slane %v605, 2
      %v607 = vadd.f32 %v605, %v606
      %v608 = vrot.slane %v607, 1
      %v609 = vadd.f32 %v607, %v608
      %v610 = vsel %vm289, %v597, 0.0
      %v611 = vrot.slane %v610, 4
      %v612 = vadd.f32 %v610, %v611
      %v613 = vrot.slane %v612, 2
      %v614 = vadd.f32 %v612, %v613
      %v615 = vrot.slane %v614, 1
      %v616 = vadd.f32 %v614, %v615
      %v617 = vsel %vm289, %v596, 0.0
      %v618 = vrot.slane %v617, 4
      %v619 = vadd.f32 %v617, %v618
      %v620 = vrot.slane %v619, 2
      %v621 = vadd.f32 %v619, %v620
      %v622 = vrot.slane %v621, 1
      %v623 = vadd.f32 %v621, %v622
      %v624 = vsel %vm289, %v598, 0.0
      %v625 = vrot.slane %v624, 4
      %v626 = vadd.f32 %v624, %v625
      %v627 = vrot.slane %v626, 2
      %v628 = vadd.f32 %v626, %v627
      %v629 = vrot.slane %v628, 1
      %v630 = vadd.f32 %v628, %v629
      %v632 = vcombine.high %v342, %v342
      %v634 = vunpack.c.l.s4 1983009808
      %v635 = vunpack.c.0.s8 %v634
      %v636 = vlaneseq
      %v637 = vshrl.u32 %v636, 7
      %v638 = vsub.s32 %v635, %v637
      %v639 = vrot.slane %v342, %v638
      %v641 = vunpack.c.l.s4 1983009808
      %v642 = vunpack.c.0.s8 %v641
      %v643 = vlaneseq
      %v644 = vshrl.u32 %v643, 7
      %v645 = vsub.s32 %v642, %v644
      %v646 = vrot.slane %v632, %v645
      %v647 = vcombine.high %v639, %v639
      %v648 = vcombine.high %v646, %v646
      %v653 = vsel %vm289, %v639, 0.0
      %v654 = vrot.slane %v653, 4
      %v655 = vadd.f32 %v653, %v654
      %v656 = vrot.slane %v655, 2
      %v657 = vadd.f32 %v655, %v656
      %v658 = vrot.slane %v657, 1
      %v659 = vadd.f32 %v657, %v658
      %v660 = vsel %vm289, %v647, 0.0
      %v661 = vrot.slane %v660, 4
      %v662 = vadd.f32 %v660, %v661
      %v663 = vrot.slane %v662, 2
      %v664 = vadd.f32 %v662, %v663
      %v665 = vrot.slane %v664, 1
      %v666 = vadd.f32 %v664, %v665
      %v667 = vsel %vm289, %v646, 0.0
      %v668 = vrot.slane %v667, 4
      %v669 = vadd.f32 %v667, %v668
      %v670 = vrot.slane %v669, 2
      %v671 = vadd.f32 %v669, %v670
      %v672 = vrot.slane %v671, 1
      %v673 = vadd.f32 %v671, %v672
      %v674 = vsel %vm289, %v648, 0.0
      %v675 = vrot.slane %v674, 4
      %v676 = vadd.f32 %v674, %v675
      %v677 = vrot.slane %v676, 2
      %v678 = vadd.f32 %v676, %v677
      %v679 = vrot.slane %v678, 1
      %v680 = vadd.f32 %v678, %v679
      %v681 = vrcp.pop %v659
      %v682 = vrcp.pop %v666
      %v683 = vrcp.pop %v673
      %v684 = vrcp.pop %v680
      %v685 = vmul.f32 %v609, %v681
      %v686 = vmul.f32 %v616, %v682
      %v687 = vmul.f32 %v623, %v683
      %v688 = vmul.f32 %v630, %v684
      %v689 = vadd.f32 %v685, 1e-10
      %v690 = vadd.f32 %v686, 1e-10
      %v691 = vadd.f32 %v687, 1e-10
      %v692 = vadd.f32 %v688, 1e-10
      %v693 = vlog2.pop %v689
      %v694 = vmul.f32 %v693, 0.6931472
      %v695 = vlog2.pop %v690
      %v696 = vmul.f32 %v695, 0.6931472
      %v697 = vlog2.pop %v691
      %v698 = vmul.f32 %v697, 0.6931472
      %v699 = vlog2.pop %v692
      %v700 = vmul.f32 %v699, 0.6931472
      %v701 = vsub.f32 0.0, %v694
      %v702 = vsub.f32 0.0, %v696
      %v703 = vsub.f32 0.0, %v698
      %v704 = vsub.f32 0.0, %v700
      %v709 = vcombine.low %v701, %v702
      %v710 = vcombine.low %v703, %v704
      %v712 = vunpack.c.l.s4 1966171168
      %v713 = vunpack.c.0.s8 %v712
      %v714 = vlaneseq
      %v715 = vshrl.u32 %v714, 7
      %v716 = vsub.s32 %v713, %v715
      %v717 = vrot.slane %v709, %v716
      %v719 = vunpack.c.l.s4 1966171168
      %v720 = vunpack.c.0.s8 %v719
      %v721 = vlaneseq
      %v722 = vshrl.u32 %v721, 7
      %v723 = vsub.s32 %v720, %v722
      %v724 = vrot.slane %v710, %v723
      %v725 = vcombine.low %v717, %v724
      %v727 = vunpack.c.l.s4 1966171168
      %v728 = vunpack.c.0.s8 %v727
      %v729 = vlaneseq
      %v730 = vshrl.u32 %v729, 7
      %v731 = vsub.s32 %v728, %v730
      %v732 = vrot.slane %v725, %v731
      %v734 = vlaneseq
      %vm735 = vcmp.ge.s32.totalorder %v734, 0
      %vm736 = vcmp.lt.s32.totalorder %v734, 512
      %vm737 = vmand %vm735, %vm736
      %738 = vst.msk [vmem:[%s260] sm:$0xf] %vm737, %v732
      %s739 = smul.u32 4, %s15
      %p740 = scmp.lt.s32.totalorder %s739, 11
      %s741 = scalar_select %p740, %s739, 11
      %s742 = scalar_lea.vmem %s4, %s741
      // Predicated region
      $region37: #{forward.61} parent=35 // pred_check
        %p743 = pneg %p137
      $region38: #{forward.61} parent=35 // pred_check_branch
        %745 = sbr.rel (%p743) target = $region40
      $region39: #{forward.61} parent=35 // pred_region
        %s746 = smul.u32 4, %s15
      $region40: #{forward.61} parent=35 // pred_fallthru
        _
    $region36: #{forward.61} parent=5 // pred_fallthru
      _
    %p747 = scmp.le.s32.totalorder 2, %s10
    // Predicated region
    $region41: #{forward.61} parent=5 // pred_check
      %p748 = pneg %p747
    $region42: #{forward.61} parent=5 // pred_check_branch
      %750 = sbr.rel (%p748) target = $region44
    $region43: #{forward.61} parent=5 // pred_region
      %s751 = ssub.s32 %s10, 2
      // Predicated region
      $region45: #{forward.61} parent=43 // pred_check
        %p752 = pneg %p143
      $region46: #{forward.61} parent=43 // pred_check_branch
        %754 = sbr.rel (%p752) target = $region48
      $region47: #{forward.61} parent=43 // pred_region
        %s755 = smul.u32 4, %s16
        %p756 = scmp.lt.s32.totalorder %s755, 11
        %s757 = scalar_select %p756, %s755, 11
        %s758 = scalar_lea.vmem %s4, %s757
      $region48: #{forward.61} parent=43 // pred_fallthru
        _
    $region44: #{forward.61} parent=5 // pred_fallthru
      _
  $region6: #{forward.61} parent=0 // loop_footer
    %s14 = sadd.s32 1, %s10
  $region7: #{forward.61} parent=0 // loop_footer_branch
    %9 = sbr.rel target = $region3
  $region8: #{forward.61} parent=0 // loop_exit
    _

// kernel: forward.55
$region0: #{forward.55}
  #allocation0 [shape = 'u32[]', space=smem, size = 0x4, offset = 0x4, fixed_abs, tag = 'smem constant byte address 0x4 - core index']
  #allocation1 [shape = 'u32[144,128]{1,0:T(1,128)}', space=vmem, size = 0x12000, scoped, tag = 'internal scratch']
  %s0 = inlined_call_operand.vmem [shape: f32[1,512], index: 0, kind: input, shape index: {}]
  %s1 = inlined_call_operand.vmem [shape: f32[2,512], index: 1, kind: input, shape index: {}]
  %s2 = inlined_call_operand.vmem [shape: f32[2,512], index: 2, kind: input, shape index: {}]
  %s3 = inlined_call_operand.vmem [shape: f32[2,512], index: 3, kind: input, shape index: {}]
  %s4 = inlined_call_operand.vmem [shape: f32[1,512], index: 4, kind: output, shape index: {}]
  %s5 = sld [smem:[#allocation0]]
  $region49: #{forward.55} parent=0
    _
  %s7 = ssub.s32 1, %s5
  %s8 = scalar_select 0, %s7, %s5
  loop: start=0, step=1, limit=4
  $region2: #{forward.55} parent=0 // loop_pre_header
    _
  $region3: #{forward.55} parent=0 // loop_header
    %s10 = sphi 0, %s14
    %p11 = scmp.ge.s32.totalorder %s10, 4
    %s20 = sphi 0, %s22
    %s23 = sphi 0, %s20
    %s24 = sphi 0, %s23
    %s40 = sphi 0, %s24
    %s46 = sphi 0, %s48
    %s49 = sphi 0, %s46
    %s50 = sphi 0, %s49
    %s66 = sphi 0, %s50
    %s72 = sphi 0, %s74
    %s75 = sphi 0, %s72
    %s76 = sphi 0, %s75
    %s92 = sphi 0, %s76
    %s98 = sphi 0, %s100
    %s101 = sphi 0, %s98
    %s102 = sphi 0, %s101
    %s118 = sphi 0, %s102
    %s124 = sphi 0, %s126
    %s127 = sphi 0, %s124
    %s128 = sphi 0, %s127
    %s144 = sphi 0, %s128
  $region4: #{forward.55} parent=0 // loop_header_branch
    %13 = sbr.rel (%p11) target = $region8
  $region5: #{forward.55} parent=0 // loop_body
    %s15 = ssub.s32 %s10, 1
    %s16 = ssub.s32 %s10, 2
    %s17 = sadd.s32 %s10, 1
    %s18 = ssub.s32 %s10, %s17
    %p19 = scmp.eq.s32.totalorder %s18, 0
    %s21 = sadd.s32 %s20, 1
    %s22 = scalar_select %p19, %s20, %s21
    %p25 = pneg %p19
    %p26 = scmp.eq.s32.totalorder %s10, 1
    %p27 = por %p25, %p26
    %p28 = scmp.ne.s32.totalorder %s20, %s23
    %p29 = scmp.eq.s32.totalorder %s10, 0
    %p30 = por %p28, %p29
    %p31 = scmp.ne.s32.totalorder %s20, %s23
    %p32 = scmp.eq.s32.totalorder %s15, 1
    %p33 = por %p31, %p32
    %p34 = scmp.ne.s32.totalorder %s23, %s24
    %p35 = scmp.eq.s32.totalorder %s15, 0
    %p36 = por %p34, %p35
    %p37 = scmp.ne.s32.totalorder %s23, %s24
    %p38 = scmp.eq.s32.totalorder %s16, 1
    %p39 = por %p37, %p38
    %p41 = scmp.ne.s32.totalorder %s24, %s40
    %p42 = scmp.eq.s32.totalorder %s16, 0
    %p43 = por %p41, %p42
    %s44 = ssub.s32 %s10, %s17
    %p45 = scmp.eq.s32.totalorder %s44, 0
    %s47 = sadd.s32 %s46, 1
    %s48 = scalar_select %p45, %s46, %s47
    %p51 = pneg %p45
    %p52 = scmp.eq.s32.totalorder %s10, 1
    %p53 = por %p51, %p52
    %p54 = scmp.ne.s32.totalorder %s46, %s49
    %p55 = scmp.eq.s32.totalorder %s10, 0
    %p56 = por %p54, %p55
    %p57 = scmp.ne.s32.totalorder %s46, %s49
    %p58 = scmp.eq.s32.totalorder %s15, 1
    %p59 = por %p57, %p58
    %p60 = scmp.ne.s32.totalorder %s49, %s50
    %p61 = scmp.eq.s32.totalorder %s15, 0
    %p62 = por %p60, %p61
    %p63 = scmp.ne.s32.totalorder %s49, %s50
    %p64 = scmp.eq.s32.totalorder %s16, 1
    %p65 = por %p63, %p64
    %p67 = scmp.ne.s32.totalorder %s50, %s66
    %p68 = scmp.eq.s32.totalorder %s16, 0
    %p69 = por %p67, %p68
    %s70 = ssub.s32 %s10, %s17
    %p71 = scmp.eq.s32.totalorder %s70, 0
    %s73 = sadd.s32 %s72, 1
    %s74 = scalar_select %p71, %s72, %s73
    %p77 = pneg %p71
    %p78 = scmp.eq.s32.totalorder %s10, 1
    %p79 = por %p77, %p78
    %p80 = scmp.ne.s32.totalorder %s72, %s75
    %p81 = scmp.eq.s32.totalorder %s10, 0
    %p82 = por %p80, %p81
    %p83 = scmp.ne.s32.totalorder %s72, %s75
    %p84 = scmp.eq.s32.totalorder %s15, 1
    %p85 = por %p83, %p84
    %p86 = scmp.ne.s32.totalorder %s75, %s76
    %p87 = scmp.eq.s32.totalorder %s15, 0
    %p88 = por %p86, %p87
    %p89 = scmp.ne.s32.totalorder %s75, %s76
    %p90 = scmp.eq.s32.totalorder %s16, 1
    %p91 = por %p89, %p90
    %p93 = scmp.ne.s32.totalorder %s76, %s92
    %p94 = scmp.eq.s32.totalorder %s16, 0
    %p95 = por %p93, %p94
    %s96 = ssub.s32 %s10, %s17
    %p97 = scmp.eq.s32.totalorder %s96, 0
    %s99 = sadd.s32 %s98, 1
    %s100 = scalar_select %p97, %s98, %s99
    %p103 = pneg %p97
    %p104 = scmp.eq.s32.totalorder %s10, 1
    %p105 = por %p103, %p104
    %p106 = scmp.ne.s32.totalorder %s98, %s101
    %p107 = scmp.eq.s32.totalorder %s10, 0
    %p108 = por %p106, %p107
    %p109 = scmp.ne.s32.totalorder %s98, %s101
    %p110 = scmp.eq.s32.totalorder %s15, 1
    %p111 = por %p109, %p110
    %p112 = scmp.ne.s32.totalorder %s101, %s102
    %p113 = scmp.eq.s32.totalorder %s15, 0
    %p114 = por %p112, %p113
    %p115 = scmp.ne.s32.totalorder %s101, %s102
    %p116 = scmp.eq.s32.totalorder %s16, 1
    %p117 = por %p115, %p116
    %p119 = scmp.ne.s32.totalorder %s102, %s118
    %p120 = scmp.eq.s32.totalorder %s16, 0
    %p121 = por %p119, %p120
    %s122 = ssub.s32 %s10, %s17
    %p123 = scmp.eq.s32.totalorder %s122, 0
    %s125 = sadd.s32 %s124, 1
    %s126 = scalar_select %p123, %s124, %s125
    %p129 = pneg %p123
    %p130 = scmp.eq.s32.totalorder %s10, 1
    %p131 = por %p129, %p130
    %p132 = scmp.ne.s32.totalorder %s124, %s127
    %p133 = scmp.eq.s32.totalorder %s10, 0
    %p134 = por %p132, %p133
    %p135 = scmp.ne.s32.totalorder %s124, %s127
    %p136 = scmp.eq.s32.totalorder %s15, 1
    %p137 = por %p135, %p136
    %p138 = scmp.ne.s32.totalorder %s127, %s128
    %p139 = scmp.eq.s32.totalorder %s15, 0
    %p140 = por %p138, %p139
    %p141 = scmp.ne.s32.totalorder %s127, %s128
    %p142 = scmp.eq.s32.totalorder %s16, 1
    %p143 = por %p141, %p142
    %p145 = scmp.ne.s32.totalorder %s128, %s144
    %p146 = scmp.eq.s32.totalorder %s16, 0
    %p147 = por %p145, %p146
    %p148 = scmp.le.s32.totalorder 1, %s10
    %p149 = scmp.lt.s32.totalorder %s10, 3
    %p150 = pnand %p148, %p149
    %p151 = pneg %p150
    // Predicated region
    $region9: #{forward.55} parent=5 // pred_check
      _
    $region10: #{forward.55} parent=5 // pred_check_branch
      %153 = sbr.rel (%p150) target = $region12
    $region11: #{forward.55} parent=5 // pred_region
      %s154 = ssub.s32 %s10, 1
    $region12: #{forward.55} parent=5 // pred_fallthru
      _
    %p155 = scmp.lt.s32.totalorder %s10, 2
    // Predicated region
    $region13: #{forward.55} parent=5 // pred_check
      %p156 = pneg %p155
    $region14: #{forward.55} parent=5 // pred_check_branch
      %158 = sbr.rel (%p156) target = $region16
    $region15: #{forward.55} parent=5 // pred_region
      // Predicated region
      $region17: #{forward.55} parent=15 // pred_check
        %p159 = pneg %p30
      $region18: #{forward.55} parent=15 // pred_check_branch
        %161 = sbr.rel (%p159) target = $region20
      $region19: #{forward.55} parent=15 // pred_region
        %s162 = smul.u32 2, %s10
        %p163 = scmp.lt.s32.totalorder %s162, 3
        %s164 = scalar_select %p163, %s162, 3
        %s165 = scalar_lea.vmem %s0, %s164
        %s166 = smul.u32 2, %s10
      $region20: #{forward.55} parent=15 // pred_fallthru
        _
      // Predicated region
      $region21: #{forward.55} parent=15 // pred_check
        %p167 = pneg %p56
      $region22: #{forward.55} parent=15 // pred_check_branch
        %169 = sbr.rel (%p167) target = $region24
      $region23: #{forward.55} parent=15 // pred_region
        %s170 = smul.u32 2, %s10
        %p171 = scmp.lt.s32.totalorder %s170, 3
        %s172 = scalar_select %p171, %s170, 3
        %s173 = smul.addr %s172, 2
        %s174 = scalar_lea.vmem %s1, %s173
        %s175 = smul.u32 2, %s10
      $region24: #{forward.55} parent=15 // pred_fallthru
        _
      // Predicated region
      $region25: #{forward.55} parent=15 // pred_check
        %p176 = pneg %p82
      $region26: #{forward.55} parent=15 // pred_check_branch
        %178 = sbr.rel (%p176) target = $region28
      $region27: #{forward.55} parent=15 // pred_region
        %s179 = smul.u32 2, %s10
        %p180 = scmp.lt.s32.totalorder %s179, 3
        %s181 = scalar_select %p180, %s179, 3
        %s182 = smul.addr %s181, 2
        %s183 = scalar_lea.vmem %s2, %s182
        %s184 = smul.u32 2, %s10
      $region28: #{forward.55} parent=15 // pred_fallthru
        _
      // Predicated region
      $region29: #{forward.55} parent=15 // pred_check
        %p185 = pneg %p108
      $region30: #{forward.55} parent=15 // pred_check_branch
        %187 = sbr.rel (%p185) target = $region32
      $region31: #{forward.55} parent=15 // pred_region
        %s188 = smul.u32 2, %s10
        %p189 = scmp.lt.s32.totalorder %s188, 3
        %s190 = scalar_select %p189, %s188, 3
        %s191 = smul.addr %s190, 2
        %s192 = scalar_lea.vmem %s3, %s191
        %s193 = smul.u32 2, %s10
      $region32: #{forward.55} parent=15 // pred_fallthru
        _
    $region16: #{forward.55} parent=5 // pred_fallthru
      _
    %p194 = scmp.le.s32.totalorder 1, %s10
    %p195 = scmp.lt.s32.totalorder %s10, 3
    %p196 = pnand %p194, %p195
    %p197 = pneg %p196
    // Predicated region
    $region33: #{forward.55} parent=5 // pred_check
      _
    $region34: #{forward.55} parent=5 // pred_check_branch
      %199 = sbr.rel (%p196) target = $region36
    $region35: #{forward.55} parent=5 // pred_region
      %s200 = ssub.s32 %s10, 1
      %s201 = smul.u32 2, %s15
      %p202 = scmp.lt.s32.totalorder %s201, 3
      %s203 = scalar_select %p202, %s201, 3
      %s204 = scalar_lea.vmem %s0, %s203
      %p205 = pneg %p36
      %p206 = pneg %p33
      %s207 = smul.u32 2, %s15
      %p208 = scmp.lt.s32.totalorder %s207, 3
      %s209 = scalar_select %p208, %s207, 3
      %s210 = smul.addr %s209, 2
      %s211 = scalar_lea.vmem %s1, %s210
      %p212 = pneg %p62
      %p213 = pneg %p59
      %s214 = smul.u32 2, %s15
      %p215 = scmp.lt.s32.totalorder %s214, 3
      %s216 = scalar_select %p215, %s214, 3
      %s217 = smul.addr %s216, 2
      %s218 = scalar_lea.vmem %s2, %s217
      %p219 = pneg %p88
      %p220 = pneg %p85
      %s221 = smul.u32 2, %s15
      %p222 = scmp.lt.s32.totalorder %s221, 3
      %s223 = scalar_select %p222, %s221, 3
      %s224 = smul.addr %s223, 2
      %s225 = scalar_lea.vmem %s3, %s224
      %p226 = pneg %p114
      %p227 = pneg %p111
      %p228 = pneg %p140
      %p229 = pneg %p137
      %s230 = smul.u32 2, %s15
      %p231 = scmp.lt.s32.totalorder %s230, 3
      %s232 = scalar_select %p231, %s230, 3
      %s233 = scalar_lea.vmem %s4, %s232
      %s234 = smul.u32 2, %s15
      %p235 = scmp.lt.s32.totalorder %s234, 3
      %s236 = scalar_select %p235, %s234, 3
      %s237 = scalar_lea.vmem %s0, %s236
      %s238 = smul.u32 2, %s15
      %s239 = smul.u32 2, %s15
      %p240 = scmp.lt.s32.totalorder %s239, 3
      %s241 = scalar_select %p240, %s239, 3
      %s242 = smul.addr %s241, 2
      %s243 = scalar_lea.vmem %s1, %s242
      %s244 = smul.u32 2, %s15
      %s245 = smul.u32 2, %s15
      %p246 = scmp.lt.s32.totalorder %s245, 3
      %s247 = scalar_select %p246, %s245, 3
      %s248 = smul.addr %s247, 2
      %s249 = scalar_lea.vmem %s2, %s248
      %s250 = smul.u32 2, %s15
      %s251 = smul.u32 2, %s15
      %p252 = scmp.lt.s32.totalorder %s251, 3
      %s253 = scalar_select %p252, %s251, 3
      %s254 = smul.addr %s253, 2
      %s255 = scalar_lea.vmem %s3, %s254
      %s256 = smul.u32 2, %s15
      %s257 = smul.u32 2, %s15
      %p258 = scmp.lt.s32.totalorder %s257, 3
      %s259 = scalar_select %p258, %s257, 3
      %s260 = scalar_lea.vmem %s4, %s259
      %s261 = smul.u32 2, %s15
      %v262 = vld [vmem:[%s237] sm:$0x3]
      %v263 = vld [vmem:[%s243] sm:$0xf]
      %v264 = vld [vmem:[%s249] sm:$0xf]
      %v265 = vmax.f32 %v264, -7.0
      %v266 = vld [vmem:[%s255] sm:$0xf]
      %v269 = vunpack.c.l.s4 1983009808
      %v270 = vunpack.c.0.s8 %v269
      %v271 = vlaneseq
      %v272 = vshrl.u32 %v271, 7
      %v273 = vsub.s32 %v270, %v272
      %v274 = vrot.slane %v266, %v273
      %v275 = vcombine.high %v274, %v274
      %vm278 = vcmask 1041408
      %v279 = vsel %vm278, %v274, -inf
      %v280 = vrot.slane %v279, 4
      %v281 = vmax.f32 %v279, %v280
      %v282 = vrot.slane %v281, 2
      %v283 = vmax.f32 %v281, %v282
      %v284 = vrot.slane %v283, 1
      %v285 = vmax.f32 %v283, %v284
      %v286 = vsel %vm278, %v275, -inf
      %v287 = vrot.slane %v286, 4
      %v288 = vmax.f32 %v286, %v287
      %v289 = vrot.slane %v288, 2
      %v290 = vmax.f32 %v288, %v289
      %v291 = vrot.slane %v290, 1
      %v292 = vmax.f32 %v290, %v291
      %v295 = vcombine.low %v285, %v292
      %v297 = vunpack.c.l.s4 1983009808
      %v298 = vunpack.c.0.s8 %v297
      %v299 = vlaneseq
      %v300 = vshrl.u32 %v299, 7
      %v301 = vsub.s32 %v298, %v300
      %v302 = vrot.slane %v295, %v301
      %v304 = vsub.f32 %v266, %v302
      %v305 = vmul.f32 %v304, 1.442695
      %v306 = vpow.pop %v305
      %v307 = vsub.f32 0.0, %v265
      %v308 = vmul.f32 %v307, 1.442695
      %v309 = vpow.pop %v308
      %v310 = vadd.f32 %v262, 0.14285715
      %v312 = vlaneseq
      %v313 = vshrl.u32 %v312, 7
      %v314 = vsub.s32 0, %v313
      %v315 = vrot.slane %v310, %v314
      %v316 = vlaneseq
      %v317 = vshrl.u32 %v316, 7
      %v318 = vsub.s32 1, %v317
      %v319 = vrot.slane %v310, %v318
      %v324 = vunpack.c.l.s4 1983009808
      %v325 = vunpack.c.0.s8 %v324
      %v326 = vlaneseq
      %v327 = vshrl.u32 %v326, 7
      %v328 = vsub.s32 %v325, %v327
      %v329 = vrot.slane %v263, %v328
      %v330 = vcombine.high %v329, %v329
      %v333 = vsub.f32 %v315, %v329
      %v334 = vsub.f32 %v319, %v330
      %v337 = vunpack.c.l.s4 1983009808
      %v338 = vunpack.c.0.s8 %v337
      %v339 = vlaneseq
      %v340 = vshrl.u32 %v339, 7
      %v341 = vsub.s32 %v338, %v340
      %v342 = vrot.slane %v309, %v341
      %v343 = vcombine.high %v342, %v342
      %v346 = vmul.f32 %v333, %v342
      %v347 = vmul.f32 %v334, %v343
      %v348 = vxor.u32 %v346, 2147483648
      %v349 = vxor.u32 %v347, 2147483648
      %v350 = vmul.f32 %v348, 1.442695
      %v351 = vpow.pop %v350
      %v352 = vmul.f32 %v349, 1.442695
      %v353 = vpow.pop %v352
      %v354 = vadd.f32 %v351, 1.0
      %v355 = vadd.f32 %v353, 1.0
      %v356 = vrcp.pop %v354
      %v357 = vmul.f32 1.0, %v356
      %v358 = vrcp.pop %v355
      %v359 = vmul.f32 1.0, %v358
      %v360 = vsub.f32 %v262, 0.14285715
      %v362 = vlaneseq
      %v363 = vshrl.u32 %v362, 7
      %v364 = vsub.s32 0, %v363
      %v365 = vrot.slane %v360, %v364
      %v366 = vlaneseq
      %v367 = vshrl.u32 %v366, 7
      %v368 = vsub.s32 1, %v367
      %v369 = vrot.slane %v360, %v368
      %v372 = vsub.f32 %v365, %v329
      %v373 = vsub.f32 %v369, %v330
      %v374 = vmul.f32 %v372, %v342
      %v375 = vmul.f32 %v373, %v343
      %v376 = vxor.u32 %v374, 2147483648
      %v377 = vxor.u32 %v375, 2147483648
      %v378 = vmul.f32 %v376, 1.442695
      %v379 = vpow.pop %v378
      %v380 = vmul.f32 %v377, 1.442695
      %v381 = vpow.pop %v380
      %v382 = vadd.f32 %v379, 1.0
      %v383 = vadd.f32 %v381, 1.0
      %v384 = vrcp.pop %v382
      %v385 = vmul.f32 1.0, %v384
      %v386 = vrcp.pop %v383
      %v387 = vmul.f32 1.0, %v386
      %vm388 = vcmp.le.f32.partialorder %v262, -0.85714287
      %vm389 = vcmp.ge.f32.partialorder %v262, 0.85714287
      %v390 = vsub.f32 1.0, %v385
      %v391 = vsub.f32 1.0, %v387
      %v392 = vsub.f32 %v357, %v385
      %v393 = vsub.f32 %v359, %v387
      %v394 = vsel %vm389, 1, 0
      %v395 = vlaneseq
      %v396 = vshrl.u32 %v395, 7
      %v397 = vsub.s32 0, %v396
      %v398 = vrot.slane %v394, %v397
      %v399 = vlaneseq
      %v400 = vshrl.u32 %v399, 7
      %v401 = vsub.s32 1, %v400
      %v402 = vrot.slane %v394, %v401
      %vm403 = vcmp.eq.s32.totalorder %v398, 1
      %vm404 = vcmp.eq.s32.totalorder %v402, 1
      %v405 = vsel %vm403, %v390, %v392
      %v406 = vsel %vm404, %v391, %v393
      %v407 = vsel %vm388, 1, 0
      %v408 = vlaneseq
      %v409 = vshrl.u32 %v408, 7
      %v410 = vsub.s32 0, %v409
      %v411 = vrot.slane %v407, %v410
      %v412 = vlaneseq
      %v413 = vshrl.u32 %v412, 7
      %v414 = vsub.s32 1, %v413
      %v415 = vrot.slane %v407, %v414
      %vm416 = vcmp.eq.s32.totalorder %v411, 1
      %vm417 = vcmp.eq.s32.totalorder %v415, 1
      %v418 = vsel %vm416, %v357, %v405
      %v419 = vsel %vm417, %v359, %v406
      %v422 = vcombine.low %v418, %v419
      %v424 = vunpack.c.l.s4 1983009808
      %v425 = vunpack.c.0.s8 %v424
      %v426 = vlaneseq
      %v427 = vshrl.u32 %v426, 7
      %v428 = vsub.s32 %v425, %v427
      %v429 = vrot.slane %v422, %v428
      %v431 = vmul.f32 %v306, %v429
      %v434 = vunpack.c.l.s4 1983009808
      %v435 = vunpack.c.0.s8 %v434
      %v436 = vlaneseq
      %v437 = vshrl.u32 %v436, 7
      %v438 = vsub.s32 %v435, %v437
      %v439 = vrot.slane %v431, %v438
      %v440 = vcombine.high %v439, %v439
      %v443 = vsel %vm278, %v439, 0.0
      %v444 = vrot.slane %v443, 4
      %v445 = vadd.f32 %v443, %v444
      %v446 = vrot.slane %v445, 2
      %v447 = vadd.f32 %v445, %v446
      %v448 = vrot.slane %v447, 1
      %v449 = vadd.f32 %v447, %v448
      %v450 = vsel %vm278, %v440, 0.0
      %v451 = vrot.slane %v450, 4
      %v452 = vadd.f32 %v450, %v451
      %v453 = vrot.slane %v452, 2
      %v454 = vadd.f32 %v452, %v453
      %v455 = vrot.slane %v454, 1
      %v456 = vadd.f32 %v454, %v455
      %v459 = vunpack.c.l.s4 1983009808
      %v460 = vunpack.c.0.s8 %v459
      %v461 = vlaneseq
      %v462 = vshrl.u32 %v461, 7
      %v463 = vsub.s32 %v460, %v462
      %v464 = vrot.slane %v306, %v463
      %v465 = vcombine.high %v464, %v464
      %v468 = vsel %vm278, %v464, 0.0
      %v469 = vrot.slane %v468, 4
      %v470 = vadd.f32 %v468, %v469
      %v471 = vrot.slane %v470, 2
      %v472 = vadd.f32 %v470, %v471
      %v473 = vrot.slane %v472, 1
      %v474 = vadd.f32 %v472, %v473
      %v475 = vsel %vm278, %v465, 0.0
      %v476 = vrot.slane %v475, 4
      %v477 = vadd.f32 %v475, %v476
      %v478 = vrot.slane %v477, 2
      %v479 = vadd.f32 %v477, %v478
      %v480 = vrot.slane %v479, 1
      %v481 = vadd.f32 %v479, %v480
      %v482 = vrcp.pop %v474
      %v483 = vrcp.pop %v481
      %v484 = vmul.f32 %v449, %v482
      %v485 = vmul.f32 %v456, %v483
      %v486 = vadd.f32 %v484, 1e-10
      %v487 = vadd.f32 %v485, 1e-10
      %v488 = vlog2.pop %v486
      %v489 = vmul.f32 %v488, 0.6931472
      %v490 = vlog2.pop %v487
      %v491 = vmul.f32 %v490, 0.6931472
      %v492 = vsub.f32 0.0, %v489
      %v493 = vsub.f32 0.0, %v491
      %v496 = vcombine.low %v492, %v493
      %v498 = vunpack.c.l.s4 1966171168
      %v499 = vunpack.c.0.s8 %v498
      %v500 = vlaneseq
      %v501 = vshrl.u32 %v500, 7
      %v502 = vsub.s32 %v499, %v501
      %v503 = vrot.slane %v496, %v502
      %v505 = vunpack.c.l.s4 1966171168
      %v506 = vunpack.c.0.s8 %v505
      %v507 = vlaneseq
      %v508 = vshrl.u32 %v507, 7
      %v509 = vsub.s32 %v506, %v508
      %v510 = vrot.slane %v503, %v509
      %v512 = vlaneseq
      %vm513 = vcmp.ge.s32.totalorder %v512, 0
      %vm514 = vcmp.lt.s32.totalorder %v512, 256
      %vm515 = vmand %vm513, %vm514
      %516 = vst.msk [vmem:[%s260] sm:$0x3] %vm515, %v510
      %s517 = smul.u32 2, %s15
      %p518 = scmp.lt.s32.totalorder %s517, 3
      %s519 = scalar_select %p518, %s517, 3
      %s520 = scalar_lea.vmem %s4, %s519
      // Predicated region
      $region37: #{forward.55} parent=35 // pred_check
        %p521 = pneg %p137
      $region38: #{forward.55} parent=35 // pred_check_branch
        %523 = sbr.rel (%p521) target = $region40
      $region39: #{forward.55} parent=35 // pred_region
        %s524 = smul.u32 2, %s15
      $region40: #{forward.55} parent=35 // pred_fallthru
        _
    $region36: #{forward.55} parent=5 // pred_fallthru
      _
    %p525 = scmp.le.s32.totalorder 2, %s10
    // Predicated region
    $region41: #{forward.55} parent=5 // pred_check
      %p526 = pneg %p525
    $region42: #{forward.55} parent=5 // pred_check_branch
      %528 = sbr.rel (%p526) target = $region44
    $region43: #{forward.55} parent=5 // pred_region
      %s529 = ssub.s32 %s10, 2
      // Predicated region
      $region45: #{forward.55} parent=43 // pred_check
        %p530 = pneg %p143
      $region46: #{forward.55} parent=43 // pred_check_branch
        %532 = sbr.rel (%p530) target = $region48
      $region47: #{forward.55} parent=43 // pred_region
        %s533 = smul.u32 2, %s16
        %p534 = scmp.lt.s32.totalorder %s533, 3
        %s535 = scalar_select %p534, %s533, 3
        %s536 = scalar_lea.vmem %s4, %s535
      $region48: #{forward.55} parent=43 // pred_fallthru
        _
    $region44: #{forward.55} parent=5 // pred_fallthru
      _
  $region6: #{forward.55} parent=0 // loop_footer
    %s14 = sadd.s32 1, %s10
  $region7: #{forward.55} parent=0 // loop_footer_branch
    %9 = sbr.rel target = $region3
  $region8: #{forward.55} parent=0 // loop_exit
    _

// kernel: squeeze.10
$region0: #{squeeze.10}
  %s0 = inlined_call_operand.vmem [shape: f32[2,1,4,2,4,4], index: 0, kind: input, shape index: {}]
  %s1 = inlined_call_operand.vmem [shape: f32[2,128], index: 1, kind: output, shape index: {}]
  $region1: #{squeeze.10} parent=0
    #allocation0 [shape = 'u8[4096]{0}', space=vmem, size = 0x1000, scoped, tag = 'scoped mem for output reshape']
    #allocation1 [shape = 'u8[65536]{0}', space=vmem, size = 0x10000, scoped, tag = 'scoped mem for input reshape']
    %s3 = sshll.u32 1, 4
    %s4 = ssub.s32 %s3, 1
    %s5 = smul.addr 4, 15
    %s6 = scalar_lea.vmem %s0, %s5
    %v7 = vld [vmem:[%s6] sm:%s4]
    %s8 = scalar_lea.vmem [#allocation1], 120
    %9 = vst [vmem:[%s8] sm:%s4] %v7
    %s10 = smul.addr 4, 14
    %s11 = scalar_lea.vmem %s0, %s10
    %v12 = vld [vmem:[%s11] sm:%s4]
    %s13 = scalar_lea.vmem [#allocation1], 112
    %14 = vst [vmem:[%s13] sm:%s4] %v12
    %s15 = smul.addr 4, 13
    %s16 = scalar_lea.vmem %s0, %s15
    %v17 = vld [vmem:[%s16] sm:%s4]
    %s18 = scalar_lea.vmem [#allocation1], 104
    %19 = vst [vmem:[%s18] sm:%s4] %v17
    %s20 = smul.addr 4, 12
    %s21 = scalar_lea.vmem %s0, %s20
    %v22 = vld [vmem:[%s21] sm:%s4]
    %s23 = scalar_lea.vmem [#allocation1], 96
    %24 = vst [vmem:[%s23] sm:%s4] %v22
    %s25 = smul.addr 4, 11
    %s26 = scalar_lea.vmem %s0, %s25
    %v27 = vld [vmem:[%s26] sm:%s4]
    %s28 = scalar_lea.vmem [#allocation1], 88
    %29 = vst [vmem:[%s28] sm:%s4] %v27
    %s30 = smul.addr 4, 10
    %s31 = scalar_lea.vmem %s0, %s30
    %v32 = vld [vmem:[%s31] sm:%s4]
    %s33 = scalar_lea.vmem [#allocation1], 80
    %34 = vst [vmem:[%s33] sm:%s4] %v32
    %s35 = smul.addr 4, 9
    %s36 = scalar_lea.vmem %s0, %s35
    %v37 = vld [vmem:[%s36] sm:%s4]
    %s38 = scalar_lea.vmem [#allocation1], 72
    %39 = vst [vmem:[%s38] sm:%s4] %v37
    %s40 = smul.addr 4, 8
    %s41 = scalar_lea.vmem %s0, %s40
    %v42 = vld [vmem:[%s41] sm:%s4]
    %s43 = scalar_lea.vmem [#allocation1], 64
    %44 = vst [vmem:[%s43] sm:%s4] %v42
    %s45 = smul.addr 4, 7
    %s46 = scalar_lea.vmem %s0, %s45
    %v47 = vld [vmem:[%s46] sm:%s4]
    %s48 = scalar_lea.vmem [#allocation1], 56
    %49 = vst [vmem:[%s48] sm:%s4] %v47
    %s50 = smul.addr 4, 6
    %s51 = scalar_lea.vmem %s0, %s50
    %v52 = vld [vmem:[%s51] sm:%s4]
    %s53 = scalar_lea.vmem [#allocation1], 48
    %54 = vst [vmem:[%s53] sm:%s4] %v52
    %s55 = smul.addr 4, 5
    %s56 = scalar_lea.vmem %s0, %s55
    %v57 = vld [vmem:[%s56] sm:%s4]
    %s58 = scalar_lea.vmem [#allocation1], 40
    %59 = vst [vmem:[%s58] sm:%s4] %v57
    %s60 = smul.addr 4, 4
    %s61 = scalar_lea.vmem %s0, %s60
    %v62 = vld [vmem:[%s61] sm:%s4]
    %s63 = scalar_lea.vmem [#allocation1], 32
    %64 = vst [vmem:[%s63] sm:%s4] %v62
    %s65 = smul.addr 4, 3
    %s66 = scalar_lea.vmem %s0, %s65
    %v67 = vld [vmem:[%s66] sm:%s4]
    %s68 = scalar_lea.vmem [#allocation1], 24
    %69 = vst [vmem:[%s68] sm:%s4] %v67
    %s70 = smul.addr 4, 2
    %s71 = scalar_lea.vmem %s0, %s70
    %v72 = vld [vmem:[%s71] sm:%s4]
    %s73 = scalar_lea.vmem [#allocation1], 16
    %74 = vst [vmem:[%s73] sm:%s4] %v72
    %s75 = scalar_lea.vmem %s0, 4
    %v76 = vld [vmem:[%s75] sm:%s4]
    %s77 = scalar_lea.vmem [#allocation1], 8
    %78 = vst [vmem:[%s77] sm:%s4] %v76
    %v79 = vld [vmem:[%s0] sm:%s4]
    %80 = vst [vmem:[#allocation1] sm:%s4] %v79
    %v81 = vld [vmem:[#allocation1] sm:$0x1]
    %s82 = scalar_lea.vmem [#allocation1], 63
    %v83 = vld [vmem:[%s82] sm:$0x2]
    %vm84 = vcmask 1041409
    %v85 = vsel %vm84, %v83, %v81
    %vm86 = vcmask 31744
    %87 = vst.msk [vmem:[#allocation0] sm:$0x3] %vm86, %v85
    %s88 = scalar_lea.vmem [#allocation1], 59
    %v89 = vld [vmem:[%s88] sm:$0x1]
    %s90 = scalar_lea.vmem [#allocation1], 122
    %v91 = vld [vmem:[%s90] sm:$0x2]
    %vm92 = vcmask 1041409
    %v93 = vsel %vm92, %v91, %v89
    %94 = vrot.lane.b32.xlu0 %v93, 124
    %v95 = vpop.permute.xlu0 %94
    %vm96 = vcmask 1048544
    %97 = vst.msk [vmem:[#allocation0] sm:$0x3] %vm96, %v95
    %s98 = scalar_lea.vmem [#allocation1], 58
    %v99 = vld [vmem:[%s98] sm:$0x1]
    %s100 = scalar_lea.vmem [#allocation1], 121
    %v101 = vld [vmem:[%s100] sm:$0x2]
    %vm102 = vcmask 1041409
    %v103 = vsel %vm102, %v101, %v99
    %104 = vrot.lane.b32.xlu0 %v103, 120
    %v105 = vpop.permute.xlu0 %104
    %vm106 = vcmask 1015744
    %107 = vst.msk [vmem:[#allocation0] sm:$0x3] %vm106, %v105
    %s108 = scalar_lea.vmem [#allocation1], 57
    %v109 = vld [vmem:[%s108] sm:$0x1]
    %s110 = scalar_lea.vmem [#allocation1], 120
    %v111 = vld [vmem:[%s110] sm:$0x2]
    %vm112 = vcmask 1041409
    %v113 = vsel %vm112, %v111, %v109
    %114 = vrot.lane.b32.xlu0 %v113, 116
    %v115 = vpop.permute.xlu0 %114
    %vm116 = vcmask 982944
    %117 = vst.msk [vmem:[#allocation0] sm:$0x3] %vm116, %v115
    %s118 = scalar_lea.vmem [#allocation1], 56
    %v119 = vld [vmem:[%s118] sm:$0x1]
    %s120 = scalar_lea.vmem [#allocation1], 119
    %v121 = vld [vmem:[%s120] sm:$0x2]
    %vm122 = vcmask 1041409
    %v123 = vsel %vm122, %v121, %v119
    %124 = vrot.lane.b32.xlu0 %v123, 112
    %v125 = vpop.permute.xlu0 %124
    %vm126 = vcmask 950144
    %127 = vst.msk [vmem:[#allocation0] sm:$0x3] %vm126, %v125
    %s128 = scalar_lea.vmem [#allocation1], 51
    %v129 = vld [vmem:[%s128] sm:$0x1]
    %s130 = scalar_lea.vmem [#allocation1], 114
    %v131 = vld [vmem:[%s130] sm:$0x2]
    %vm132 = vcmask 1041409
    %v133 = vsel %vm132, %v131, %v129
    %134 = vrot.lane.b32.xlu0 %v133, 108
    %v135 = vpop.permute.xlu0 %134
    %vm136 = vcmask 917344
    %137 = vst.msk [vmem:[#allocation0] sm:$0x3] %vm136, %v135
    %s138 = scalar_lea.vmem [#allocation1], 50
    %v139 = vld [vmem:[%s138] sm:$0x1]
    %s140 = scalar_lea.vmem [#allocation1], 113
    %v141 = vld [vmem:[%s140] sm:$0x2]
    %vm142 = vcmask 1041409
    %v143 = vsel %vm142, %v141, %v139
    %144 = vrot.lane.b32.xlu0 %v143, 104
    %v145 = vpop.permute.xlu0 %144
    %vm146 = vcmask 884544
    %147 = vst.msk [vmem:[#allocation0] sm:$0x3] %vm146, %v145
    %s148 = scalar_lea.vmem [#allocation1], 49
    %v149 = vld [vmem:[%s148] sm:$0x1]
    %s150 = scalar_lea.vmem [#allocation1], 112
    %v151 = vld [vmem:[%s150] sm:$0x2]
    %vm152 = vcmask 1041409
    %v153 = vsel %vm152, %v151, %v149
    %154 = vrot.lane.b32.xlu0 %v153, 100
    %v155 = vpop.permute.xlu0 %154
    %vm156 = vcmask 851744
    %157 = vst.msk [vmem:[#allocation0] sm:$0x3] %vm156, %v155
    %s158 = scalar_lea.vmem [#allocation1], 48
    %v159 = vld [vmem:[%s158] sm:$0x1]
    %s160 = scalar_lea.vmem [#allocation1], 111
    %v161 = vld [vmem:[%s160] sm:$0x2]
    %vm162 = vcmask 1041409
    %v163 = vsel %vm162, %v161, %v159
    %164 = vrot.lane.b32.xlu0 %v163, 96
    %v165 = vpop.permute.xlu0 %164
    %vm166 = vcmask 818944
    %167 = vst.msk [vmem:[#allocation0] sm:$0x3] %vm166, %v165
    %s168 = scalar_lea.vmem [#allocation1], 43
    %v169 = vld [vmem:[%s168] sm:$0x1]
    %s170 = scalar_lea.vmem [#allocation1], 106
    %v171 = vld [vmem:[%s170] sm:$0x2]
    %vm172 = vcmask 1041409
    %v173 = vsel %vm172, %v171, %v169
    %174 = vrot.lane.b32.xlu0 %v173, 92
    %v175 = vpop.permute.xlu0 %174
    %vm176 = vcmask 786144
    %177 = vst.msk [vmem:[#allocation0] sm:$0x3] %vm176, %v175
    %s178 = scalar_lea.vmem [#allocation1], 42
    %v179 = vld [vmem:[%s178] sm:$0x1]
    %s180 = scalar_lea.vmem [#allocation1], 105
    %v181 = vld [vmem:[%s180] sm:$0x2]
    %vm182 = vcmask 1041409
    %v183 = vsel %vm182, %v181, %v179
    %184 = vrot.lane.b32.xlu0 %v183, 88
    %v185 = vpop.permute.xlu0 %184
    %vm186 = vcmask 753344
    %187 = vst.msk [vmem:[#allocation0] sm:$0x3] %vm186, %v185
    %s188 = scalar_lea.vmem [#allocation1], 41
    %v189 = vld [vmem:[%s188] sm:$0x1]
    %s190 = scalar_lea.vmem [#allocation1], 104
    %v191 = vld [vmem:[%s190] sm:$0x2]
    %vm192 = vcmask 1041409
    %v193 = vsel %vm192, %v191, %v189
    %194 = vrot.lane.b32.xlu0 %v193, 84
    %v195 = vpop.permute.xlu0 %194
    %vm196 = vcmask 720544
    %197 = vst.msk [vmem:[#allocation0] sm:$0x3] %vm196, %v195
    %s198 = scalar_lea.vmem [#allocation1], 40
    %v199 = vld [vmem:[%s198] sm:$0x1]
    %s200 = scalar_lea.vmem [#allocation1], 103
    %v201 = vld [vmem:[%s200] sm:$0x2]
    %vm202 = vcmask 1041409
    %v203 = vsel %vm202, %v201, %v199
    %204 = vrot.lane.b32.xlu0 %v203, 80
    %v205 = vpop.permute.xlu0 %204
    %vm206 = vcmask 687744
    %207 = vst.msk [vmem:[#allocation0] sm:$0x3] %vm206, %v205
    %s208 = scalar_lea.vmem [#allocation1], 35
    %v209 = vld [vmem:[%s208] sm:$0x1]
    %s210 = scalar_lea.vmem [#allocation1], 98
    %v211 = vld [vmem:[%s210] sm:$0x2]
    %vm212 = vcmask 1041409
    %v213 = vsel %vm212, %v211, %v209
    %214 = vrot.lane.b32.xlu0 %v213, 76
    %v215 = vpop.permute.xlu0 %214
    %vm216 = vcmask 654944
    %217 = vst.msk [vmem:[#allocation0] sm:$0x3] %vm216, %v215
    %s218 = scalar_lea.vmem [#allocation1], 34
    %v219 = vld [vmem:[%s218] sm:$0x1]
    %s220 = scalar_lea.vmem [#allocation1], 97
    %v221 = vld [vmem:[%s220] sm:$0x2]
    %vm222 = vcmask 1041409
    %v223 = vsel %vm222, %v221, %v219
    %224 = vrot.lane.b32.xlu0 %v223, 72
    %v225 = vpop.permute.xlu0 %224
    %vm226 = vcmask 622144
    %227 = vst.msk [vmem:[#allocation0] sm:$0x3] %vm226, %v225
    %s228 = scalar_lea.vmem [#allocation1], 33
    %v229 = vld [vmem:[%s228] sm:$0x1]
    %s230 = scalar_lea.vmem [#allocation1], 96
    %v231 = vld [vmem:[%s230] sm:$0x2]
    %vm232 = vcmask 1041409
    %v233 = vsel %vm232, %v231, %v229
    %234 = vrot.lane.b32.xlu0 %v233, 68
    %v235 = vpop.permute.xlu0 %234
    %vm236 = vcmask 589344
    %237 = vst.msk [vmem:[#allocation0] sm:$0x3] %vm236, %v235
    %s238 = scalar_lea.vmem [#allocation1], 32
    %v239 = vld [vmem:[%s238] sm:$0x1]
    %s240 = scalar_lea.vmem [#allocation1], 95
    %v241 = vld [vmem:[%s240] sm:$0x2]
    %vm242 = vcmask 1041409
    %v243 = vsel %vm242, %v241, %v239
    %244 = vrot.lane.b32.xlu0 %v243, 64
    %v245 = vpop.permute.xlu0 %244
    %vm246 = vcmask 556544
    %247 = vst.msk [vmem:[#allocation0] sm:$0x3] %vm246, %v245
    %s248 = scalar_lea.vmem [#allocation1], 27
    %v249 = vld [vmem:[%s248] sm:$0x1]
    %s250 = scalar_lea.vmem [#allocation1], 90
    %v251 = vld [vmem:[%s250] sm:$0x2]
    %vm252 = vcmask 1041409
    %v253 = vsel %vm252, %v251, %v249
    %254 = vrot.lane.b32.xlu0 %v253, 60
    %v255 = vpop.permute.xlu0 %254
    %vm256 = vcmask 523744
    %257 = vst.msk [vmem:[#allocation0] sm:$0x3] %vm256, %v255
    %s258 = scalar_lea.vmem [#allocation1], 26
    %v259 = vld [vmem:[%s258] sm:$0x1]
    %s260 = scalar_lea.vmem [#allocation1], 89
    %v261 = vld [vmem:[%s260] sm:$0x2]
    %vm262 = vcmask 1041409
    %v263 = vsel %vm262, %v261, %v259
    %264 = vrot.lane.b32.xlu0 %v263, 56
    %v265 = vpop.permute.xlu0 %264
    %vm266 = vcmask 490944
    %267 = vst.msk [vmem:[#allocation0] sm:$0x3] %vm266, %v265
    %s268 = scalar_lea.vmem [#allocation1], 25
    %v269 = vld [vmem:[%s268] sm:$0x1]
    %s270 = scalar_lea.vmem [#allocation1], 88
    %v271 = vld [vmem:[%s270] sm:$0x2]
    %vm272 = vcmask 1041409
    %v273 = vsel %vm272, %v271, %v269
    %274 = vrot.lane.b32.xlu0 %v273, 52
    %v275 = vpop.permute.xlu0 %274
    %vm276 = vcmask 458144
    %277 = vst.msk [vmem:[#allocation0] sm:$0x3] %vm276, %v275
    %s278 = scalar_lea.vmem [#allocation1], 24
    %v279 = vld [vmem:[%s278] sm:$0x1]
    %s280 = scalar_lea.vmem [#allocation1], 87
    %v281 = vld [vmem:[%s280] sm:$0x2]
    %vm282 = vcmask 1041409
    %v283 = vsel %vm282, %v281, %v279
    %284 = vrot.lane.b32.xlu0 %v283, 48
    %v285 = vpop.permute.xlu0 %284
    %vm286 = vcmask 425344
    %287 = vst.msk [vmem:[#allocation0] sm:$0x3] %vm286, %v285
    %s288 = scalar_lea.vmem [#allocation1], 19
    %v289 = vld [vmem:[%s288] sm:$0x1]
    %s290 = scalar_lea.vmem [#allocation1], 82
    %v291 = vld [vmem:[%s290] sm:$0x2]
    %vm292 = vcmask 1041409
    %v293 = vsel %vm292, %v291, %v289
    %294 = vrot.lane.b32.xlu0 %v293, 44
    %v295 = vpop.permute.xlu0 %294
    %vm296 = vcmask 392544
    %297 = vst.msk [vmem:[#allocation0] sm:$0x3] %vm296, %v295
    %s298 = scalar_lea.vmem [#allocation1], 18
    %v299 = vld [vmem:[%s298] sm:$0x1]
    %s300 = scalar_lea.vmem [#allocation1], 81
    %v301 = vld [vmem:[%s300] sm:$0x2]
    %vm302 = vcmask 1041409
    %v303 = vsel %vm302, %v301, %v299
    %304 = vrot.lane.b32.xlu0 %v303, 40
    %v305 = vpop.permute.xlu0 %304
    %vm306 = vcmask 359744
    %307 = vst.msk [vmem:[#allocation0] sm:$0x3] %vm306, %v305
    %s308 = scalar_lea.vmem [#allocation1], 17
    %v309 = vld [vmem:[%s308] sm:$0x1]
    %s310 = scalar_lea.vmem [#allocation1], 80
    %v311 = vld [vmem:[%s310] sm:$0x2]
    %vm312 = vcmask 1041409
    %v313 = vsel %vm312, %v311, %v309
    %314 = vrot.lane.b32.xlu0 %v313, 36
    %v315 = vpop.permute.xlu0 %314
    %vm316 = vcmask 326944
    %317 = vst.msk [vmem:[#allocation0] sm:$0x3] %vm316, %v315
    %s318 = scalar_lea.vmem [#allocation1], 16
    %v319 = vld [vmem:[%s318] sm:$0x1]
    %s320 = scalar_lea.vmem [#allocation1], 79
    %v321 = vld [vmem:[%s320] sm:$0x2]
    %vm322 = vcmask 1041409
    %v323 = vsel %vm322, %v321, %v319
    %324 = vrot.lane.b32.xlu0 %v323, 32
    %v325 = vpop.permute.xlu0 %324
    %vm326 = vcmask 294144
    %327 = vst.msk [vmem:[#allocation0] sm:$0x3] %vm326, %v325
    %s328 = scalar_lea.vmem [#allocation1], 11
    %v329 = vld [vmem:[%s328] sm:$0x1]
    %s330 = scalar_lea.vmem [#allocation1], 74
    %v331 = vld [vmem:[%s330] sm:$0x2]
    %vm332 = vcmask 1041409
    %v333 = vsel %vm332, %v331, %v329
    %334 = vrot.lane.b32.xlu0 %v333, 28
    %v335 = vpop.permute.xlu0 %334
    %vm336 = vcmask 261344
    %337 = vst.msk [vmem:[#allocation0] sm:$0x3] %vm336, %v335
    %s338 = scalar_lea.vmem [#allocation1], 10
    %v339 = vld [vmem:[%s338] sm:$0x1]
    %s340 = scalar_lea.vmem [#allocation1], 73
    %v341 = vld [vmem:[%s340] sm:$0x2]
    %vm342 = vcmask 1041409
    %v343 = vsel %vm342, %v341, %v339
    %344 = vrot.lane.b32.xlu0 %v343, 24
    %v345 = vpop.permute.xlu0 %344
    %vm346 = vcmask 228544
    %347 = vst.msk [vmem:[#allocation0] sm:$0x3] %vm346, %v345
    %s348 = scalar_lea.vmem [#allocation1], 9
    %v349 = vld [vmem:[%s348] sm:$0x1]
    %s350 = scalar_lea.vmem [#allocation1], 72
    %v351 = vld [vmem:[%s350] sm:$0x2]
    %vm352 = vcmask 1041409
    %v353 = vsel %vm352, %v351, %v349
    %354 = vrot.lane.b32.xlu0 %v353, 20
    %v355 = vpop.permute.xlu0 %354
    %vm356 = vcmask 195744
    %357 = vst.msk [vmem:[#allocation0] sm:$0x3] %vm356, %v355
    %s358 = scalar_lea.vmem [#allocation1], 8
    %v359 = vld [vmem:[%s358] sm:$0x1]
    %s360 = scalar_lea.vmem [#allocation1], 71
    %v361 = vld [vmem:[%s360] sm:$0x2]
    %vm362 = vcmask 1041409
    %v363 = vsel %vm362, %v361, %v359
    %364 = vrot.lane.b32.xlu0 %v363, 16
    %v365 = vpop.permute.xlu0 %364
    %vm366 = vcmask 162944
    %367 = vst.msk [vmem:[#allocation0] sm:$0x3] %vm366, %v365
    %s368 = scalar_lea.vmem [#allocation1], 3
    %v369 = vld [vmem:[%s368] sm:$0x1]
    %s370 = scalar_lea.vmem [#allocation1], 66
    %v371 = vld [vmem:[%s370] sm:$0x2]
    %vm372 = vcmask 1041409
    %v373 = vsel %vm372, %v371, %v369
    %374 = vrot.lane.b32.xlu0 %v373, 12
    %v375 = vpop.permute.xlu0 %374
    %vm376 = vcmask 130144
    %377 = vst.msk [vmem:[#allocation0] sm:$0x3] %vm376, %v375
    %s378 = scalar_lea.vmem [#allocation1], 2
    %v379 = vld [vmem:[%s378] sm:$0x1]
    %s380 = scalar_lea.vmem [#allocation1], 65
    %v381 = vld [vmem:[%s380] sm:$0x2]
    %vm382 = vcmask 1041409
    %v383 = vsel %vm382, %v381, %v379
    %384 = vrot.lane.b32.xlu0 %v383, 8
    %v385 = vpop.permute.xlu0 %384
    %vm386 = vcmask 97344
    %387 = vst.msk [vmem:[#allocation0] sm:$0x3] %vm386, %v385
    %s388 = scalar_lea.vmem [#allocation1], 1
    %v389 = vld [vmem:[%s388] sm:$0x1]
    %s390 = scalar_lea.vmem [#allocation1], 64
    %v391 = vld [vmem:[%s390] sm:$0x2]
    %vm392 = vcmask 1041409
    %v393 = vsel %vm392, %v391, %v389
    %394 = vrot.lane.b32.xlu0 %v393, 4
    %v395 = vpop.permute.xlu0 %394
    %vm396 = vcmask 64544
    %397 = vst.msk [vmem:[#allocation0] sm:$0x3] %vm396, %v395
    %s399 = sshll.u32 1, 2
    %s400 = ssub.s32 %s399, 1
    %v402 = vld [vmem:[#allocation0] sm:%s400]
    %s403 = sshll.u32 1, 2
    %s404 = ssub.s32 %s403, 1
    %405 = vst [vmem:[%s1] sm:%s404] %v402

// kernel: forward.48
$region0: #{forward.48}
  #allocation0 [shape = 'u32[]', space=smem, size = 0x4, offset = 0x4, fixed_abs, tag = 'smem constant byte address 0x4 - core index']
  #allocation1 [shape = 'u32[144,128]{1,0:T(1,128)}', space=vmem, size = 0x12000, scoped, tag = 'internal scratch']
  %s0 = inlined_call_operand.vmem [shape: bf16[24,72], index: 0, kind: input, shape index: {}]
  %s1 = inlined_call_operand.vmem [shape: bf16[72,32], index: 1, kind: input, shape index: {}]
  %s2 = inlined_call_operand.vmem [shape: f32[24,1], index: 2, kind: input, shape index: {}]
  %s3 = inlined_call_operand.vmem [shape: f32[24,32], index: 3, kind: output, shape index: {}]
  %s4 = sld [smem:[#allocation0]]
  $region22: #{forward.48} parent=0
    _
  %s6 = ssub.s32 1, %s4
  %s7 = scalar_select 0, %s6, %s4
  // Predicated region
  $region2: #{forward.48} parent=0 // pred_check
    _
  $region3: #{forward.48} parent=0 // pred_check_branch
    %9 = sbr.rel (0) target = $region5
  $region4: #{forward.48} parent=0 // pred_region
    _
  $region5: #{forward.48} parent=0 // pred_fallthru
    _
  // Predicated region
  $region6: #{forward.48} parent=0 // pred_check
    _
  $region7: #{forward.48} parent=0 // pred_check_branch
    %11 = sbr.rel (0) target = $region9
  $region8: #{forward.48} parent=0 // pred_region
    _
  $region9: #{forward.48} parent=0 // pred_fallthru
    _
  // Predicated region
  $region10: #{forward.48} parent=0 // pred_check
    _
  $region11: #{forward.48} parent=0 // pred_check_branch
    %13 = sbr.rel (0) target = $region13
  $region12: #{forward.48} parent=0 // pred_region
    _
  $region13: #{forward.48} parent=0 // pred_fallthru
    _
  %v15 = vld [vmem:[%s0] sm:$0xf]
  %v16 = vld [vmem:[%s0 + $0x4] sm:$0xf]
  %v17 = vld [vmem:[%s0 + $0x8] sm:$0xf]
  %v18 = vld [vmem:[%s1] sm:$0xf]
  %v19 = vld [vmem:[%s1 + $0x4] sm:$0xf]
  %v20 = vld [vmem:[%s1 + $0x8] sm:$0xf]
  %v21 = vld [vmem:[%s1 + $0xc] sm:$0xf]
  %v22 = vld [vmem:[%s1 + $0x10] sm:$0xf]
  %v23 = vld [vmem:[%s1 + $0x14] sm:$0xf]
  %v24 = vld [vmem:[%s1 + $0x18] sm:$0xf]
  %v25 = vld [vmem:[%s1 + $0x1c] sm:$0xf]
  %v26 = vld [vmem:[%s1 + $0x20] sm:$0xf]
  %v27 = vld [vmem:[%s2] sm:$0xff]
  %v28 = vld [vmem:[%s2 + $0x8] sm:$0xff]
  %v29 = vld [vmem:[%s2 + $0x10] sm:$0xff]
  %31 = vset.pattern.permute.xlu0 0
  %32 = vperm.xlu0 %31, %v27
  %v33 = vpop.permute.xlu0 %32
  %36 = vset.pattern.permute.xlu0 0
  %37 = vperm.xlu0 %36, %v28
  %v38 = vpop.permute.xlu0 %37
  %41 = vset.pattern.permute.xlu0 0
  %42 = vperm.xlu0 %41, %v29
  %v43 = vpop.permute.xlu0 %42
  %v48 = vunpack.c.l.b16 %v15
  %v49 = vunpack.c.l.b16 %v16
  %v50 = vunpack.c.l.b16 %v17
  %v51 = vpack.c.b16 %v49, %v48
  %v52 = vpack.c.b16 %v50, %v50
  %v62 = vunpack.c.l.b16 %v18
  %v63 = vunpack.c.l.b16 %v19
  %v64 = vunpack.c.l.b16 %v20
  %v65 = vunpack.c.l.b16 %v21
  %v66 = vunpack.c.l.b16 %v22
  %v67 = vunpack.c.l.b16 %v23
  %v68 = vunpack.c.l.b16 %v24
  %v69 = vunpack.c.l.b16 %v25
  %v70 = vunpack.c.l.b16 %v26
  %v71 = vpack.c.b16 %v63, %v62
  %v72 = vpack.c.b16 %v65, %v64
  %v73 = vpack.c.b16 %v67, %v66
  %v74 = vpack.c.b16 %v69, %v68
  %v75 = vpack.c.b16 %v70, %v70
  %vm80 = vcmask 588800
  %v82 = vsel %vm80, %v51, 0
  %v85 = vsel %vm80, %v52, 0
  %vm87 = vcmask 1043456
  %v89 = vsel %vm87, %v75, 0
  %91 = vmatprep.subr.bf16.mxu0 0
  %92 = vmatpush1.bf16.msra.mxu0 0
  %93 = vmatprep.subr.bf16.mxu0 0
  %94 = vmatpush1.bf16.msra.mxu0 0
  %95 = vmatprep.subr.bf16.mxu0 0
  %96 = vmatpush1.bf16.msra.mxu0 0
  %97 = vmatprep.subr.bf16.mxu0 0
  %98 = vmatpush1.bf16.msra.mxu0 %v89
  %99 = vmatprep.subr.bf16.mxu0 0
  %100 = vmatpush1.bf16.msra.mxu0 %v74
  %101 = vmatprep.subr.bf16.mxu0 0
  %102 = vmatpush1.bf16.msra.mxu0 %v73
  %103 = vmatprep.subr.bf16.mxu0 0
  %104 = vmatpush1.bf16.msra.mxu0 %v72
  %105 = vmatprep.subr.bf16.mxu0 0
  %106 = vmatpush1.bf16.msra.mxu0 %v71
  %107 = vmatprep.subr.bf16.mxu0 0
  %108 = vmatpush2.bf16.msra.mxu0 0
  %109 = vmatprep.subr.bf16.mxu0 0
  %110 = vmatpush2.bf16.msra.mxu0 0
  %111 = vmatprep.subr.bf16.mxu0 0
  %112 = vmatpush2.bf16.msra.mxu0 0
  %113 = vmatprep.subr.bf16.mxu0 0
  %114 = vmatpush2.bf16.msra.mxu0 0
  %115 = vmatprep.subr.bf16.mxu0 0
  %116 = vmatpush2.bf16.msra.mxu0 0
  %117 = vmatprep.subr.bf16.mxu0 0
  %118 = vmatpush2.bf16.msra.mxu0 0
  %119 = vmatprep.subr.bf16.mxu0 0
  %120 = vmatpush2.bf16.msra.mxu0 0
  %121 = vmatprep.subr.bf16.mxu0 0
  %122 = vmatpush2.bf16.msra.mxu0 0
  %123 = vmatprep.mubr.bf16.mxu0 0
  %124 = vmatmul.mubr.bf16.gmra.mxu0 %v82
  %v125 = vpop.f32.mrf.mxu0
  %v126 = vadd.f32 %v33, %v125
  %v127 = vpop.f32.mrf.mxu0
  %v128 = vpop.f32.mrf.mxu0
  %v129 = vadd.f32 %v38, %v128
  %v130 = vpop.f32.mrf.mxu0
  %131 = vmatprep.mubr.bf16.mxu0 0
  %132 = vmatmul.mubr.bf16.gmra.mxu0 %v85
  %v133 = vpop.f32.mrf.mxu0
  %v134 = vadd.f32 %v43, %v133
  %v135 = vpop.f32.mrf.mxu0
  %v136 = vpop.f32.mrf.mxu0
  %v137 = vpop.f32.mrf.mxu0
  %138 = vdwg.mxu0
  %vm139 = vcmask 261120
  %140 = vst.msk [vmem:[%s3] sm:$0xff] %vm139, %v126
  %141 = vst.msk [vmem:[%s3 + $0x8] sm:$0xff] %vm139, %v129
  %142 = vst.msk [vmem:[%s3 + $0x10] sm:$0xff] %vm139, %v134
  // Predicated region
  $region14: #{forward.48} parent=0 // pred_check
    _
  $region15: #{forward.48} parent=0 // pred_check_branch
    %144 = sbr.rel (0) target = $region17
  $region16: #{forward.48} parent=0 // pred_region
    _
  $region17: #{forward.48} parent=0 // pred_fallthru
    _
  // Predicated region
  $region18: #{forward.48} parent=0 // pred_check
    _
  $region19: #{forward.48} parent=0 // pred_check_branch
    %146 = sbr.rel (0) target = $region21
  $region20: #{forward.48} parent=0 // pred_region
    _
  $region21: #{forward.48} parent=0 // pred_fallthru
    _

// kernel: forward.49
$region0: #{forward.49}
  #allocation0 [shape = 'u32[]', space=smem, size = 0x4, offset = 0x4, fixed_abs, tag = 'smem constant byte address 0x4 - core index']
  #allocation1 [shape = 'u32[144,128]{1,0:T(1,128)}', space=vmem, size = 0x12000, scoped, tag = 'internal scratch']
  %s0 = inlined_call_operand.vmem [shape: f32[1,128], index: 0, kind: input, shape index: {}]
  %s1 = inlined_call_operand.vmem [shape: f32[2,128], index: 1, kind: input, shape index: {}]
  %s2 = inlined_call_operand.vmem [shape: f32[2,128], index: 2, kind: input, shape index: {}]
  %s3 = inlined_call_operand.vmem [shape: f32[2,128], index: 3, kind: input, shape index: {}]
  %s4 = inlined_call_operand.vmem [shape: f32[1,128], index: 4, kind: output, shape index: {}]
  %s5 = sld [smem:[#allocation0]]
  $region26: #{forward.49} parent=0
    _
  %s7 = ssub.s32 1, %s5
  %s8 = scalar_select 0, %s7, %s5
  // Predicated region
  $region2: #{forward.49} parent=0 // pred_check
    _
  $region3: #{forward.49} parent=0 // pred_check_branch
    %10 = sbr.rel (0) target = $region5
  $region4: #{forward.49} parent=0 // pred_region
    _
  $region5: #{forward.49} parent=0 // pred_fallthru
    _
  // Predicated region
  $region6: #{forward.49} parent=0 // pred_check
    _
  $region7: #{forward.49} parent=0 // pred_check_branch
    %12 = sbr.rel (0) target = $region9
  $region8: #{forward.49} parent=0 // pred_region
    _
  $region9: #{forward.49} parent=0 // pred_fallthru
    _
  // Predicated region
  $region10: #{forward.49} parent=0 // pred_check
    _
  $region11: #{forward.49} parent=0 // pred_check_branch
    %14 = sbr.rel (0) target = $region13
  $region12: #{forward.49} parent=0 // pred_region
    _
  $region13: #{forward.49} parent=0 // pred_fallthru
    _
  // Predicated region
  $region14: #{forward.49} parent=0 // pred_check
    _
  $region15: #{forward.49} parent=0 // pred_check_branch
    %16 = sbr.rel (0) target = $region17
  $region16: #{forward.49} parent=0 // pred_region
    _
  $region17: #{forward.49} parent=0 // pred_fallthru
    _
  %v17 = vld [vmem:[%s0] sm:$0x1]
  %v18 = vld [vmem:[%s1] sm:$0x3]
  %v19 = vld [vmem:[%s2] sm:$0x3]
  %v20 = vmax.f32 %v19, -7.0
  %v21 = vld [vmem:[%s3] sm:$0x3]
  %vm22 = vcmask 1041408
  %v23 = vsel %vm22, %v21, -inf
  %v24 = vrot.slane %v23, 4
  %v25 = vmax.f32 %v23, %v24
  %v26 = vrot.slane %v25, 2
  %v27 = vmax.f32 %v25, %v26
  %v28 = vrot.slane %v27, 1
  %v29 = vmax.f32 %v27, %v28
  %v30 = vsub.f32 %v21, %v29
  %v31 = vmul.f32 %v30, 1.442695
  %v32 = vpow.pop %v31
  %v33 = vsub.f32 0.0, %v20
  %v34 = vmul.f32 %v33, 1.442695
  %v35 = vpow.pop %v34
  %v36 = vadd.f32 %v17, 0.14285715
  %v38 = vlaneseq
  %v39 = vshrl.u32 %v38, 7
  %v40 = vsub.s32 0, %v39
  %v41 = vrot.slane %v36, %v40
  %v43 = vsub.f32 %v41, %v18
  %v44 = vmul.f32 %v43, %v35
  %v45 = vxor.u32 %v44, 2147483648
  %v46 = vmul.f32 %v45, 1.442695
  %v47 = vpow.pop %v46
  %v48 = vadd.f32 %v47, 1.0
  %v49 = vrcp.pop %v48
  %v50 = vmul.f32 1.0, %v49
  %v51 = vsub.f32 %v17, 0.14285715
  %v53 = vlaneseq
  %v54 = vshrl.u32 %v53, 7
  %v55 = vsub.s32 0, %v54
  %v56 = vrot.slane %v51, %v55
  %v58 = vsub.f32 %v56, %v18
  %v59 = vmul.f32 %v58, %v35
  %v60 = vxor.u32 %v59, 2147483648
  %v61 = vmul.f32 %v60, 1.442695
  %v62 = vpow.pop %v61
  %v63 = vadd.f32 %v62, 1.0
  %v64 = vrcp.pop %v63
  %v65 = vmul.f32 1.0, %v64
  %vm66 = vcmp.le.f32.partialorder %v17, -0.85714287
  %vm67 = vcmp.ge.f32.partialorder %v17, 0.85714287
  %v68 = vsub.f32 1.0, %v65
  %v69 = vsub.f32 %v50, %v65
  %v70 = vsel %vm67, 1, 0
  %v71 = vlaneseq
  %v72 = vshrl.u32 %v71, 7
  %v73 = vsub.s32 0, %v72
  %v74 = vrot.slane %v70, %v73
  %vm75 = vcmp.eq.s32.totalorder %v74, 1
  %v76 = vsel %vm75, %v68, %v69
  %v77 = vsel %vm66, 1, 0
  %v78 = vlaneseq
  %v79 = vshrl.u32 %v78, 7
  %v80 = vsub.s32 0, %v79
  %v81 = vrot.slane %v77, %v80
  %vm82 = vcmp.eq.s32.totalorder %v81, 1
  %v83 = vsel %vm82, %v50, %v76
  %v84 = vmul.f32 %v32, %v83
  %v85 = vsel %vm22, %v84, 0.0
  %v86 = vrot.slane %v85, 4
  %v87 = vadd.f32 %v85, %v86
  %v88 = vrot.slane %v87, 2
  %v89 = vadd.f32 %v87, %v88
  %v90 = vrot.slane %v89, 1
  %v91 = vadd.f32 %v89, %v90
  %v92 = vsel %vm22, %v32, 0.0
  %v93 = vrot.slane %v92, 4
  %v94 = vadd.f32 %v92, %v93
  %v95 = vrot.slane %v94, 2
  %v96 = vadd.f32 %v94, %v95
  %v97 = vrot.slane %v96, 1
  %v98 = vadd.f32 %v96, %v97
  %v99 = vrcp.pop %v98
  %v100 = vmul.f32 %v91, %v99
  %v101 = vadd.f32 %v100, 1e-10
  %v102 = vlog2.pop %v101
  %v103 = vmul.f32 %v102, 0.6931472
  %v104 = vsub.f32 0.0, %v103
  %105 = vst [vmem:[%s4] sm:$0x1] %v104
  // Predicated region
  $region18: #{forward.49} parent=0 // pred_check
    _
  $region19: #{forward.49} parent=0 // pred_check_branch
    %107 = sbr.rel (0) target = $region21
  $region20: #{forward.49} parent=0 // pred_region
    _
  $region21: #{forward.49} parent=0 // pred_fallthru
    _
  // Predicated region
  $region22: #{forward.49} parent=0 // pred_check
    _
  $region23: #{forward.49} parent=0 // pred_check_branch
    %109 = sbr.rel (0) target = $region25
  $region24: #{forward.49} parent=0 // pred_region
    _
  $region25: #{forward.49} parent=0 // pred_fallthru
    _

</llo_original>
